<compile_context>
chip_gen: v7x
topology: tpu7x:2x2x1
jax: 0.10.0
libtpu: 0.0.40
codegen_flags: <defaults>
</compile_context>

<pallas_src>
import functools
import math

import jax
import jax.numpy as jnp
from jax import lax
from jax.experimental import pallas as pl
from jax.experimental.pallas import tpu as pltpu


# ----------------------------------------------------------------------------
# Pallas kernel: fused Q/K projection + QK^T + masked softmax + Linear(50->128)
# ----------------------------------------------------------------------------
def _attn_kernel(x_ref, bias_ref, wcat_ref, wl_ref, out_ref, *, h, s_valid):
    # x_ref    : (1, S_pad, 2H)  [text | embedding] lanes, zero-padded rows
    # bias_ref : (1, 1, 2H)      [bq + pe[b] | bk + pe[b]]
    # wcat_ref : (2H, 2H)        block-diag [[Wq^T, 0], [0, Wk^T]]
    # wl_ref   : (S_pad, OUT_PAD) Wl^T (+ bl folded in), zero-padded
    # out_ref  : (1, S_pad, OUT_PAD)
    x = x_ref[0]                                                   # (S_pad, 2H)

    # One MXU matmul produces Q in lanes [0, H) and K in lanes [H, 2H).
    qk = jnp.dot(x, wcat_ref[...],
                 preferred_element_type=jnp.float32) + bias_ref[0]  # (S_pad, 2H)
    q = qk[:, :h]                                                   # (S_pad, H)
    k = qk[:, h:2 * h]                                              # (S_pad, H)

    # weight_score = Q @ K^T (contract trailing feature dims, no .T materialized)
    s = lax.dot_general(q, k, (((1,), (1,)), ((), ())),
                        preferred_element_type=jnp.float32)         # (S_pad, S_pad)

    # Mask the zero-padded key columns before softmax.
    col = lax.broadcasted_iota(jnp.int32, s.shape, 1)
    s = jnp.where(col < s_valid, s, -1e30)

    # Softmax over the last dim (exact division -> rows sum to exactly 1,
    # which makes the folded output bias exact).
    s = s - jnp.max(s, axis=-1, keepdims=True)
    e = jnp.exp(s)
    p = e / jnp.sum(e, axis=-1, keepdims=True)

    # weight_prob = Linear(50, 100): bias already folded into wl_ref rows.
    out_ref[0] = jnp.dot(p, wl_ref[...], preferred_element_type=jnp.float32)


def attention_scores(xcat, bias_cat, wcat, wl_fused, B, S, S_pad, H, OUT_PAD):
    """Fused Pallas kernel. Returns padded weight_prob of shape (B, S_pad, OUT_PAD)."""
    flops = 2 * (B * S_pad * (2 * H) * (2 * H)        # fused projection
                 + B * S_pad * S_pad * H              # QK^T
                 + B * S_pad * S_pad * OUT_PAD)       # output Linear
    bytes_accessed = 4 * (B * S_pad * 2 * H + B * 2 * H + (2 * H) * (2 * H)
                          + S_pad * OUT_PAD + B * S_pad * OUT_PAD)
    return pl.pallas_call(
        functools.partial(_attn_kernel, h=H, s_valid=S),
        out_shape=jax.ShapeDtypeStruct((B, S_pad, OUT_PAD), jnp.float32),
        grid=(B,),
        in_specs=[
            pl.BlockSpec((1, S_pad, 2 * H), lambda b: (b, 0, 0)),   # [text|emb]
            pl.BlockSpec((1, 1, 2 * H), lambda b: (b, 0, 0)),       # per-batch bias
            pl.BlockSpec((2 * H, 2 * H), lambda b: (0, 0)),         # block-diag W
            pl.BlockSpec((S_pad, OUT_PAD), lambda b: (0, 0)),       # Wl^T (+ bl)
        ],
        out_specs=pl.BlockSpec((1, S_pad, OUT_PAD), lambda b: (b, 0, 0)),
        compiler_params=pltpu.CompilerParams(
            dimension_semantics=("parallel",)),
        cost_estimate=pl.CostEstimate(flops=flops,
                                      transcendentals=B * S_pad * S_pad,
                                      bytes_accessed=bytes_accessed),
    )(xcat, bias_cat, wcat, wl_fused)


# ----------------------------------------------------------------------------
# Glue: positional-encoding rows, deterministic k-means (replaces joblib model)
# ----------------------------------------------------------------------------
def make_positional_encoding_rows(n_rows, d_model):
    # Only the first `n_rows` rows of the torch buffer are ever used (pe[:B]),
    # broadcast over the sequence dim (faithful to the original quirky code).
    position = jnp.arange(0, n_rows, dtype=jnp.float32)[:, None]
    div_term = jnp.exp(jnp.arange(0, d_model, 2, dtype=jnp.float32)
                       * -(math.log(10000.0) / d_model))
    pe = jnp.zeros((n_rows, d_model), dtype=jnp.float32)
    pe = pe.at[:, 0::2].set(jnp.sin(position * div_term))
    pe = pe.at[:, 1::2].set(jnp.cos(position * div_term))
    return pe[:, None, :]   # (n_rows, 1, d_model)


# TODO(synk): original code loads a pretrained sklearn KMeans via joblib and
# calls fit_predict; replaced with a deterministic in-script Lloyd k-means (K=2).
def kmeans_fit_predict(points, n_clusters=2, n_iter=10):
    ssum = points.sum(-1)
    c0 = points[jnp.argmin(ssum)]
    c1 = points[jnp.argmax(ssum)]
    centroids = jnp.stack([c0, c1])  # (K, 2)

    def step(_, c):
        d = jnp.sum((points[:, None, :] - c[None, :, :]) ** 2, axis=-1)  # (N, K)
        labels = jnp.argmin(d, axis=-1)
        onehot = jax.nn.one_hot(labels, n_clusters, dtype=jnp.float32)   # (N, K)
        counts = onehot.sum(0)[:, None]
        new_c = (onehot.T @ points) / jnp.maximum(counts, 1.0)
        return jnp.where(counts > 0, new_c, c)

    centroids = lax.fori_loop(0, n_iter, step, centroids)
    d = jnp.sum((points[:, None, :] - centroids[None, :, :]) ** 2, axis=-1)
    return jnp.argmin(d, axis=-1)


def self_attention_t_forward(text_embedding, embedding, params):
    B, S, H = text_embedding.shape
    OUT = params["wl"].shape[0]      # 100
    OUT_PAD = 128                    # lane-dense output stores
    S_PAD = 64                       # sublane-aligned row count (50 -> 64)

    # PositionalEncoding: pe[:B] is one row per *batch*, broadcast over S.
    # Dropout(p=0.1) is inference-mode identity.
    pe_rows = make_positional_encoding_rows(B, H)                        # (B, 1, H)
    bias_q = params["bq"][None, None, :] + pe_rows                       # (B, 1, H)
    bias_k = params["bk"][None, None, :] + pe_rows                       # (B, 1, H)
    bias_cat = jnp.concatenate([bias_q, bias_k], axis=-1)                # (B, 1, 2H)

    # Lane-concatenated, row-padded input: [text | embedding], rows 50..63 zero.
    xcat = jnp.zeros((B, S_PAD, 2 * H), jnp.float32)
    xcat = xcat.at[:, :S, :H].set(text_embedding)
    xcat = xcat.at[:, :S, H:].set(embedding)

    # Block-diagonal fused projection weight (input-major).
    wcat = jnp.zeros((2 * H, 2 * H), jnp.float32)
    wcat = wcat.at[:H, :H].set(params["wq"].T)
    wcat = wcat.at[H:, H:].set(params["wk"].T)

    # Output Linear weight, transposed + padded; bias folded in (softmax rows
    # sum to 1, so adding bl to every real row of Wl^T is exact).
    wl_fused = jnp.zeros((S_PAD, OUT_PAD), jnp.float32)
    wl_fused = wl_fused.at[:S, :OUT].set(params["wl"].T + params["bl"][None, :])

    out_pad = attention_scores(xcat, bias_cat, wcat, wl_fused,
                               B, S, S_PAD, H, OUT_PAD)                  # (B, 64, 128)
    weight_prob = out_pad[:, :S, :OUT]                                   # (B, 50, 100)

    pts = weight_prob.reshape(-1, 2)                                     # (B*50*50, 2)
    labels = kmeans_fit_predict(pts)                                     # (B*50*50,)
    adj_matrix = labels.reshape(B, 50, 50).astype(jnp.float32)
    return adj_matrix


# ----------------------------------------------------------------------------
# Main
# ----------------------------------------------------------------------------
if __name__ == "__main__":
    B = 2
    S = 50          # forced by Linear(50, 100) and the (b, 50, 50) reshape
    H = 32          # hidden_size == TEXT_DIM

    key = jax.random.PRNGKey(0)
    keys = jax.random.split(key, 8)

    # deterministic parameter init (nn.Linear shapes: W=(out,in), b=(out,))
    bound_h = 1.0 / math.sqrt(H)
    bound_l = 1.0 / math.sqrt(S)
    params = {
        "wq": jax.random.uniform(keys[0], (H, H), jnp.float32, -bound_h, bound_h),
        "bq": jax.random.uniform(keys[1], (H,), jnp.float32, -bound_h, bound_h),
        "wk": jax.random.uniform(keys[2], (H, H), jnp.float32, -bound_h, bound_h),
        "bk": jax.random.uniform(keys[3], (H,), jnp.float32, -bound_h, bound_h),
        "wl": jax.random.uniform(keys[4], (100, S), jnp.float32, -bound_l, bound_l),
        "bl": jax.random.uniform(keys[5], (100,), jnp.float32, -bound_l, bound_l),
    }

    text_embedding = jax.random.normal(keys[6], (B, S, H), jnp.float32)
    embedding = jax.random.normal(keys[7], (B, S, H), jnp.float32)

    forward = jax.jit(self_attention_t_forward)
    adj = forward(text_embedding, embedding, params)
    jax.block_until_ready(adj)
    assert adj.shape == (B, 50, 50)
    print("KERNEL_OK")
</pallas_src>

<mosaic_0001>
module attributes {stable_mosaic.version = 11 : i64} {
  func.func @_attn_kernel(%arg0: i32, %arg1: memref<1x64x64xf32, #tpu.memory_space<vmem>>, %arg2: memref<1x1x64xf32, #tpu.memory_space<vmem>>, %arg3: memref<64x64xf32, #tpu.memory_space<vmem>>, %arg4: memref<64x128xf32, #tpu.memory_space<vmem>>, %arg5: memref<1x64x128xf32, #tpu.memory_space<vmem>>) attributes {dimension_semantics = [#tpu.dimension_semantics<parallel>], iteration_bounds = array<i64: 2>, scalar_prefetch = 0 : i64, scratch_operands = 0 : i64, tpu.core_type = #tpu.core_type<tc>, window_params = [{transform_indices = @transform_0, window_bounds = array<i64: 1, 64, 64>}, {transform_indices = @transform_1, window_bounds = array<i64: 1, 1, 64>}, {pipeline_mode = #tpu.pipeline_mode<synchronous>, transform_indices = @transform_2, window_bounds = array<i64: 64, 64>}, {pipeline_mode = #tpu.pipeline_mode<synchronous>, transform_indices = @transform_3, window_bounds = array<i64: 64, 128>}, {transform_indices = @transform_4, window_bounds = array<i64: 1, 64, 128>}]} {
    %c0 = arith.constant 0 : index
    %c0_0 = arith.constant 0 : index
    %c0_1 = arith.constant 0 : index
    %0 = vector.load %arg1[%c0, %c0_0, %c0_1] : memref<1x64x64xf32, #tpu.memory_space<vmem>>, vector<1x64x64xf32>
    %1 = vector.shape_cast %0 : vector<1x64x64xf32> to vector<64x64xf32>
    %c0_2 = arith.constant 0 : index
    %c0_3 = arith.constant 0 : index
    %2 = vector.load %arg3[%c0_2, %c0_3] : memref<64x64xf32, #tpu.memory_space<vmem>>, vector<64x64xf32>
    %cst = arith.constant dense<0.000000e+00> : vector<64x64xf32>
    %3 = tpu.matmul %1, %2, %cst {dimension_numbers = #tpu.dot_dimension_numbers<[1], [0], [0], [1], [0, 0, 1, 1], [], []>} : vector<64x64xf32>, vector<64x64xf32>, vector<64x64xf32> -> vector<64x64xf32>
    %c0_4 = arith.constant 0 : index
    %c0_5 = arith.constant 0 : index
    %c0_6 = arith.constant 0 : index
    %4 = vector.load %arg2[%c0_4, %c0_5, %c0_6] : memref<1x1x64xf32, #tpu.memory_space<vmem>>, vector<1x1x64xf32>
    %5 = vector.shape_cast %4 : vector<1x1x64xf32> to vector<1x64xf32>
    %6 = vector.broadcast %5 : vector<1x64xf32> to vector<64x64xf32>
    %7 = arith.addf %3, %6 : vector<64x64xf32>
    %8 = vector.extract_strided_slice %7 {offsets = [0, 0], sizes = [64, 32], strides = [1, 1]} : vector<64x64xf32> to vector<64x32xf32>
    %9 = vector.extract_strided_slice %7 {offsets = [0, 32], sizes = [64, 32], strides = [1, 1]} : vector<64x64xf32> to vector<64x32xf32>
    %cst_7 = arith.constant dense<0.000000e+00> : vector<64x64xf32>
    %10 = tpu.matmul %8, %9, %cst_7 {dimension_numbers = #tpu.dot_dimension_numbers<[1], [1], [0], [0], [0, 0, 1, 0], [], []>} : vector<64x32xf32>, vector<64x32xf32>, vector<64x64xf32> -> vector<64x64xf32>
    %11 = tpu.iota {dimensions = array<i32: 1>} : vector<64x64xi32>
    %c50_i32 = arith.constant 50 : i32
    %12 = vector.broadcast %c50_i32 : i32 to vector<64x64xi32>
    %13 = arith.cmpi slt, %11, %12 : vector<64x64xi32>
    %cst_8 = arith.constant -1.000000e+30 : f32
    %14 = vector.broadcast %cst_8 : f32 to vector<64x64xf32>
    %15 = arith.select %13, %10, %14 : vector<64x64xi1>, vector<64x64xf32>
    %cst_9 = arith.constant dense<0xFF800000> : vector<64xf32>
    %16 = vector.multi_reduction <maximumf>, %15, %cst_9 [1] : vector<64x64xf32> to vector<64xf32>
    %17 = vector.shape_cast %16 : vector<64xf32> to vector<64x1xf32>
    %18 = vector.broadcast %17 : vector<64x1xf32> to vector<64x64xf32>
    %19 = arith.subf %15, %18 : vector<64x64xf32>
    %20 = math.exp %19 : vector<64x64xf32>
    %cst_10 = arith.constant dense<0.000000e+00> : vector<64xf32>
    %21 = vector.multi_reduction <add>, %20, %cst_10 [1] : vector<64x64xf32> to vector<64xf32>
    %22 = vector.shape_cast %21 : vector<64xf32> to vector<64x1xf32>
    %23 = vector.broadcast %22 : vector<64x1xf32> to vector<64x64xf32>
    %24 = arith.divf %20, %23 : vector<64x64xf32>
    %c0_11 = arith.constant 0 : index
    %c0_12 = arith.constant 0 : index
    %25 = vector.load %arg4[%c0_11, %c0_12] : memref<64x128xf32, #tpu.memory_space<vmem>>, vector<64x128xf32>
    %cst_13 = arith.constant dense<0.000000e+00> : vector<64x128xf32>
    %26 = tpu.matmul %24, %25, %cst_13 {dimension_numbers = #tpu.dot_dimension_numbers<[1], [0], [0], [1], [0, 0, 1, 1], [], []>} : vector<64x64xf32>, vector<64x128xf32>, vector<64x128xf32> -> vector<64x128xf32>
    %c0_14 = arith.constant 0 : index
    %c0_15 = arith.constant 0 : index
    %c0_16 = arith.constant 0 : index
    %27 = vector.load %arg5[%c0_14, %c0_15, %c0_16] : memref<1x64x128xf32, #tpu.memory_space<vmem>>, vector<1x64x128xf32>
    %28 = vector.shape_cast %27 : vector<1x64x128xf32> to vector<64x128xf32>
    %29 = vector.shape_cast %26 : vector<64x128xf32> to vector<1x64x128xf32>
    tpu.vector_store %arg5[%c0_14, %c0_15, %c0_16], %29 {strides = array<i32>} : memref<1x64x128xf32, #tpu.memory_space<vmem>>, vector<1x64x128xf32>,
    return
  }
  func.func @transform_0(%arg0: i32) -> (i32, i32, i32) {
    %c0_i32 = arith.constant 0 : i32
    %c0_i32_0 = arith.constant 0 : i32
    %c0_i32_1 = arith.constant 0 : i32
    return %arg0, %c0_i32, %c0_i32_0 : i32, i32, i32
  }
  func.func @transform_1(%arg0: i32) -> (i32, i32, i32) {
    %c0_i32 = arith.constant 0 : i32
    %c0_i32_0 = arith.constant 0 : i32
    %c0_i32_1 = arith.constant 0 : i32
    return %arg0, %c0_i32, %c0_i32_0 : i32, i32, i32
  }
  func.func @transform_2(%arg0: i32) -> (i32, i32) {
    %c0_i32 = arith.constant 0 : i32
    %c0_i32_0 = arith.constant 0 : i32
    %c0_i32_1 = arith.constant 0 : i32
    return %c0_i32, %c0_i32_0 : i32, i32
  }
  func.func @transform_3(%arg0: i32) -> (i32, i32) {
    %c0_i32 = arith.constant 0 : i32
    %c0_i32_0 = arith.constant 0 : i32
    %c0_i32_1 = arith.constant 0 : i32
    return %c0_i32, %c0_i32_0 : i32, i32
  }
  func.func @transform_4(%arg0: i32) -> (i32, i32, i32) {
    %c0_i32 = arith.constant 0 : i32
    %c0_i32_0 = arith.constant 0 : i32
    %c0_i32_1 = arith.constant 0 : i32
    return %arg0, %c0_i32, %c0_i32_0 : i32, i32, i32
  }
}

</mosaic_0001>

<llo_original>
// kernel: sub.22
$region0: #{sub.22}
  %s0 = inlined_call_operand.vmem [shape: f32[2,50,100], index: 0, kind: input, shape index: {}]
  %s1 = inlined_call_operand.vmem [shape: f32[5000,2], index: 1, kind: output, shape index: {}]
  %v2 = vld [vmem:[%s0] sm:$0xff]
  %vm3 = vcmask 15360
  %4 = vst.msk [vmem:[%s1] ss:$50 sm:$0xff] %vm3, %v2
  %s5 = scalar_lea.vmem %s0, 8
  %v6 = vld [vmem:[%s5] sm:$0xff]
  %vm7 = vcmask 15360
  %s8 = scalar_lea.vmem %s1, 400
  %9 = vst.msk [vmem:[%s8] ss:$50 sm:$0xff] %vm7, %v6
  %s10 = scalar_lea.vmem %s0, 16
  %v11 = vld [vmem:[%s10] sm:$0xff]
  %vm12 = vcmask 15360
  %s13 = scalar_lea.vmem %s1, 800
  %14 = vst.msk [vmem:[%s13] ss:$50 sm:$0xff] %vm12, %v11
  %s15 = scalar_lea.vmem %s0, 24
  %v16 = vld [vmem:[%s15] sm:$0xff]
  %vm17 = vcmask 15360
  %s18 = scalar_lea.vmem %s1, 1200
  %19 = vst.msk [vmem:[%s18] ss:$50 sm:$0xff] %vm17, %v16
  %s20 = scalar_lea.vmem %s0, 32
  %v21 = vld [vmem:[%s20] sm:$0xff]
  %vm22 = vcmask 15360
  %s23 = scalar_lea.vmem %s1, 1600
  %24 = vst.msk [vmem:[%s23] ss:$50 sm:$0xff] %vm22, %v21
  %s25 = scalar_lea.vmem %s0, 40
  %v26 = vld [vmem:[%s25] sm:$0xff]
  %vm27 = vcmask 15360
  %s28 = scalar_lea.vmem %s1, 2000
  %29 = vst.msk [vmem:[%s28] ss:$50 sm:$0xff] %vm27, %v26
  %s30 = scalar_lea.vmem %s0, 48
  %v31 = vld [vmem:[%s30] sm:$0x3]
  %vm32 = vcmask 15360
  %s33 = scalar_lea.vmem %s1, 2400
  %34 = vst.msk [vmem:[%s33] ss:$50 sm:$0x3] %vm32, %v31
  %s35 = scalar_lea.vmem %s0, 56
  %v36 = vld [vmem:[%s35] sm:$0xff]
  %vm37 = vcmask 15360
  %s38 = scalar_lea.vmem %s1, 2500
  %39 = vst.msk [vmem:[%s38] ss:$50 sm:$0xff] %vm37, %v36
  %s40 = scalar_lea.vmem %s0, 64
  %v41 = vld [vmem:[%s40] sm:$0xff]
  %vm42 = vcmask 15360
  %s43 = scalar_lea.vmem %s1, 2900
  %44 = vst.msk [vmem:[%s43] ss:$50 sm:$0xff] %vm42, %v41
  %s45 = scalar_lea.vmem %s0, 72
  %v46 = vld [vmem:[%s45] sm:$0xff]
  %vm47 = vcmask 15360
  %s48 = scalar_lea.vmem %s1, 3300
  %49 = vst.msk [vmem:[%s48] ss:$50 sm:$0xff] %vm47, %v46
  %s50 = scalar_lea.vmem %s0, 80
  %v51 = vld [vmem:[%s50] sm:$0xff]
  %vm52 = vcmask 15360
  %s53 = scalar_lea.vmem %s1, 3700
  %54 = vst.msk [vmem:[%s53] ss:$50 sm:$0xff] %vm52, %v51
  %s55 = scalar_lea.vmem %s0, 88
  %v56 = vld [vmem:[%s55] sm:$0xff]
  %vm57 = vcmask 15360
  %s58 = scalar_lea.vmem %s1, 4100
  %59 = vst.msk [vmem:[%s58] ss:$50 sm:$0xff] %vm57, %v56
  %s60 = scalar_lea.vmem %s0, 96
  %v61 = vld [vmem:[%s60] sm:$0xff]
  %vm62 = vcmask 15360
  %s63 = scalar_lea.vmem %s1, 4500
  %64 = vst.msk [vmem:[%s63] ss:$50 sm:$0xff] %vm62, %v61
  %s65 = scalar_lea.vmem %s0, 104
  %v66 = vld [vmem:[%s65] sm:$0x3]
  %vm67 = vcmask 15360
  %s68 = scalar_lea.vmem %s1, 4900
  %69 = vst.msk [vmem:[%s68] ss:$50 sm:$0x3] %vm67, %v66
  %v70 = vld.sshfl [vmem:[%s0] sm:$0xff pattern:$0xf6d4b290]
  %71 = vrot.lane.b32.xlu0 %v70, 126
  %v72 = vpop.permute.xlu0 %71
  %vm73 = vcmask 15360
  %s74 = scalar_lea.vmem %s1, 1
  %75 = vst.msk [vmem:[%s74] ss:$450 sm:$0x3] %vm73, %v72
  %s76 = scalar_lea.vmem %s1, 4294966497
  %77 = vst.msk [vmem:[%s76] ss:$450 sm:$0xc] %vm73, %v72
  %s78 = scalar_lea.vmem %s1, 4294965697
  %79 = vst.msk [vmem:[%s78] ss:$450 sm:$0x30] %vm73, %v72
  %s80 = scalar_lea.vmem %s1, 4294964897
  %81 = vst.msk [vmem:[%s80] ss:$450 sm:$0xc0] %vm73, %v72
  %s82 = scalar_lea.vmem %s0, 16
  %v83 = vld.sshfl [vmem:[%s82] sm:$0xff pattern:$0xf6d4b290]
  %84 = vrot.lane.b32.xlu0 %v83, 126
  %v85 = vpop.permute.xlu0 %84
  %vm86 = vcmask 15360
  %s87 = scalar_lea.vmem %s1, 801
  %88 = vst.msk [vmem:[%s87] ss:$450 sm:$0x3] %vm86, %v85
  %s89 = scalar_lea.vmem %s1, 1
  %90 = vst.msk [vmem:[%s89] ss:$450 sm:$0xc] %vm86, %v85
  %s91 = scalar_lea.vmem %s1, 4294966497
  %92 = vst.msk [vmem:[%s91] ss:$450 sm:$0x30] %vm86, %v85
  %s93 = scalar_lea.vmem %s1, 4294965697
  %94 = vst.msk [vmem:[%s93] ss:$450 sm:$0xc0] %vm86, %v85
  %s95 = scalar_lea.vmem %s0, 32
  %v96 = vld.sshfl [vmem:[%s95] sm:$0xff pattern:$0xf6d4b290]
  %97 = vrot.lane.b32.xlu0 %v96, 126
  %v98 = vpop.permute.xlu0 %97
  %vm99 = vcmask 15360
  %s100 = scalar_lea.vmem %s1, 1601
  %101 = vst.msk [vmem:[%s100] ss:$450 sm:$0x3] %vm99, %v98
  %s102 = scalar_lea.vmem %s1, 801
  %103 = vst.msk [vmem:[%s102] ss:$450 sm:$0xc] %vm99, %v98
  %s104 = scalar_lea.vmem %s1, 1
  %105 = vst.msk [vmem:[%s104] ss:$450 sm:$0x30] %vm99, %v98
  %s106 = scalar_lea.vmem %s1, 4294966497
  %107 = vst.msk [vmem:[%s106] ss:$450 sm:$0xc0] %vm99, %v98
  %s108 = scalar_lea.vmem %s0, 48
  %v109 = vld.sshfl [vmem:[%s108] sm:$0xff pattern:$0x888888f0]
  %s110 = scalar_lea.vmem %s0, 58
  %v111 = vld.sshfl [vmem:[%s110] sm:$0xff pattern:$0xb2907777]
  %vm112 = vcmask 1047555
  %v113 = vsel %vm112, %v111, %v109
  %114 = vrot.lane.b32.xlu0 %v113, 126
  %v115 = vpop.permute.xlu0 %114
  %vm116 = vcmask 15360
  %s117 = scalar_lea.vmem %s1, 2401
  %118 = vst.msk [vmem:[%s117] ss:$450 sm:$0x3] %vm116, %v115
  %s119 = scalar_lea.vmem %s1, 1601
  %120 = vst.msk [vmem:[%s119] ss:$450 sm:$0xc] %vm116, %v115
  %s121 = scalar_lea.vmem %s1, 801
  %122 = vst.msk [vmem:[%s121] ss:$450 sm:$0x30] %vm116, %v115
  %s123 = scalar_lea.vmem %s1, 1
  %124 = vst.msk [vmem:[%s123] ss:$450 sm:$0xc0] %vm116, %v115
  %s125 = scalar_lea.vmem %s0, 70
  %v126 = vld.sshfl [vmem:[%s125] sm:$0xff pattern:$0xf6d4b290]
  %127 = vrot.lane.b32.xlu0 %v126, 126
  %v128 = vpop.permute.xlu0 %127
  %vm129 = vcmask 15360
  %s130 = scalar_lea.vmem %s1, 3201
  %131 = vst.msk [vmem:[%s130] ss:$450 sm:$0x3] %vm129, %v128
  %s132 = scalar_lea.vmem %s1, 2401
  %133 = vst.msk [vmem:[%s132] ss:$450 sm:$0xc] %vm129, %v128
  %s134 = scalar_lea.vmem %s1, 1601
  %135 = vst.msk [vmem:[%s134] ss:$450 sm:$0x30] %vm129, %v128
  %s136 = scalar_lea.vmem %s1, 801
  %137 = vst.msk [vmem:[%s136] ss:$450 sm:$0xc0] %vm129, %v128
  %s138 = scalar_lea.vmem %s0, 86
  %v139 = vld.sshfl [vmem:[%s138] sm:$0xff pattern:$0xf6d4b290]
  %140 = vrot.lane.b32.xlu0 %v139, 126
  %v141 = vpop.permute.xlu0 %140
  %vm142 = vcmask 15360
  %s143 = scalar_lea.vmem %s1, 4001
  %144 = vst.msk [vmem:[%s143] ss:$450 sm:$0x3] %vm142, %v141
  %s145 = scalar_lea.vmem %s1, 3201
  %146 = vst.msk [vmem:[%s145] ss:$450 sm:$0xc] %vm142, %v141
  %s147 = scalar_lea.vmem %s1, 2401
  %148 = vst.msk [vmem:[%s147] ss:$450 sm:$0x30] %vm142, %v141
  %s149 = scalar_lea.vmem %s1, 1601
  %150 = vst.msk [vmem:[%s149] ss:$450 sm:$0xc0] %vm142, %v141
  %s151 = scalar_lea.vmem %s0, 102
  %s152 = smov 3
  %v153 = vld [vmem:[%s151] ss:$2 sm:%s152]
  %s154 = scalar_lea.vmem %s0, 1
  %v155 = vld.sshfl [vmem:[%s154] sm:$0xff pattern:$0x4b290777]
  %vm156 = vcmask 1047554
  %v157 = vsel %vm156, %v155, %v153
  %158 = vrot.lane.b32.xlu0 %v157, 126
  %v159 = vpop.permute.xlu0 %158
  %vm160 = vcmask 15360
  %s161 = scalar_lea.vmem %s1, 4801
  %162 = vst.msk [vmem:[%s161] ss:$100 sm:$0x3] %vm160, %v159
  %s163 = scalar_lea.vmem %s1, 1101
  %164 = vst.msk [vmem:[%s163] ss:$-350 sm:$0xc] %vm160, %v159
  %s165 = scalar_lea.vmem %s1, 1901
  %166 = vst.msk [vmem:[%s165] ss:$-350 sm:$0x30] %vm160, %v159
  %s167 = scalar_lea.vmem %s1, 2701
  %168 = vst.msk [vmem:[%s167] ss:$-350 sm:$0xc0] %vm160, %v159
  %s169 = scalar_lea.vmem %s0, 14
  %v170 = vld.sshfl [vmem:[%s169] sm:$0xff pattern:$0x7e5c3a]
  %v171 = vld [vmem:[%s0] sm:$0x80]
  %vm172 = vcmask 1047559
  %v173 = vsel %vm172, %v171, %v170
  %174 = vrot.lane.b32.xlu0 %v173, 126
  %v175 = vpop.permute.xlu0 %174
  %vm176 = vcmask 15360
  %s177 = scalar_lea.vmem %s1, 1201
  %178 = vst.msk [vmem:[%s177] ss:$-350 sm:$0x3] %vm176, %v175
  %s179 = scalar_lea.vmem %s1, 2001
  %180 = vst.msk [vmem:[%s179] ss:$-350 sm:$0xc] %vm176, %v175
  %s181 = scalar_lea.vmem %s1, 2801
  %182 = vst.msk [vmem:[%s181] ss:$-350 sm:$0xf0] %vm176, %v175
  %s183 = scalar_lea.vmem %s0, 30
  %v184 = vld.sshfl [vmem:[%s183] sm:$0xff pattern:$0x7e5c3a]
  %s185 = scalar_lea.vmem %s0, 16
  %v186 = vld [vmem:[%s185] sm:$0x80]
  %vm187 = vcmask 1047559
  %v188 = vsel %vm187, %v186, %v184
  %189 = vrot.lane.b32.xlu0 %v188, 126
  %v190 = vpop.permute.xlu0 %189
  %vm191 = vcmask 15360
  %s192 = scalar_lea.vmem %s1, 2001
  %193 = vst.msk [vmem:[%s192] ss:$-350 sm:$0x3] %vm191, %v190
  %s194 = scalar_lea.vmem %s1, 2801
  %195 = vst.msk [vmem:[%s194] ss:$-350 sm:$0xc] %vm191, %v190
  %s196 = scalar_lea.vmem %s1, 3601
  %197 = vst.msk [vmem:[%s196] ss:$-350 sm:$0xf0] %vm191, %v190
  %s198 = scalar_lea.vmem %s0, 49
  %v199 = vld.sshfl [vmem:[%s198] sm:$0xff pattern:$0x88888f0d]
  %s200 = scalar_lea.vmem %s0, 94
  %s201 = smov 48
  %v202 = vld [vmem:[%s200] ss:$-7 sm:%s201]
  %vm203 = vcmask 1045508
  %v204 = vsel %vm203, %v202, %v199
  %s205 = scalar_lea.vmem %s0, 88
  %s206 = smov 192
  %v207 = vld [vmem:[%s205] ss:$-7 sm:%s206]
  %vm208 = vcmask 1047558
  %v209 = vsel %vm208, %v207, %v204
  %210 = vrot.lane.b32.xlu0 %v209, 126
  %v211 = vpop.permute.xlu0 %210
  %vm212 = vcmask 15360
  %s213 = scalar_lea.vmem %s1, 2801
  %214 = vst.msk [vmem:[%s213] ss:$-350 sm:$0x3] %vm212, %v211
  %s215 = scalar_lea.vmem %s1, 3601
  %216 = vst.msk [vmem:[%s215] ss:$-350 sm:$0xc] %vm212, %v211
  %s217 = scalar_lea.vmem %s1, 4401
  %218 = vst.msk [vmem:[%s217] ss:$-350 sm:$0xf0] %vm212, %v211
  %s219 = scalar_lea.vmem %s0, 68
  %v220 = vld.sshfl [vmem:[%s219] sm:$0xff pattern:$0x7e5c3a]
  %s221 = scalar_lea.vmem %s0, 54
  %v222 = vld [vmem:[%s221] sm:$0x80]
  %vm223 = vcmask 1047559
  %v224 = vsel %vm223, %v222, %v220
  %225 = vrot.lane.b32.xlu0 %v224, 126
  %v226 = vpop.permute.xlu0 %225
  %vm227 = vcmask 15360
  %s228 = scalar_lea.vmem %s1, 3601
  %229 = vst.msk [vmem:[%s228] ss:$-350 sm:$0x3] %vm227, %v226
  %s230 = scalar_lea.vmem %s1, 4401
  %231 = vst.msk [vmem:[%s230] ss:$-350 sm:$0xc] %vm227, %v226
  %s232 = scalar_lea.vmem %s1, 5201
  %233 = vst.msk [vmem:[%s232] ss:$-350 sm:$0xf0] %vm227, %v226
  %s234 = scalar_lea.vmem %s0, 84
  %v235 = vld.sshfl [vmem:[%s234] sm:$0xff pattern:$0x7e5c3a]
  %s236 = scalar_lea.vmem %s0, 70
  %v237 = vld [vmem:[%s236] sm:$0x80]
  %vm238 = vcmask 1047559
  %v239 = vsel %vm238, %v237, %v235
  %240 = vrot.lane.b32.xlu0 %v239, 126
  %v241 = vpop.permute.xlu0 %240
  %vm242 = vcmask 15360
  %s243 = scalar_lea.vmem %s1, 4401
  %244 = vst.msk [vmem:[%s243] ss:$-350 sm:$0x3] %vm242, %v241
  %s245 = scalar_lea.vmem %s1, 5201
  %246 = vst.msk [vmem:[%s245] ss:$-350 sm:$0xc] %vm242, %v241
  %s247 = scalar_lea.vmem %s1, 6001
  %248 = vst.msk [vmem:[%s247] ss:$-350 sm:$0xf0] %vm242, %v241
  %s249 = scalar_lea.vmem %s0, 93
  %v250 = vld.sshfl [vmem:[%s249] sm:$0xff pattern:$0x7ca]
  %251 = vrot.lane.b32.xlu0 %v250, 126
  %v252 = vpop.permute.xlu0 %251
  %vm253 = vcmask 15360
  %s254 = scalar_lea.vmem %s1, 4851
  %255 = vst.msk [vmem:[%s254] ss:$100 sm:$0x3] %vm253, %v252
  %s256 = scalar_lea.vmem %s1, 5401
  %257 = vst.msk [vmem:[%s256] ss:$-350 sm:$0xc] %vm253, %v252
  %v258 = vld.sshfl [vmem:[%s0] sm:$0xff pattern:$0x6d4b2907]
  %259 = vrot.lane.b32.xlu0 %v258, 124
  %v260 = vpop.permute.xlu0 %259
  %vm261 = vcmask 15360
  %s262 = scalar_lea.vmem %s1, 352
  %263 = vst.msk [vmem:[%s262] ss:$-350 sm:$0x3] %vm261, %v260
  %s264 = scalar_lea.vmem %s1, 1152
  %265 = vst.msk [vmem:[%s264] ss:$-350 sm:$0xc] %vm261, %v260
  %s266 = scalar_lea.vmem %s1, 1952
  %267 = vst.msk [vmem:[%s266] ss:$-350 sm:$0x30] %vm261, %v260
  %s268 = scalar_lea.vmem %s1, 2752
  %269 = vst.msk [vmem:[%s268] ss:$-350 sm:$0xc0] %vm261, %v260
  %s270 = scalar_lea.vmem %s0, 16
  %v271 = vld.sshfl [vmem:[%s270] sm:$0xff pattern:$0x6d4b2907]
  %272 = vrot.lane.b32.xlu0 %v271, 124
  %v273 = vpop.permute.xlu0 %272
  %vm274 = vcmask 15360
  %s275 = scalar_lea.vmem %s1, 1152
  %276 = vst.msk [vmem:[%s275] ss:$-350 sm:$0x3] %vm274, %v273
  %s277 = scalar_lea.vmem %s1, 1952
  %278 = vst.msk [vmem:[%s277] ss:$-350 sm:$0xc] %vm274, %v273
  %s279 = scalar_lea.vmem %s1, 2752
  %280 = vst.msk [vmem:[%s279] ss:$-350 sm:$0x30] %vm274, %v273
  %s281 = scalar_lea.vmem %s1, 3552
  %282 = vst.msk [vmem:[%s281] ss:$-350 sm:$0xc0] %vm274, %v273
  %s283 = scalar_lea.vmem %s0, 32
  %v284 = vld.sshfl [vmem:[%s283] sm:$0xff pattern:$0x6d4b2907]
  %285 = vrot.lane.b32.xlu0 %v284, 124
  %v286 = vpop.permute.xlu0 %285
  %vm287 = vcmask 15360
  %s288 = scalar_lea.vmem %s1, 1952
  %289 = vst.msk [vmem:[%s288] ss:$-350 sm:$0x3] %vm287, %v286
  %s290 = scalar_lea.vmem %s1, 2752
  %291 = vst.msk [vmem:[%s290] ss:$-350 sm:$0xc] %vm287, %v286
  %s292 = scalar_lea.vmem %s1, 3552
  %293 = vst.msk [vmem:[%s292] ss:$-350 sm:$0x30] %vm287, %v286
  %s294 = scalar_lea.vmem %s1, 4352
  %295 = vst.msk [vmem:[%s294] ss:$-350 sm:$0xc0] %vm287, %v286
  %s296 = scalar_lea.vmem %s0, 48
  %v297 = vld.sshfl [vmem:[%s296] sm:$0xff pattern:$0x88888f0d]
  %s298 = scalar_lea.vmem %s0, 58
  %v299 = vld.sshfl [vmem:[%s298] sm:$0xff pattern:$0x29077777]
  %vm300 = vcmask 1047556
  %v301 = vsel %vm300, %v299, %v297
  %302 = vrot.lane.b32.xlu0 %v301, 124
  %v303 = vpop.permute.xlu0 %302
  %vm304 = vcmask 15360
  %s305 = scalar_lea.vmem %s1, 2752
  %306 = vst.msk [vmem:[%s305] ss:$-350 sm:$0x3] %vm304, %v303
  %s307 = scalar_lea.vmem %s1, 3552
  %308 = vst.msk [vmem:[%s307] ss:$-350 sm:$0xc] %vm304, %v303
  %s309 = scalar_lea.vmem %s1, 4352
  %310 = vst.msk [vmem:[%s309] ss:$-350 sm:$0x30] %vm304, %v303
  %s311 = scalar_lea.vmem %s1, 5152
  %312 = vst.msk [vmem:[%s311] ss:$-350 sm:$0xc0] %vm304, %v303
  %s313 = scalar_lea.vmem %s0, 70
  %v314 = vld.sshfl [vmem:[%s313] sm:$0xff pattern:$0x6d4b2907]
  %315 = vrot.lane.b32.xlu0 %v314, 124
  %v316 = vpop.permute.xlu0 %315
  %vm317 = vcmask 15360
  %s318 = scalar_lea.vmem %s1, 3552
  %319 = vst.msk [vmem:[%s318] ss:$-350 sm:$0x3] %vm317, %v316
  %s320 = scalar_lea.vmem %s1, 4352
  %321 = vst.msk [vmem:[%s320] ss:$-350 sm:$0xc] %vm317, %v316
  %s322 = scalar_lea.vmem %s1, 5152
  %323 = vst.msk [vmem:[%s322] ss:$-350 sm:$0x30] %vm317, %v316
  %s324 = scalar_lea.vmem %s1, 5952
  %325 = vst.msk [vmem:[%s324] ss:$-350 sm:$0xc0] %vm317, %v316
  %s326 = scalar_lea.vmem %s0, 86
  %v327 = vld.sshfl [vmem:[%s326] sm:$0xff pattern:$0x6d4b2907]
  %328 = vrot.lane.b32.xlu0 %v327, 124
  %v329 = vpop.permute.xlu0 %328
  %vm330 = vcmask 15360
  %s331 = scalar_lea.vmem %s1, 4352
  %332 = vst.msk [vmem:[%s331] ss:$-350 sm:$0x3] %vm330, %v329
  %s333 = scalar_lea.vmem %s1, 5152
  %334 = vst.msk [vmem:[%s333] ss:$-350 sm:$0xc] %vm330, %v329
  %s335 = scalar_lea.vmem %s1, 5952
  %336 = vst.msk [vmem:[%s335] ss:$-350 sm:$0x30] %vm330, %v329
  %s337 = scalar_lea.vmem %s1, 6752
  %338 = vst.msk [vmem:[%s337] ss:$-350 sm:$0xc0] %vm330, %v329
  %s339 = scalar_lea.vmem %s0, 102
  %s340 = smov 3
  %v341 = vld [vmem:[%s339] ss:$2 sm:%s340]
  %s342 = scalar_lea.vmem %s0, 1
  %v343 = vld.sshfl [vmem:[%s342] sm:$0xff pattern:$0xb2907eee]
  %vm344 = vcmask 1047554
  %v345 = vsel %vm344, %v343, %v341
  %346 = vrot.lane.b32.xlu0 %v345, 124
  %v347 = vpop.permute.xlu0 %346
  %vm348 = vcmask 15360
  %s349 = scalar_lea.vmem %s1, 4802
  %350 = vst.msk [vmem:[%s349] ss:$100 sm:$0x3] %vm348, %v347
  %s351 = scalar_lea.vmem %s1, 1452
  %352 = vst.msk [vmem:[%s351] ss:$-350 sm:$0x1c] %vm348, %v347
  %s353 = scalar_lea.vmem %s1, 2252
  %354 = vst.msk [vmem:[%s353] ss:$-350 sm:$0x60] %vm348, %v347
  %s355 = scalar_lea.vmem %s1, 595
  %356 = vst.msk [vmem:[%s355] sm:$0x80] %vm348, %v347
  %s357 = scalar_lea.vmem %s0, 17
  %v358 = vld.sshfl [vmem:[%s357] sm:$0xff pattern:$0xbbb2907e]
  %s359 = scalar_lea.vmem %s0, 4294967247
  %s360 = smov 192
  %v361 = vld [vmem:[%s359] ss:$9 sm:%s360]
  %vm362 = vcmask 1047558
  %v363 = vsel %vm362, %v361, %v358
  %364 = vrot.lane.b32.xlu0 %v363, 124
  %v365 = vpop.permute.xlu0 %364
  %vm366 = vcmask 15360
  %s367 = scalar_lea.vmem %s1, 1552
  %368 = vst.msk [vmem:[%s367] ss:$-350 sm:$0x7] %vm366, %v365
  %s369 = scalar_lea.vmem %s1, 2352
  %370 = vst.msk [vmem:[%s369] ss:$-350 sm:$0x18] %vm366, %v365
  %s371 = scalar_lea.vmem %s1, 7152
  %372 = vst.msk [vmem:[%s371] ss:$-1150 sm:$0x60] %vm366, %v365
  %s373 = scalar_lea.vmem %s1, 695
  %374 = vst.msk [vmem:[%s373] sm:$0x80] %vm366, %v365
  %s375 = scalar_lea.vmem %s0, 33
  %v376 = vld.sshfl [vmem:[%s375] sm:$0xff pattern:$0xbbb2907e]
  %s377 = scalar_lea.vmem %s0, 4294967263
  %s378 = smov 192
  %v379 = vld [vmem:[%s377] ss:$9 sm:%s378]
  %vm380 = vcmask 1047558
  %v381 = vsel %vm380, %v379, %v376
  %382 = vrot.lane.b32.xlu0 %v381, 124
  %v383 = vpop.permute.xlu0 %382
  %vm384 = vcmask 15360
  %s385 = scalar_lea.vmem %s1, 2352
  %386 = vst.msk [vmem:[%s385] ss:$-350 sm:$0x7] %vm384, %v383
  %s387 = scalar_lea.vmem %s1, 3152
  %388 = vst.msk [vmem:[%s387] ss:$-350 sm:$0x18] %vm384, %v383
  %s389 = scalar_lea.vmem %s1, 7952
  %390 = vst.msk [vmem:[%s389] ss:$-1150 sm:$0x60] %vm384, %v383
  %s391 = scalar_lea.vmem %s1, 1495
  %392 = vst.msk [vmem:[%s391] sm:$0x80] %vm384, %v383
  %s393 = scalar_lea.vmem %s0, 69
  %s394 = smov 3
  %v395 = vld [vmem:[%s393] ss:$-7 sm:%s394]
  %s396 = scalar_lea.vmem %s0, 49
  %v397 = vld.sshfl [vmem:[%s396] sm:$0xff pattern:$0x8888f000]
  %vm398 = vcmask 1044482
  %v399 = vsel %vm398, %v397, %v395
  %s400 = scalar_lea.vmem %s0, 211
  %s401 = smov 96
  %v402 = vld [vmem:[%s400] ss:$-29 sm:%s401]
  %vm403 = vcmask 1046533
  %v404 = vsel %vm403, %v402, %v399
  %s405 = scalar_lea.vmem %s0, 39
  %v406 = vld [vmem:[%s405] sm:$0x80]
  %vm407 = vcmask 1047559
  %v408 = vsel %vm407, %v406, %v404
  %409 = vrot.lane.b32.xlu0 %v408, 124
  %v410 = vpop.permute.xlu0 %409
  %vm411 = vcmask 15360
  %s412 = scalar_lea.vmem %s1, 3152
  %413 = vst.msk [vmem:[%s412] ss:$-350 sm:$0x7] %vm411, %v410
  %s414 = scalar_lea.vmem %s1, 3952
  %415 = vst.msk [vmem:[%s414] ss:$-350 sm:$0x18] %vm411, %v410
  %s416 = scalar_lea.vmem %s1, 8752
  %417 = vst.msk [vmem:[%s416] ss:$-1150 sm:$0x60] %vm411, %v410
  %s418 = scalar_lea.vmem %s1, 2295
  %419 = vst.msk [vmem:[%s418] sm:$0x80] %vm411, %v410
  %s420 = scalar_lea.vmem %s0, 71
  %v421 = vld.sshfl [vmem:[%s420] sm:$0xff pattern:$0xbbb2907e]
  %s422 = scalar_lea.vmem %s0, 5
  %s423 = smov 192
  %v424 = vld [vmem:[%s422] ss:$9 sm:%s423]
  %vm425 = vcmask 1047558
  %v426 = vsel %vm425, %v424, %v421
  %427 = vrot.lane.b32.xlu0 %v426, 124
  %v428 = vpop.permute.xlu0 %427
  %vm429 = vcmask 15360
  %s430 = scalar_lea.vmem %s1, 3952
  %431 = vst.msk [vmem:[%s430] ss:$-350 sm:$0x7] %vm429, %v428
  %s432 = scalar_lea.vmem %s1, 4752
  %433 = vst.msk [vmem:[%s432] ss:$-350 sm:$0x18] %vm429, %v428
  %s434 = scalar_lea.vmem %s1, 9552
  %435 = vst.msk [vmem:[%s434] ss:$-1150 sm:$0x60] %vm429, %v428
  %s436 = scalar_lea.vmem %s1, 3095
  %437 = vst.msk [vmem:[%s436] sm:$0x80] %vm429, %v428
  %s438 = scalar_lea.vmem %s0, 87
  %v439 = vld.sshfl [vmem:[%s438] sm:$0xff pattern:$0xbbb2907e]
  %s440 = scalar_lea.vmem %s0, 21
  %s441 = smov 192
  %v442 = vld [vmem:[%s440] ss:$9 sm:%s441]
  %vm443 = vcmask 1047558
  %v444 = vsel %vm443, %v442, %v439
  %445 = vrot.lane.b32.xlu0 %v444, 124
  %v446 = vpop.permute.xlu0 %445
  %vm447 = vcmask 15360
  %s448 = scalar_lea.vmem %s1, 4752
  %449 = vst.msk [vmem:[%s448] ss:$-350 sm:$0x7] %vm447, %v446
  %s450 = scalar_lea.vmem %s1, 5552
  %451 = vst.msk [vmem:[%s450] ss:$-350 sm:$0x18] %vm447, %v446
  %s452 = scalar_lea.vmem %s1, 10352
  %453 = vst.msk [vmem:[%s452] ss:$-1150 sm:$0x60] %vm447, %v446
  %s454 = scalar_lea.vmem %s1, 3895
  %455 = vst.msk [vmem:[%s454] sm:$0x80] %vm447, %v446
  %s456 = scalar_lea.vmem %s0, 91
  %v457 = vld.sshfl [vmem:[%s456] sm:$0xff pattern:$0x999990ec]
  %458 = vrot.lane.b32.xlu0 %v457, 124
  %v459 = vpop.permute.xlu0 %458
  %vm460 = vcmask 15360
  %s461 = scalar_lea.vmem %s1, 4852
  %462 = vst.msk [vmem:[%s461] ss:$100 sm:$0x3] %vm460, %v459
  %s463 = scalar_lea.vmem %s1, 3352
  %464 = vst.msk [vmem:[%s463] ss:$450 sm:$0xc] %vm460, %v459
  %v465 = vld.sshfl [vmem:[%s0] sm:$0xff pattern:$0x6d4b2907]
  %466 = vrot.lane.b32.xlu0 %v465, 122
  %v467 = vpop.permute.xlu0 %466
  %vm468 = vcmask 15360
  %s469 = scalar_lea.vmem %s1, 353
  %470 = vst.msk [vmem:[%s469] ss:$-350 sm:$0x3] %vm468, %v467
  %s471 = scalar_lea.vmem %s1, 1153
  %472 = vst.msk [vmem:[%s471] ss:$-350 sm:$0xc] %vm468, %v467
  %s473 = scalar_lea.vmem %s1, 1953
  %474 = vst.msk [vmem:[%s473] ss:$-350 sm:$0x30] %vm468, %v467
  %s475 = scalar_lea.vmem %s1, 2753
  %476 = vst.msk [vmem:[%s475] ss:$-350 sm:$0xc0] %vm468, %v467
  %s477 = scalar_lea.vmem %s0, 16
  %v478 = vld.sshfl [vmem:[%s477] sm:$0xff pattern:$0x6d4b2907]
  %479 = vrot.lane.b32.xlu0 %v478, 122
  %v480 = vpop.permute.xlu0 %479
  %vm481 = vcmask 15360
  %s482 = scalar_lea.vmem %s1, 1153
  %483 = vst.msk [vmem:[%s482] ss:$-350 sm:$0x3] %vm481, %v480
  %s484 = scalar_lea.vmem %s1, 1953
  %485 = vst.msk [vmem:[%s484] ss:$-350 sm:$0xc] %vm481, %v480
  %s486 = scalar_lea.vmem %s1, 2753
  %487 = vst.msk [vmem:[%s486] ss:$-350 sm:$0x30] %vm481, %v480
  %s488 = scalar_lea.vmem %s1, 3553
  %489 = vst.msk [vmem:[%s488] ss:$-350 sm:$0xc0] %vm481, %v480
  %s490 = scalar_lea.vmem %s0, 32
  %v491 = vld.sshfl [vmem:[%s490] sm:$0xff pattern:$0x6d4b2907]
  %492 = vrot.lane.b32.xlu0 %v491, 122
  %v493 = vpop.permute.xlu0 %492
  %vm494 = vcmask 15360
  %s495 = scalar_lea.vmem %s1, 1953
  %496 = vst.msk [vmem:[%s495] ss:$-350 sm:$0x3] %vm494, %v493
  %s497 = scalar_lea.vmem %s1, 2753
  %498 = vst.msk [vmem:[%s497] ss:$-350 sm:$0xc] %vm494, %v493
  %s499 = scalar_lea.vmem %s1, 3553
  %500 = vst.msk [vmem:[%s499] ss:$-350 sm:$0x30] %vm494, %v493
  %s501 = scalar_lea.vmem %s1, 4353
  %502 = vst.msk [vmem:[%s501] ss:$-350 sm:$0xc0] %vm494, %v493
  %s503 = scalar_lea.vmem %s0, 48
  %v504 = vld.sshfl [vmem:[%s503] sm:$0xff pattern:$0x88888f0d]
  %s505 = scalar_lea.vmem %s0, 58
  %v506 = vld.sshfl [vmem:[%s505] sm:$0xff pattern:$0x29077777]
  %vm507 = vcmask 1047556
  %v508 = vsel %vm507, %v506, %v504
  %509 = vrot.lane.b32.xlu0 %v508, 122
  %v510 = vpop.permute.xlu0 %509
  %vm511 = vcmask 15360
  %s512 = scalar_lea.vmem %s1, 2753
  %513 = vst.msk [vmem:[%s512] ss:$-350 sm:$0x3] %vm511, %v510
  %s514 = scalar_lea.vmem %s1, 3553
  %515 = vst.msk [vmem:[%s514] ss:$-350 sm:$0xc] %vm511, %v510
  %s516 = scalar_lea.vmem %s1, 4353
  %517 = vst.msk [vmem:[%s516] ss:$-350 sm:$0x30] %vm511, %v510
  %s518 = scalar_lea.vmem %s1, 5153
  %519 = vst.msk [vmem:[%s518] ss:$-350 sm:$0xc0] %vm511, %v510
  %s520 = scalar_lea.vmem %s0, 70
  %v521 = vld.sshfl [vmem:[%s520] sm:$0xff pattern:$0x6d4b2907]
  %522 = vrot.lane.b32.xlu0 %v521, 122
  %v523 = vpop.permute.xlu0 %522
  %vm524 = vcmask 15360
  %s525 = scalar_lea.vmem %s1, 3553
  %526 = vst.msk [vmem:[%s525] ss:$-350 sm:$0x3] %vm524, %v523
  %s527 = scalar_lea.vmem %s1, 4353
  %528 = vst.msk [vmem:[%s527] ss:$-350 sm:$0xc] %vm524, %v523
  %s529 = scalar_lea.vmem %s1, 5153
  %530 = vst.msk [vmem:[%s529] ss:$-350 sm:$0x30] %vm524, %v523
  %s531 = scalar_lea.vmem %s1, 5953
  %532 = vst.msk [vmem:[%s531] ss:$-350 sm:$0xc0] %vm524, %v523
  %s533 = scalar_lea.vmem %s0, 86
  %v534 = vld.sshfl [vmem:[%s533] sm:$0xff pattern:$0x6d4b2907]
  %535 = vrot.lane.b32.xlu0 %v534, 122
  %v536 = vpop.permute.xlu0 %535
  %vm537 = vcmask 15360
  %s538 = scalar_lea.vmem %s1, 4353
  %539 = vst.msk [vmem:[%s538] ss:$-350 sm:$0x3] %vm537, %v536
  %s540 = scalar_lea.vmem %s1, 5153
  %541 = vst.msk [vmem:[%s540] ss:$-350 sm:$0xc] %vm537, %v536
  %s542 = scalar_lea.vmem %s1, 5953
  %543 = vst.msk [vmem:[%s542] ss:$-350 sm:$0x30] %vm537, %v536
  %s544 = scalar_lea.vmem %s1, 6753
  %545 = vst.msk [vmem:[%s544] ss:$-350 sm:$0xc0] %vm537, %v536
  %s546 = scalar_lea.vmem %s0, 102
  %s547 = smov 3
  %v548 = vld [vmem:[%s546] ss:$2 sm:%s547]
  %s549 = scalar_lea.vmem %s0, 1
  %v550 = vld.sshfl [vmem:[%s549] sm:$0xff pattern:$0xb2907eee]
  %vm551 = vcmask 1047554
  %v552 = vsel %vm551, %v550, %v548
  %553 = vrot.lane.b32.xlu0 %v552, 122
  %v554 = vpop.permute.xlu0 %553
  %vm555 = vcmask 15360
  %s556 = scalar_lea.vmem %s1, 4803
  %557 = vst.msk [vmem:[%s556] ss:$100 sm:$0x3] %vm555, %v554
  %s558 = scalar_lea.vmem %s1, 1453
  %559 = vst.msk [vmem:[%s558] ss:$-350 sm:$0x1c] %vm555, %v554
  %s560 = scalar_lea.vmem %s1, 2253
  %561 = vst.msk [vmem:[%s560] ss:$-350 sm:$0x60] %vm555, %v554
  %s562 = scalar_lea.vmem %s1, 596
  %563 = vst.msk [vmem:[%s562] sm:$0x80] %vm555, %v554
  %s564 = scalar_lea.vmem %s0, 17
  %v565 = vld.sshfl [vmem:[%s564] sm:$0xff pattern:$0xbbb2907e]
  %s566 = scalar_lea.vmem %s0, 4294967247
  %s567 = smov 192
  %v568 = vld [vmem:[%s566] ss:$9 sm:%s567]
  %vm569 = vcmask 1047558
  %v570 = vsel %vm569, %v568, %v565
  %571 = vrot.lane.b32.xlu0 %v570, 122
  %v572 = vpop.permute.xlu0 %571
  %vm573 = vcmask 15360
  %s574 = scalar_lea.vmem %s1, 1553
  %575 = vst.msk [vmem:[%s574] ss:$-350 sm:$0x7] %vm573, %v572
  %s576 = scalar_lea.vmem %s1, 2353
  %577 = vst.msk [vmem:[%s576] ss:$-350 sm:$0x18] %vm573, %v572
  %s578 = scalar_lea.vmem %s1, 7153
  %579 = vst.msk [vmem:[%s578] ss:$-1150 sm:$0x60] %vm573, %v572
  %s580 = scalar_lea.vmem %s1, 696
  %581 = vst.msk [vmem:[%s580] sm:$0x80] %vm573, %v572
  %s582 = scalar_lea.vmem %s0, 33
  %v583 = vld.sshfl [vmem:[%s582] sm:$0xff pattern:$0xbbb2907e]
  %s584 = scalar_lea.vmem %s0, 4294967263
  %s585 = smov 192
  %v586 = vld [vmem:[%s584] ss:$9 sm:%s585]
  %vm587 = vcmask 1047558
  %v588 = vsel %vm587, %v586, %v583
  %589 = vrot.lane.b32.xlu0 %v588, 122
  %v590 = vpop.permute.xlu0 %589
  %vm591 = vcmask 15360
  %s592 = scalar_lea.vmem %s1, 2353
  %593 = vst.msk [vmem:[%s592] ss:$-350 sm:$0x7] %vm591, %v590
  %s594 = scalar_lea.vmem %s1, 3153
  %595 = vst.msk [vmem:[%s594] ss:$-350 sm:$0x18] %vm591, %v590
  %s596 = scalar_lea.vmem %s1, 7953
  %597 = vst.msk [vmem:[%s596] ss:$-1150 sm:$0x60] %vm591, %v590
  %s598 = scalar_lea.vmem %s1, 1496
  %599 = vst.msk [vmem:[%s598] sm:$0x80] %vm591, %v590
  %s600 = scalar_lea.vmem %s0, 69
  %s601 = smov 3
  %v602 = vld [vmem:[%s600] ss:$-7 sm:%s601]
  %s603 = scalar_lea.vmem %s0, 49
  %v604 = vld.sshfl [vmem:[%s603] sm:$0xff pattern:$0x8888f000]
  %vm605 = vcmask 1044482
  %v606 = vsel %vm605, %v604, %v602
  %s607 = scalar_lea.vmem %s0, 211
  %s608 = smov 96
  %v609 = vld [vmem:[%s607] ss:$-29 sm:%s608]
  %vm610 = vcmask 1046533
  %v611 = vsel %vm610, %v609, %v606
  %s612 = scalar_lea.vmem %s0, 39
  %v613 = vld [vmem:[%s612] sm:$0x80]
  %vm614 = vcmask 1047559
  %v615 = vsel %vm614, %v613, %v611
  %616 = vrot.lane.b32.xlu0 %v615, 122
  %v617 = vpop.permute.xlu0 %616
  %vm618 = vcmask 15360
  %s619 = scalar_lea.vmem %s1, 3153
  %620 = vst.msk [vmem:[%s619] ss:$-350 sm:$0x7] %vm618, %v617
  %s621 = scalar_lea.vmem %s1, 3953
  %622 = vst.msk [vmem:[%s621] ss:$-350 sm:$0x18] %vm618, %v617
  %s623 = scalar_lea.vmem %s1, 8753
  %624 = vst.msk [vmem:[%s623] ss:$-1150 sm:$0x60] %vm618, %v617
  %s625 = scalar_lea.vmem %s1, 2296
  %626 = vst.msk [vmem:[%s625] sm:$0x80] %vm618, %v617
  %s627 = scalar_lea.vmem %s0, 71
  %v628 = vld.sshfl [vmem:[%s627] sm:$0xff pattern:$0xbbb2907e]
  %s629 = scalar_lea.vmem %s0, 5
  %s630 = smov 192
  %v631 = vld [vmem:[%s629] ss:$9 sm:%s630]
  %vm632 = vcmask 1047558
  %v633 = vsel %vm632, %v631, %v628
  %634 = vrot.lane.b32.xlu0 %v633, 122
  %v635 = vpop.permute.xlu0 %634
  %vm636 = vcmask 15360
  %s637 = scalar_lea.vmem %s1, 3953
  %638 = vst.msk [vmem:[%s637] ss:$-350 sm:$0x7] %vm636, %v635
  %s639 = scalar_lea.vmem %s1, 4753
  %640 = vst.msk [vmem:[%s639] ss:$-350 sm:$0x18] %vm636, %v635
  %s641 = scalar_lea.vmem %s1, 9553
  %642 = vst.msk [vmem:[%s641] ss:$-1150 sm:$0x60] %vm636, %v635
  %s643 = scalar_lea.vmem %s1, 3096
  %644 = vst.msk [vmem:[%s643] sm:$0x80] %vm636, %v635
  %s645 = scalar_lea.vmem %s0, 87
  %v646 = vld.sshfl [vmem:[%s645] sm:$0xff pattern:$0xbbb2907e]
  %s647 = scalar_lea.vmem %s0, 21
  %s648 = smov 192
  %v649 = vld [vmem:[%s647] ss:$9 sm:%s648]
  %vm650 = vcmask 1047558
  %v651 = vsel %vm650, %v649, %v646
  %652 = vrot.lane.b32.xlu0 %v651, 122
  %v653 = vpop.permute.xlu0 %652
  %vm654 = vcmask 15360
  %s655 = scalar_lea.vmem %s1, 4753
  %656 = vst.msk [vmem:[%s655] ss:$-350 sm:$0x7] %vm654, %v653
  %s657 = scalar_lea.vmem %s1, 5553
  %658 = vst.msk [vmem:[%s657] ss:$-350 sm:$0x18] %vm654, %v653
  %s659 = scalar_lea.vmem %s1, 10353
  %660 = vst.msk [vmem:[%s659] ss:$-1150 sm:$0x60] %vm654, %v653
  %s661 = scalar_lea.vmem %s1, 3896
  %662 = vst.msk [vmem:[%s661] sm:$0x80] %vm654, %v653
  %s663 = scalar_lea.vmem %s0, 91
  %v664 = vld.sshfl [vmem:[%s663] sm:$0xff pattern:$0x999990ec]
  %665 = vrot.lane.b32.xlu0 %v664, 122
  %v666 = vpop.permute.xlu0 %665
  %vm667 = vcmask 15360
  %s668 = scalar_lea.vmem %s1, 4853
  %669 = vst.msk [vmem:[%s668] ss:$100 sm:$0x3] %vm667, %v666
  %s670 = scalar_lea.vmem %s1, 3353
  %671 = vst.msk [vmem:[%s670] ss:$450 sm:$0xc] %vm667, %v666
  %v672 = vld.sshfl [vmem:[%s0] sm:$0xff pattern:$0xd4b2907e]
  %673 = vrot.lane.b32.xlu0 %v672, 120
  %v674 = vpop.permute.xlu0 %673
  %vm675 = vcmask 15360
  %s676 = scalar_lea.vmem %s1, 704
  %677 = vst.msk [vmem:[%s676] ss:$-350 sm:$0x7] %vm675, %v674
  %s678 = scalar_lea.vmem %s1, 1504
  %679 = vst.msk [vmem:[%s678] ss:$-350 sm:$0x18] %vm675, %v674
  %s680 = scalar_lea.vmem %s1, 2304
  %681 = vst.msk [vmem:[%s680] ss:$-350 sm:$0x60] %vm675, %v674
  %s682 = scalar_lea.vmem %s1, 647
  %683 = vst.msk [vmem:[%s682] sm:$0x80] %vm675, %v674
  %s684 = scalar_lea.vmem %s0, 16
  %v685 = vld.sshfl [vmem:[%s684] sm:$0xff pattern:$0xd4b2907e]
  %686 = vrot.lane.b32.xlu0 %v685, 120
  %v687 = vpop.permute.xlu0 %686
  %vm688 = vcmask 15360
  %s689 = scalar_lea.vmem %s1, 1504
  %690 = vst.msk [vmem:[%s689] ss:$-350 sm:$0x7] %vm688, %v687
  %s691 = scalar_lea.vmem %s1, 2304
  %692 = vst.msk [vmem:[%s691] ss:$-350 sm:$0x18] %vm688, %v687
  %s693 = scalar_lea.vmem %s1, 3104
  %694 = vst.msk [vmem:[%s693] ss:$-350 sm:$0x60] %vm688, %v687
  %s695 = scalar_lea.vmem %s1, 1447
  %696 = vst.msk [vmem:[%s695] sm:$0x80] %vm688, %v687
  %s697 = scalar_lea.vmem %s0, 32
  %v698 = vld.sshfl [vmem:[%s697] sm:$0xff pattern:$0xd4b2907e]
  %699 = vrot.lane.b32.xlu0 %v698, 120
  %v700 = vpop.permute.xlu0 %699
  %vm701 = vcmask 15360
  %s702 = scalar_lea.vmem %s1, 2304
  %703 = vst.msk [vmem:[%s702] ss:$-350 sm:$0x7] %vm701, %v700
  %s704 = scalar_lea.vmem %s1, 3104
  %705 = vst.msk [vmem:[%s704] ss:$-350 sm:$0x18] %vm701, %v700
  %s706 = scalar_lea.vmem %s1, 3904
  %707 = vst.msk [vmem:[%s706] ss:$-350 sm:$0x60] %vm701, %v700
  %s708 = scalar_lea.vmem %s1, 2247
  %709 = vst.msk [vmem:[%s708] sm:$0x80] %vm701, %v700
  %s710 = scalar_lea.vmem %s0, 68
  %s711 = smov 3
  %v712 = vld [vmem:[%s710] ss:$-7 sm:%s711]
  %s713 = scalar_lea.vmem %s0, 48
  %v714 = vld.sshfl [vmem:[%s713] sm:$0xff pattern:$0x8888f000]
  %vm715 = vcmask 1044482
  %v716 = vsel %vm715, %v714, %v712
  %s717 = scalar_lea.vmem %s0, 58
  %v718 = vld.sshfl [vmem:[%s717] sm:$0xff pattern:$0x90777777]
  %vm719 = vcmask 1047557
  %v720 = vsel %vm719, %v718, %v716
  %721 = vrot.lane.b32.xlu0 %v720, 120
  %v722 = vpop.permute.xlu0 %721
  %vm723 = vcmask 15360
  %s724 = scalar_lea.vmem %s1, 3104
  %725 = vst.msk [vmem:[%s724] ss:$-350 sm:$0x7] %vm723, %v722
  %s726 = scalar_lea.vmem %s1, 3904
  %727 = vst.msk [vmem:[%s726] ss:$-350 sm:$0x18] %vm723, %v722
  %s728 = scalar_lea.vmem %s1, 4704
  %729 = vst.msk [vmem:[%s728] ss:$-350 sm:$0x60] %vm723, %v722
  %s730 = scalar_lea.vmem %s1, 3047
  %731 = vst.msk [vmem:[%s730] sm:$0x80] %vm723, %v722
  %s732 = scalar_lea.vmem %s0, 70
  %v733 = vld.sshfl [vmem:[%s732] sm:$0xff pattern:$0xd4b2907e]
  %734 = vrot.lane.b32.xlu0 %v733, 120
  %v735 = vpop.permute.xlu0 %734
  %vm736 = vcmask 15360
  %s737 = scalar_lea.vmem %s1, 3904
  %738 = vst.msk [vmem:[%s737] ss:$-350 sm:$0x7] %vm736, %v735
  %s739 = scalar_lea.vmem %s1, 4704
  %740 = vst.msk [vmem:[%s739] ss:$-350 sm:$0x18] %vm736, %v735
  %s741 = scalar_lea.vmem %s1, 5504
  %742 = vst.msk [vmem:[%s741] ss:$-350 sm:$0x60] %vm736, %v735
  %s743 = scalar_lea.vmem %s1, 3847
  %744 = vst.msk [vmem:[%s743] sm:$0x80] %vm736, %v735
  %s745 = scalar_lea.vmem %s0, 86
  %v746 = vld.sshfl [vmem:[%s745] sm:$0xff pattern:$0xd4b2907e]
  %747 = vrot.lane.b32.xlu0 %v746, 120
  %v748 = vpop.permute.xlu0 %747
  %vm749 = vcmask 15360
  %s750 = scalar_lea.vmem %s1, 4704
  %751 = vst.msk [vmem:[%s750] ss:$-350 sm:$0x7] %vm749, %v748
  %s752 = scalar_lea.vmem %s1, 5504
  %753 = vst.msk [vmem:[%s752] ss:$-350 sm:$0x18] %vm749, %v748
  %s754 = scalar_lea.vmem %s1, 6304
  %755 = vst.msk [vmem:[%s754] ss:$-350 sm:$0x60] %vm749, %v748
  %s756 = scalar_lea.vmem %s1, 4647
  %757 = vst.msk [vmem:[%s756] sm:$0x80] %vm749, %v748
  %s758 = scalar_lea.vmem %s0, 102
  %s759 = smov 3
  %v760 = vld [vmem:[%s758] ss:$2 sm:%s759]
  %s761 = scalar_lea.vmem %s0, 1
  %v762 = vld.sshfl [vmem:[%s761] sm:$0xff pattern:$0x2907e555]
  %vm763 = vcmask 1047554
  %v764 = vsel %vm763, %v762, %v760
  %765 = vrot.lane.b32.xlu0 %v764, 120
  %v766 = vpop.permute.xlu0 %765
  %vm767 = vcmask 15360
  %s768 = scalar_lea.vmem %s1, 4804
  %769 = vst.msk [vmem:[%s768] ss:$100 sm:$0x3] %vm767, %v766
  %s770 = scalar_lea.vmem %s1, 4294966700
  %771 = vst.msk [vmem:[%s770] ss:$450 sm:$0xc] %vm767, %v766
  %s772 = scalar_lea.vmem %s1, 1804
  %773 = vst.msk [vmem:[%s772] ss:$-350 sm:$0x30] %vm767, %v766
  %s774 = scalar_lea.vmem %s1, 2604
  %775 = vst.msk [vmem:[%s774] ss:$-350 sm:$0xc0] %vm767, %v766
  %s776 = scalar_lea.vmem %s0, 17
  %v777 = vld.sshfl [vmem:[%s776] sm:$0xff pattern:$0x222907e5]
  %s778 = scalar_lea.vmem %s0, 54
  %s779 = smov 192
  %v780 = vld [vmem:[%s778] ss:$-7 sm:%s779]
  %vm781 = vcmask 1047558
  %v782 = vsel %vm781, %v780, %v777
  %783 = vrot.lane.b32.xlu0 %v782, 120
  %v784 = vpop.permute.xlu0 %783
  %vm785 = vcmask 15360
  %s786 = scalar_lea.vmem %s1, 1104
  %787 = vst.msk [vmem:[%s786] ss:$450 sm:$0x3] %vm785, %v784
  %s788 = scalar_lea.vmem %s1, 1904
  %789 = vst.msk [vmem:[%s788] ss:$-350 sm:$0xc] %vm785, %v784
  %s790 = scalar_lea.vmem %s1, 2704
  %791 = vst.msk [vmem:[%s790] ss:$-350 sm:$0xf0] %vm785, %v784
  %s792 = scalar_lea.vmem %s0, 33
  %v793 = vld.sshfl [vmem:[%s792] sm:$0xff pattern:$0x222907e5]
  %s794 = scalar_lea.vmem %s0, 70
  %s795 = smov 192
  %v796 = vld [vmem:[%s794] ss:$-7 sm:%s795]
  %vm797 = vcmask 1047558
  %v798 = vsel %vm797, %v796, %v793
  %799 = vrot.lane.b32.xlu0 %v798, 120
  %v800 = vpop.permute.xlu0 %799
  %vm801 = vcmask 15360
  %s802 = scalar_lea.vmem %s1, 1904
  %803 = vst.msk [vmem:[%s802] ss:$450 sm:$0x3] %vm801, %v800
  %s804 = scalar_lea.vmem %s1, 2704
  %805 = vst.msk [vmem:[%s804] ss:$-350 sm:$0xc] %vm801, %v800
  %s806 = scalar_lea.vmem %s1, 3504
  %807 = vst.msk [vmem:[%s806] ss:$-350 sm:$0xf0] %vm801, %v800
  %s808 = scalar_lea.vmem %s0, 60
  %v809 = vld.sshfl [vmem:[%s808] sm:$0xff pattern:$0x22222290]
  %s810 = scalar_lea.vmem %s0, 49
  %v811 = vld.sshfl [vmem:[%s810] sm:$0xff pattern:$0x888f0000]
  %vm812 = vcmask 1045507
  %v813 = vsel %vm812, %v811, %v809
  %s814 = scalar_lea.vmem %s0, 86
  %s815 = smov 192
  %v816 = vld [vmem:[%s814] ss:$-7 sm:%s815]
  %vm817 = vcmask 1047558
  %v818 = vsel %vm817, %v816, %v813
  %819 = vrot.lane.b32.xlu0 %v818, 120
  %v820 = vpop.permute.xlu0 %819
  %vm821 = vcmask 15360
  %s822 = scalar_lea.vmem %s1, 2704
  %823 = vst.msk [vmem:[%s822] ss:$450 sm:$0x3] %vm821, %v820
  %s824 = scalar_lea.vmem %s1, 3504
  %825 = vst.msk [vmem:[%s824] ss:$-350 sm:$0xc] %vm821, %v820
  %s826 = scalar_lea.vmem %s1, 4304
  %827 = vst.msk [vmem:[%s826] ss:$-350 sm:$0xf0] %vm821, %v820
  %s828 = scalar_lea.vmem %s0, 71
  %v829 = vld.sshfl [vmem:[%s828] sm:$0xff pattern:$0x222907e5]
  %s830 = scalar_lea.vmem %s0, 108
  %s831 = smov 192
  %v832 = vld [vmem:[%s830] ss:$-7 sm:%s831]
  %vm833 = vcmask 1047558
  %v834 = vsel %vm833, %v832, %v829
  %835 = vrot.lane.b32.xlu0 %v834, 120
  %v836 = vpop.permute.xlu0 %835
  %vm837 = vcmask 15360
  %s838 = scalar_lea.vmem %s1, 3504
  %839 = vst.msk [vmem:[%s838] ss:$450 sm:$0x3] %vm837, %v836
  %s840 = scalar_lea.vmem %s1, 4304
  %841 = vst.msk [vmem:[%s840] ss:$-350 sm:$0xc] %vm837, %v836
  %s842 = scalar_lea.vmem %s1, 5104
  %843 = vst.msk [vmem:[%s842] ss:$-350 sm:$0xf0] %vm837, %v836
  %s844 = scalar_lea.vmem %s0, 87
  %v845 = vld.sshfl [vmem:[%s844] sm:$0xff pattern:$0x222907e5]
  %s846 = scalar_lea.vmem %s0, 124
  %s847 = smov 192
  %v848 = vld [vmem:[%s846] ss:$-7 sm:%s847]
  %vm849 = vcmask 1047558
  %v850 = vsel %vm849, %v848, %v845
  %851 = vrot.lane.b32.xlu0 %v850, 120
  %v852 = vpop.permute.xlu0 %851
  %vm853 = vcmask 15360
  %s854 = scalar_lea.vmem %s1, 4304
  %855 = vst.msk [vmem:[%s854] ss:$450 sm:$0x3] %vm853, %v852
  %s856 = scalar_lea.vmem %s1, 5104
  %857 = vst.msk [vmem:[%s856] ss:$-350 sm:$0xc] %vm853, %v852
  %s858 = scalar_lea.vmem %s1, 5904
  %859 = vst.msk [vmem:[%s858] ss:$-350 sm:$0xf0] %vm853, %v852
  %s860 = scalar_lea.vmem %s0, 91
  %v861 = vld.sshfl [vmem:[%s860] sm:$0xff pattern:$0x7ec]
  %862 = vrot.lane.b32.xlu0 %v861, 120
  %v863 = vpop.permute.xlu0 %862
  %vm864 = vcmask 15360
  %s865 = scalar_lea.vmem %s1, 4854
  %866 = vst.msk [vmem:[%s865] ss:$100 sm:$0x3] %vm864, %v863
  %s867 = scalar_lea.vmem %s1, 5304
  %868 = vst.msk [vmem:[%s867] ss:$-350 sm:$0xc] %vm864, %v863
  %v869 = vld.sshfl [vmem:[%s0] sm:$0xff pattern:$0xd4b2907e]
  %870 = vrot.lane.b32.xlu0 %v869, 118
  %v871 = vpop.permute.xlu0 %870
  %vm872 = vcmask 15360
  %s873 = scalar_lea.vmem %s1, 705
  %874 = vst.msk [vmem:[%s873] ss:$-350 sm:$0x7] %vm872, %v871
  %s875 = scalar_lea.vmem %s1, 1505
  %876 = vst.msk [vmem:[%s875] ss:$-350 sm:$0x18] %vm872, %v871
  %s877 = scalar_lea.vmem %s1, 2305
  %878 = vst.msk [vmem:[%s877] ss:$-350 sm:$0x60] %vm872, %v871
  %s879 = scalar_lea.vmem %s1, 648
  %880 = vst.msk [vmem:[%s879] sm:$0x80] %vm872, %v871
  %s881 = scalar_lea.vmem %s0, 16
  %v882 = vld.sshfl [vmem:[%s881] sm:$0xff pattern:$0xd4b2907e]
  %883 = vrot.lane.b32.xlu0 %v882, 118
  %v884 = vpop.permute.xlu0 %883
  %vm885 = vcmask 15360
  %s886 = scalar_lea.vmem %s1, 1505
  %887 = vst.msk [vmem:[%s886] ss:$-350 sm:$0x7] %vm885, %v884
  %s888 = scalar_lea.vmem %s1, 2305
  %889 = vst.msk [vmem:[%s888] ss:$-350 sm:$0x18] %vm885, %v884
  %s890 = scalar_lea.vmem %s1, 3105
  %891 = vst.msk [vmem:[%s890] ss:$-350 sm:$0x60] %vm885, %v884
  %s892 = scalar_lea.vmem %s1, 1448
  %893 = vst.msk [vmem:[%s892] sm:$0x80] %vm885, %v884
  %s894 = scalar_lea.vmem %s0, 32
  %v895 = vld.sshfl [vmem:[%s894] sm:$0xff pattern:$0xd4b2907e]
  %896 = vrot.lane.b32.xlu0 %v895, 118
  %v897 = vpop.permute.xlu0 %896
  %vm898 = vcmask 15360
  %s899 = scalar_lea.vmem %s1, 2305
  %900 = vst.msk [vmem:[%s899] ss:$-350 sm:$0x7] %vm898, %v897
  %s901 = scalar_lea.vmem %s1, 3105
  %902 = vst.msk [vmem:[%s901] ss:$-350 sm:$0x18] %vm898, %v897
  %s903 = scalar_lea.vmem %s1, 3905
  %904 = vst.msk [vmem:[%s903] ss:$-350 sm:$0x60] %vm898, %v897
  %s905 = scalar_lea.vmem %s1, 2248
  %906 = vst.msk [vmem:[%s905] sm:$0x80] %vm898, %v897
  %s907 = scalar_lea.vmem %s0, 68
  %s908 = smov 3
  %v909 = vld [vmem:[%s907] ss:$-7 sm:%s908]
  %s910 = scalar_lea.vmem %s0, 48
  %v911 = vld.sshfl [vmem:[%s910] sm:$0xff pattern:$0x8888f000]
  %vm912 = vcmask 1044482
  %v913 = vsel %vm912, %v911, %v909
  %s914 = scalar_lea.vmem %s0, 58
  %v915 = vld.sshfl [vmem:[%s914] sm:$0xff pattern:$0x90777777]
  %vm916 = vcmask 1047557
  %v917 = vsel %vm916, %v915, %v913
  %918 = vrot.lane.b32.xlu0 %v917, 118
  %v919 = vpop.permute.xlu0 %918
  %vm920 = vcmask 15360
  %s921 = scalar_lea.vmem %s1, 3105
  %922 = vst.msk [vmem:[%s921] ss:$-350 sm:$0x7] %vm920, %v919
  %s923 = scalar_lea.vmem %s1, 3905
  %924 = vst.msk [vmem:[%s923] ss:$-350 sm:$0x18] %vm920, %v919
  %s925 = scalar_lea.vmem %s1, 4705
  %926 = vst.msk [vmem:[%s925] ss:$-350 sm:$0x60] %vm920, %v919
  %s927 = scalar_lea.vmem %s1, 3048
  %928 = vst.msk [vmem:[%s927] sm:$0x80] %vm920, %v919
  %s929 = scalar_lea.vmem %s0, 70
  %v930 = vld.sshfl [vmem:[%s929] sm:$0xff pattern:$0xd4b2907e]
  %931 = vrot.lane.b32.xlu0 %v930, 118
  %v932 = vpop.permute.xlu0 %931
  %vm933 = vcmask 15360
  %s934 = scalar_lea.vmem %s1, 3905
  %935 = vst.msk [vmem:[%s934] ss:$-350 sm:$0x7] %vm933, %v932
  %s936 = scalar_lea.vmem %s1, 4705
  %937 = vst.msk [vmem:[%s936] ss:$-350 sm:$0x18] %vm933, %v932
  %s938 = scalar_lea.vmem %s1, 5505
  %939 = vst.msk [vmem:[%s938] ss:$-350 sm:$0x60] %vm933, %v932
  %s940 = scalar_lea.vmem %s1, 3848
  %941 = vst.msk [vmem:[%s940] sm:$0x80] %vm933, %v932
  %s942 = scalar_lea.vmem %s0, 86
  %v943 = vld.sshfl [vmem:[%s942] sm:$0xff pattern:$0xd4b2907e]
  %944 = vrot.lane.b32.xlu0 %v943, 118
  %v945 = vpop.permute.xlu0 %944
  %vm946 = vcmask 15360
  %s947 = scalar_lea.vmem %s1, 4705
  %948 = vst.msk [vmem:[%s947] ss:$-350 sm:$0x7] %vm946, %v945
  %s949 = scalar_lea.vmem %s1, 5505
  %950 = vst.msk [vmem:[%s949] ss:$-350 sm:$0x18] %vm946, %v945
  %s951 = scalar_lea.vmem %s1, 6305
  %952 = vst.msk [vmem:[%s951] ss:$-350 sm:$0x60] %vm946, %v945
  %s953 = scalar_lea.vmem %s1, 4648
  %954 = vst.msk [vmem:[%s953] sm:$0x80] %vm946, %v945
  %s955 = scalar_lea.vmem %s0, 102
  %s956 = smov 3
  %v957 = vld [vmem:[%s955] ss:$2 sm:%s956]
  %s958 = scalar_lea.vmem %s0, 1
  %v959 = vld.sshfl [vmem:[%s958] sm:$0xff pattern:$0x2907e555]
  %vm960 = vcmask 1047554
  %v961 = vsel %vm960, %v959, %v957
  %962 = vrot.lane.b32.xlu0 %v961, 118
  %v963 = vpop.permute.xlu0 %962
  %vm964 = vcmask 15360
  %s965 = scalar_lea.vmem %s1, 4805
  %966 = vst.msk [vmem:[%s965] ss:$100 sm:$0x3] %vm964, %v963
  %s967 = scalar_lea.vmem %s1, 4294966701
  %968 = vst.msk [vmem:[%s967] ss:$450 sm:$0xc] %vm964, %v963
  %s969 = scalar_lea.vmem %s1, 1805
  %970 = vst.msk [vmem:[%s969] ss:$-350 sm:$0x30] %vm964, %v963
  %s971 = scalar_lea.vmem %s1, 2605
  %972 = vst.msk [vmem:[%s971] ss:$-350 sm:$0xc0] %vm964, %v963
  %s973 = scalar_lea.vmem %s0, 17
  %v974 = vld.sshfl [vmem:[%s973] sm:$0xff pattern:$0x222907e5]
  %s975 = scalar_lea.vmem %s0, 54
  %s976 = smov 192
  %v977 = vld [vmem:[%s975] ss:$-7 sm:%s976]
  %vm978 = vcmask 1047558
  %v979 = vsel %vm978, %v977, %v974
  %980 = vrot.lane.b32.xlu0 %v979, 118
  %v981 = vpop.permute.xlu0 %980
  %vm982 = vcmask 15360
  %s983 = scalar_lea.vmem %s1, 1105
  %984 = vst.msk [vmem:[%s983] ss:$450 sm:$0x3] %vm982, %v981
  %s985 = scalar_lea.vmem %s1, 1905
  %986 = vst.msk [vmem:[%s985] ss:$-350 sm:$0xc] %vm982, %v981
  %s987 = scalar_lea.vmem %s1, 2705
  %988 = vst.msk [vmem:[%s987] ss:$-350 sm:$0xf0] %vm982, %v981
  %s989 = scalar_lea.vmem %s0, 33
  %v990 = vld.sshfl [vmem:[%s989] sm:$0xff pattern:$0x222907e5]
  %s991 = scalar_lea.vmem %s0, 70
  %s992 = smov 192
  %v993 = vld [vmem:[%s991] ss:$-7 sm:%s992]
  %vm994 = vcmask 1047558
  %v995 = vsel %vm994, %v993, %v990
  %996 = vrot.lane.b32.xlu0 %v995, 118
  %v997 = vpop.permute.xlu0 %996
  %vm998 = vcmask 15360
  %s999 = scalar_lea.vmem %s1, 1905
  %1000 = vst.msk [vmem:[%s999] ss:$450 sm:$0x3] %vm998, %v997
  %s1001 = scalar_lea.vmem %s1, 2705
  %1002 = vst.msk [vmem:[%s1001] ss:$-350 sm:$0xc] %vm998, %v997
  %s1003 = scalar_lea.vmem %s1, 3505
  %1004 = vst.msk [vmem:[%s1003] ss:$-350 sm:$0xf0] %vm998, %v997
  %s1005 = scalar_lea.vmem %s0, 60
  %v1006 = vld.sshfl [vmem:[%s1005] sm:$0xff pattern:$0x22222290]
  %s1007 = scalar_lea.vmem %s0, 49
  %v1008 = vld.sshfl [vmem:[%s1007] sm:$0xff pattern:$0x888f0000]
  %vm1009 = vcmask 1045507
  %v1010 = vsel %vm1009, %v1008, %v1006
  %s1011 = scalar_lea.vmem %s0, 86
  %s1012 = smov 192
  %v1013 = vld [vmem:[%s1011] ss:$-7 sm:%s1012]
  %vm1014 = vcmask 1047558
  %v1015 = vsel %vm1014, %v1013, %v1010
  %1016 = vrot.lane.b32.xlu0 %v1015, 118
  %v1017 = vpop.permute.xlu0 %1016
  %vm1018 = vcmask 15360
  %s1019 = scalar_lea.vmem %s1, 2705
  %1020 = vst.msk [vmem:[%s1019] ss:$450 sm:$0x3] %vm1018, %v1017
  %s1021 = scalar_lea.vmem %s1, 3505
  %1022 = vst.msk [vmem:[%s1021] ss:$-350 sm:$0xc] %vm1018, %v1017
  %s1023 = scalar_lea.vmem %s1, 4305
  %1024 = vst.msk [vmem:[%s1023] ss:$-350 sm:$0xf0] %vm1018, %v1017
  %s1025 = scalar_lea.vmem %s0, 71
  %v1026 = vld.sshfl [vmem:[%s1025] sm:$0xff pattern:$0x222907e5]
  %s1027 = scalar_lea.vmem %s0, 108
  %s1028 = smov 192
  %v1029 = vld [vmem:[%s1027] ss:$-7 sm:%s1028]
  %vm1030 = vcmask 1047558
  %v1031 = vsel %vm1030, %v1029, %v1026
  %1032 = vrot.lane.b32.xlu0 %v1031, 118
  %v1033 = vpop.permute.xlu0 %1032
  %vm1034 = vcmask 15360
  %s1035 = scalar_lea.vmem %s1, 3505
  %1036 = vst.msk [vmem:[%s1035] ss:$450 sm:$0x3] %vm1034, %v1033
  %s1037 = scalar_lea.vmem %s1, 4305
  %1038 = vst.msk [vmem:[%s1037] ss:$-350 sm:$0xc] %vm1034, %v1033
  %s1039 = scalar_lea.vmem %s1, 5105
  %1040 = vst.msk [vmem:[%s1039] ss:$-350 sm:$0xf0] %vm1034, %v1033
  %s1041 = scalar_lea.vmem %s0, 87
  %v1042 = vld.sshfl [vmem:[%s1041] sm:$0xff pattern:$0x222907e5]
  %s1043 = scalar_lea.vmem %s0, 124
  %s1044 = smov 192
  %v1045 = vld [vmem:[%s1043] ss:$-7 sm:%s1044]
  %vm1046 = vcmask 1047558
  %v1047 = vsel %vm1046, %v1045, %v1042
  %1048 = vrot.lane.b32.xlu0 %v1047, 118
  %v1049 = vpop.permute.xlu0 %1048
  %vm1050 = vcmask 15360
  %s1051 = scalar_lea.vmem %s1, 4305
  %1052 = vst.msk [vmem:[%s1051] ss:$450 sm:$0x3] %vm1050, %v1049
  %s1053 = scalar_lea.vmem %s1, 5105
  %1054 = vst.msk [vmem:[%s1053] ss:$-350 sm:$0xc] %vm1050, %v1049
  %s1055 = scalar_lea.vmem %s1, 5905
  %1056 = vst.msk [vmem:[%s1055] ss:$-350 sm:$0xf0] %vm1050, %v1049
  %s1057 = scalar_lea.vmem %s0, 91
  %v1058 = vld.sshfl [vmem:[%s1057] sm:$0xff pattern:$0x7ec]
  %1059 = vrot.lane.b32.xlu0 %v1058, 118
  %v1060 = vpop.permute.xlu0 %1059
  %vm1061 = vcmask 15360
  %s1062 = scalar_lea.vmem %s1, 4855
  %1063 = vst.msk [vmem:[%s1062] ss:$100 sm:$0x3] %vm1061, %v1060
  %s1064 = scalar_lea.vmem %s1, 5305
  %1065 = vst.msk [vmem:[%s1064] ss:$-350 sm:$0xc] %vm1061, %v1060
  %v1066 = vld.sshfl [vmem:[%s0] sm:$0xff pattern:$0x4b2907e5]
  %1067 = vrot.lane.b32.xlu0 %v1066, 116
  %v1068 = vpop.permute.xlu0 %1067
  %vm1069 = vcmask 15360
  %s1070 = scalar_lea.vmem %s1, 256
  %1071 = vst.msk [vmem:[%s1070] ss:$450 sm:$0x3] %vm1069, %v1068
  %s1072 = scalar_lea.vmem %s1, 1056
  %1073 = vst.msk [vmem:[%s1072] ss:$-350 sm:$0xc] %vm1069, %v1068
  %s1074 = scalar_lea.vmem %s1, 1856
  %1075 = vst.msk [vmem:[%s1074] ss:$-350 sm:$0x30] %vm1069, %v1068
  %s1076 = scalar_lea.vmem %s1, 2656
  %1077 = vst.msk [vmem:[%s1076] ss:$-350 sm:$0xc0] %vm1069, %v1068
  %s1078 = scalar_lea.vmem %s0, 16
  %v1079 = vld.sshfl [vmem:[%s1078] sm:$0xff pattern:$0x4b2907e5]
  %1080 = vrot.lane.b32.xlu0 %v1079, 116
  %v1081 = vpop.permute.xlu0 %1080
  %vm1082 = vcmask 15360
  %s1083 = scalar_lea.vmem %s1, 1056
  %1084 = vst.msk [vmem:[%s1083] ss:$450 sm:$0x3] %vm1082, %v1081
  %s1085 = scalar_lea.vmem %s1, 1856
  %1086 = vst.msk [vmem:[%s1085] ss:$-350 sm:$0xc] %vm1082, %v1081
  %s1087 = scalar_lea.vmem %s1, 2656
  %1088 = vst.msk [vmem:[%s1087] ss:$-350 sm:$0x30] %vm1082, %v1081
  %s1089 = scalar_lea.vmem %s1, 3456
  %1090 = vst.msk [vmem:[%s1089] ss:$-350 sm:$0xc0] %vm1082, %v1081
  %s1091 = scalar_lea.vmem %s0, 32
  %v1092 = vld.sshfl [vmem:[%s1091] sm:$0xff pattern:$0x4b2907e5]
  %1093 = vrot.lane.b32.xlu0 %v1092, 116
  %v1094 = vpop.permute.xlu0 %1093
  %vm1095 = vcmask 15360
  %s1096 = scalar_lea.vmem %s1, 1856
  %1097 = vst.msk [vmem:[%s1096] ss:$450 sm:$0x3] %vm1095, %v1094
  %s1098 = scalar_lea.vmem %s1, 2656
  %1099 = vst.msk [vmem:[%s1098] ss:$-350 sm:$0xc] %vm1095, %v1094
  %s1100 = scalar_lea.vmem %s1, 3456
  %1101 = vst.msk [vmem:[%s1100] ss:$-350 sm:$0x30] %vm1095, %v1094
  %s1102 = scalar_lea.vmem %s1, 4256
  %1103 = vst.msk [vmem:[%s1102] ss:$-350 sm:$0xc0] %vm1095, %v1094
  %s1104 = scalar_lea.vmem %s0, 59
  %v1105 = vld.sshfl [vmem:[%s1104] sm:$0xff pattern:$0x22222290]
  %s1106 = scalar_lea.vmem %s0, 48
  %v1107 = vld.sshfl [vmem:[%s1106] sm:$0xff pattern:$0x888f0000]
  %vm1108 = vcmask 1045507
  %v1109 = vsel %vm1108, %v1107, %v1105
  %s1110 = scalar_lea.vmem %s0, 107
  %s1111 = smov 192
  %v1112 = vld [vmem:[%s1110] ss:$-7 sm:%s1111]
  %vm1113 = vcmask 1047558
  %v1114 = vsel %vm1113, %v1112, %v1109
  %1115 = vrot.lane.b32.xlu0 %v1114, 116
  %v1116 = vpop.permute.xlu0 %1115
  %vm1117 = vcmask 15360
  %s1118 = scalar_lea.vmem %s1, 2656
  %1119 = vst.msk [vmem:[%s1118] ss:$450 sm:$0x3] %vm1117, %v1116
  %s1120 = scalar_lea.vmem %s1, 3456
  %1121 = vst.msk [vmem:[%s1120] ss:$-350 sm:$0xc] %vm1117, %v1116
  %s1122 = scalar_lea.vmem %s1, 4256
  %1123 = vst.msk [vmem:[%s1122] ss:$-350 sm:$0x30] %vm1117, %v1116
  %s1124 = scalar_lea.vmem %s1, 5056
  %1125 = vst.msk [vmem:[%s1124] ss:$-350 sm:$0xc0] %vm1117, %v1116
  %s1126 = scalar_lea.vmem %s0, 70
  %v1127 = vld.sshfl [vmem:[%s1126] sm:$0xff pattern:$0x4b2907e5]
  %1128 = vrot.lane.b32.xlu0 %v1127, 116
  %v1129 = vpop.permute.xlu0 %1128
  %vm1130 = vcmask 15360
  %s1131 = scalar_lea.vmem %s1, 3456
  %1132 = vst.msk [vmem:[%s1131] ss:$450 sm:$0x3] %vm1130, %v1129
  %s1133 = scalar_lea.vmem %s1, 4256
  %1134 = vst.msk [vmem:[%s1133] ss:$-350 sm:$0xc] %vm1130, %v1129
  %s1135 = scalar_lea.vmem %s1, 5056
  %1136 = vst.msk [vmem:[%s1135] ss:$-350 sm:$0x30] %vm1130, %v1129
  %s1137 = scalar_lea.vmem %s1, 5856
  %1138 = vst.msk [vmem:[%s1137] ss:$-350 sm:$0xc0] %vm1130, %v1129
  %s1139 = scalar_lea.vmem %s0, 86
  %v1140 = vld.sshfl [vmem:[%s1139] sm:$0xff pattern:$0x4b2907e5]
  %1141 = vrot.lane.b32.xlu0 %v1140, 116
  %v1142 = vpop.permute.xlu0 %1141
  %vm1143 = vcmask 15360
  %s1144 = scalar_lea.vmem %s1, 4256
  %1145 = vst.msk [vmem:[%s1144] ss:$450 sm:$0x3] %vm1143, %v1142
  %s1146 = scalar_lea.vmem %s1, 5056
  %1147 = vst.msk [vmem:[%s1146] ss:$-350 sm:$0xc] %vm1143, %v1142
  %s1148 = scalar_lea.vmem %s1, 5856
  %1149 = vst.msk [vmem:[%s1148] ss:$-350 sm:$0x30] %vm1143, %v1142
  %s1150 = scalar_lea.vmem %s1, 6656
  %1151 = vst.msk [vmem:[%s1150] ss:$-350 sm:$0xc0] %vm1143, %v1142
  %s1152 = scalar_lea.vmem %s0, 102
  %s1153 = smov 3
  %v1154 = vld [vmem:[%s1152] ss:$2 sm:%s1153]
  %s1155 = scalar_lea.vmem %s0, 1
  %v1156 = vld.sshfl [vmem:[%s1155] sm:$0xff pattern:$0x907e5ccc]
  %vm1157 = vcmask 1047554
  %v1158 = vsel %vm1157, %v1156, %v1154
  %1159 = vrot.lane.b32.xlu0 %v1158, 116
  %v1160 = vpop.permute.xlu0 %1159
  %vm1161 = vcmask 15360
  %s1162 = scalar_lea.vmem %s1, 4806
  %1163 = vst.msk [vmem:[%s1162] ss:$100 sm:$0x3] %vm1161, %v1160
  %s1164 = scalar_lea.vmem %s1, 1356
  %1165 = vst.msk [vmem:[%s1164] ss:$-350 sm:$0xc] %vm1161, %v1160
  %s1166 = scalar_lea.vmem %s1, 2156
  %1167 = vst.msk [vmem:[%s1166] ss:$-350 sm:$0x70] %vm1161, %v1160
  %s1168 = scalar_lea.vmem %s1, 499
  %1169 = vst.msk [vmem:[%s1168] sm:$0x80] %vm1161, %v1160
  %s1170 = scalar_lea.vmem %s0, 17
  %v1171 = vld.sshfl [vmem:[%s1170] sm:$0xff pattern:$0x99907e5c]
  %s1172 = scalar_lea.vmem %s0, 4294967245
  %s1173 = smov 192
  %v1174 = vld [vmem:[%s1172] ss:$9 sm:%s1173]
  %vm1175 = vcmask 1047558
  %v1176 = vsel %vm1175, %v1174, %v1171
  %1177 = vrot.lane.b32.xlu0 %v1176, 116
  %v1178 = vpop.permute.xlu0 %1177
  %vm1179 = vcmask 15360
  %s1180 = scalar_lea.vmem %s1, 1456
  %1181 = vst.msk [vmem:[%s1180] ss:$-350 sm:$0x3] %vm1179, %v1178
  %s1182 = scalar_lea.vmem %s1, 2256
  %1183 = vst.msk [vmem:[%s1182] ss:$-350 sm:$0x1c] %vm1179, %v1178
  %s1184 = scalar_lea.vmem %s1, 7056
  %1185 = vst.msk [vmem:[%s1184] ss:$-1150 sm:$0x60] %vm1179, %v1178
  %s1186 = scalar_lea.vmem %s1, 599
  %1187 = vst.msk [vmem:[%s1186] sm:$0x80] %vm1179, %v1178
  %s1188 = scalar_lea.vmem %s0, 33
  %v1189 = vld.sshfl [vmem:[%s1188] sm:$0xff pattern:$0x99907e5c]
  %s1190 = scalar_lea.vmem %s0, 4294967261
  %s1191 = smov 192
  %v1192 = vld [vmem:[%s1190] ss:$9 sm:%s1191]
  %vm1193 = vcmask 1047558
  %v1194 = vsel %vm1193, %v1192, %v1189
  %1195 = vrot.lane.b32.xlu0 %v1194, 116
  %v1196 = vpop.permute.xlu0 %1195
  %vm1197 = vcmask 15360
  %s1198 = scalar_lea.vmem %s1, 2256
  %1199 = vst.msk [vmem:[%s1198] ss:$-350 sm:$0x3] %vm1197, %v1196
  %s1200 = scalar_lea.vmem %s1, 3056
  %1201 = vst.msk [vmem:[%s1200] ss:$-350 sm:$0x1c] %vm1197, %v1196
  %s1202 = scalar_lea.vmem %s1, 7856
  %1203 = vst.msk [vmem:[%s1202] ss:$-1150 sm:$0x60] %vm1197, %v1196
  %s1204 = scalar_lea.vmem %s1, 1399
  %1205 = vst.msk [vmem:[%s1204] sm:$0x80] %vm1197, %v1196
  %s1206 = scalar_lea.vmem %s0, 60
  %v1207 = vld.sshfl [vmem:[%s1206] sm:$0xff pattern:$0x22222907]
  %s1208 = scalar_lea.vmem %s0, 4294967285
  %s1209 = smov 48
  %v1210 = vld [vmem:[%s1208] ss:$15 sm:%s1209]
  %vm1211 = vcmask 1045508
  %v1212 = vsel %vm1211, %v1210, %v1207
  %s1213 = scalar_lea.vmem %s0, 4294967277
  %s1214 = smov 192
  %v1215 = vld [vmem:[%s1213] ss:$9 sm:%s1214]
  %vm1216 = vcmask 1047558
  %v1217 = vsel %vm1216, %v1215, %v1212
  %1218 = vrot.lane.b32.xlu0 %v1217, 116
  %v1219 = vpop.permute.xlu0 %1218
  %vm1220 = vcmask 15360
  %s1221 = scalar_lea.vmem %s1, 3056
  %1222 = vst.msk [vmem:[%s1221] ss:$-350 sm:$0x3] %vm1220, %v1219
  %s1223 = scalar_lea.vmem %s1, 3856
  %1224 = vst.msk [vmem:[%s1223] ss:$-350 sm:$0x1c] %vm1220, %v1219
  %s1225 = scalar_lea.vmem %s1, 8656
  %1226 = vst.msk [vmem:[%s1225] ss:$-1150 sm:$0x60] %vm1220, %v1219
  %s1227 = scalar_lea.vmem %s1, 2199
  %1228 = vst.msk [vmem:[%s1227] sm:$0x80] %vm1220, %v1219
  %s1229 = scalar_lea.vmem %s0, 71
  %v1230 = vld.sshfl [vmem:[%s1229] sm:$0xff pattern:$0x99907e5c]
  %s1231 = scalar_lea.vmem %s0, 3
  %s1232 = smov 192
  %v1233 = vld [vmem:[%s1231] ss:$9 sm:%s1232]
  %vm1234 = vcmask 1047558
  %v1235 = vsel %vm1234, %v1233, %v1230
  %1236 = vrot.lane.b32.xlu0 %v1235, 116
  %v1237 = vpop.permute.xlu0 %1236
  %vm1238 = vcmask 15360
  %s1239 = scalar_lea.vmem %s1, 3856
  %1240 = vst.msk [vmem:[%s1239] ss:$-350 sm:$0x3] %vm1238, %v1237
  %s1241 = scalar_lea.vmem %s1, 4656
  %1242 = vst.msk [vmem:[%s1241] ss:$-350 sm:$0x1c] %vm1238, %v1237
  %s1243 = scalar_lea.vmem %s1, 9456
  %1244 = vst.msk [vmem:[%s1243] ss:$-1150 sm:$0x60] %vm1238, %v1237
  %s1245 = scalar_lea.vmem %s1, 2999
  %1246 = vst.msk [vmem:[%s1245] sm:$0x80] %vm1238, %v1237
  %s1247 = scalar_lea.vmem %s0, 87
  %v1248 = vld.sshfl [vmem:[%s1247] sm:$0xff pattern:$0x99907e5c]
  %s1249 = scalar_lea.vmem %s0, 19
  %s1250 = smov 192
  %v1251 = vld [vmem:[%s1249] ss:$9 sm:%s1250]
  %vm1252 = vcmask 1047558
  %v1253 = vsel %vm1252, %v1251, %v1248
  %1254 = vrot.lane.b32.xlu0 %v1253, 116
  %v1255 = vpop.permute.xlu0 %1254
  %vm1256 = vcmask 15360
  %s1257 = scalar_lea.vmem %s1, 4656
  %1258 = vst.msk [vmem:[%s1257] ss:$-350 sm:$0x3] %vm1256, %v1255
  %s1259 = scalar_lea.vmem %s1, 5456
  %1260 = vst.msk [vmem:[%s1259] ss:$-350 sm:$0x1c] %vm1256, %v1255
  %s1261 = scalar_lea.vmem %s1, 10256
  %1262 = vst.msk [vmem:[%s1261] ss:$-1150 sm:$0x60] %vm1256, %v1255
  %s1263 = scalar_lea.vmem %s1, 3799
  %1264 = vst.msk [vmem:[%s1263] sm:$0x80] %vm1256, %v1255
  %s1265 = scalar_lea.vmem %s0, 89
  %v1266 = vld.sshfl [vmem:[%s1265] sm:$0xff pattern:$0x9999990e]
  %s1267 = scalar_lea.vmem %s0, 102
  %v1268 = vld [vmem:[%s1267] sm:$0x8]
  %vm1269 = vcmask 1043459
  %v1270 = vsel %vm1269, %v1268, %v1266
  %1271 = vrot.lane.b32.xlu0 %v1270, 116
  %v1272 = vpop.permute.xlu0 %1271
  %vm1273 = vcmask 15360
  %s1274 = scalar_lea.vmem %s1, 4856
  %1275 = vst.msk [vmem:[%s1274] ss:$-700 sm:$0x3] %vm1273, %v1272
  %s1276 = scalar_lea.vmem %s1, 3906
  %1277 = vst.msk [vmem:[%s1276] ss:$350 sm:$0xc] %vm1273, %v1272
  %v1278 = vld.sshfl [vmem:[%s0] sm:$0xff pattern:$0x4b2907e5]
  %1279 = vrot.lane.b32.xlu0 %v1278, 114
  %v1280 = vpop.permute.xlu0 %1279
  %vm1281 = vcmask 15360
  %s1282 = scalar_lea.vmem %s1, 257
  %1283 = vst.msk [vmem:[%s1282] ss:$450 sm:$0x3] %vm1281, %v1280
  %s1284 = scalar_lea.vmem %s1, 1057
  %1285 = vst.msk [vmem:[%s1284] ss:$-350 sm:$0xc] %vm1281, %v1280
  %s1286 = scalar_lea.vmem %s1, 1857
  %1287 = vst.msk [vmem:[%s1286] ss:$-350 sm:$0x30] %vm1281, %v1280
  %s1288 = scalar_lea.vmem %s1, 2657
  %1289 = vst.msk [vmem:[%s1288] ss:$-350 sm:$0xc0] %vm1281, %v1280
  %s1290 = scalar_lea.vmem %s0, 16
  %v1291 = vld.sshfl [vmem:[%s1290] sm:$0xff pattern:$0x4b2907e5]
  %1292 = vrot.lane.b32.xlu0 %v1291, 114
  %v1293 = vpop.permute.xlu0 %1292
  %vm1294 = vcmask 15360
  %s1295 = scalar_lea.vmem %s1, 1057
  %1296 = vst.msk [vmem:[%s1295] ss:$450 sm:$0x3] %vm1294, %v1293
  %s1297 = scalar_lea.vmem %s1, 1857
  %1298 = vst.msk [vmem:[%s1297] ss:$-350 sm:$0xc] %vm1294, %v1293
  %s1299 = scalar_lea.vmem %s1, 2657
  %1300 = vst.msk [vmem:[%s1299] ss:$-350 sm:$0x30] %vm1294, %v1293
  %s1301 = scalar_lea.vmem %s1, 3457
  %1302 = vst.msk [vmem:[%s1301] ss:$-350 sm:$0xc0] %vm1294, %v1293
  %s1303 = scalar_lea.vmem %s0, 32
  %v1304 = vld.sshfl [vmem:[%s1303] sm:$0xff pattern:$0x4b2907e5]
  %1305 = vrot.lane.b32.xlu0 %v1304, 114
  %v1306 = vpop.permute.xlu0 %1305
  %vm1307 = vcmask 15360
  %s1308 = scalar_lea.vmem %s1, 1857
  %1309 = vst.msk [vmem:[%s1308] ss:$450 sm:$0x3] %vm1307, %v1306
  %s1310 = scalar_lea.vmem %s1, 2657
  %1311 = vst.msk [vmem:[%s1310] ss:$-350 sm:$0xc] %vm1307, %v1306
  %s1312 = scalar_lea.vmem %s1, 3457
  %1313 = vst.msk [vmem:[%s1312] ss:$-350 sm:$0x30] %vm1307, %v1306
  %s1314 = scalar_lea.vmem %s1, 4257
  %1315 = vst.msk [vmem:[%s1314] ss:$-350 sm:$0xc0] %vm1307, %v1306
  %s1316 = scalar_lea.vmem %s0, 59
  %v1317 = vld.sshfl [vmem:[%s1316] sm:$0xff pattern:$0x22222290]
  %s1318 = scalar_lea.vmem %s0, 48
  %v1319 = vld.sshfl [vmem:[%s1318] sm:$0xff pattern:$0x888f0000]
  %vm1320 = vcmask 1045507
  %v1321 = vsel %vm1320, %v1319, %v1317
  %s1322 = scalar_lea.vmem %s0, 107
  %s1323 = smov 192
  %v1324 = vld [vmem:[%s1322] ss:$-7 sm:%s1323]
  %vm1325 = vcmask 1047558
  %v1326 = vsel %vm1325, %v1324, %v1321
  %1327 = vrot.lane.b32.xlu0 %v1326, 114
  %v1328 = vpop.permute.xlu0 %1327
  %vm1329 = vcmask 15360
  %s1330 = scalar_lea.vmem %s1, 2657
  %1331 = vst.msk [vmem:[%s1330] ss:$450 sm:$0x3] %vm1329, %v1328
  %s1332 = scalar_lea.vmem %s1, 3457
  %1333 = vst.msk [vmem:[%s1332] ss:$-350 sm:$0xc] %vm1329, %v1328
  %s1334 = scalar_lea.vmem %s1, 4257
  %1335 = vst.msk [vmem:[%s1334] ss:$-350 sm:$0x30] %vm1329, %v1328
  %s1336 = scalar_lea.vmem %s1, 5057
  %1337 = vst.msk [vmem:[%s1336] ss:$-350 sm:$0xc0] %vm1329, %v1328
  %s1338 = scalar_lea.vmem %s0, 70
  %v1339 = vld.sshfl [vmem:[%s1338] sm:$0xff pattern:$0x4b2907e5]
  %1340 = vrot.lane.b32.xlu0 %v1339, 114
  %v1341 = vpop.permute.xlu0 %1340
  %vm1342 = vcmask 15360
  %s1343 = scalar_lea.vmem %s1, 3457
  %1344 = vst.msk [vmem:[%s1343] ss:$450 sm:$0x3] %vm1342, %v1341
  %s1345 = scalar_lea.vmem %s1, 4257
  %1346 = vst.msk [vmem:[%s1345] ss:$-350 sm:$0xc] %vm1342, %v1341
  %s1347 = scalar_lea.vmem %s1, 5057
  %1348 = vst.msk [vmem:[%s1347] ss:$-350 sm:$0x30] %vm1342, %v1341
  %s1349 = scalar_lea.vmem %s1, 5857
  %1350 = vst.msk [vmem:[%s1349] ss:$-350 sm:$0xc0] %vm1342, %v1341
  %s1351 = scalar_lea.vmem %s0, 86
  %v1352 = vld.sshfl [vmem:[%s1351] sm:$0xff pattern:$0x4b2907e5]
  %1353 = vrot.lane.b32.xlu0 %v1352, 114
  %v1354 = vpop.permute.xlu0 %1353
  %vm1355 = vcmask 15360
  %s1356 = scalar_lea.vmem %s1, 4257
  %1357 = vst.msk [vmem:[%s1356] ss:$450 sm:$0x3] %vm1355, %v1354
  %s1358 = scalar_lea.vmem %s1, 5057
  %1359 = vst.msk [vmem:[%s1358] ss:$-350 sm:$0xc] %vm1355, %v1354
  %s1360 = scalar_lea.vmem %s1, 5857
  %1361 = vst.msk [vmem:[%s1360] ss:$-350 sm:$0x30] %vm1355, %v1354
  %s1362 = scalar_lea.vmem %s1, 6657
  %1363 = vst.msk [vmem:[%s1362] ss:$-350 sm:$0xc0] %vm1355, %v1354
  %s1364 = scalar_lea.vmem %s0, 102
  %s1365 = smov 3
  %v1366 = vld [vmem:[%s1364] ss:$2 sm:%s1365]
  %s1367 = scalar_lea.vmem %s0, 1
  %v1368 = vld.sshfl [vmem:[%s1367] sm:$0xff pattern:$0x907e5ccc]
  %vm1369 = vcmask 1047554
  %v1370 = vsel %vm1369, %v1368, %v1366
  %1371 = vrot.lane.b32.xlu0 %v1370, 114
  %v1372 = vpop.permute.xlu0 %1371
  %vm1373 = vcmask 15360
  %s1374 = scalar_lea.vmem %s1, 4807
  %1375 = vst.msk [vmem:[%s1374] ss:$100 sm:$0x3] %vm1373, %v1372
  %s1376 = scalar_lea.vmem %s1, 1357
  %1377 = vst.msk [vmem:[%s1376] ss:$-350 sm:$0xc] %vm1373, %v1372
  %s1378 = scalar_lea.vmem %s1, 2157
  %1379 = vst.msk [vmem:[%s1378] ss:$-350 sm:$0x70] %vm1373, %v1372
  %s1380 = scalar_lea.vmem %s1, 500
  %1381 = vst.msk [vmem:[%s1380] sm:$0x80] %vm1373, %v1372
  %s1382 = scalar_lea.vmem %s0, 17
  %v1383 = vld.sshfl [vmem:[%s1382] sm:$0xff pattern:$0x99907e5c]
  %s1384 = scalar_lea.vmem %s0, 4294967245
  %s1385 = smov 192
  %v1386 = vld [vmem:[%s1384] ss:$9 sm:%s1385]
  %vm1387 = vcmask 1047558
  %v1388 = vsel %vm1387, %v1386, %v1383
  %1389 = vrot.lane.b32.xlu0 %v1388, 114
  %v1390 = vpop.permute.xlu0 %1389
  %vm1391 = vcmask 15360
  %s1392 = scalar_lea.vmem %s1, 1457
  %1393 = vst.msk [vmem:[%s1392] ss:$-350 sm:$0x3] %vm1391, %v1390
  %s1394 = scalar_lea.vmem %s1, 2257
  %1395 = vst.msk [vmem:[%s1394] ss:$-350 sm:$0x1c] %vm1391, %v1390
  %s1396 = scalar_lea.vmem %s1, 7057
  %1397 = vst.msk [vmem:[%s1396] ss:$-1150 sm:$0x60] %vm1391, %v1390
  %s1398 = scalar_lea.vmem %s1, 600
  %1399 = vst.msk [vmem:[%s1398] sm:$0x80] %vm1391, %v1390
  %s1400 = scalar_lea.vmem %s0, 33
  %v1401 = vld.sshfl [vmem:[%s1400] sm:$0xff pattern:$0x99907e5c]
  %s1402 = scalar_lea.vmem %s0, 4294967261
  %s1403 = smov 192
  %v1404 = vld [vmem:[%s1402] ss:$9 sm:%s1403]
  %vm1405 = vcmask 1047558
  %v1406 = vsel %vm1405, %v1404, %v1401
  %1407 = vrot.lane.b32.xlu0 %v1406, 114
  %v1408 = vpop.permute.xlu0 %1407
  %vm1409 = vcmask 15360
  %s1410 = scalar_lea.vmem %s1, 2257
  %1411 = vst.msk [vmem:[%s1410] ss:$-350 sm:$0x3] %vm1409, %v1408
  %s1412 = scalar_lea.vmem %s1, 3057
  %1413 = vst.msk [vmem:[%s1412] ss:$-350 sm:$0x1c] %vm1409, %v1408
  %s1414 = scalar_lea.vmem %s1, 7857
  %1415 = vst.msk [vmem:[%s1414] ss:$-1150 sm:$0x60] %vm1409, %v1408
  %s1416 = scalar_lea.vmem %s1, 1400
  %1417 = vst.msk [vmem:[%s1416] sm:$0x80] %vm1409, %v1408
  %s1418 = scalar_lea.vmem %s0, 60
  %v1419 = vld.sshfl [vmem:[%s1418] sm:$0xff pattern:$0x22222907]
  %s1420 = scalar_lea.vmem %s0, 4294967285
  %s1421 = smov 48
  %v1422 = vld [vmem:[%s1420] ss:$15 sm:%s1421]
  %vm1423 = vcmask 1045508
  %v1424 = vsel %vm1423, %v1422, %v1419
  %s1425 = scalar_lea.vmem %s0, 4294967277
  %s1426 = smov 192
  %v1427 = vld [vmem:[%s1425] ss:$9 sm:%s1426]
  %vm1428 = vcmask 1047558
  %v1429 = vsel %vm1428, %v1427, %v1424
  %1430 = vrot.lane.b32.xlu0 %v1429, 114
  %v1431 = vpop.permute.xlu0 %1430
  %vm1432 = vcmask 15360
  %s1433 = scalar_lea.vmem %s1, 3057
  %1434 = vst.msk [vmem:[%s1433] ss:$-350 sm:$0x3] %vm1432, %v1431
  %s1435 = scalar_lea.vmem %s1, 3857
  %1436 = vst.msk [vmem:[%s1435] ss:$-350 sm:$0x1c] %vm1432, %v1431
  %s1437 = scalar_lea.vmem %s1, 8657
  %1438 = vst.msk [vmem:[%s1437] ss:$-1150 sm:$0x60] %vm1432, %v1431
  %s1439 = scalar_lea.vmem %s1, 2200
  %1440 = vst.msk [vmem:[%s1439] sm:$0x80] %vm1432, %v1431
  %s1441 = scalar_lea.vmem %s0, 71
  %v1442 = vld.sshfl [vmem:[%s1441] sm:$0xff pattern:$0x99907e5c]
  %s1443 = scalar_lea.vmem %s0, 3
  %s1444 = smov 192
  %v1445 = vld [vmem:[%s1443] ss:$9 sm:%s1444]
  %vm1446 = vcmask 1047558
  %v1447 = vsel %vm1446, %v1445, %v1442
  %1448 = vrot.lane.b32.xlu0 %v1447, 114
  %v1449 = vpop.permute.xlu0 %1448
  %vm1450 = vcmask 15360
  %s1451 = scalar_lea.vmem %s1, 3857
  %1452 = vst.msk [vmem:[%s1451] ss:$-350 sm:$0x3] %vm1450, %v1449
  %s1453 = scalar_lea.vmem %s1, 4657
  %1454 = vst.msk [vmem:[%s1453] ss:$-350 sm:$0x1c] %vm1450, %v1449
  %s1455 = scalar_lea.vmem %s1, 9457
  %1456 = vst.msk [vmem:[%s1455] ss:$-1150 sm:$0x60] %vm1450, %v1449
  %s1457 = scalar_lea.vmem %s1, 3000
  %1458 = vst.msk [vmem:[%s1457] sm:$0x80] %vm1450, %v1449
  %s1459 = scalar_lea.vmem %s0, 87
  %v1460 = vld.sshfl [vmem:[%s1459] sm:$0xff pattern:$0x99907e5c]
  %s1461 = scalar_lea.vmem %s0, 19
  %s1462 = smov 192
  %v1463 = vld [vmem:[%s1461] ss:$9 sm:%s1462]
  %vm1464 = vcmask 1047558
  %v1465 = vsel %vm1464, %v1463, %v1460
  %1466 = vrot.lane.b32.xlu0 %v1465, 114
  %v1467 = vpop.permute.xlu0 %1466
  %vm1468 = vcmask 15360
  %s1469 = scalar_lea.vmem %s1, 4657
  %1470 = vst.msk [vmem:[%s1469] ss:$-350 sm:$0x3] %vm1468, %v1467
  %s1471 = scalar_lea.vmem %s1, 5457
  %1472 = vst.msk [vmem:[%s1471] ss:$-350 sm:$0x1c] %vm1468, %v1467
  %s1473 = scalar_lea.vmem %s1, 10257
  %1474 = vst.msk [vmem:[%s1473] ss:$-1150 sm:$0x60] %vm1468, %v1467
  %s1475 = scalar_lea.vmem %s1, 3800
  %1476 = vst.msk [vmem:[%s1475] sm:$0x80] %vm1468, %v1467
  %s1477 = scalar_lea.vmem %s0, 89
  %v1478 = vld.sshfl [vmem:[%s1477] sm:$0xff pattern:$0x9999990e]
  %s1479 = scalar_lea.vmem %s0, 102
  %v1480 = vld [vmem:[%s1479] sm:$0x8]
  %vm1481 = vcmask 1043459
  %v1482 = vsel %vm1481, %v1480, %v1478
  %1483 = vrot.lane.b32.xlu0 %v1482, 114
  %v1484 = vpop.permute.xlu0 %1483
  %vm1485 = vcmask 15360
  %s1486 = scalar_lea.vmem %s1, 4857
  %1487 = vst.msk [vmem:[%s1486] ss:$-700 sm:$0x3] %vm1485, %v1484
  %s1488 = scalar_lea.vmem %s1, 3907
  %1489 = vst.msk [vmem:[%s1488] ss:$350 sm:$0xc] %vm1485, %v1484
  %v1490 = vld.sshfl [vmem:[%s0] sm:$0xff pattern:$0xb2907e5c]
  %1491 = vrot.lane.b32.xlu0 %v1490, 112
  %v1492 = vpop.permute.xlu0 %1491
  %vm1493 = vcmask 15360
  %s1494 = scalar_lea.vmem %s1, 608
  %1495 = vst.msk [vmem:[%s1494] ss:$-350 sm:$0x3] %vm1493, %v1492
  %s1496 = scalar_lea.vmem %s1, 1408
  %1497 = vst.msk [vmem:[%s1496] ss:$-350 sm:$0x1c] %vm1493, %v1492
  %s1498 = scalar_lea.vmem %s1, 2208
  %1499 = vst.msk [vmem:[%s1498] ss:$-350 sm:$0x60] %vm1493, %v1492
  %s1500 = scalar_lea.vmem %s1, 551
  %1501 = vst.msk [vmem:[%s1500] sm:$0x80] %vm1493, %v1492
  %s1502 = scalar_lea.vmem %s0, 16
  %v1503 = vld.sshfl [vmem:[%s1502] sm:$0xff pattern:$0xb2907e5c]
  %1504 = vrot.lane.b32.xlu0 %v1503, 112
  %v1505 = vpop.permute.xlu0 %1504
  %vm1506 = vcmask 15360
  %s1507 = scalar_lea.vmem %s1, 1408
  %1508 = vst.msk [vmem:[%s1507] ss:$-350 sm:$0x3] %vm1506, %v1505
  %s1509 = scalar_lea.vmem %s1, 2208
  %1510 = vst.msk [vmem:[%s1509] ss:$-350 sm:$0x1c] %vm1506, %v1505
  %s1511 = scalar_lea.vmem %s1, 3008
  %1512 = vst.msk [vmem:[%s1511] ss:$-350 sm:$0x60] %vm1506, %v1505
  %s1513 = scalar_lea.vmem %s1, 1351
  %1514 = vst.msk [vmem:[%s1513] sm:$0x80] %vm1506, %v1505
  %s1515 = scalar_lea.vmem %s0, 32
  %v1516 = vld.sshfl [vmem:[%s1515] sm:$0xff pattern:$0xb2907e5c]
  %1517 = vrot.lane.b32.xlu0 %v1516, 112
  %v1518 = vpop.permute.xlu0 %1517
  %vm1519 = vcmask 15360
  %s1520 = scalar_lea.vmem %s1, 2208
  %1521 = vst.msk [vmem:[%s1520] ss:$-350 sm:$0x3] %vm1519, %v1518
  %s1522 = scalar_lea.vmem %s1, 3008
  %1523 = vst.msk [vmem:[%s1522] ss:$-350 sm:$0x1c] %vm1519, %v1518
  %s1524 = scalar_lea.vmem %s1, 3808
  %1525 = vst.msk [vmem:[%s1524] ss:$-350 sm:$0x60] %vm1519, %v1518
  %s1526 = scalar_lea.vmem %s1, 2151
  %1527 = vst.msk [vmem:[%s1526] sm:$0x80] %vm1519, %v1518
  %s1528 = scalar_lea.vmem %s0, 59
  %v1529 = vld.sshfl [vmem:[%s1528] sm:$0xff pattern:$0x22222907]
  %s1530 = scalar_lea.vmem %s0, 48
  %v1531 = vld.sshfl [vmem:[%s1530] sm:$0xff pattern:$0x88f00000]
  %vm1532 = vcmask 1046532
  %v1533 = vsel %vm1532, %v1531, %v1529
  %s1534 = scalar_lea.vmem %s0, 58
  %v1535 = vld [vmem:[%s1534] sm:$0x80]
  %vm1536 = vcmask 1047559
  %v1537 = vsel %vm1536, %v1535, %v1533
  %1538 = vrot.lane.b32.xlu0 %v1537, 112
  %v1539 = vpop.permute.xlu0 %1538
  %vm1540 = vcmask 15360
  %s1541 = scalar_lea.vmem %s1, 3008
  %1542 = vst.msk [vmem:[%s1541] ss:$-350 sm:$0x3] %vm1540, %v1539
  %s1543 = scalar_lea.vmem %s1, 3808
  %1544 = vst.msk [vmem:[%s1543] ss:$-350 sm:$0x1c] %vm1540, %v1539
  %s1545 = scalar_lea.vmem %s1, 4608
  %1546 = vst.msk [vmem:[%s1545] ss:$-350 sm:$0x60] %vm1540, %v1539
  %s1547 = scalar_lea.vmem %s1, 2951
  %1548 = vst.msk [vmem:[%s1547] sm:$0x80] %vm1540, %v1539
  %s1549 = scalar_lea.vmem %s0, 70
  %v1550 = vld.sshfl [vmem:[%s1549] sm:$0xff pattern:$0xb2907e5c]
  %1551 = vrot.lane.b32.xlu0 %v1550, 112
  %v1552 = vpop.permute.xlu0 %1551
  %vm1553 = vcmask 15360
  %s1554 = scalar_lea.vmem %s1, 3808
  %1555 = vst.msk [vmem:[%s1554] ss:$-350 sm:$0x3] %vm1553, %v1552
  %s1556 = scalar_lea.vmem %s1, 4608
  %1557 = vst.msk [vmem:[%s1556] ss:$-350 sm:$0x1c] %vm1553, %v1552
  %s1558 = scalar_lea.vmem %s1, 5408
  %1559 = vst.msk [vmem:[%s1558] ss:$-350 sm:$0x60] %vm1553, %v1552
  %s1560 = scalar_lea.vmem %s1, 3751
  %1561 = vst.msk [vmem:[%s1560] sm:$0x80] %vm1553, %v1552
  %s1562 = scalar_lea.vmem %s0, 86
  %v1563 = vld.sshfl [vmem:[%s1562] sm:$0xff pattern:$0xb2907e5c]
  %1564 = vrot.lane.b32.xlu0 %v1563, 112
  %v1565 = vpop.permute.xlu0 %1564
  %vm1566 = vcmask 15360
  %s1567 = scalar_lea.vmem %s1, 4608
  %1568 = vst.msk [vmem:[%s1567] ss:$-350 sm:$0x3] %vm1566, %v1565
  %s1569 = scalar_lea.vmem %s1, 5408
  %1570 = vst.msk [vmem:[%s1569] ss:$-350 sm:$0x1c] %vm1566, %v1565
  %s1571 = scalar_lea.vmem %s1, 6208
  %1572 = vst.msk [vmem:[%s1571] ss:$-350 sm:$0x60] %vm1566, %v1565
  %s1573 = scalar_lea.vmem %s1, 4551
  %1574 = vst.msk [vmem:[%s1573] sm:$0x80] %vm1566, %v1565
  %s1575 = scalar_lea.vmem %s0, 102
  %s1576 = smov 3
  %v1577 = vld [vmem:[%s1575] ss:$2 sm:%s1576]
  %s1578 = scalar_lea.vmem %s0, 1
  %v1579 = vld.sshfl [vmem:[%s1578] sm:$0xff pattern:$0x7e5c333]
  %vm1580 = vcmask 1047554
  %v1581 = vsel %vm1580, %v1579, %v1577
  %1582 = vrot.lane.b32.xlu0 %v1581, 112
  %v1583 = vpop.permute.xlu0 %1582
  %vm1584 = vcmask 15360
  %s1585 = scalar_lea.vmem %s1, 4808
  %1586 = vst.msk [vmem:[%s1585] ss:$100 sm:$0x3] %vm1584, %v1583
  %s1587 = scalar_lea.vmem %s1, 4294966604
  %1588 = vst.msk [vmem:[%s1587] ss:$450 sm:$0xc] %vm1584, %v1583
  %s1589 = scalar_lea.vmem %s1, 4294965804
  %1590 = vst.msk [vmem:[%s1589] ss:$450 sm:$0x30] %vm1584, %v1583
  %s1591 = scalar_lea.vmem %s1, 2508
  %1592 = vst.msk [vmem:[%s1591] ss:$-350 sm:$0xc0] %vm1584, %v1583
  %s1593 = scalar_lea.vmem %s0, 17
  %v1594 = vld.sshfl [vmem:[%s1593] sm:$0xff pattern:$0x7e5c3]
  %s1595 = scalar_lea.vmem %s0, 52
  %s1596 = smov 192
  %v1597 = vld [vmem:[%s1595] ss:$-7 sm:%s1596]
  %vm1598 = vcmask 1047558
  %v1599 = vsel %vm1598, %v1597, %v1594
  %1600 = vrot.lane.b32.xlu0 %v1599, 112
  %v1601 = vpop.permute.xlu0 %1600
  %vm1602 = vcmask 15360
  %s1603 = scalar_lea.vmem %s1, 1008
  %1604 = vst.msk [vmem:[%s1603] ss:$450 sm:$0x3] %vm1602, %v1601
  %s1605 = scalar_lea.vmem %s1, 208
  %1606 = vst.msk [vmem:[%s1605] ss:$450 sm:$0xc] %vm1602, %v1601
  %s1607 = scalar_lea.vmem %s1, 2608
  %1608 = vst.msk [vmem:[%s1607] ss:$-350 sm:$0xf0] %vm1602, %v1601
  %s1609 = scalar_lea.vmem %s0, 33
  %v1610 = vld.sshfl [vmem:[%s1609] sm:$0xff pattern:$0x7e5c3]
  %s1611 = scalar_lea.vmem %s0, 68
  %s1612 = smov 192
  %v1613 = vld [vmem:[%s1611] ss:$-7 sm:%s1612]
  %vm1614 = vcmask 1047558
  %v1615 = vsel %vm1614, %v1613, %v1610
  %1616 = vrot.lane.b32.xlu0 %v1615, 112
  %v1617 = vpop.permute.xlu0 %1616
  %vm1618 = vcmask 15360
  %s1619 = scalar_lea.vmem %s1, 1808
  %1620 = vst.msk [vmem:[%s1619] ss:$450 sm:$0x3] %vm1618, %v1617
  %s1621 = scalar_lea.vmem %s1, 1008
  %1622 = vst.msk [vmem:[%s1621] ss:$450 sm:$0xc] %vm1618, %v1617
  %s1623 = scalar_lea.vmem %s1, 3408
  %1624 = vst.msk [vmem:[%s1623] ss:$-350 sm:$0xf0] %vm1618, %v1617
  %s1625 = scalar_lea.vmem %s0, 58
  %v1626 = vld.sshfl [vmem:[%s1625] sm:$0xff pattern:$0x4444b290]
  %s1627 = scalar_lea.vmem %s0, 84
  %v1628 = vld [vmem:[%s1627] ss:$-7 sm:$0xe0]
  %vm1629 = vcmask 1047557
  %v1630 = vsel %vm1629, %v1628, %v1626
  %1631 = vrot.lane.b32.xlu0 %v1630, 112
  %v1632 = vpop.permute.xlu0 %1631
  %vm1633 = vcmask 15360
  %s1634 = scalar_lea.vmem %s1, 2608
  %1635 = vst.msk [vmem:[%s1634] ss:$450 sm:$0x3] %vm1633, %v1632
  %s1636 = scalar_lea.vmem %s1, 1808
  %1637 = vst.msk [vmem:[%s1636] ss:$450 sm:$0xc] %vm1633, %v1632
  %s1638 = scalar_lea.vmem %s1, 4208
  %1639 = vst.msk [vmem:[%s1638] ss:$-350 sm:$0xf0] %vm1633, %v1632
  %s1640 = scalar_lea.vmem %s0, 71
  %v1641 = vld.sshfl [vmem:[%s1640] sm:$0xff pattern:$0x7e5c3]
  %s1642 = scalar_lea.vmem %s0, 106
  %s1643 = smov 192
  %v1644 = vld [vmem:[%s1642] ss:$-7 sm:%s1643]
  %vm1645 = vcmask 1047558
  %v1646 = vsel %vm1645, %v1644, %v1641
  %1647 = vrot.lane.b32.xlu0 %v1646, 112
  %v1648 = vpop.permute.xlu0 %1647
  %vm1649 = vcmask 15360
  %s1650 = scalar_lea.vmem %s1, 3408
  %1651 = vst.msk [vmem:[%s1650] ss:$450 sm:$0x3] %vm1649, %v1648
  %s1652 = scalar_lea.vmem %s1, 2608
  %1653 = vst.msk [vmem:[%s1652] ss:$450 sm:$0xc] %vm1649, %v1648
  %s1654 = scalar_lea.vmem %s1, 5008
  %1655 = vst.msk [vmem:[%s1654] ss:$-350 sm:$0xf0] %vm1649, %v1648
  %s1656 = scalar_lea.vmem %s0, 87
  %v1657 = vld.sshfl [vmem:[%s1656] sm:$0xff pattern:$0x7e5c3]
  %s1658 = scalar_lea.vmem %s0, 122
  %s1659 = smov 192
  %v1660 = vld [vmem:[%s1658] ss:$-7 sm:%s1659]
  %vm1661 = vcmask 1047558
  %v1662 = vsel %vm1661, %v1660, %v1657
  %1663 = vrot.lane.b32.xlu0 %v1662, 112
  %v1664 = vpop.permute.xlu0 %1663
  %vm1665 = vcmask 15360
  %s1666 = scalar_lea.vmem %s1, 4208
  %1667 = vst.msk [vmem:[%s1666] ss:$450 sm:$0x3] %vm1665, %v1664
  %s1668 = scalar_lea.vmem %s1, 3408
  %1669 = vst.msk [vmem:[%s1668] ss:$450 sm:$0xc] %vm1665, %v1664
  %s1670 = scalar_lea.vmem %s1, 5808
  %1671 = vst.msk [vmem:[%s1670] ss:$-350 sm:$0xf0] %vm1665, %v1664
  %s1672 = scalar_lea.vmem %s0, 103
  %v1673 = vld [vmem:[%s1672] ss:$-7 sm:$0x7]
  %s1674 = scalar_lea.vmem %s0, 102
  %v1675 = vld [vmem:[%s1674] sm:$0x8]
  %vm1676 = vcmask 1043459
  %v1677 = vsel %vm1676, %v1675, %v1673
  %1678 = vrot.lane.b32.xlu0 %v1677, 112
  %v1679 = vpop.permute.xlu0 %1678
  %vm1680 = vcmask 15360
  %s1681 = scalar_lea.vmem %s1, 4858
  %1682 = vst.msk [vmem:[%s1681] ss:$-350 sm:$0x7] %vm1680, %v1679
  %s1683 = scalar_lea.vmem %s1, 4955
  %1684 = vst.msk [vmem:[%s1683] sm:$0x8] %vm1680, %v1679
  %v1685 = vld.sshfl [vmem:[%s0] sm:$0xff pattern:$0xb2907e5c]
  %1686 = vrot.lane.b32.xlu0 %v1685, 110
  %v1687 = vpop.permute.xlu0 %1686
  %vm1688 = vcmask 15360
  %s1689 = scalar_lea.vmem %s1, 609
  %1690 = vst.msk [vmem:[%s1689] ss:$-350 sm:$0x3] %vm1688, %v1687
  %s1691 = scalar_lea.vmem %s1, 1409
  %1692 = vst.msk [vmem:[%s1691] ss:$-350 sm:$0x1c] %vm1688, %v1687
  %s1693 = scalar_lea.vmem %s1, 2209
  %1694 = vst.msk [vmem:[%s1693] ss:$-350 sm:$0x60] %vm1688, %v1687
  %s1695 = scalar_lea.vmem %s1, 552
  %1696 = vst.msk [vmem:[%s1695] sm:$0x80] %vm1688, %v1687
  %s1697 = scalar_lea.vmem %s0, 16
  %v1698 = vld.sshfl [vmem:[%s1697] sm:$0xff pattern:$0xb2907e5c]
  %1699 = vrot.lane.b32.xlu0 %v1698, 110
  %v1700 = vpop.permute.xlu0 %1699
  %vm1701 = vcmask 15360
  %s1702 = scalar_lea.vmem %s1, 1409
  %1703 = vst.msk [vmem:[%s1702] ss:$-350 sm:$0x3] %vm1701, %v1700
  %s1704 = scalar_lea.vmem %s1, 2209
  %1705 = vst.msk [vmem:[%s1704] ss:$-350 sm:$0x1c] %vm1701, %v1700
  %s1706 = scalar_lea.vmem %s1, 3009
  %1707 = vst.msk [vmem:[%s1706] ss:$-350 sm:$0x60] %vm1701, %v1700
  %s1708 = scalar_lea.vmem %s1, 1352
  %1709 = vst.msk [vmem:[%s1708] sm:$0x80] %vm1701, %v1700
  %s1710 = scalar_lea.vmem %s0, 32
  %v1711 = vld.sshfl [vmem:[%s1710] sm:$0xff pattern:$0xb2907e5c]
  %1712 = vrot.lane.b32.xlu0 %v1711, 110
  %v1713 = vpop.permute.xlu0 %1712
  %vm1714 = vcmask 15360
  %s1715 = scalar_lea.vmem %s1, 2209
  %1716 = vst.msk [vmem:[%s1715] ss:$-350 sm:$0x3] %vm1714, %v1713
  %s1717 = scalar_lea.vmem %s1, 3009
  %1718 = vst.msk [vmem:[%s1717] ss:$-350 sm:$0x1c] %vm1714, %v1713
  %s1719 = scalar_lea.vmem %s1, 3809
  %1720 = vst.msk [vmem:[%s1719] ss:$-350 sm:$0x60] %vm1714, %v1713
  %s1721 = scalar_lea.vmem %s1, 2152
  %1722 = vst.msk [vmem:[%s1721] sm:$0x80] %vm1714, %v1713
  %s1723 = scalar_lea.vmem %s0, 59
  %v1724 = vld.sshfl [vmem:[%s1723] sm:$0xff pattern:$0x22222907]
  %s1725 = scalar_lea.vmem %s0, 48
  %v1726 = vld.sshfl [vmem:[%s1725] sm:$0xff pattern:$0x88f00000]
  %vm1727 = vcmask 1046532
  %v1728 = vsel %vm1727, %v1726, %v1724
  %s1729 = scalar_lea.vmem %s0, 58
  %v1730 = vld [vmem:[%s1729] sm:$0x80]
  %vm1731 = vcmask 1047559
  %v1732 = vsel %vm1731, %v1730, %v1728
  %1733 = vrot.lane.b32.xlu0 %v1732, 110
  %v1734 = vpop.permute.xlu0 %1733
  %vm1735 = vcmask 15360
  %s1736 = scalar_lea.vmem %s1, 3009
  %1737 = vst.msk [vmem:[%s1736] ss:$-350 sm:$0x3] %vm1735, %v1734
  %s1738 = scalar_lea.vmem %s1, 3809
  %1739 = vst.msk [vmem:[%s1738] ss:$-350 sm:$0x1c] %vm1735, %v1734
  %s1740 = scalar_lea.vmem %s1, 4609
  %1741 = vst.msk [vmem:[%s1740] ss:$-350 sm:$0x60] %vm1735, %v1734
  %s1742 = scalar_lea.vmem %s1, 2952
  %1743 = vst.msk [vmem:[%s1742] sm:$0x80] %vm1735, %v1734
  %s1744 = scalar_lea.vmem %s0, 70
  %v1745 = vld.sshfl [vmem:[%s1744] sm:$0xff pattern:$0xb2907e5c]
  %1746 = vrot.lane.b32.xlu0 %v1745, 110
  %v1747 = vpop.permute.xlu0 %1746
  %vm1748 = vcmask 15360
  %s1749 = scalar_lea.vmem %s1, 3809
  %1750 = vst.msk [vmem:[%s1749] ss:$-350 sm:$0x3] %vm1748, %v1747
  %s1751 = scalar_lea.vmem %s1, 4609
  %1752 = vst.msk [vmem:[%s1751] ss:$-350 sm:$0x1c] %vm1748, %v1747
  %s1753 = scalar_lea.vmem %s1, 5409
  %1754 = vst.msk [vmem:[%s1753] ss:$-350 sm:$0x60] %vm1748, %v1747
  %s1755 = scalar_lea.vmem %s1, 3752
  %1756 = vst.msk [vmem:[%s1755] sm:$0x80] %vm1748, %v1747
  %s1757 = scalar_lea.vmem %s0, 86
  %v1758 = vld.sshfl [vmem:[%s1757] sm:$0xff pattern:$0xb2907e5c]
  %1759 = vrot.lane.b32.xlu0 %v1758, 110
  %v1760 = vpop.permute.xlu0 %1759
  %vm1761 = vcmask 15360
  %s1762 = scalar_lea.vmem %s1, 4609
  %1763 = vst.msk [vmem:[%s1762] ss:$-350 sm:$0x3] %vm1761, %v1760
  %s1764 = scalar_lea.vmem %s1, 5409
  %1765 = vst.msk [vmem:[%s1764] ss:$-350 sm:$0x1c] %vm1761, %v1760
  %s1766 = scalar_lea.vmem %s1, 6209
  %1767 = vst.msk [vmem:[%s1766] ss:$-350 sm:$0x60] %vm1761, %v1760
  %s1768 = scalar_lea.vmem %s1, 4552
  %1769 = vst.msk [vmem:[%s1768] sm:$0x80] %vm1761, %v1760
  %s1770 = scalar_lea.vmem %s0, 102
  %s1771 = smov 3
  %v1772 = vld [vmem:[%s1770] ss:$2 sm:%s1771]
  %s1773 = scalar_lea.vmem %s0, 1
  %v1774 = vld.sshfl [vmem:[%s1773] sm:$0xff pattern:$0x7e5c333]
  %vm1775 = vcmask 1047554
  %v1776 = vsel %vm1775, %v1774, %v1772
  %1777 = vrot.lane.b32.xlu0 %v1776, 110
  %v1778 = vpop.permute.xlu0 %1777
  %vm1779 = vcmask 15360
  %s1780 = scalar_lea.vmem %s1, 4809
  %1781 = vst.msk [vmem:[%s1780] ss:$100 sm:$0x3] %vm1779, %v1778
  %s1782 = scalar_lea.vmem %s1, 4294966605
  %1783 = vst.msk [vmem:[%s1782] ss:$450 sm:$0xc] %vm1779, %v1778
  %s1784 = scalar_lea.vmem %s1, 4294965805
  %1785 = vst.msk [vmem:[%s1784] ss:$450 sm:$0x30] %vm1779, %v1778
  %s1786 = scalar_lea.vmem %s1, 2509
  %1787 = vst.msk [vmem:[%s1786] ss:$-350 sm:$0xc0] %vm1779, %v1778
  %s1788 = scalar_lea.vmem %s0, 17
  %v1789 = vld.sshfl [vmem:[%s1788] sm:$0xff pattern:$0x7e5c3]
  %s1790 = scalar_lea.vmem %s0, 52
  %s1791 = smov 192
  %v1792 = vld [vmem:[%s1790] ss:$-7 sm:%s1791]
  %vm1793 = vcmask 1047558
  %v1794 = vsel %vm1793, %v1792, %v1789
  %1795 = vrot.lane.b32.xlu0 %v1794, 110
  %v1796 = vpop.permute.xlu0 %1795
  %vm1797 = vcmask 15360
  %s1798 = scalar_lea.vmem %s1, 1009
  %1799 = vst.msk [vmem:[%s1798] ss:$450 sm:$0x3] %vm1797, %v1796
  %s1800 = scalar_lea.vmem %s1, 209
  %1801 = vst.msk [vmem:[%s1800] ss:$450 sm:$0xc] %vm1797, %v1796
  %s1802 = scalar_lea.vmem %s1, 2609
  %1803 = vst.msk [vmem:[%s1802] ss:$-350 sm:$0xf0] %vm1797, %v1796
  %s1804 = scalar_lea.vmem %s0, 33
  %v1805 = vld.sshfl [vmem:[%s1804] sm:$0xff pattern:$0x7e5c3]
  %s1806 = scalar_lea.vmem %s0, 68
  %s1807 = smov 192
  %v1808 = vld [vmem:[%s1806] ss:$-7 sm:%s1807]
  %vm1809 = vcmask 1047558
  %v1810 = vsel %vm1809, %v1808, %v1805
  %1811 = vrot.lane.b32.xlu0 %v1810, 110
  %v1812 = vpop.permute.xlu0 %1811
  %vm1813 = vcmask 15360
  %s1814 = scalar_lea.vmem %s1, 1809
  %1815 = vst.msk [vmem:[%s1814] ss:$450 sm:$0x3] %vm1813, %v1812
  %s1816 = scalar_lea.vmem %s1, 1009
  %1817 = vst.msk [vmem:[%s1816] ss:$450 sm:$0xc] %vm1813, %v1812
  %s1818 = scalar_lea.vmem %s1, 3409
  %1819 = vst.msk [vmem:[%s1818] ss:$-350 sm:$0xf0] %vm1813, %v1812
  %s1820 = scalar_lea.vmem %s0, 58
  %v1821 = vld.sshfl [vmem:[%s1820] sm:$0xff pattern:$0x4444b290]
  %s1822 = scalar_lea.vmem %s0, 84
  %v1823 = vld [vmem:[%s1822] ss:$-7 sm:$0xe0]
  %vm1824 = vcmask 1047557
  %v1825 = vsel %vm1824, %v1823, %v1821
  %1826 = vrot.lane.b32.xlu0 %v1825, 110
  %v1827 = vpop.permute.xlu0 %1826
  %vm1828 = vcmask 15360
  %s1829 = scalar_lea.vmem %s1, 2609
  %1830 = vst.msk [vmem:[%s1829] ss:$450 sm:$0x3] %vm1828, %v1827
  %s1831 = scalar_lea.vmem %s1, 1809
  %1832 = vst.msk [vmem:[%s1831] ss:$450 sm:$0xc] %vm1828, %v1827
  %s1833 = scalar_lea.vmem %s1, 4209
  %1834 = vst.msk [vmem:[%s1833] ss:$-350 sm:$0xf0] %vm1828, %v1827
  %s1835 = scalar_lea.vmem %s0, 71
  %v1836 = vld.sshfl [vmem:[%s1835] sm:$0xff pattern:$0x7e5c3]
  %s1837 = scalar_lea.vmem %s0, 106
  %s1838 = smov 192
  %v1839 = vld [vmem:[%s1837] ss:$-7 sm:%s1838]
  %vm1840 = vcmask 1047558
  %v1841 = vsel %vm1840, %v1839, %v1836
  %1842 = vrot.lane.b32.xlu0 %v1841, 110
  %v1843 = vpop.permute.xlu0 %1842
  %vm1844 = vcmask 15360
  %s1845 = scalar_lea.vmem %s1, 3409
  %1846 = vst.msk [vmem:[%s1845] ss:$450 sm:$0x3] %vm1844, %v1843
  %s1847 = scalar_lea.vmem %s1, 2609
  %1848 = vst.msk [vmem:[%s1847] ss:$450 sm:$0xc] %vm1844, %v1843
  %s1849 = scalar_lea.vmem %s1, 5009
  %1850 = vst.msk [vmem:[%s1849] ss:$-350 sm:$0xf0] %vm1844, %v1843
  %s1851 = scalar_lea.vmem %s0, 87
  %v1852 = vld.sshfl [vmem:[%s1851] sm:$0xff pattern:$0x7e5c3]
  %s1853 = scalar_lea.vmem %s0, 122
  %s1854 = smov 192
  %v1855 = vld [vmem:[%s1853] ss:$-7 sm:%s1854]
  %vm1856 = vcmask 1047558
  %v1857 = vsel %vm1856, %v1855, %v1852
  %1858 = vrot.lane.b32.xlu0 %v1857, 110
  %v1859 = vpop.permute.xlu0 %1858
  %vm1860 = vcmask 15360
  %s1861 = scalar_lea.vmem %s1, 4209
  %1862 = vst.msk [vmem:[%s1861] ss:$450 sm:$0x3] %vm1860, %v1859
  %s1863 = scalar_lea.vmem %s1, 3409
  %1864 = vst.msk [vmem:[%s1863] ss:$450 sm:$0xc] %vm1860, %v1859
  %s1865 = scalar_lea.vmem %s1, 5809
  %1866 = vst.msk [vmem:[%s1865] ss:$-350 sm:$0xf0] %vm1860, %v1859
  %s1867 = scalar_lea.vmem %s0, 103
  %v1868 = vld [vmem:[%s1867] ss:$-7 sm:$0x7]
  %s1869 = scalar_lea.vmem %s0, 102
  %v1870 = vld [vmem:[%s1869] sm:$0x8]
  %vm1871 = vcmask 1043459
  %v1872 = vsel %vm1871, %v1870, %v1868
  %1873 = vrot.lane.b32.xlu0 %v1872, 110
  %v1874 = vpop.permute.xlu0 %1873
  %vm1875 = vcmask 15360
  %s1876 = scalar_lea.vmem %s1, 4859
  %1877 = vst.msk [vmem:[%s1876] ss:$-350 sm:$0x7] %vm1875, %v1874
  %s1878 = scalar_lea.vmem %s1, 4956
  %1879 = vst.msk [vmem:[%s1878] sm:$0x8] %vm1875, %v1874
  %v1880 = vld.sshfl [vmem:[%s0] sm:$0xff pattern:$0x2907e5c3]
  %1881 = vrot.lane.b32.xlu0 %v1880, 108
  %v1882 = vpop.permute.xlu0 %1881
  %vm1883 = vcmask 15360
  %s1884 = scalar_lea.vmem %s1, 160
  %1885 = vst.msk [vmem:[%s1884] ss:$450 sm:$0x3] %vm1883, %v1882
  %s1886 = scalar_lea.vmem %s1, 4294966656
  %1887 = vst.msk [vmem:[%s1886] ss:$450 sm:$0xc] %vm1883, %v1882
  %s1888 = scalar_lea.vmem %s1, 1760
  %1889 = vst.msk [vmem:[%s1888] ss:$-350 sm:$0x30] %vm1883, %v1882
  %s1890 = scalar_lea.vmem %s1, 2560
  %1891 = vst.msk [vmem:[%s1890] ss:$-350 sm:$0xc0] %vm1883, %v1882
  %s1892 = scalar_lea.vmem %s0, 16
  %v1893 = vld.sshfl [vmem:[%s1892] sm:$0xff pattern:$0x2907e5c3]
  %1894 = vrot.lane.b32.xlu0 %v1893, 108
  %v1895 = vpop.permute.xlu0 %1894
  %vm1896 = vcmask 15360
  %s1897 = scalar_lea.vmem %s1, 960
  %1898 = vst.msk [vmem:[%s1897] ss:$450 sm:$0x3] %vm1896, %v1895
  %s1899 = scalar_lea.vmem %s1, 160
  %1900 = vst.msk [vmem:[%s1899] ss:$450 sm:$0xc] %vm1896, %v1895
  %s1901 = scalar_lea.vmem %s1, 2560
  %1902 = vst.msk [vmem:[%s1901] ss:$-350 sm:$0x30] %vm1896, %v1895
  %s1903 = scalar_lea.vmem %s1, 3360
  %1904 = vst.msk [vmem:[%s1903] ss:$-350 sm:$0xc0] %vm1896, %v1895
  %s1905 = scalar_lea.vmem %s0, 32
  %v1906 = vld.sshfl [vmem:[%s1905] sm:$0xff pattern:$0x2907e5c3]
  %1907 = vrot.lane.b32.xlu0 %v1906, 108
  %v1908 = vpop.permute.xlu0 %1907
  %vm1909 = vcmask 15360
  %s1910 = scalar_lea.vmem %s1, 1760
  %1911 = vst.msk [vmem:[%s1910] ss:$450 sm:$0x3] %vm1909, %v1908
  %s1912 = scalar_lea.vmem %s1, 960
  %1913 = vst.msk [vmem:[%s1912] ss:$450 sm:$0xc] %vm1909, %v1908
  %s1914 = scalar_lea.vmem %s1, 3360
  %1915 = vst.msk [vmem:[%s1914] ss:$-350 sm:$0x30] %vm1909, %v1908
  %s1916 = scalar_lea.vmem %s1, 4160
  %1917 = vst.msk [vmem:[%s1916] ss:$-350 sm:$0xc0] %vm1909, %v1908
  %s1918 = scalar_lea.vmem %s0, 57
  %v1919 = vld.sshfl [vmem:[%s1918] sm:$0xff pattern:$0x4444b290]
  %s1920 = scalar_lea.vmem %s0, 48
  %v1921 = vld.sshfl [vmem:[%s1920] sm:$0xff pattern:$0x8f000000]
  %vm1922 = vcmask 1047557
  %v1923 = vsel %vm1922, %v1921, %v1919
  %1924 = vrot.lane.b32.xlu0 %v1923, 108
  %v1925 = vpop.permute.xlu0 %1924
  %vm1926 = vcmask 15360
  %s1927 = scalar_lea.vmem %s1, 2560
  %1928 = vst.msk [vmem:[%s1927] ss:$450 sm:$0x3] %vm1926, %v1925
  %s1929 = scalar_lea.vmem %s1, 1760
  %1930 = vst.msk [vmem:[%s1929] ss:$450 sm:$0xc] %vm1926, %v1925
  %s1931 = scalar_lea.vmem %s1, 4160
  %1932 = vst.msk [vmem:[%s1931] ss:$-350 sm:$0x30] %vm1926, %v1925
  %s1933 = scalar_lea.vmem %s1, 4960
  %1934 = vst.msk [vmem:[%s1933] ss:$-350 sm:$0xc0] %vm1926, %v1925
  %s1935 = scalar_lea.vmem %s0, 70
  %v1936 = vld.sshfl [vmem:[%s1935] sm:$0xff pattern:$0x2907e5c3]
  %1937 = vrot.lane.b32.xlu0 %v1936, 108
  %v1938 = vpop.permute.xlu0 %1937
  %vm1939 = vcmask 15360
  %s1940 = scalar_lea.vmem %s1, 3360
  %1941 = vst.msk [vmem:[%s1940] ss:$450 sm:$0x3] %vm1939, %v1938
  %s1942 = scalar_lea.vmem %s1, 2560
  %1943 = vst.msk [vmem:[%s1942] ss:$450 sm:$0xc] %vm1939, %v1938
  %s1944 = scalar_lea.vmem %s1, 4960
  %1945 = vst.msk [vmem:[%s1944] ss:$-350 sm:$0x30] %vm1939, %v1938
  %s1946 = scalar_lea.vmem %s1, 5760
  %1947 = vst.msk [vmem:[%s1946] ss:$-350 sm:$0xc0] %vm1939, %v1938
  %s1948 = scalar_lea.vmem %s0, 86
  %v1949 = vld.sshfl [vmem:[%s1948] sm:$0xff pattern:$0x2907e5c3]
  %1950 = vrot.lane.b32.xlu0 %v1949, 108
  %v1951 = vpop.permute.xlu0 %1950
  %vm1952 = vcmask 15360
  %s1953 = scalar_lea.vmem %s1, 4160
  %1954 = vst.msk [vmem:[%s1953] ss:$450 sm:$0x3] %vm1952, %v1951
  %s1955 = scalar_lea.vmem %s1, 3360
  %1956 = vst.msk [vmem:[%s1955] ss:$450 sm:$0xc] %vm1952, %v1951
  %s1957 = scalar_lea.vmem %s1, 5760
  %1958 = vst.msk [vmem:[%s1957] ss:$-350 sm:$0x30] %vm1952, %v1951
  %s1959 = scalar_lea.vmem %s1, 6560
  %1960 = vst.msk [vmem:[%s1959] ss:$-350 sm:$0xc0] %vm1952, %v1951
  %s1961 = scalar_lea.vmem %s0, 102
  %v1962 = vld.sshfl [vmem:[%s1961] sm:$0xff pattern:$0x22222203]
  %s1963 = scalar_lea.vmem %s0, 4
  %v1964 = vld.sshfl [vmem:[%s1963] sm:$0xff pattern:$0xb2907777]
  %vm1965 = vcmask 1047555
  %v1966 = vsel %vm1965, %v1964, %v1962
  %1967 = vrot.lane.b32.xlu0 %v1966, 108
  %v1968 = vpop.permute.xlu0 %1967
  %vm1969 = vcmask 15360
  %s1970 = scalar_lea.vmem %s1, 4960
  %1971 = vst.msk [vmem:[%s1970] ss:$-150 sm:$0x3] %vm1969, %v1968
  %s1972 = scalar_lea.vmem %s1, 13610
  %1973 = vst.msk [vmem:[%s1972] ss:$-4350 sm:$0xc] %vm1969, %v1968
  %s1974 = scalar_lea.vmem %s1, 4294965706
  %1975 = vst.msk [vmem:[%s1974] ss:$450 sm:$0x30] %vm1969, %v1968
  %s1976 = scalar_lea.vmem %s1, 4294964906
  %1977 = vst.msk [vmem:[%s1976] ss:$450 sm:$0xc0] %vm1969, %v1968
  %s1978 = scalar_lea.vmem %s0, 20
  %v1979 = vld.sshfl [vmem:[%s1978] sm:$0xff pattern:$0xbbbb2907]
  %s1980 = scalar_lea.vmem %s0, 1
  %v1981 = vld.sshfl [vmem:[%s1980] sm:$0xff pattern:$0x90777777]
  %vm1982 = vcmask 1047557
  %v1983 = vsel %vm1982, %v1981, %v1979
  %1984 = vrot.lane.b32.xlu0 %v1983, 108
  %v1985 = vpop.permute.xlu0 %1984
  %vm1986 = vcmask 15360
  %s1987 = scalar_lea.vmem %s1, 1360
  %1988 = vst.msk [vmem:[%s1987] ss:$-350 sm:$0x3] %vm1986, %v1985
  %s1989 = scalar_lea.vmem %s1, 2160
  %1990 = vst.msk [vmem:[%s1989] ss:$-350 sm:$0xc] %vm1986, %v1985
  %s1991 = scalar_lea.vmem %s1, 6160
  %1992 = vst.msk [vmem:[%s1991] ss:$-1150 sm:$0x30] %vm1986, %v1985
  %s1993 = scalar_lea.vmem %s1, 4294964656
  %1994 = vst.msk [vmem:[%s1993] ss:$450 sm:$0xc0] %vm1986, %v1985
  %s1995 = scalar_lea.vmem %s0, 36
  %v1996 = vld.sshfl [vmem:[%s1995] sm:$0xff pattern:$0xbbbb2907]
  %s1997 = scalar_lea.vmem %s0, 17
  %v1998 = vld.sshfl [vmem:[%s1997] sm:$0xff pattern:$0x90777777]
  %vm1999 = vcmask 1047557
  %v2000 = vsel %vm1999, %v1998, %v1996
  %2001 = vrot.lane.b32.xlu0 %v2000, 108
  %v2002 = vpop.permute.xlu0 %2001
  %vm2003 = vcmask 15360
  %s2004 = scalar_lea.vmem %s1, 2160
  %2005 = vst.msk [vmem:[%s2004] ss:$-350 sm:$0x3] %vm2003, %v2002
  %s2006 = scalar_lea.vmem %s1, 2960
  %2007 = vst.msk [vmem:[%s2006] ss:$-350 sm:$0xc] %vm2003, %v2002
  %s2008 = scalar_lea.vmem %s1, 6960
  %2009 = vst.msk [vmem:[%s2008] ss:$-1150 sm:$0x30] %vm2003, %v2002
  %s2010 = scalar_lea.vmem %s1, 4294965456
  %2011 = vst.msk [vmem:[%s2010] ss:$450 sm:$0xc0] %vm2003, %v2002
  %s2012 = scalar_lea.vmem %s0, 58
  %v2013 = vld.sshfl [vmem:[%s2012] sm:$0xff pattern:$0xbbbb2907]
  %s2014 = scalar_lea.vmem %s0, 33
  %v2015 = vld.sshfl [vmem:[%s2014] sm:$0xff pattern:$0x90777777]
  %vm2016 = vcmask 1047557
  %v2017 = vsel %vm2016, %v2015, %v2013
  %2018 = vrot.lane.b32.xlu0 %v2017, 108
  %v2019 = vpop.permute.xlu0 %2018
  %vm2020 = vcmask 15360
  %s2021 = scalar_lea.vmem %s1, 2960
  %2022 = vst.msk [vmem:[%s2021] ss:$-350 sm:$0x3] %vm2020, %v2019
  %s2023 = scalar_lea.vmem %s1, 3760
  %2024 = vst.msk [vmem:[%s2023] ss:$-350 sm:$0xc] %vm2020, %v2019
  %s2025 = scalar_lea.vmem %s1, 7760
  %2026 = vst.msk [vmem:[%s2025] ss:$-1150 sm:$0x30] %vm2020, %v2019
  %s2027 = scalar_lea.vmem %s1, 4294966256
  %2028 = vst.msk [vmem:[%s2027] ss:$450 sm:$0xc0] %vm2020, %v2019
  %s2029 = scalar_lea.vmem %s0, 74
  %v2030 = vld.sshfl [vmem:[%s2029] sm:$0xff pattern:$0xbbbb2907]
  %s2031 = scalar_lea.vmem %s0, 49
  %v2032 = vld.sshfl [vmem:[%s2031] sm:$0xff pattern:$0xf0dddddd]
  %vm2033 = vcmask 1047557
  %v2034 = vsel %vm2033, %v2032, %v2030
  %2035 = vrot.lane.b32.xlu0 %v2034, 108
  %v2036 = vpop.permute.xlu0 %2035
  %vm2037 = vcmask 15360
  %s2038 = scalar_lea.vmem %s1, 3760
  %2039 = vst.msk [vmem:[%s2038] ss:$-350 sm:$0x3] %vm2037, %v2036
  %s2040 = scalar_lea.vmem %s1, 4560
  %2041 = vst.msk [vmem:[%s2040] ss:$-350 sm:$0xc] %vm2037, %v2036
  %s2042 = scalar_lea.vmem %s1, 8560
  %2043 = vst.msk [vmem:[%s2042] ss:$-1150 sm:$0x30] %vm2037, %v2036
  %s2044 = scalar_lea.vmem %s1, 4294967056
  %2045 = vst.msk [vmem:[%s2044] ss:$450 sm:$0xc0] %vm2037, %v2036
  %s2046 = scalar_lea.vmem %s0, 90
  %v2047 = vld.sshfl [vmem:[%s2046] sm:$0xff pattern:$0xbbbb2907]
  %s2048 = scalar_lea.vmem %s0, 71
  %v2049 = vld.sshfl [vmem:[%s2048] sm:$0xff pattern:$0x90777777]
  %vm2050 = vcmask 1047557
  %v2051 = vsel %vm2050, %v2049, %v2047
  %2052 = vrot.lane.b32.xlu0 %v2051, 108
  %v2053 = vpop.permute.xlu0 %2052
  %vm2054 = vcmask 15360
  %s2055 = scalar_lea.vmem %s1, 4560
  %2056 = vst.msk [vmem:[%s2055] ss:$-350 sm:$0x3] %vm2054, %v2053
  %s2057 = scalar_lea.vmem %s1, 5360
  %2058 = vst.msk [vmem:[%s2057] ss:$-350 sm:$0xc] %vm2054, %v2053
  %s2059 = scalar_lea.vmem %s1, 9360
  %2060 = vst.msk [vmem:[%s2059] ss:$-1150 sm:$0x30] %vm2054, %v2053
  %s2061 = scalar_lea.vmem %s1, 560
  %2062 = vst.msk [vmem:[%s2061] ss:$450 sm:$0xc0] %vm2054, %v2053
  %s2063 = scalar_lea.vmem %s0, 87
  %v2064 = vld.sshfl [vmem:[%s2063] sm:$0xff pattern:$0x99999907]
  %s2065 = scalar_lea.vmem %s0, 100
  %v2066 = vld [vmem:[%s2065] sm:$0x8]
  %vm2067 = vcmask 1043459
  %v2068 = vsel %vm2067, %v2066, %v2064
  %2069 = vrot.lane.b32.xlu0 %v2068, 108
  %v2070 = vpop.permute.xlu0 %2069
  %vm2071 = vcmask 15360
  %s2072 = scalar_lea.vmem %s1, 4410
  %2073 = vst.msk [vmem:[%s2072] ss:$-350 sm:$0x3] %vm2071, %v2070
  %s2074 = scalar_lea.vmem %s1, 3810
  %2075 = vst.msk [vmem:[%s2074] ss:$350 sm:$0xc] %vm2071, %v2070
  %v2076 = vld.sshfl [vmem:[%s0] sm:$0xff pattern:$0x2907e5c3]
  %2077 = vrot.lane.b32.xlu0 %v2076, 106
  %v2078 = vpop.permute.xlu0 %2077
  %vm2079 = vcmask 15360
  %s2080 = scalar_lea.vmem %s1, 161
  %2081 = vst.msk [vmem:[%s2080] ss:$450 sm:$0x3] %vm2079, %v2078
  %s2082 = scalar_lea.vmem %s1, 4294966657
  %2083 = vst.msk [vmem:[%s2082] ss:$450 sm:$0xc] %vm2079, %v2078
  %s2084 = scalar_lea.vmem %s1, 1761
  %2085 = vst.msk [vmem:[%s2084] ss:$-350 sm:$0x30] %vm2079, %v2078
  %s2086 = scalar_lea.vmem %s1, 2561
  %2087 = vst.msk [vmem:[%s2086] ss:$-350 sm:$0xc0] %vm2079, %v2078
  %s2088 = scalar_lea.vmem %s0, 16
  %v2089 = vld.sshfl [vmem:[%s2088] sm:$0xff pattern:$0x2907e5c3]
  %2090 = vrot.lane.b32.xlu0 %v2089, 106
  %v2091 = vpop.permute.xlu0 %2090
  %vm2092 = vcmask 15360
  %s2093 = scalar_lea.vmem %s1, 961
  %2094 = vst.msk [vmem:[%s2093] ss:$450 sm:$0x3] %vm2092, %v2091
  %s2095 = scalar_lea.vmem %s1, 161
  %2096 = vst.msk [vmem:[%s2095] ss:$450 sm:$0xc] %vm2092, %v2091
  %s2097 = scalar_lea.vmem %s1, 2561
  %2098 = vst.msk [vmem:[%s2097] ss:$-350 sm:$0x30] %vm2092, %v2091
  %s2099 = scalar_lea.vmem %s1, 3361
  %2100 = vst.msk [vmem:[%s2099] ss:$-350 sm:$0xc0] %vm2092, %v2091
  %s2101 = scalar_lea.vmem %s0, 32
  %v2102 = vld.sshfl [vmem:[%s2101] sm:$0xff pattern:$0x2907e5c3]
  %2103 = vrot.lane.b32.xlu0 %v2102, 106
  %v2104 = vpop.permute.xlu0 %2103
  %vm2105 = vcmask 15360
  %s2106 = scalar_lea.vmem %s1, 1761
  %2107 = vst.msk [vmem:[%s2106] ss:$450 sm:$0x3] %vm2105, %v2104
  %s2108 = scalar_lea.vmem %s1, 961
  %2109 = vst.msk [vmem:[%s2108] ss:$450 sm:$0xc] %vm2105, %v2104
  %s2110 = scalar_lea.vmem %s1, 3361
  %2111 = vst.msk [vmem:[%s2110] ss:$-350 sm:$0x30] %vm2105, %v2104
  %s2112 = scalar_lea.vmem %s1, 4161
  %2113 = vst.msk [vmem:[%s2112] ss:$-350 sm:$0xc0] %vm2105, %v2104
  %s2114 = scalar_lea.vmem %s0, 57
  %v2115 = vld.sshfl [vmem:[%s2114] sm:$0xff pattern:$0x4444b290]
  %s2116 = scalar_lea.vmem %s0, 48
  %v2117 = vld.sshfl [vmem:[%s2116] sm:$0xff pattern:$0x8f000000]
  %vm2118 = vcmask 1047557
  %v2119 = vsel %vm2118, %v2117, %v2115
  %2120 = vrot.lane.b32.xlu0 %v2119, 106
  %v2121 = vpop.permute.xlu0 %2120
  %vm2122 = vcmask 15360
  %s2123 = scalar_lea.vmem %s1, 2561
  %2124 = vst.msk [vmem:[%s2123] ss:$450 sm:$0x3] %vm2122, %v2121
  %s2125 = scalar_lea.vmem %s1, 1761
  %2126 = vst.msk [vmem:[%s2125] ss:$450 sm:$0xc] %vm2122, %v2121
  %s2127 = scalar_lea.vmem %s1, 4161
  %2128 = vst.msk [vmem:[%s2127] ss:$-350 sm:$0x30] %vm2122, %v2121
  %s2129 = scalar_lea.vmem %s1, 4961
  %2130 = vst.msk [vmem:[%s2129] ss:$-350 sm:$0xc0] %vm2122, %v2121
  %s2131 = scalar_lea.vmem %s0, 70
  %v2132 = vld.sshfl [vmem:[%s2131] sm:$0xff pattern:$0x2907e5c3]
  %2133 = vrot.lane.b32.xlu0 %v2132, 106
  %v2134 = vpop.permute.xlu0 %2133
  %vm2135 = vcmask 15360
  %s2136 = scalar_lea.vmem %s1, 3361
  %2137 = vst.msk [vmem:[%s2136] ss:$450 sm:$0x3] %vm2135, %v2134
  %s2138 = scalar_lea.vmem %s1, 2561
  %2139 = vst.msk [vmem:[%s2138] ss:$450 sm:$0xc] %vm2135, %v2134
  %s2140 = scalar_lea.vmem %s1, 4961
  %2141 = vst.msk [vmem:[%s2140] ss:$-350 sm:$0x30] %vm2135, %v2134
  %s2142 = scalar_lea.vmem %s1, 5761
  %2143 = vst.msk [vmem:[%s2142] ss:$-350 sm:$0xc0] %vm2135, %v2134
  %s2144 = scalar_lea.vmem %s0, 86
  %v2145 = vld.sshfl [vmem:[%s2144] sm:$0xff pattern:$0x2907e5c3]
  %2146 = vrot.lane.b32.xlu0 %v2145, 106
  %v2147 = vpop.permute.xlu0 %2146
  %vm2148 = vcmask 15360
  %s2149 = scalar_lea.vmem %s1, 4161
  %2150 = vst.msk [vmem:[%s2149] ss:$450 sm:$0x3] %vm2148, %v2147
  %s2151 = scalar_lea.vmem %s1, 3361
  %2152 = vst.msk [vmem:[%s2151] ss:$450 sm:$0xc] %vm2148, %v2147
  %s2153 = scalar_lea.vmem %s1, 5761
  %2154 = vst.msk [vmem:[%s2153] ss:$-350 sm:$0x30] %vm2148, %v2147
  %s2155 = scalar_lea.vmem %s1, 6561
  %2156 = vst.msk [vmem:[%s2155] ss:$-350 sm:$0xc0] %vm2148, %v2147
  %s2157 = scalar_lea.vmem %s0, 102
  %v2158 = vld.sshfl [vmem:[%s2157] sm:$0xff pattern:$0x22222203]
  %s2159 = scalar_lea.vmem %s0, 4
  %v2160 = vld.sshfl [vmem:[%s2159] sm:$0xff pattern:$0xb2907777]
  %vm2161 = vcmask 1047555
  %v2162 = vsel %vm2161, %v2160, %v2158
  %2163 = vrot.lane.b32.xlu0 %v2162, 106
  %v2164 = vpop.permute.xlu0 %2163
  %vm2165 = vcmask 15360
  %s2166 = scalar_lea.vmem %s1, 4961
  %2167 = vst.msk [vmem:[%s2166] ss:$-150 sm:$0x3] %vm2165, %v2164
  %s2168 = scalar_lea.vmem %s1, 13611
  %2169 = vst.msk [vmem:[%s2168] ss:$-4350 sm:$0xc] %vm2165, %v2164
  %s2170 = scalar_lea.vmem %s1, 4294965707
  %2171 = vst.msk [vmem:[%s2170] ss:$450 sm:$0x30] %vm2165, %v2164
  %s2172 = scalar_lea.vmem %s1, 4294964907
  %2173 = vst.msk [vmem:[%s2172] ss:$450 sm:$0xc0] %vm2165, %v2164
  %s2174 = scalar_lea.vmem %s0, 20
  %v2175 = vld.sshfl [vmem:[%s2174] sm:$0xff pattern:$0xbbbb2907]
  %s2176 = scalar_lea.vmem %s0, 1
  %v2177 = vld.sshfl [vmem:[%s2176] sm:$0xff pattern:$0x90777777]
  %vm2178 = vcmask 1047557
  %v2179 = vsel %vm2178, %v2177, %v2175
  %2180 = vrot.lane.b32.xlu0 %v2179, 106
  %v2181 = vpop.permute.xlu0 %2180
  %vm2182 = vcmask 15360
  %s2183 = scalar_lea.vmem %s1, 1361
  %2184 = vst.msk [vmem:[%s2183] ss:$-350 sm:$0x3] %vm2182, %v2181
  %s2185 = scalar_lea.vmem %s1, 2161
  %2186 = vst.msk [vmem:[%s2185] ss:$-350 sm:$0xc] %vm2182, %v2181
  %s2187 = scalar_lea.vmem %s1, 6161
  %2188 = vst.msk [vmem:[%s2187] ss:$-1150 sm:$0x30] %vm2182, %v2181
  %s2189 = scalar_lea.vmem %s1, 4294964657
  %2190 = vst.msk [vmem:[%s2189] ss:$450 sm:$0xc0] %vm2182, %v2181
  %s2191 = scalar_lea.vmem %s0, 36
  %v2192 = vld.sshfl [vmem:[%s2191] sm:$0xff pattern:$0xbbbb2907]
  %s2193 = scalar_lea.vmem %s0, 17
  %v2194 = vld.sshfl [vmem:[%s2193] sm:$0xff pattern:$0x90777777]
  %vm2195 = vcmask 1047557
  %v2196 = vsel %vm2195, %v2194, %v2192
  %2197 = vrot.lane.b32.xlu0 %v2196, 106
  %v2198 = vpop.permute.xlu0 %2197
  %vm2199 = vcmask 15360
  %s2200 = scalar_lea.vmem %s1, 2161
  %2201 = vst.msk [vmem:[%s2200] ss:$-350 sm:$0x3] %vm2199, %v2198
  %s2202 = scalar_lea.vmem %s1, 2961
  %2203 = vst.msk [vmem:[%s2202] ss:$-350 sm:$0xc] %vm2199, %v2198
  %s2204 = scalar_lea.vmem %s1, 6961
  %2205 = vst.msk [vmem:[%s2204] ss:$-1150 sm:$0x30] %vm2199, %v2198
  %s2206 = scalar_lea.vmem %s1, 4294965457
  %2207 = vst.msk [vmem:[%s2206] ss:$450 sm:$0xc0] %vm2199, %v2198
  %s2208 = scalar_lea.vmem %s0, 58
  %v2209 = vld.sshfl [vmem:[%s2208] sm:$0xff pattern:$0xbbbb2907]
  %s2210 = scalar_lea.vmem %s0, 33
  %v2211 = vld.sshfl [vmem:[%s2210] sm:$0xff pattern:$0x90777777]
  %vm2212 = vcmask 1047557
  %v2213 = vsel %vm2212, %v2211, %v2209
  %2214 = vrot.lane.b32.xlu0 %v2213, 106
  %v2215 = vpop.permute.xlu0 %2214
  %vm2216 = vcmask 15360
  %s2217 = scalar_lea.vmem %s1, 2961
  %2218 = vst.msk [vmem:[%s2217] ss:$-350 sm:$0x3] %vm2216, %v2215
  %s2219 = scalar_lea.vmem %s1, 3761
  %2220 = vst.msk [vmem:[%s2219] ss:$-350 sm:$0xc] %vm2216, %v2215
  %s2221 = scalar_lea.vmem %s1, 7761
  %2222 = vst.msk [vmem:[%s2221] ss:$-1150 sm:$0x30] %vm2216, %v2215
  %s2223 = scalar_lea.vmem %s1, 4294966257
  %2224 = vst.msk [vmem:[%s2223] ss:$450 sm:$0xc0] %vm2216, %v2215
  %s2225 = scalar_lea.vmem %s0, 74
  %v2226 = vld.sshfl [vmem:[%s2225] sm:$0xff pattern:$0xbbbb2907]
  %s2227 = scalar_lea.vmem %s0, 49
  %v2228 = vld.sshfl [vmem:[%s2227] sm:$0xff pattern:$0xf0dddddd]
  %vm2229 = vcmask 1047557
  %v2230 = vsel %vm2229, %v2228, %v2226
  %2231 = vrot.lane.b32.xlu0 %v2230, 106
  %v2232 = vpop.permute.xlu0 %2231
  %vm2233 = vcmask 15360
  %s2234 = scalar_lea.vmem %s1, 3761
  %2235 = vst.msk [vmem:[%s2234] ss:$-350 sm:$0x3] %vm2233, %v2232
  %s2236 = scalar_lea.vmem %s1, 4561
  %2237 = vst.msk [vmem:[%s2236] ss:$-350 sm:$0xc] %vm2233, %v2232
  %s2238 = scalar_lea.vmem %s1, 8561
  %2239 = vst.msk [vmem:[%s2238] ss:$-1150 sm:$0x30] %vm2233, %v2232
  %s2240 = scalar_lea.vmem %s1, 4294967057
  %2241 = vst.msk [vmem:[%s2240] ss:$450 sm:$0xc0] %vm2233, %v2232
  %s2242 = scalar_lea.vmem %s0, 90
  %v2243 = vld.sshfl [vmem:[%s2242] sm:$0xff pattern:$0xbbbb2907]
  %s2244 = scalar_lea.vmem %s0, 71
  %v2245 = vld.sshfl [vmem:[%s2244] sm:$0xff pattern:$0x90777777]
  %vm2246 = vcmask 1047557
  %v2247 = vsel %vm2246, %v2245, %v2243
  %2248 = vrot.lane.b32.xlu0 %v2247, 106
  %v2249 = vpop.permute.xlu0 %2248
  %vm2250 = vcmask 15360
  %s2251 = scalar_lea.vmem %s1, 4561
  %2252 = vst.msk [vmem:[%s2251] ss:$-350 sm:$0x3] %vm2250, %v2249
  %s2253 = scalar_lea.vmem %s1, 5361
  %2254 = vst.msk [vmem:[%s2253] ss:$-350 sm:$0xc] %vm2250, %v2249
  %s2255 = scalar_lea.vmem %s1, 9361
  %2256 = vst.msk [vmem:[%s2255] ss:$-1150 sm:$0x30] %vm2250, %v2249
  %s2257 = scalar_lea.vmem %s1, 561
  %2258 = vst.msk [vmem:[%s2257] ss:$450 sm:$0xc0] %vm2250, %v2249
  %s2259 = scalar_lea.vmem %s0, 87
  %v2260 = vld.sshfl [vmem:[%s2259] sm:$0xff pattern:$0x99999907]
  %s2261 = scalar_lea.vmem %s0, 100
  %v2262 = vld [vmem:[%s2261] sm:$0x8]
  %vm2263 = vcmask 1043459
  %v2264 = vsel %vm2263, %v2262, %v2260
  %2265 = vrot.lane.b32.xlu0 %v2264, 106
  %v2266 = vpop.permute.xlu0 %2265
  %vm2267 = vcmask 15360
  %s2268 = scalar_lea.vmem %s1, 4411
  %2269 = vst.msk [vmem:[%s2268] ss:$-350 sm:$0x3] %vm2267, %v2266
  %s2270 = scalar_lea.vmem %s1, 3811
  %2271 = vst.msk [vmem:[%s2270] ss:$350 sm:$0xc] %vm2267, %v2266
  %v2272 = vld.sshfl [vmem:[%s0] sm:$0xff pattern:$0x907e5c3a]
  %2273 = vrot.lane.b32.xlu0 %v2272, 104
  %v2274 = vpop.permute.xlu0 %2273
  %vm2275 = vcmask 15360
  %s2276 = scalar_lea.vmem %s1, 512
  %2277 = vst.msk [vmem:[%s2276] ss:$-350 sm:$0x3] %vm2275, %v2274
  %s2278 = scalar_lea.vmem %s1, 1312
  %2279 = vst.msk [vmem:[%s2278] ss:$-350 sm:$0xc] %vm2275, %v2274
  %s2280 = scalar_lea.vmem %s1, 2112
  %2281 = vst.msk [vmem:[%s2280] ss:$-350 sm:$0x70] %vm2275, %v2274
  %s2282 = scalar_lea.vmem %s1, 455
  %2283 = vst.msk [vmem:[%s2282] sm:$0x80] %vm2275, %v2274
  %s2284 = scalar_lea.vmem %s0, 16
  %v2285 = vld.sshfl [vmem:[%s2284] sm:$0xff pattern:$0x907e5c3a]
  %2286 = vrot.lane.b32.xlu0 %v2285, 104
  %v2287 = vpop.permute.xlu0 %2286
  %vm2288 = vcmask 15360
  %s2289 = scalar_lea.vmem %s1, 1312
  %2290 = vst.msk [vmem:[%s2289] ss:$-350 sm:$0x3] %vm2288, %v2287
  %s2291 = scalar_lea.vmem %s1, 2112
  %2292 = vst.msk [vmem:[%s2291] ss:$-350 sm:$0xc] %vm2288, %v2287
  %s2293 = scalar_lea.vmem %s1, 2912
  %2294 = vst.msk [vmem:[%s2293] ss:$-350 sm:$0x70] %vm2288, %v2287
  %s2295 = scalar_lea.vmem %s1, 1255
  %2296 = vst.msk [vmem:[%s2295] sm:$0x80] %vm2288, %v2287
  %s2297 = scalar_lea.vmem %s0, 32
  %v2298 = vld.sshfl [vmem:[%s2297] sm:$0xff pattern:$0x907e5c3a]
  %2299 = vrot.lane.b32.xlu0 %v2298, 104
  %v2300 = vpop.permute.xlu0 %2299
  %vm2301 = vcmask 15360
  %s2302 = scalar_lea.vmem %s1, 2112
  %2303 = vst.msk [vmem:[%s2302] ss:$-350 sm:$0x3] %vm2301, %v2300
  %s2304 = scalar_lea.vmem %s1, 2912
  %2305 = vst.msk [vmem:[%s2304] ss:$-350 sm:$0xc] %vm2301, %v2300
  %s2306 = scalar_lea.vmem %s1, 3712
  %2307 = vst.msk [vmem:[%s2306] ss:$-350 sm:$0x70] %vm2301, %v2300
  %s2308 = scalar_lea.vmem %s1, 2055
  %2309 = vst.msk [vmem:[%s2308] sm:$0x80] %vm2301, %v2300
  %s2310 = scalar_lea.vmem %s0, 57
  %v2311 = vld.sshfl [vmem:[%s2310] sm:$0xff pattern:$0x444b2907]
  %s2312 = scalar_lea.vmem %s0, 4294967254
  %s2313 = smov 192
  %v2314 = vld [vmem:[%s2312] ss:$15 sm:%s2313]
  %vm2315 = vcmask 1047558
  %v2316 = vsel %vm2315, %v2314, %v2311
  %2317 = vrot.lane.b32.xlu0 %v2316, 104
  %v2318 = vpop.permute.xlu0 %2317
  %vm2319 = vcmask 15360
  %s2320 = scalar_lea.vmem %s1, 2912
  %2321 = vst.msk [vmem:[%s2320] ss:$-350 sm:$0x3] %vm2319, %v2318
  %s2322 = scalar_lea.vmem %s1, 3712
  %2323 = vst.msk [vmem:[%s2322] ss:$-350 sm:$0xc] %vm2319, %v2318
  %s2324 = scalar_lea.vmem %s1, 4512
  %2325 = vst.msk [vmem:[%s2324] ss:$-350 sm:$0x70] %vm2319, %v2318
  %s2326 = scalar_lea.vmem %s1, 2855
  %2327 = vst.msk [vmem:[%s2326] sm:$0x80] %vm2319, %v2318
  %s2328 = scalar_lea.vmem %s0, 70
  %v2329 = vld.sshfl [vmem:[%s2328] sm:$0xff pattern:$0x907e5c3a]
  %2330 = vrot.lane.b32.xlu0 %v2329, 104
  %v2331 = vpop.permute.xlu0 %2330
  %vm2332 = vcmask 15360
  %s2333 = scalar_lea.vmem %s1, 3712
  %2334 = vst.msk [vmem:[%s2333] ss:$-350 sm:$0x3] %vm2332, %v2331
  %s2335 = scalar_lea.vmem %s1, 4512
  %2336 = vst.msk [vmem:[%s2335] ss:$-350 sm:$0xc] %vm2332, %v2331
  %s2337 = scalar_lea.vmem %s1, 5312
  %2338 = vst.msk [vmem:[%s2337] ss:$-350 sm:$0x70] %vm2332, %v2331
  %s2339 = scalar_lea.vmem %s1, 3655
  %2340 = vst.msk [vmem:[%s2339] sm:$0x80] %vm2332, %v2331
  %s2341 = scalar_lea.vmem %s0, 86
  %v2342 = vld.sshfl [vmem:[%s2341] sm:$0xff pattern:$0x907e5c3a]
  %2343 = vrot.lane.b32.xlu0 %v2342, 104
  %v2344 = vpop.permute.xlu0 %2343
  %vm2345 = vcmask 15360
  %s2346 = scalar_lea.vmem %s1, 4512
  %2347 = vst.msk [vmem:[%s2346] ss:$-350 sm:$0x3] %vm2345, %v2344
  %s2348 = scalar_lea.vmem %s1, 5312
  %2349 = vst.msk [vmem:[%s2348] ss:$-350 sm:$0xc] %vm2345, %v2344
  %s2350 = scalar_lea.vmem %s1, 6112
  %2351 = vst.msk [vmem:[%s2350] ss:$-350 sm:$0x70] %vm2345, %v2344
  %s2352 = scalar_lea.vmem %s1, 4455
  %2353 = vst.msk [vmem:[%s2352] sm:$0x80] %vm2345, %v2344
  %s2354 = scalar_lea.vmem %s0, 105
  %s2355 = smov 3
  %v2356 = vld [vmem:[%s2354] ss:$-3 sm:%s2355]
  %s2357 = scalar_lea.vmem %s0, 2
  %v2358 = vld.sshfl [vmem:[%s2357] sm:$0xff pattern:$0xd4b29000]
  %vm2359 = vcmask 1047554
  %v2360 = vsel %vm2359, %v2358, %v2356
  %2361 = vrot.lane.b32.xlu0 %v2360, 104
  %v2362 = vpop.permute.xlu0 %2361
  %vm2363 = vcmask 15360
  %s2364 = scalar_lea.vmem %s1, 4962
  %2365 = vst.msk [vmem:[%s2364] ss:$-150 sm:$0x3] %vm2363, %v2362
  %s2366 = scalar_lea.vmem %s1, 4294966508
  %2367 = vst.msk [vmem:[%s2366] ss:$450 sm:$0xc] %vm2363, %v2362
  %s2368 = scalar_lea.vmem %s1, 4294965708
  %2369 = vst.msk [vmem:[%s2368] ss:$450 sm:$0x30] %vm2363, %v2362
  %s2370 = scalar_lea.vmem %s1, 4294964908
  %2371 = vst.msk [vmem:[%s2370] ss:$450 sm:$0xc0] %vm2363, %v2362
  %s2372 = scalar_lea.vmem %s0, 18
  %v2373 = vld.sshfl [vmem:[%s2372] sm:$0xff pattern:$0xddd4b290]
  %s2374 = scalar_lea.vmem %s0, 50
  %s2375 = smov 192
  %v2376 = vld [vmem:[%s2374] ss:$-7 sm:%s2375]
  %vm2377 = vcmask 1047558
  %v2378 = vsel %vm2377, %v2376, %v2373
  %2379 = vrot.lane.b32.xlu0 %v2378, 104
  %v2380 = vpop.permute.xlu0 %2379
  %vm2381 = vcmask 15360
  %s2382 = scalar_lea.vmem %s1, 912
  %2383 = vst.msk [vmem:[%s2382] ss:$450 sm:$0x3] %vm2381, %v2380
  %s2384 = scalar_lea.vmem %s1, 112
  %2385 = vst.msk [vmem:[%s2384] ss:$450 sm:$0xc] %vm2381, %v2380
  %s2386 = scalar_lea.vmem %s1, 4294966608
  %2387 = vst.msk [vmem:[%s2386] ss:$450 sm:$0x30] %vm2381, %v2380
  %s2388 = scalar_lea.vmem %s1, 2512
  %2389 = vst.msk [vmem:[%s2388] ss:$-350 sm:$0xc0] %vm2381, %v2380
  %s2390 = scalar_lea.vmem %s0, 34
  %v2391 = vld.sshfl [vmem:[%s2390] sm:$0xff pattern:$0xddd4b290]
  %s2392 = scalar_lea.vmem %s0, 66
  %s2393 = smov 192
  %v2394 = vld [vmem:[%s2392] ss:$-7 sm:%s2393]
  %vm2395 = vcmask 1047558
  %v2396 = vsel %vm2395, %v2394, %v2391
  %2397 = vrot.lane.b32.xlu0 %v2396, 104
  %v2398 = vpop.permute.xlu0 %2397
  %vm2399 = vcmask 15360
  %s2400 = scalar_lea.vmem %s1, 1712
  %2401 = vst.msk [vmem:[%s2400] ss:$450 sm:$0x3] %vm2399, %v2398
  %s2402 = scalar_lea.vmem %s1, 912
  %2403 = vst.msk [vmem:[%s2402] ss:$450 sm:$0xc] %vm2399, %v2398
  %s2404 = scalar_lea.vmem %s1, 112
  %2405 = vst.msk [vmem:[%s2404] ss:$450 sm:$0x30] %vm2399, %v2398
  %s2406 = scalar_lea.vmem %s1, 3312
  %2407 = vst.msk [vmem:[%s2406] ss:$-350 sm:$0xc0] %vm2399, %v2398
  %s2408 = scalar_lea.vmem %s0, 56
  %v2409 = vld.sshfl [vmem:[%s2408] sm:$0xff pattern:$0xddd4b290]
  %s2410 = scalar_lea.vmem %s0, 82
  %s2411 = smov 192
  %v2412 = vld [vmem:[%s2410] ss:$-7 sm:%s2411]
  %vm2413 = vcmask 1047558
  %v2414 = vsel %vm2413, %v2412, %v2409
  %2415 = vrot.lane.b32.xlu0 %v2414, 104
  %v2416 = vpop.permute.xlu0 %2415
  %vm2417 = vcmask 15360
  %s2418 = scalar_lea.vmem %s1, 2512
  %2419 = vst.msk [vmem:[%s2418] ss:$450 sm:$0x3] %vm2417, %v2416
  %s2420 = scalar_lea.vmem %s1, 1712
  %2421 = vst.msk [vmem:[%s2420] ss:$450 sm:$0xc] %vm2417, %v2416
  %s2422 = scalar_lea.vmem %s1, 912
  %2423 = vst.msk [vmem:[%s2422] ss:$450 sm:$0x30] %vm2417, %v2416
  %s2424 = scalar_lea.vmem %s1, 4112
  %2425 = vst.msk [vmem:[%s2424] ss:$-350 sm:$0xc0] %vm2417, %v2416
  %s2426 = scalar_lea.vmem %s0, 72
  %v2427 = vld.sshfl [vmem:[%s2426] sm:$0xff pattern:$0xddd4b290]
  %s2428 = scalar_lea.vmem %s0, 140
  %s2429 = smov 192
  %v2430 = vld [vmem:[%s2428] ss:$-13 sm:%s2429]
  %vm2431 = vcmask 1047558
  %v2432 = vsel %vm2431, %v2430, %v2427
  %2433 = vrot.lane.b32.xlu0 %v2432, 104
  %v2434 = vpop.permute.xlu0 %2433
  %vm2435 = vcmask 15360
  %s2436 = scalar_lea.vmem %s1, 3312
  %2437 = vst.msk [vmem:[%s2436] ss:$450 sm:$0x3] %vm2435, %v2434
  %s2438 = scalar_lea.vmem %s1, 2512
  %2439 = vst.msk [vmem:[%s2438] ss:$450 sm:$0xc] %vm2435, %v2434
  %s2440 = scalar_lea.vmem %s1, 1712
  %2441 = vst.msk [vmem:[%s2440] ss:$450 sm:$0x30] %vm2435, %v2434
  %s2442 = scalar_lea.vmem %s1, 4912
  %2443 = vst.msk [vmem:[%s2442] ss:$-350 sm:$0xc0] %vm2435, %v2434
  %s2444 = scalar_lea.vmem %s0, 88
  %v2445 = vld.sshfl [vmem:[%s2444] sm:$0xff pattern:$0xddd4b290]
  %s2446 = scalar_lea.vmem %s0, 120
  %s2447 = smov 192
  %v2448 = vld [vmem:[%s2446] ss:$-7 sm:%s2447]
  %vm2449 = vcmask 1047558
  %v2450 = vsel %vm2449, %v2448, %v2445
  %2451 = vrot.lane.b32.xlu0 %v2450, 104
  %v2452 = vpop.permute.xlu0 %2451
  %vm2453 = vcmask 15360
  %s2454 = scalar_lea.vmem %s1, 4112
  %2455 = vst.msk [vmem:[%s2454] ss:$450 sm:$0x3] %vm2453, %v2452
  %s2456 = scalar_lea.vmem %s1, 3312
  %2457 = vst.msk [vmem:[%s2456] ss:$450 sm:$0xc] %vm2453, %v2452
  %s2458 = scalar_lea.vmem %s1, 2512
  %2459 = vst.msk [vmem:[%s2458] ss:$450 sm:$0x30] %vm2453, %v2452
  %s2460 = scalar_lea.vmem %s1, 5712
  %2461 = vst.msk [vmem:[%s2460] ss:$-350 sm:$0xc0] %vm2453, %v2452
  %s2462 = scalar_lea.vmem %s0, 104
  %s2463 = smov 3
  %v2464 = vld [vmem:[%s2462] ss:$-10 sm:%s2463]
  %s2465 = scalar_lea.vmem %s0, 55
  %s2466 = smov 12
  %v2467 = vld [vmem:[%s2465] ss:$16 sm:%s2466]
  %vm2468 = vcmask 1043458
  %v2469 = vsel %vm2468, %v2467, %v2464
  %2470 = vrot.lane.b32.xlu0 %v2469, 104
  %v2471 = vpop.permute.xlu0 %2470
  %vm2472 = vcmask 15360
  %s2473 = scalar_lea.vmem %s1, 4912
  %2474 = vst.msk [vmem:[%s2473] ss:$-500 sm:$0x3] %vm2472, %v2471
  %s2475 = scalar_lea.vmem %s1, 4060
  %2476 = vst.msk [vmem:[%s2475] sm:$0x4] %vm2472, %v2471
  %s2477 = scalar_lea.vmem %s1, 4859
  %2478 = vst.msk [vmem:[%s2477] sm:$0x8] %vm2472, %v2471
  %v2479 = vld.sshfl [vmem:[%s0] sm:$0xff pattern:$0x907e5c3a]
  %2480 = vrot.lane.b32.xlu0 %v2479, 102
  %v2481 = vpop.permute.xlu0 %2480
  %vm2482 = vcmask 15360
  %s2483 = scalar_lea.vmem %s1, 513
  %2484 = vst.msk [vmem:[%s2483] ss:$-350 sm:$0x3] %vm2482, %v2481
  %s2485 = scalar_lea.vmem %s1, 1313
  %2486 = vst.msk [vmem:[%s2485] ss:$-350 sm:$0xc] %vm2482, %v2481
  %s2487 = scalar_lea.vmem %s1, 2113
  %2488 = vst.msk [vmem:[%s2487] ss:$-350 sm:$0x70] %vm2482, %v2481
  %s2489 = scalar_lea.vmem %s1, 456
  %2490 = vst.msk [vmem:[%s2489] sm:$0x80] %vm2482, %v2481
  %s2491 = scalar_lea.vmem %s0, 16
  %v2492 = vld.sshfl [vmem:[%s2491] sm:$0xff pattern:$0x907e5c3a]
  %2493 = vrot.lane.b32.xlu0 %v2492, 102
  %v2494 = vpop.permute.xlu0 %2493
  %vm2495 = vcmask 15360
  %s2496 = scalar_lea.vmem %s1, 1313
  %2497 = vst.msk [vmem:[%s2496] ss:$-350 sm:$0x3] %vm2495, %v2494
  %s2498 = scalar_lea.vmem %s1, 2113
  %2499 = vst.msk [vmem:[%s2498] ss:$-350 sm:$0xc] %vm2495, %v2494
  %s2500 = scalar_lea.vmem %s1, 2913
  %2501 = vst.msk [vmem:[%s2500] ss:$-350 sm:$0x70] %vm2495, %v2494
  %s2502 = scalar_lea.vmem %s1, 1256
  %2503 = vst.msk [vmem:[%s2502] sm:$0x80] %vm2495, %v2494
  %s2504 = scalar_lea.vmem %s0, 32
  %v2505 = vld.sshfl [vmem:[%s2504] sm:$0xff pattern:$0x907e5c3a]
  %2506 = vrot.lane.b32.xlu0 %v2505, 102
  %v2507 = vpop.permute.xlu0 %2506
  %vm2508 = vcmask 15360
  %s2509 = scalar_lea.vmem %s1, 2113
  %2510 = vst.msk [vmem:[%s2509] ss:$-350 sm:$0x3] %vm2508, %v2507
  %s2511 = scalar_lea.vmem %s1, 2913
  %2512 = vst.msk [vmem:[%s2511] ss:$-350 sm:$0xc] %vm2508, %v2507
  %s2513 = scalar_lea.vmem %s1, 3713
  %2514 = vst.msk [vmem:[%s2513] ss:$-350 sm:$0x70] %vm2508, %v2507
  %s2515 = scalar_lea.vmem %s1, 2056
  %2516 = vst.msk [vmem:[%s2515] sm:$0x80] %vm2508, %v2507
  %s2517 = scalar_lea.vmem %s0, 57
  %v2518 = vld.sshfl [vmem:[%s2517] sm:$0xff pattern:$0x444b2907]
  %s2519 = scalar_lea.vmem %s0, 4294967254
  %s2520 = smov 192
  %v2521 = vld [vmem:[%s2519] ss:$15 sm:%s2520]
  %vm2522 = vcmask 1047558
  %v2523 = vsel %vm2522, %v2521, %v2518
  %2524 = vrot.lane.b32.xlu0 %v2523, 102
  %v2525 = vpop.permute.xlu0 %2524
  %vm2526 = vcmask 15360
  %s2527 = scalar_lea.vmem %s1, 2913
  %2528 = vst.msk [vmem:[%s2527] ss:$-350 sm:$0x3] %vm2526, %v2525
  %s2529 = scalar_lea.vmem %s1, 3713
  %2530 = vst.msk [vmem:[%s2529] ss:$-350 sm:$0xc] %vm2526, %v2525
  %s2531 = scalar_lea.vmem %s1, 4513
  %2532 = vst.msk [vmem:[%s2531] ss:$-350 sm:$0x70] %vm2526, %v2525
  %s2533 = scalar_lea.vmem %s1, 2856
  %2534 = vst.msk [vmem:[%s2533] sm:$0x80] %vm2526, %v2525
  %s2535 = scalar_lea.vmem %s0, 70
  %v2536 = vld.sshfl [vmem:[%s2535] sm:$0xff pattern:$0x907e5c3a]
  %2537 = vrot.lane.b32.xlu0 %v2536, 102
  %v2538 = vpop.permute.xlu0 %2537
  %vm2539 = vcmask 15360
  %s2540 = scalar_lea.vmem %s1, 3713
  %2541 = vst.msk [vmem:[%s2540] ss:$-350 sm:$0x3] %vm2539, %v2538
  %s2542 = scalar_lea.vmem %s1, 4513
  %2543 = vst.msk [vmem:[%s2542] ss:$-350 sm:$0xc] %vm2539, %v2538
  %s2544 = scalar_lea.vmem %s1, 5313
  %2545 = vst.msk [vmem:[%s2544] ss:$-350 sm:$0x70] %vm2539, %v2538
  %s2546 = scalar_lea.vmem %s1, 3656
  %2547 = vst.msk [vmem:[%s2546] sm:$0x80] %vm2539, %v2538
  %s2548 = scalar_lea.vmem %s0, 86
  %v2549 = vld.sshfl [vmem:[%s2548] sm:$0xff pattern:$0x907e5c3a]
  %2550 = vrot.lane.b32.xlu0 %v2549, 102
  %v2551 = vpop.permute.xlu0 %2550
  %vm2552 = vcmask 15360
  %s2553 = scalar_lea.vmem %s1, 4513
  %2554 = vst.msk [vmem:[%s2553] ss:$-350 sm:$0x3] %vm2552, %v2551
  %s2555 = scalar_lea.vmem %s1, 5313
  %2556 = vst.msk [vmem:[%s2555] ss:$-350 sm:$0xc] %vm2552, %v2551
  %s2557 = scalar_lea.vmem %s1, 6113
  %2558 = vst.msk [vmem:[%s2557] ss:$-350 sm:$0x70] %vm2552, %v2551
  %s2559 = scalar_lea.vmem %s1, 4456
  %2560 = vst.msk [vmem:[%s2559] sm:$0x80] %vm2552, %v2551
  %s2561 = scalar_lea.vmem %s0, 105
  %s2562 = smov 3
  %v2563 = vld [vmem:[%s2561] ss:$-3 sm:%s2562]
  %s2564 = scalar_lea.vmem %s0, 2
  %v2565 = vld.sshfl [vmem:[%s2564] sm:$0xff pattern:$0xd4b29000]
  %vm2566 = vcmask 1047554
  %v2567 = vsel %vm2566, %v2565, %v2563
  %2568 = vrot.lane.b32.xlu0 %v2567, 102
  %v2569 = vpop.permute.xlu0 %2568
  %vm2570 = vcmask 15360
  %s2571 = scalar_lea.vmem %s1, 4963
  %2572 = vst.msk [vmem:[%s2571] ss:$-150 sm:$0x3] %vm2570, %v2569
  %s2573 = scalar_lea.vmem %s1, 4294966509
  %2574 = vst.msk [vmem:[%s2573] ss:$450 sm:$0xc] %vm2570, %v2569
  %s2575 = scalar_lea.vmem %s1, 4294965709
  %2576 = vst.msk [vmem:[%s2575] ss:$450 sm:$0x30] %vm2570, %v2569
  %s2577 = scalar_lea.vmem %s1, 4294964909
  %2578 = vst.msk [vmem:[%s2577] ss:$450 sm:$0xc0] %vm2570, %v2569
  %s2579 = scalar_lea.vmem %s0, 18
  %v2580 = vld.sshfl [vmem:[%s2579] sm:$0xff pattern:$0xddd4b290]
  %s2581 = scalar_lea.vmem %s0, 50
  %s2582 = smov 192
  %v2583 = vld [vmem:[%s2581] ss:$-7 sm:%s2582]
  %vm2584 = vcmask 1047558
  %v2585 = vsel %vm2584, %v2583, %v2580
  %2586 = vrot.lane.b32.xlu0 %v2585, 102
  %v2587 = vpop.permute.xlu0 %2586
  %vm2588 = vcmask 15360
  %s2589 = scalar_lea.vmem %s1, 913
  %2590 = vst.msk [vmem:[%s2589] ss:$450 sm:$0x3] %vm2588, %v2587
  %s2591 = scalar_lea.vmem %s1, 113
  %2592 = vst.msk [vmem:[%s2591] ss:$450 sm:$0xc] %vm2588, %v2587
  %s2593 = scalar_lea.vmem %s1, 4294966609
  %2594 = vst.msk [vmem:[%s2593] ss:$450 sm:$0x30] %vm2588, %v2587
  %s2595 = scalar_lea.vmem %s1, 2513
  %2596 = vst.msk [vmem:[%s2595] ss:$-350 sm:$0xc0] %vm2588, %v2587
  %s2597 = scalar_lea.vmem %s0, 34
  %v2598 = vld.sshfl [vmem:[%s2597] sm:$0xff pattern:$0xddd4b290]
  %s2599 = scalar_lea.vmem %s0, 66
  %s2600 = smov 192
  %v2601 = vld [vmem:[%s2599] ss:$-7 sm:%s2600]
  %vm2602 = vcmask 1047558
  %v2603 = vsel %vm2602, %v2601, %v2598
  %2604 = vrot.lane.b32.xlu0 %v2603, 102
  %v2605 = vpop.permute.xlu0 %2604
  %vm2606 = vcmask 15360
  %s2607 = scalar_lea.vmem %s1, 1713
  %2608 = vst.msk [vmem:[%s2607] ss:$450 sm:$0x3] %vm2606, %v2605
  %s2609 = scalar_lea.vmem %s1, 913
  %2610 = vst.msk [vmem:[%s2609] ss:$450 sm:$0xc] %vm2606, %v2605
  %s2611 = scalar_lea.vmem %s1, 113
  %2612 = vst.msk [vmem:[%s2611] ss:$450 sm:$0x30] %vm2606, %v2605
  %s2613 = scalar_lea.vmem %s1, 3313
  %2614 = vst.msk [vmem:[%s2613] ss:$-350 sm:$0xc0] %vm2606, %v2605
  %s2615 = scalar_lea.vmem %s0, 56
  %v2616 = vld.sshfl [vmem:[%s2615] sm:$0xff pattern:$0xddd4b290]
  %s2617 = scalar_lea.vmem %s0, 82
  %s2618 = smov 192
  %v2619 = vld [vmem:[%s2617] ss:$-7 sm:%s2618]
  %vm2620 = vcmask 1047558
  %v2621 = vsel %vm2620, %v2619, %v2616
  %2622 = vrot.lane.b32.xlu0 %v2621, 102
  %v2623 = vpop.permute.xlu0 %2622
  %vm2624 = vcmask 15360
  %s2625 = scalar_lea.vmem %s1, 2513
  %2626 = vst.msk [vmem:[%s2625] ss:$450 sm:$0x3] %vm2624, %v2623
  %s2627 = scalar_lea.vmem %s1, 1713
  %2628 = vst.msk [vmem:[%s2627] ss:$450 sm:$0xc] %vm2624, %v2623
  %s2629 = scalar_lea.vmem %s1, 913
  %2630 = vst.msk [vmem:[%s2629] ss:$450 sm:$0x30] %vm2624, %v2623
  %s2631 = scalar_lea.vmem %s1, 4113
  %2632 = vst.msk [vmem:[%s2631] ss:$-350 sm:$0xc0] %vm2624, %v2623
  %s2633 = scalar_lea.vmem %s0, 72
  %v2634 = vld.sshfl [vmem:[%s2633] sm:$0xff pattern:$0xddd4b290]
  %s2635 = scalar_lea.vmem %s0, 140
  %s2636 = smov 192
  %v2637 = vld [vmem:[%s2635] ss:$-13 sm:%s2636]
  %vm2638 = vcmask 1047558
  %v2639 = vsel %vm2638, %v2637, %v2634
  %2640 = vrot.lane.b32.xlu0 %v2639, 102
  %v2641 = vpop.permute.xlu0 %2640
  %vm2642 = vcmask 15360
  %s2643 = scalar_lea.vmem %s1, 3313
  %2644 = vst.msk [vmem:[%s2643] ss:$450 sm:$0x3] %vm2642, %v2641
  %s2645 = scalar_lea.vmem %s1, 2513
  %2646 = vst.msk [vmem:[%s2645] ss:$450 sm:$0xc] %vm2642, %v2641
  %s2647 = scalar_lea.vmem %s1, 1713
  %2648 = vst.msk [vmem:[%s2647] ss:$450 sm:$0x30] %vm2642, %v2641
  %s2649 = scalar_lea.vmem %s1, 4913
  %2650 = vst.msk [vmem:[%s2649] ss:$-350 sm:$0xc0] %vm2642, %v2641
  %s2651 = scalar_lea.vmem %s0, 88
  %v2652 = vld.sshfl [vmem:[%s2651] sm:$0xff pattern:$0xddd4b290]
  %s2653 = scalar_lea.vmem %s0, 120
  %s2654 = smov 192
  %v2655 = vld [vmem:[%s2653] ss:$-7 sm:%s2654]
  %vm2656 = vcmask 1047558
  %v2657 = vsel %vm2656, %v2655, %v2652
  %2658 = vrot.lane.b32.xlu0 %v2657, 102
  %v2659 = vpop.permute.xlu0 %2658
  %vm2660 = vcmask 15360
  %s2661 = scalar_lea.vmem %s1, 4113
  %2662 = vst.msk [vmem:[%s2661] ss:$450 sm:$0x3] %vm2660, %v2659
  %s2663 = scalar_lea.vmem %s1, 3313
  %2664 = vst.msk [vmem:[%s2663] ss:$450 sm:$0xc] %vm2660, %v2659
  %s2665 = scalar_lea.vmem %s1, 2513
  %2666 = vst.msk [vmem:[%s2665] ss:$450 sm:$0x30] %vm2660, %v2659
  %s2667 = scalar_lea.vmem %s1, 5713
  %2668 = vst.msk [vmem:[%s2667] ss:$-350 sm:$0xc0] %vm2660, %v2659
  %s2669 = scalar_lea.vmem %s0, 104
  %s2670 = smov 3
  %v2671 = vld [vmem:[%s2669] ss:$-10 sm:%s2670]
  %s2672 = scalar_lea.vmem %s0, 55
  %s2673 = smov 12
  %v2674 = vld [vmem:[%s2672] ss:$16 sm:%s2673]
  %vm2675 = vcmask 1043458
  %v2676 = vsel %vm2675, %v2674, %v2671
  %2677 = vrot.lane.b32.xlu0 %v2676, 102
  %v2678 = vpop.permute.xlu0 %2677
  %vm2679 = vcmask 15360
  %s2680 = scalar_lea.vmem %s1, 4913
  %2681 = vst.msk [vmem:[%s2680] ss:$-500 sm:$0x3] %vm2679, %v2678
  %s2682 = scalar_lea.vmem %s1, 4061
  %2683 = vst.msk [vmem:[%s2682] sm:$0x4] %vm2679, %v2678
  %s2684 = scalar_lea.vmem %s1, 4860
  %2685 = vst.msk [vmem:[%s2684] sm:$0x8] %vm2679, %v2678
  %v2686 = vld.sshfl [vmem:[%s0] sm:$0xff pattern:$0x7e5c3a1]
  %2687 = vrot.lane.b32.xlu0 %v2686, 100
  %v2688 = vpop.permute.xlu0 %2687
  %vm2689 = vcmask 15360
  %s2690 = scalar_lea.vmem %s1, 64
  %2691 = vst.msk [vmem:[%s2690] ss:$450 sm:$0x3] %vm2689, %v2688
  %s2692 = scalar_lea.vmem %s1, 4294966560
  %2693 = vst.msk [vmem:[%s2692] ss:$450 sm:$0xc] %vm2689, %v2688
  %s2694 = scalar_lea.vmem %s1, 4294965760
  %2695 = vst.msk [vmem:[%s2694] ss:$450 sm:$0x30] %vm2689, %v2688
  %s2696 = scalar_lea.vmem %s1, 2464
  %2697 = vst.msk [vmem:[%s2696] ss:$-350 sm:$0xc0] %vm2689, %v2688
  %s2698 = scalar_lea.vmem %s0, 16
  %v2699 = vld.sshfl [vmem:[%s2698] sm:$0xff pattern:$0x7e5c3a1]
  %2700 = vrot.lane.b32.xlu0 %v2699, 100
  %v2701 = vpop.permute.xlu0 %2700
  %vm2702 = vcmask 15360
  %s2703 = scalar_lea.vmem %s1, 864
  %2704 = vst.msk [vmem:[%s2703] ss:$450 sm:$0x3] %vm2702, %v2701
  %s2705 = scalar_lea.vmem %s1, 64
  %2706 = vst.msk [vmem:[%s2705] ss:$450 sm:$0xc] %vm2702, %v2701
  %s2707 = scalar_lea.vmem %s1, 4294966560
  %2708 = vst.msk [vmem:[%s2707] ss:$450 sm:$0x30] %vm2702, %v2701
  %s2709 = scalar_lea.vmem %s1, 3264
  %2710 = vst.msk [vmem:[%s2709] ss:$-350 sm:$0xc0] %vm2702, %v2701
  %s2711 = scalar_lea.vmem %s0, 32
  %v2712 = vld.sshfl [vmem:[%s2711] sm:$0xff pattern:$0x7e5c3a1]
  %2713 = vrot.lane.b32.xlu0 %v2712, 100
  %v2714 = vpop.permute.xlu0 %2713
  %vm2715 = vcmask 15360
  %s2716 = scalar_lea.vmem %s1, 1664
  %2717 = vst.msk [vmem:[%s2716] ss:$450 sm:$0x3] %vm2715, %v2714
  %s2718 = scalar_lea.vmem %s1, 864
  %2719 = vst.msk [vmem:[%s2718] ss:$450 sm:$0xc] %vm2715, %v2714
  %s2720 = scalar_lea.vmem %s1, 64
  %2721 = vst.msk [vmem:[%s2720] ss:$450 sm:$0x30] %vm2715, %v2714
  %s2722 = scalar_lea.vmem %s1, 4064
  %2723 = vst.msk [vmem:[%s2722] ss:$-350 sm:$0xc0] %vm2715, %v2714
  %s2724 = scalar_lea.vmem %s0, 49
  %v2725 = vld.sshfl [vmem:[%s2724] sm:$0xff pattern:$0x888888f0]
  %s2726 = scalar_lea.vmem %s0, 59
  %v2727 = vld.sshfl [vmem:[%s2726] sm:$0xff pattern:$0x22907777]
  %vm2728 = vcmask 1046531
  %v2729 = vsel %vm2728, %v2727, %v2725
  %s2730 = scalar_lea.vmem %s0, 41
  %v2731 = vld [vmem:[%s2730] sm:$0x80]
  %vm2732 = vcmask 1047559
  %v2733 = vsel %vm2732, %v2731, %v2729
  %2734 = vrot.lane.b32.xlu0 %v2733, 100
  %v2735 = vpop.permute.xlu0 %2734
  %vm2736 = vcmask 15360
  %s2737 = scalar_lea.vmem %s1, 2464
  %2738 = vst.msk [vmem:[%s2737] ss:$450 sm:$0x3] %vm2736, %v2735
  %s2739 = scalar_lea.vmem %s1, 1664
  %2740 = vst.msk [vmem:[%s2739] ss:$450 sm:$0xc] %vm2736, %v2735
  %s2741 = scalar_lea.vmem %s1, 864
  %2742 = vst.msk [vmem:[%s2741] ss:$450 sm:$0x30] %vm2736, %v2735
  %s2743 = scalar_lea.vmem %s1, 4864
  %2744 = vst.msk [vmem:[%s2743] ss:$-350 sm:$0xc0] %vm2736, %v2735
  %s2745 = scalar_lea.vmem %s0, 70
  %v2746 = vld.sshfl [vmem:[%s2745] sm:$0xff pattern:$0x7e5c3a1]
  %2747 = vrot.lane.b32.xlu0 %v2746, 100
  %v2748 = vpop.permute.xlu0 %2747
  %vm2749 = vcmask 15360
  %s2750 = scalar_lea.vmem %s1, 3264
  %2751 = vst.msk [vmem:[%s2750] ss:$450 sm:$0x3] %vm2749, %v2748
  %s2752 = scalar_lea.vmem %s1, 2464
  %2753 = vst.msk [vmem:[%s2752] ss:$450 sm:$0xc] %vm2749, %v2748
  %s2754 = scalar_lea.vmem %s1, 1664
  %2755 = vst.msk [vmem:[%s2754] ss:$450 sm:$0x30] %vm2749, %v2748
  %s2756 = scalar_lea.vmem %s1, 5664
  %2757 = vst.msk [vmem:[%s2756] ss:$-350 sm:$0xc0] %vm2749, %v2748
  %s2758 = scalar_lea.vmem %s0, 86
  %v2759 = vld.sshfl [vmem:[%s2758] sm:$0xff pattern:$0x7e5c3a1]
  %2760 = vrot.lane.b32.xlu0 %v2759, 100
  %v2761 = vpop.permute.xlu0 %2760
  %vm2762 = vcmask 15360
  %s2763 = scalar_lea.vmem %s1, 4064
  %2764 = vst.msk [vmem:[%s2763] ss:$450 sm:$0x3] %vm2762, %v2761
  %s2765 = scalar_lea.vmem %s1, 3264
  %2766 = vst.msk [vmem:[%s2765] ss:$450 sm:$0xc] %vm2762, %v2761
  %s2767 = scalar_lea.vmem %s1, 2464
  %2768 = vst.msk [vmem:[%s2767] ss:$450 sm:$0x30] %vm2762, %v2761
  %s2769 = scalar_lea.vmem %s1, 6464
  %2770 = vst.msk [vmem:[%s2769] ss:$-350 sm:$0xc0] %vm2762, %v2761
  %s2771 = scalar_lea.vmem %s0, 102
  %v2772 = vld.sshfl [vmem:[%s2771] sm:$0xff pattern:$0x31]
  %s2773 = scalar_lea.vmem %s0, 2
  %v2774 = vld.sshfl [vmem:[%s2773] sm:$0xff pattern:$0xb2907777]
  %vm2775 = vcmask 1047555
  %v2776 = vsel %vm2775, %v2774, %v2772
  %2777 = vrot.lane.b32.xlu0 %v2776, 100
  %v2778 = vpop.permute.xlu0 %2777
  %vm2779 = vcmask 15360
  %s2780 = scalar_lea.vmem %s1, 4864
  %2781 = vst.msk [vmem:[%s2780] ss:$100 sm:$0x3] %vm2779, %v2778
  %s2782 = scalar_lea.vmem %s1, 13514
  %2783 = vst.msk [vmem:[%s2782] ss:$-4350 sm:$0xc] %vm2779, %v2778
  %s2784 = scalar_lea.vmem %s1, 4294965610
  %2785 = vst.msk [vmem:[%s2784] ss:$450 sm:$0x30] %vm2779, %v2778
  %s2786 = scalar_lea.vmem %s1, 4294964810
  %2787 = vst.msk [vmem:[%s2786] ss:$450 sm:$0xc0] %vm2779, %v2778
  %s2788 = scalar_lea.vmem %s0, 18
  %v2789 = vld.sshfl [vmem:[%s2788] sm:$0xff pattern:$0xbbbb2907]
  %s2790 = scalar_lea.vmem %s0, 6
  %v2791 = vld.sshfl [vmem:[%s2790] sm:$0xff pattern:$0x29000000]
  %vm2792 = vcmask 1047557
  %v2793 = vsel %vm2792, %v2791, %v2789
  %2794 = vrot.lane.b32.xlu0 %v2793, 100
  %v2795 = vpop.permute.xlu0 %2794
  %vm2796 = vcmask 15360
  %s2797 = scalar_lea.vmem %s1, 1264
  %2798 = vst.msk [vmem:[%s2797] ss:$-350 sm:$0x3] %vm2796, %v2795
  %s2799 = scalar_lea.vmem %s1, 2064
  %2800 = vst.msk [vmem:[%s2799] ss:$-350 sm:$0xc] %vm2796, %v2795
  %s2801 = scalar_lea.vmem %s1, 6064
  %2802 = vst.msk [vmem:[%s2801] ss:$-1150 sm:$0x30] %vm2796, %v2795
  %s2803 = scalar_lea.vmem %s1, 2864
  %2804 = vst.msk [vmem:[%s2803] ss:$-350 sm:$0xc0] %vm2796, %v2795
  %s2805 = scalar_lea.vmem %s0, 34
  %v2806 = vld.sshfl [vmem:[%s2805] sm:$0xff pattern:$0xbbbb2907]
  %s2807 = scalar_lea.vmem %s0, 22
  %v2808 = vld.sshfl [vmem:[%s2807] sm:$0xff pattern:$0x29000000]
  %vm2809 = vcmask 1047557
  %v2810 = vsel %vm2809, %v2808, %v2806
  %2811 = vrot.lane.b32.xlu0 %v2810, 100
  %v2812 = vpop.permute.xlu0 %2811
  %vm2813 = vcmask 15360
  %s2814 = scalar_lea.vmem %s1, 2064
  %2815 = vst.msk [vmem:[%s2814] ss:$-350 sm:$0x3] %vm2813, %v2812
  %s2816 = scalar_lea.vmem %s1, 2864
  %2817 = vst.msk [vmem:[%s2816] ss:$-350 sm:$0xc] %vm2813, %v2812
  %s2818 = scalar_lea.vmem %s1, 6864
  %2819 = vst.msk [vmem:[%s2818] ss:$-1150 sm:$0x30] %vm2813, %v2812
  %s2820 = scalar_lea.vmem %s1, 3664
  %2821 = vst.msk [vmem:[%s2820] ss:$-350 sm:$0xc0] %vm2813, %v2812
  %s2822 = scalar_lea.vmem %s0, 56
  %v2823 = vld.sshfl [vmem:[%s2822] sm:$0xff pattern:$0xbbbb2907]
  %s2824 = scalar_lea.vmem %s0, 38
  %v2825 = vld.sshfl [vmem:[%s2824] sm:$0xff pattern:$0x29000000]
  %vm2826 = vcmask 1047557
  %v2827 = vsel %vm2826, %v2825, %v2823
  %2828 = vrot.lane.b32.xlu0 %v2827, 100
  %v2829 = vpop.permute.xlu0 %2828
  %vm2830 = vcmask 15360
  %s2831 = scalar_lea.vmem %s1, 2864
  %2832 = vst.msk [vmem:[%s2831] ss:$-350 sm:$0x3] %vm2830, %v2829
  %s2833 = scalar_lea.vmem %s1, 3664
  %2834 = vst.msk [vmem:[%s2833] ss:$-350 sm:$0xc] %vm2830, %v2829
  %s2835 = scalar_lea.vmem %s1, 7664
  %2836 = vst.msk [vmem:[%s2835] ss:$-1150 sm:$0x30] %vm2830, %v2829
  %s2837 = scalar_lea.vmem %s1, 4464
  %2838 = vst.msk [vmem:[%s2837] ss:$-350 sm:$0xc0] %vm2830, %v2829
  %s2839 = scalar_lea.vmem %s0, 72
  %v2840 = vld.sshfl [vmem:[%s2839] sm:$0xff pattern:$0xbbbb2907]
  %s2841 = scalar_lea.vmem %s0, 60
  %v2842 = vld.sshfl [vmem:[%s2841] sm:$0xff pattern:$0x29000000]
  %vm2843 = vcmask 1047557
  %v2844 = vsel %vm2843, %v2842, %v2840
  %2845 = vrot.lane.b32.xlu0 %v2844, 100
  %v2846 = vpop.permute.xlu0 %2845
  %vm2847 = vcmask 15360
  %s2848 = scalar_lea.vmem %s1, 3664
  %2849 = vst.msk [vmem:[%s2848] ss:$-350 sm:$0x3] %vm2847, %v2846
  %s2850 = scalar_lea.vmem %s1, 4464
  %2851 = vst.msk [vmem:[%s2850] ss:$-350 sm:$0xc] %vm2847, %v2846
  %s2852 = scalar_lea.vmem %s1, 8464
  %2853 = vst.msk [vmem:[%s2852] ss:$-1150 sm:$0x30] %vm2847, %v2846
  %s2854 = scalar_lea.vmem %s1, 5264
  %2855 = vst.msk [vmem:[%s2854] ss:$-350 sm:$0xc0] %vm2847, %v2846
  %s2856 = scalar_lea.vmem %s0, 88
  %v2857 = vld.sshfl [vmem:[%s2856] sm:$0xff pattern:$0xbbbb2907]
  %s2858 = scalar_lea.vmem %s0, 76
  %v2859 = vld.sshfl [vmem:[%s2858] sm:$0xff pattern:$0x29000000]
  %vm2860 = vcmask 1047557
  %v2861 = vsel %vm2860, %v2859, %v2857
  %2862 = vrot.lane.b32.xlu0 %v2861, 100
  %v2863 = vpop.permute.xlu0 %2862
  %vm2864 = vcmask 15360
  %s2865 = scalar_lea.vmem %s1, 4464
  %2866 = vst.msk [vmem:[%s2865] ss:$-350 sm:$0x3] %vm2864, %v2863
  %s2867 = scalar_lea.vmem %s1, 5264
  %2868 = vst.msk [vmem:[%s2867] ss:$-350 sm:$0xc] %vm2864, %v2863
  %s2869 = scalar_lea.vmem %s1, 9264
  %2870 = vst.msk [vmem:[%s2869] ss:$-1150 sm:$0x30] %vm2864, %v2863
  %s2871 = scalar_lea.vmem %s1, 6064
  %2872 = vst.msk [vmem:[%s2871] ss:$-350 sm:$0xc0] %vm2864, %v2863
  %s2873 = scalar_lea.vmem %s0, 92
  %v2874 = vld.sshfl [vmem:[%s2873] sm:$0xff pattern:$0x2222290c]
  %2875 = vrot.lane.b32.xlu0 %v2874, 100
  %v2876 = vpop.permute.xlu0 %2875
  %vm2877 = vcmask 15360
  %s2878 = scalar_lea.vmem %s1, 4914
  %2879 = vst.msk [vmem:[%s2878] ss:$-600 sm:$0x3] %vm2877, %v2876
  %s2880 = scalar_lea.vmem %s1, 5464
  %2881 = vst.msk [vmem:[%s2880] ss:$-350 sm:$0xc] %vm2877, %v2876
  %v2882 = vld.sshfl [vmem:[%s0] sm:$0xff pattern:$0x7e5c3a1]
  %2883 = vrot.lane.b32.xlu0 %v2882, 98
  %v2884 = vpop.permute.xlu0 %2883
  %vm2885 = vcmask 15360
  %s2886 = scalar_lea.vmem %s1, 65
  %2887 = vst.msk [vmem:[%s2886] ss:$450 sm:$0x3] %vm2885, %v2884
  %s2888 = scalar_lea.vmem %s1, 4294966561
  %2889 = vst.msk [vmem:[%s2888] ss:$450 sm:$0xc] %vm2885, %v2884
  %s2890 = scalar_lea.vmem %s1, 4294965761
  %2891 = vst.msk [vmem:[%s2890] ss:$450 sm:$0x30] %vm2885, %v2884
  %s2892 = scalar_lea.vmem %s1, 2465
  %2893 = vst.msk [vmem:[%s2892] ss:$-350 sm:$0xc0] %vm2885, %v2884
  %s2894 = scalar_lea.vmem %s0, 16
  %v2895 = vld.sshfl [vmem:[%s2894] sm:$0xff pattern:$0x7e5c3a1]
  %2896 = vrot.lane.b32.xlu0 %v2895, 98
  %v2897 = vpop.permute.xlu0 %2896
  %vm2898 = vcmask 15360
  %s2899 = scalar_lea.vmem %s1, 865
  %2900 = vst.msk [vmem:[%s2899] ss:$450 sm:$0x3] %vm2898, %v2897
  %s2901 = scalar_lea.vmem %s1, 65
  %2902 = vst.msk [vmem:[%s2901] ss:$450 sm:$0xc] %vm2898, %v2897
  %s2903 = scalar_lea.vmem %s1, 4294966561
  %2904 = vst.msk [vmem:[%s2903] ss:$450 sm:$0x30] %vm2898, %v2897
  %s2905 = scalar_lea.vmem %s1, 3265
  %2906 = vst.msk [vmem:[%s2905] ss:$-350 sm:$0xc0] %vm2898, %v2897
  %s2907 = scalar_lea.vmem %s0, 32
  %v2908 = vld.sshfl [vmem:[%s2907] sm:$0xff pattern:$0x7e5c3a1]
  %2909 = vrot.lane.b32.xlu0 %v2908, 98
  %v2910 = vpop.permute.xlu0 %2909
  %vm2911 = vcmask 15360
  %s2912 = scalar_lea.vmem %s1, 1665
  %2913 = vst.msk [vmem:[%s2912] ss:$450 sm:$0x3] %vm2911, %v2910
  %s2914 = scalar_lea.vmem %s1, 865
  %2915 = vst.msk [vmem:[%s2914] ss:$450 sm:$0xc] %vm2911, %v2910
  %s2916 = scalar_lea.vmem %s1, 65
  %2917 = vst.msk [vmem:[%s2916] ss:$450 sm:$0x30] %vm2911, %v2910
  %s2918 = scalar_lea.vmem %s1, 4065
  %2919 = vst.msk [vmem:[%s2918] ss:$-350 sm:$0xc0] %vm2911, %v2910
  %s2920 = scalar_lea.vmem %s0, 49
  %v2921 = vld.sshfl [vmem:[%s2920] sm:$0xff pattern:$0x888888f0]
  %s2922 = scalar_lea.vmem %s0, 59
  %v2923 = vld.sshfl [vmem:[%s2922] sm:$0xff pattern:$0x22907777]
  %vm2924 = vcmask 1046531
  %v2925 = vsel %vm2924, %v2923, %v2921
  %s2926 = scalar_lea.vmem %s0, 41
  %v2927 = vld [vmem:[%s2926] sm:$0x80]
  %vm2928 = vcmask 1047559
  %v2929 = vsel %vm2928, %v2927, %v2925
  %2930 = vrot.lane.b32.xlu0 %v2929, 98
  %v2931 = vpop.permute.xlu0 %2930
  %vm2932 = vcmask 15360
  %s2933 = scalar_lea.vmem %s1, 2465
  %2934 = vst.msk [vmem:[%s2933] ss:$450 sm:$0x3] %vm2932, %v2931
  %s2935 = scalar_lea.vmem %s1, 1665
  %2936 = vst.msk [vmem:[%s2935] ss:$450 sm:$0xc] %vm2932, %v2931
  %s2937 = scalar_lea.vmem %s1, 865
  %2938 = vst.msk [vmem:[%s2937] ss:$450 sm:$0x30] %vm2932, %v2931
  %s2939 = scalar_lea.vmem %s1, 4865
  %2940 = vst.msk [vmem:[%s2939] ss:$-350 sm:$0xc0] %vm2932, %v2931
  %s2941 = scalar_lea.vmem %s0, 70
  %v2942 = vld.sshfl [vmem:[%s2941] sm:$0xff pattern:$0x7e5c3a1]
  %2943 = vrot.lane.b32.xlu0 %v2942, 98
  %v2944 = vpop.permute.xlu0 %2943
  %vm2945 = vcmask 15360
  %s2946 = scalar_lea.vmem %s1, 3265
  %2947 = vst.msk [vmem:[%s2946] ss:$450 sm:$0x3] %vm2945, %v2944
  %s2948 = scalar_lea.vmem %s1, 2465
  %2949 = vst.msk [vmem:[%s2948] ss:$450 sm:$0xc] %vm2945, %v2944
  %s2950 = scalar_lea.vmem %s1, 1665
  %2951 = vst.msk [vmem:[%s2950] ss:$450 sm:$0x30] %vm2945, %v2944
  %s2952 = scalar_lea.vmem %s1, 5665
  %2953 = vst.msk [vmem:[%s2952] ss:$-350 sm:$0xc0] %vm2945, %v2944
  %s2954 = scalar_lea.vmem %s0, 86
  %v2955 = vld.sshfl [vmem:[%s2954] sm:$0xff pattern:$0x7e5c3a1]
  %2956 = vrot.lane.b32.xlu0 %v2955, 98
  %v2957 = vpop.permute.xlu0 %2956
  %vm2958 = vcmask 15360
  %s2959 = scalar_lea.vmem %s1, 4065
  %2960 = vst.msk [vmem:[%s2959] ss:$450 sm:$0x3] %vm2958, %v2957
  %s2961 = scalar_lea.vmem %s1, 3265
  %2962 = vst.msk [vmem:[%s2961] ss:$450 sm:$0xc] %vm2958, %v2957
  %s2963 = scalar_lea.vmem %s1, 2465
  %2964 = vst.msk [vmem:[%s2963] ss:$450 sm:$0x30] %vm2958, %v2957
  %s2965 = scalar_lea.vmem %s1, 6465
  %2966 = vst.msk [vmem:[%s2965] ss:$-350 sm:$0xc0] %vm2958, %v2957
  %s2967 = scalar_lea.vmem %s0, 102
  %v2968 = vld.sshfl [vmem:[%s2967] sm:$0xff pattern:$0x31]
  %s2969 = scalar_lea.vmem %s0, 2
  %v2970 = vld.sshfl [vmem:[%s2969] sm:$0xff pattern:$0xb2907777]
  %vm2971 = vcmask 1047555
  %v2972 = vsel %vm2971, %v2970, %v2968
  %2973 = vrot.lane.b32.xlu0 %v2972, 98
  %v2974 = vpop.permute.xlu0 %2973
  %vm2975 = vcmask 15360
  %s2976 = scalar_lea.vmem %s1, 4865
  %2977 = vst.msk [vmem:[%s2976] ss:$100 sm:$0x3] %vm2975, %v2974
  %s2978 = scalar_lea.vmem %s1, 13515
  %2979 = vst.msk [vmem:[%s2978] ss:$-4350 sm:$0xc] %vm2975, %v2974
  %s2980 = scalar_lea.vmem %s1, 4294965611
  %2981 = vst.msk [vmem:[%s2980] ss:$450 sm:$0x30] %vm2975, %v2974
  %s2982 = scalar_lea.vmem %s1, 4294964811
  %2983 = vst.msk [vmem:[%s2982] ss:$450 sm:$0xc0] %vm2975, %v2974
  %s2984 = scalar_lea.vmem %s0, 18
  %v2985 = vld.sshfl [vmem:[%s2984] sm:$0xff pattern:$0xbbbb2907]
  %s2986 = scalar_lea.vmem %s0, 6
  %v2987 = vld.sshfl [vmem:[%s2986] sm:$0xff pattern:$0x29000000]
  %vm2988 = vcmask 1047557
  %v2989 = vsel %vm2988, %v2987, %v2985
  %2990 = vrot.lane.b32.xlu0 %v2989, 98
  %v2991 = vpop.permute.xlu0 %2990
  %vm2992 = vcmask 15360
  %s2993 = scalar_lea.vmem %s1, 1265
  %2994 = vst.msk [vmem:[%s2993] ss:$-350 sm:$0x3] %vm2992, %v2991
  %s2995 = scalar_lea.vmem %s1, 2065
  %2996 = vst.msk [vmem:[%s2995] ss:$-350 sm:$0xc] %vm2992, %v2991
  %s2997 = scalar_lea.vmem %s1, 6065
  %2998 = vst.msk [vmem:[%s2997] ss:$-1150 sm:$0x30] %vm2992, %v2991
  %s2999 = scalar_lea.vmem %s1, 2865
  %3000 = vst.msk [vmem:[%s2999] ss:$-350 sm:$0xc0] %vm2992, %v2991
  %s3001 = scalar_lea.vmem %s0, 34
  %v3002 = vld.sshfl [vmem:[%s3001] sm:$0xff pattern:$0xbbbb2907]
  %s3003 = scalar_lea.vmem %s0, 22
  %v3004 = vld.sshfl [vmem:[%s3003] sm:$0xff pattern:$0x29000000]
  %vm3005 = vcmask 1047557
  %v3006 = vsel %vm3005, %v3004, %v3002
  %3007 = vrot.lane.b32.xlu0 %v3006, 98
  %v3008 = vpop.permute.xlu0 %3007
  %vm3009 = vcmask 15360
  %s3010 = scalar_lea.vmem %s1, 2065
  %3011 = vst.msk [vmem:[%s3010] ss:$-350 sm:$0x3] %vm3009, %v3008
  %s3012 = scalar_lea.vmem %s1, 2865
  %3013 = vst.msk [vmem:[%s3012] ss:$-350 sm:$0xc] %vm3009, %v3008
  %s3014 = scalar_lea.vmem %s1, 6865
  %3015 = vst.msk [vmem:[%s3014] ss:$-1150 sm:$0x30] %vm3009, %v3008
  %s3016 = scalar_lea.vmem %s1, 3665
  %3017 = vst.msk [vmem:[%s3016] ss:$-350 sm:$0xc0] %vm3009, %v3008
  %s3018 = scalar_lea.vmem %s0, 56
  %v3019 = vld.sshfl [vmem:[%s3018] sm:$0xff pattern:$0xbbbb2907]
  %s3020 = scalar_lea.vmem %s0, 38
  %v3021 = vld.sshfl [vmem:[%s3020] sm:$0xff pattern:$0x29000000]
  %vm3022 = vcmask 1047557
  %v3023 = vsel %vm3022, %v3021, %v3019
  %3024 = vrot.lane.b32.xlu0 %v3023, 98
  %v3025 = vpop.permute.xlu0 %3024
  %vm3026 = vcmask 15360
  %s3027 = scalar_lea.vmem %s1, 2865
  %3028 = vst.msk [vmem:[%s3027] ss:$-350 sm:$0x3] %vm3026, %v3025
  %s3029 = scalar_lea.vmem %s1, 3665
  %3030 = vst.msk [vmem:[%s3029] ss:$-350 sm:$0xc] %vm3026, %v3025
  %s3031 = scalar_lea.vmem %s1, 7665
  %3032 = vst.msk [vmem:[%s3031] ss:$-1150 sm:$0x30] %vm3026, %v3025
  %s3033 = scalar_lea.vmem %s1, 4465
  %3034 = vst.msk [vmem:[%s3033] ss:$-350 sm:$0xc0] %vm3026, %v3025
  %s3035 = scalar_lea.vmem %s0, 72
  %v3036 = vld.sshfl [vmem:[%s3035] sm:$0xff pattern:$0xbbbb2907]
  %s3037 = scalar_lea.vmem %s0, 60
  %v3038 = vld.sshfl [vmem:[%s3037] sm:$0xff pattern:$0x29000000]
  %vm3039 = vcmask 1047557
  %v3040 = vsel %vm3039, %v3038, %v3036
  %3041 = vrot.lane.b32.xlu0 %v3040, 98
  %v3042 = vpop.permute.xlu0 %3041
  %vm3043 = vcmask 15360
  %s3044 = scalar_lea.vmem %s1, 3665
  %3045 = vst.msk [vmem:[%s3044] ss:$-350 sm:$0x3] %vm3043, %v3042
  %s3046 = scalar_lea.vmem %s1, 4465
  %3047 = vst.msk [vmem:[%s3046] ss:$-350 sm:$0xc] %vm3043, %v3042
  %s3048 = scalar_lea.vmem %s1, 8465
  %3049 = vst.msk [vmem:[%s3048] ss:$-1150 sm:$0x30] %vm3043, %v3042
  %s3050 = scalar_lea.vmem %s1, 5265
  %3051 = vst.msk [vmem:[%s3050] ss:$-350 sm:$0xc0] %vm3043, %v3042
  %s3052 = scalar_lea.vmem %s0, 88
  %v3053 = vld.sshfl [vmem:[%s3052] sm:$0xff pattern:$0xbbbb2907]
  %s3054 = scalar_lea.vmem %s0, 76
  %v3055 = vld.sshfl [vmem:[%s3054] sm:$0xff pattern:$0x29000000]
  %vm3056 = vcmask 1047557
  %v3057 = vsel %vm3056, %v3055, %v3053
  %3058 = vrot.lane.b32.xlu0 %v3057, 98
  %v3059 = vpop.permute.xlu0 %3058
  %vm3060 = vcmask 15360
  %s3061 = scalar_lea.vmem %s1, 4465
  %3062 = vst.msk [vmem:[%s3061] ss:$-350 sm:$0x3] %vm3060, %v3059
  %s3063 = scalar_lea.vmem %s1, 5265
  %3064 = vst.msk [vmem:[%s3063] ss:$-350 sm:$0xc] %vm3060, %v3059
  %s3065 = scalar_lea.vmem %s1, 9265
  %3066 = vst.msk [vmem:[%s3065] ss:$-1150 sm:$0x30] %vm3060, %v3059
  %s3067 = scalar_lea.vmem %s1, 6065
  %3068 = vst.msk [vmem:[%s3067] ss:$-350 sm:$0xc0] %vm3060, %v3059
  %s3069 = scalar_lea.vmem %s0, 92
  %v3070 = vld.sshfl [vmem:[%s3069] sm:$0xff pattern:$0x2222290c]
  %3071 = vrot.lane.b32.xlu0 %v3070, 98
  %v3072 = vpop.permute.xlu0 %3071
  %vm3073 = vcmask 15360
  %s3074 = scalar_lea.vmem %s1, 4915
  %3075 = vst.msk [vmem:[%s3074] ss:$-600 sm:$0x3] %vm3073, %v3072
  %s3076 = scalar_lea.vmem %s1, 5465
  %3077 = vst.msk [vmem:[%s3076] ss:$-350 sm:$0xc] %vm3073, %v3072
  %s3078 = scalar_lea.vmem %s0, 1
  %v3079 = vld.sshfl [vmem:[%s3078] sm:$0xff pattern:$0x6d4b2907]
  %3080 = vrot.lane.b32.xlu0 %v3079, 96
  %v3081 = vpop.permute.xlu0 %3080
  %vm3082 = vcmask 15360
  %s3083 = scalar_lea.vmem %s1, 416
  %3084 = vst.msk [vmem:[%s3083] ss:$-350 sm:$0x3] %vm3082, %v3081
  %s3085 = scalar_lea.vmem %s1, 1216
  %3086 = vst.msk [vmem:[%s3085] ss:$-350 sm:$0xc] %vm3082, %v3081
  %s3087 = scalar_lea.vmem %s1, 2016
  %3088 = vst.msk [vmem:[%s3087] ss:$-350 sm:$0x30] %vm3082, %v3081
  %s3089 = scalar_lea.vmem %s1, 2816
  %3090 = vst.msk [vmem:[%s3089] ss:$-350 sm:$0xc0] %vm3082, %v3081
  %s3091 = scalar_lea.vmem %s0, 17
  %v3092 = vld.sshfl [vmem:[%s3091] sm:$0xff pattern:$0x6d4b2907]
  %3093 = vrot.lane.b32.xlu0 %v3092, 96
  %v3094 = vpop.permute.xlu0 %3093
  %vm3095 = vcmask 15360
  %s3096 = scalar_lea.vmem %s1, 1216
  %3097 = vst.msk [vmem:[%s3096] ss:$-350 sm:$0x3] %vm3095, %v3094
  %s3098 = scalar_lea.vmem %s1, 2016
  %3099 = vst.msk [vmem:[%s3098] ss:$-350 sm:$0xc] %vm3095, %v3094
  %s3100 = scalar_lea.vmem %s1, 2816
  %3101 = vst.msk [vmem:[%s3100] ss:$-350 sm:$0x30] %vm3095, %v3094
  %s3102 = scalar_lea.vmem %s1, 3616
  %3103 = vst.msk [vmem:[%s3102] ss:$-350 sm:$0xc0] %vm3095, %v3094
  %s3104 = scalar_lea.vmem %s0, 33
  %v3105 = vld.sshfl [vmem:[%s3104] sm:$0xff pattern:$0x6d4b2907]
  %3106 = vrot.lane.b32.xlu0 %v3105, 96
  %v3107 = vpop.permute.xlu0 %3106
  %vm3108 = vcmask 15360
  %s3109 = scalar_lea.vmem %s1, 2016
  %3110 = vst.msk [vmem:[%s3109] ss:$-350 sm:$0x3] %vm3108, %v3107
  %s3111 = scalar_lea.vmem %s1, 2816
  %3112 = vst.msk [vmem:[%s3111] ss:$-350 sm:$0xc] %vm3108, %v3107
  %s3113 = scalar_lea.vmem %s1, 3616
  %3114 = vst.msk [vmem:[%s3113] ss:$-350 sm:$0x30] %vm3108, %v3107
  %s3115 = scalar_lea.vmem %s1, 4416
  %3116 = vst.msk [vmem:[%s3115] ss:$-350 sm:$0xc0] %vm3108, %v3107
  %s3117 = scalar_lea.vmem %s0, 49
  %v3118 = vld.sshfl [vmem:[%s3117] sm:$0xff pattern:$0x88888f0d]
  %s3119 = scalar_lea.vmem %s0, 59
  %v3120 = vld.sshfl [vmem:[%s3119] sm:$0xff pattern:$0x29077777]
  %vm3121 = vcmask 1047556
  %v3122 = vsel %vm3121, %v3120, %v3118
  %3123 = vrot.lane.b32.xlu0 %v3122, 96
  %v3124 = vpop.permute.xlu0 %3123
  %vm3125 = vcmask 15360
  %s3126 = scalar_lea.vmem %s1, 2816
  %3127 = vst.msk [vmem:[%s3126] ss:$-350 sm:$0x3] %vm3125, %v3124
  %s3128 = scalar_lea.vmem %s1, 3616
  %3129 = vst.msk [vmem:[%s3128] ss:$-350 sm:$0xc] %vm3125, %v3124
  %s3130 = scalar_lea.vmem %s1, 4416
  %3131 = vst.msk [vmem:[%s3130] ss:$-350 sm:$0x30] %vm3125, %v3124
  %s3132 = scalar_lea.vmem %s1, 5216
  %3133 = vst.msk [vmem:[%s3132] ss:$-350 sm:$0xc0] %vm3125, %v3124
  %s3134 = scalar_lea.vmem %s0, 71
  %v3135 = vld.sshfl [vmem:[%s3134] sm:$0xff pattern:$0x6d4b2907]
  %3136 = vrot.lane.b32.xlu0 %v3135, 96
  %v3137 = vpop.permute.xlu0 %3136
  %vm3138 = vcmask 15360
  %s3139 = scalar_lea.vmem %s1, 3616
  %3140 = vst.msk [vmem:[%s3139] ss:$-350 sm:$0x3] %vm3138, %v3137
  %s3141 = scalar_lea.vmem %s1, 4416
  %3142 = vst.msk [vmem:[%s3141] ss:$-350 sm:$0xc] %vm3138, %v3137
  %s3143 = scalar_lea.vmem %s1, 5216
  %3144 = vst.msk [vmem:[%s3143] ss:$-350 sm:$0x30] %vm3138, %v3137
  %s3145 = scalar_lea.vmem %s1, 6016
  %3146 = vst.msk [vmem:[%s3145] ss:$-350 sm:$0xc0] %vm3138, %v3137
  %s3147 = scalar_lea.vmem %s0, 87
  %v3148 = vld.sshfl [vmem:[%s3147] sm:$0xff pattern:$0x6d4b2907]
  %3149 = vrot.lane.b32.xlu0 %v3148, 96
  %v3150 = vpop.permute.xlu0 %3149
  %vm3151 = vcmask 15360
  %s3152 = scalar_lea.vmem %s1, 4416
  %3153 = vst.msk [vmem:[%s3152] ss:$-350 sm:$0x3] %vm3151, %v3150
  %s3154 = scalar_lea.vmem %s1, 5216
  %3155 = vst.msk [vmem:[%s3154] ss:$-350 sm:$0xc] %vm3151, %v3150
  %s3156 = scalar_lea.vmem %s1, 6016
  %3157 = vst.msk [vmem:[%s3156] ss:$-350 sm:$0x30] %vm3151, %v3150
  %s3158 = scalar_lea.vmem %s1, 6816
  %3159 = vst.msk [vmem:[%s3158] ss:$-350 sm:$0xc0] %vm3151, %v3150
  %s3160 = scalar_lea.vmem %s0, 103
  %s3161 = smov 3
  %v3162 = vld [vmem:[%s3160] ss:$2 sm:%s3161]
  %v3163 = vld.sshfl [vmem:[%s0] sm:$0xff pattern:$0xd4b29000]
  %vm3164 = vcmask 1047554
  %v3165 = vsel %vm3164, %v3163, %v3162
  %3166 = vrot.lane.b32.xlu0 %v3165, 96
  %v3167 = vpop.permute.xlu0 %3166
  %vm3168 = vcmask 15360
  %s3169 = scalar_lea.vmem %s1, 4866
  %3170 = vst.msk [vmem:[%s3169] ss:$100 sm:$0x3] %vm3168, %v3167
  %s3171 = scalar_lea.vmem %s1, 4294966412
  %3172 = vst.msk [vmem:[%s3171] ss:$450 sm:$0xc] %vm3168, %v3167
  %s3173 = scalar_lea.vmem %s1, 4294965612
  %3174 = vst.msk [vmem:[%s3173] ss:$450 sm:$0x30] %vm3168, %v3167
  %s3175 = scalar_lea.vmem %s1, 4294964812
  %3176 = vst.msk [vmem:[%s3175] ss:$450 sm:$0xc0] %vm3168, %v3167
  %s3177 = scalar_lea.vmem %s0, 16
  %v3178 = vld.sshfl [vmem:[%s3177] sm:$0xff pattern:$0xddd4b290]
  %s3179 = scalar_lea.vmem %s0, 4294967248
  %s3180 = smov 192
  %v3181 = vld [vmem:[%s3179] ss:$9 sm:%s3180]
  %vm3182 = vcmask 1047558
  %v3183 = vsel %vm3182, %v3181, %v3178
  %3184 = vrot.lane.b32.xlu0 %v3183, 96
  %v3185 = vpop.permute.xlu0 %3184
  %vm3186 = vcmask 15360
  %s3187 = scalar_lea.vmem %s1, 816
  %3188 = vst.msk [vmem:[%s3187] ss:$450 sm:$0x3] %vm3186, %v3185
  %s3189 = scalar_lea.vmem %s1, 16
  %3190 = vst.msk [vmem:[%s3189] ss:$450 sm:$0xc] %vm3186, %v3185
  %s3191 = scalar_lea.vmem %s1, 4294966512
  %3192 = vst.msk [vmem:[%s3191] ss:$450 sm:$0x30] %vm3186, %v3185
  %s3193 = scalar_lea.vmem %s1, 4294964912
  %3194 = vst.msk [vmem:[%s3193] ss:$450 sm:$0xc0] %vm3186, %v3185
  %s3195 = scalar_lea.vmem %s0, 32
  %v3196 = vld.sshfl [vmem:[%s3195] sm:$0xff pattern:$0xddd4b290]
  %s3197 = scalar_lea.vmem %s0, 4294967264
  %s3198 = smov 192
  %v3199 = vld [vmem:[%s3197] ss:$9 sm:%s3198]
  %vm3200 = vcmask 1047558
  %v3201 = vsel %vm3200, %v3199, %v3196
  %3202 = vrot.lane.b32.xlu0 %v3201, 96
  %v3203 = vpop.permute.xlu0 %3202
  %vm3204 = vcmask 15360
  %s3205 = scalar_lea.vmem %s1, 1616
  %3206 = vst.msk [vmem:[%s3205] ss:$450 sm:$0x3] %vm3204, %v3203
  %s3207 = scalar_lea.vmem %s1, 816
  %3208 = vst.msk [vmem:[%s3207] ss:$450 sm:$0xc] %vm3204, %v3203
  %s3209 = scalar_lea.vmem %s1, 16
  %3210 = vst.msk [vmem:[%s3209] ss:$450 sm:$0x30] %vm3204, %v3203
  %s3211 = scalar_lea.vmem %s1, 4294965712
  %3212 = vst.msk [vmem:[%s3211] ss:$450 sm:$0xc0] %vm3204, %v3203
  %s3213 = scalar_lea.vmem %s0, 48
  %v3214 = vld.sshfl [vmem:[%s3213] sm:$0xff pattern:$0x888888f0]
  %s3215 = scalar_lea.vmem %s0, 58
  %v3216 = vld.sshfl [vmem:[%s3215] sm:$0xff pattern:$0x99907777]
  %vm3217 = vcmask 1045507
  %v3218 = vsel %vm3217, %v3216, %v3214
  %s3219 = scalar_lea.vmem %s0, 4294967280
  %s3220 = smov 192
  %v3221 = vld [vmem:[%s3219] ss:$9 sm:%s3220]
  %vm3222 = vcmask 1047558
  %v3223 = vsel %vm3222, %v3221, %v3218
  %3224 = vrot.lane.b32.xlu0 %v3223, 96
  %v3225 = vpop.permute.xlu0 %3224
  %vm3226 = vcmask 15360
  %s3227 = scalar_lea.vmem %s1, 2416
  %3228 = vst.msk [vmem:[%s3227] ss:$450 sm:$0x3] %vm3226, %v3225
  %s3229 = scalar_lea.vmem %s1, 1616
  %3230 = vst.msk [vmem:[%s3229] ss:$450 sm:$0xc] %vm3226, %v3225
  %s3231 = scalar_lea.vmem %s1, 816
  %3232 = vst.msk [vmem:[%s3231] ss:$450 sm:$0x30] %vm3226, %v3225
  %s3233 = scalar_lea.vmem %s1, 4294966512
  %3234 = vst.msk [vmem:[%s3233] ss:$450 sm:$0xc0] %vm3226, %v3225
  %s3235 = scalar_lea.vmem %s0, 70
  %v3236 = vld.sshfl [vmem:[%s3235] sm:$0xff pattern:$0xddd4b290]
  %s3237 = scalar_lea.vmem %s0, 6
  %s3238 = smov 192
  %v3239 = vld [vmem:[%s3237] ss:$9 sm:%s3238]
  %vm3240 = vcmask 1047558
  %v3241 = vsel %vm3240, %v3239, %v3236
  %3242 = vrot.lane.b32.xlu0 %v3241, 96
  %v3243 = vpop.permute.xlu0 %3242
  %vm3244 = vcmask 15360
  %s3245 = scalar_lea.vmem %s1, 3216
  %3246 = vst.msk [vmem:[%s3245] ss:$450 sm:$0x3] %vm3244, %v3243
  %s3247 = scalar_lea.vmem %s1, 2416
  %3248 = vst.msk [vmem:[%s3247] ss:$450 sm:$0xc] %vm3244, %v3243
  %s3249 = scalar_lea.vmem %s1, 1616
  %3250 = vst.msk [vmem:[%s3249] ss:$450 sm:$0x30] %vm3244, %v3243
  %s3251 = scalar_lea.vmem %s1, 16
  %3252 = vst.msk [vmem:[%s3251] ss:$450 sm:$0xc0] %vm3244, %v3243
  %s3253 = scalar_lea.vmem %s0, 86
  %v3254 = vld.sshfl [vmem:[%s3253] sm:$0xff pattern:$0xddd4b290]
  %s3255 = scalar_lea.vmem %s0, 22
  %s3256 = smov 192
  %v3257 = vld [vmem:[%s3255] ss:$9 sm:%s3256]
  %vm3258 = vcmask 1047558
  %v3259 = vsel %vm3258, %v3257, %v3254
  %3260 = vrot.lane.b32.xlu0 %v3259, 96
  %v3261 = vpop.permute.xlu0 %3260
  %vm3262 = vcmask 15360
  %s3263 = scalar_lea.vmem %s1, 4016
  %3264 = vst.msk [vmem:[%s3263] ss:$450 sm:$0x3] %vm3262, %v3261
  %s3265 = scalar_lea.vmem %s1, 3216
  %3266 = vst.msk [vmem:[%s3265] ss:$450 sm:$0xc] %vm3262, %v3261
  %s3267 = scalar_lea.vmem %s1, 2416
  %3268 = vst.msk [vmem:[%s3267] ss:$450 sm:$0x30] %vm3262, %v3261
  %s3269 = scalar_lea.vmem %s1, 816
  %3270 = vst.msk [vmem:[%s3269] ss:$450 sm:$0xc0] %vm3262, %v3261
  %s3271 = scalar_lea.vmem %s0, 92
  %v3272 = vld.sshfl [vmem:[%s3271] sm:$0xff pattern:$0x999990ca]
  %3273 = vrot.lane.b32.xlu0 %v3272, 96
  %v3274 = vpop.permute.xlu0 %3273
  %vm3275 = vcmask 15360
  %s3276 = scalar_lea.vmem %s1, 4816
  %3277 = vst.msk [vmem:[%s3276] ss:$100 sm:$0x3] %vm3275, %v3274
  %s3278 = scalar_lea.vmem %s1, 3416
  %3279 = vst.msk [vmem:[%s3278] ss:$450 sm:$0xc] %vm3275, %v3274
  %s3280 = scalar_lea.vmem %s0, 1
  %v3281 = vld.sshfl [vmem:[%s3280] sm:$0xff pattern:$0x6d4b2907]
  %3282 = vrot.lane.b32.xlu0 %v3281, 94
  %v3283 = vpop.permute.xlu0 %3282
  %vm3284 = vcmask 15360
  %s3285 = scalar_lea.vmem %s1, 417
  %3286 = vst.msk [vmem:[%s3285] ss:$-350 sm:$0x3] %vm3284, %v3283
  %s3287 = scalar_lea.vmem %s1, 1217
  %3288 = vst.msk [vmem:[%s3287] ss:$-350 sm:$0xc] %vm3284, %v3283
  %s3289 = scalar_lea.vmem %s1, 2017
  %3290 = vst.msk [vmem:[%s3289] ss:$-350 sm:$0x30] %vm3284, %v3283
  %s3291 = scalar_lea.vmem %s1, 2817
  %3292 = vst.msk [vmem:[%s3291] ss:$-350 sm:$0xc0] %vm3284, %v3283
  %s3293 = scalar_lea.vmem %s0, 17
  %v3294 = vld.sshfl [vmem:[%s3293] sm:$0xff pattern:$0x6d4b2907]
  %3295 = vrot.lane.b32.xlu0 %v3294, 94
  %v3296 = vpop.permute.xlu0 %3295
  %vm3297 = vcmask 15360
  %s3298 = scalar_lea.vmem %s1, 1217
  %3299 = vst.msk [vmem:[%s3298] ss:$-350 sm:$0x3] %vm3297, %v3296
  %s3300 = scalar_lea.vmem %s1, 2017
  %3301 = vst.msk [vmem:[%s3300] ss:$-350 sm:$0xc] %vm3297, %v3296
  %s3302 = scalar_lea.vmem %s1, 2817
  %3303 = vst.msk [vmem:[%s3302] ss:$-350 sm:$0x30] %vm3297, %v3296
  %s3304 = scalar_lea.vmem %s1, 3617
  %3305 = vst.msk [vmem:[%s3304] ss:$-350 sm:$0xc0] %vm3297, %v3296
  %s3306 = scalar_lea.vmem %s0, 33
  %v3307 = vld.sshfl [vmem:[%s3306] sm:$0xff pattern:$0x6d4b2907]
  %3308 = vrot.lane.b32.xlu0 %v3307, 94
  %v3309 = vpop.permute.xlu0 %3308
  %vm3310 = vcmask 15360
  %s3311 = scalar_lea.vmem %s1, 2017
  %3312 = vst.msk [vmem:[%s3311] ss:$-350 sm:$0x3] %vm3310, %v3309
  %s3313 = scalar_lea.vmem %s1, 2817
  %3314 = vst.msk [vmem:[%s3313] ss:$-350 sm:$0xc] %vm3310, %v3309
  %s3315 = scalar_lea.vmem %s1, 3617
  %3316 = vst.msk [vmem:[%s3315] ss:$-350 sm:$0x30] %vm3310, %v3309
  %s3317 = scalar_lea.vmem %s1, 4417
  %3318 = vst.msk [vmem:[%s3317] ss:$-350 sm:$0xc0] %vm3310, %v3309
  %s3319 = scalar_lea.vmem %s0, 49
  %v3320 = vld.sshfl [vmem:[%s3319] sm:$0xff pattern:$0x88888f0d]
  %s3321 = scalar_lea.vmem %s0, 59
  %v3322 = vld.sshfl [vmem:[%s3321] sm:$0xff pattern:$0x29077777]
  %vm3323 = vcmask 1047556
  %v3324 = vsel %vm3323, %v3322, %v3320
  %3325 = vrot.lane.b32.xlu0 %v3324, 94
  %v3326 = vpop.permute.xlu0 %3325
  %vm3327 = vcmask 15360
  %s3328 = scalar_lea.vmem %s1, 2817
  %3329 = vst.msk [vmem:[%s3328] ss:$-350 sm:$0x3] %vm3327, %v3326
  %s3330 = scalar_lea.vmem %s1, 3617
  %3331 = vst.msk [vmem:[%s3330] ss:$-350 sm:$0xc] %vm3327, %v3326
  %s3332 = scalar_lea.vmem %s1, 4417
  %3333 = vst.msk [vmem:[%s3332] ss:$-350 sm:$0x30] %vm3327, %v3326
  %s3334 = scalar_lea.vmem %s1, 5217
  %3335 = vst.msk [vmem:[%s3334] ss:$-350 sm:$0xc0] %vm3327, %v3326
  %s3336 = scalar_lea.vmem %s0, 71
  %v3337 = vld.sshfl [vmem:[%s3336] sm:$0xff pattern:$0x6d4b2907]
  %3338 = vrot.lane.b32.xlu0 %v3337, 94
  %v3339 = vpop.permute.xlu0 %3338
  %vm3340 = vcmask 15360
  %s3341 = scalar_lea.vmem %s1, 3617
  %3342 = vst.msk [vmem:[%s3341] ss:$-350 sm:$0x3] %vm3340, %v3339
  %s3343 = scalar_lea.vmem %s1, 4417
  %3344 = vst.msk [vmem:[%s3343] ss:$-350 sm:$0xc] %vm3340, %v3339
  %s3345 = scalar_lea.vmem %s1, 5217
  %3346 = vst.msk [vmem:[%s3345] ss:$-350 sm:$0x30] %vm3340, %v3339
  %s3347 = scalar_lea.vmem %s1, 6017
  %3348 = vst.msk [vmem:[%s3347] ss:$-350 sm:$0xc0] %vm3340, %v3339
  %s3349 = scalar_lea.vmem %s0, 87
  %v3350 = vld.sshfl [vmem:[%s3349] sm:$0xff pattern:$0x6d4b2907]
  %3351 = vrot.lane.b32.xlu0 %v3350, 94
  %v3352 = vpop.permute.xlu0 %3351
  %vm3353 = vcmask 15360
  %s3354 = scalar_lea.vmem %s1, 4417
  %3355 = vst.msk [vmem:[%s3354] ss:$-350 sm:$0x3] %vm3353, %v3352
  %s3356 = scalar_lea.vmem %s1, 5217
  %3357 = vst.msk [vmem:[%s3356] ss:$-350 sm:$0xc] %vm3353, %v3352
  %s3358 = scalar_lea.vmem %s1, 6017
  %3359 = vst.msk [vmem:[%s3358] ss:$-350 sm:$0x30] %vm3353, %v3352
  %s3360 = scalar_lea.vmem %s1, 6817
  %3361 = vst.msk [vmem:[%s3360] ss:$-350 sm:$0xc0] %vm3353, %v3352
  %s3362 = scalar_lea.vmem %s0, 103
  %s3363 = smov 3
  %v3364 = vld [vmem:[%s3362] ss:$2 sm:%s3363]
  %v3365 = vld.sshfl [vmem:[%s0] sm:$0xff pattern:$0xd4b29000]
  %vm3366 = vcmask 1047554
  %v3367 = vsel %vm3366, %v3365, %v3364
  %3368 = vrot.lane.b32.xlu0 %v3367, 94
  %v3369 = vpop.permute.xlu0 %3368
  %vm3370 = vcmask 15360
  %s3371 = scalar_lea.vmem %s1, 4867
  %3372 = vst.msk [vmem:[%s3371] ss:$100 sm:$0x3] %vm3370, %v3369
  %s3373 = scalar_lea.vmem %s1, 4294966413
  %3374 = vst.msk [vmem:[%s3373] ss:$450 sm:$0xc] %vm3370, %v3369
  %s3375 = scalar_lea.vmem %s1, 4294965613
  %3376 = vst.msk [vmem:[%s3375] ss:$450 sm:$0x30] %vm3370, %v3369
  %s3377 = scalar_lea.vmem %s1, 4294964813
  %3378 = vst.msk [vmem:[%s3377] ss:$450 sm:$0xc0] %vm3370, %v3369
  %s3379 = scalar_lea.vmem %s0, 16
  %v3380 = vld.sshfl [vmem:[%s3379] sm:$0xff pattern:$0xddd4b290]
  %s3381 = scalar_lea.vmem %s0, 4294967248
  %s3382 = smov 192
  %v3383 = vld [vmem:[%s3381] ss:$9 sm:%s3382]
  %vm3384 = vcmask 1047558
  %v3385 = vsel %vm3384, %v3383, %v3380
  %3386 = vrot.lane.b32.xlu0 %v3385, 94
  %v3387 = vpop.permute.xlu0 %3386
  %vm3388 = vcmask 15360
  %s3389 = scalar_lea.vmem %s1, 817
  %3390 = vst.msk [vmem:[%s3389] ss:$450 sm:$0x3] %vm3388, %v3387
  %s3391 = scalar_lea.vmem %s1, 17
  %3392 = vst.msk [vmem:[%s3391] ss:$450 sm:$0xc] %vm3388, %v3387
  %s3393 = scalar_lea.vmem %s1, 4294966513
  %3394 = vst.msk [vmem:[%s3393] ss:$450 sm:$0x30] %vm3388, %v3387
  %s3395 = scalar_lea.vmem %s1, 4294964913
  %3396 = vst.msk [vmem:[%s3395] ss:$450 sm:$0xc0] %vm3388, %v3387
  %s3397 = scalar_lea.vmem %s0, 32
  %v3398 = vld.sshfl [vmem:[%s3397] sm:$0xff pattern:$0xddd4b290]
  %s3399 = scalar_lea.vmem %s0, 4294967264
  %s3400 = smov 192
  %v3401 = vld [vmem:[%s3399] ss:$9 sm:%s3400]
  %vm3402 = vcmask 1047558
  %v3403 = vsel %vm3402, %v3401, %v3398
  %3404 = vrot.lane.b32.xlu0 %v3403, 94
  %v3405 = vpop.permute.xlu0 %3404
  %vm3406 = vcmask 15360
  %s3407 = scalar_lea.vmem %s1, 1617
  %3408 = vst.msk [vmem:[%s3407] ss:$450 sm:$0x3] %vm3406, %v3405
  %s3409 = scalar_lea.vmem %s1, 817
  %3410 = vst.msk [vmem:[%s3409] ss:$450 sm:$0xc] %vm3406, %v3405
  %s3411 = scalar_lea.vmem %s1, 17
  %3412 = vst.msk [vmem:[%s3411] ss:$450 sm:$0x30] %vm3406, %v3405
  %s3413 = scalar_lea.vmem %s1, 4294965713
  %3414 = vst.msk [vmem:[%s3413] ss:$450 sm:$0xc0] %vm3406, %v3405
  %s3415 = scalar_lea.vmem %s0, 48
  %v3416 = vld.sshfl [vmem:[%s3415] sm:$0xff pattern:$0x888888f0]
  %s3417 = scalar_lea.vmem %s0, 58
  %v3418 = vld.sshfl [vmem:[%s3417] sm:$0xff pattern:$0x99907777]
  %vm3419 = vcmask 1045507
  %v3420 = vsel %vm3419, %v3418, %v3416
  %s3421 = scalar_lea.vmem %s0, 4294967280
  %s3422 = smov 192
  %v3423 = vld [vmem:[%s3421] ss:$9 sm:%s3422]
  %vm3424 = vcmask 1047558
  %v3425 = vsel %vm3424, %v3423, %v3420
  %3426 = vrot.lane.b32.xlu0 %v3425, 94
  %v3427 = vpop.permute.xlu0 %3426
  %vm3428 = vcmask 15360
  %s3429 = scalar_lea.vmem %s1, 2417
  %3430 = vst.msk [vmem:[%s3429] ss:$450 sm:$0x3] %vm3428, %v3427
  %s3431 = scalar_lea.vmem %s1, 1617
  %3432 = vst.msk [vmem:[%s3431] ss:$450 sm:$0xc] %vm3428, %v3427
  %s3433 = scalar_lea.vmem %s1, 817
  %3434 = vst.msk [vmem:[%s3433] ss:$450 sm:$0x30] %vm3428, %v3427
  %s3435 = scalar_lea.vmem %s1, 4294966513
  %3436 = vst.msk [vmem:[%s3435] ss:$450 sm:$0xc0] %vm3428, %v3427
  %s3437 = scalar_lea.vmem %s0, 70
  %v3438 = vld.sshfl [vmem:[%s3437] sm:$0xff pattern:$0xddd4b290]
  %s3439 = scalar_lea.vmem %s0, 6
  %s3440 = smov 192
  %v3441 = vld [vmem:[%s3439] ss:$9 sm:%s3440]
  %vm3442 = vcmask 1047558
  %v3443 = vsel %vm3442, %v3441, %v3438
  %3444 = vrot.lane.b32.xlu0 %v3443, 94
  %v3445 = vpop.permute.xlu0 %3444
  %vm3446 = vcmask 15360
  %s3447 = scalar_lea.vmem %s1, 3217
  %3448 = vst.msk [vmem:[%s3447] ss:$450 sm:$0x3] %vm3446, %v3445
  %s3449 = scalar_lea.vmem %s1, 2417
  %3450 = vst.msk [vmem:[%s3449] ss:$450 sm:$0xc] %vm3446, %v3445
  %s3451 = scalar_lea.vmem %s1, 1617
  %3452 = vst.msk [vmem:[%s3451] ss:$450 sm:$0x30] %vm3446, %v3445
  %s3453 = scalar_lea.vmem %s1, 17
  %3454 = vst.msk [vmem:[%s3453] ss:$450 sm:$0xc0] %vm3446, %v3445
  %s3455 = scalar_lea.vmem %s0, 86
  %v3456 = vld.sshfl [vmem:[%s3455] sm:$0xff pattern:$0xddd4b290]
  %s3457 = scalar_lea.vmem %s0, 22
  %s3458 = smov 192
  %v3459 = vld [vmem:[%s3457] ss:$9 sm:%s3458]
  %vm3460 = vcmask 1047558
  %v3461 = vsel %vm3460, %v3459, %v3456
  %3462 = vrot.lane.b32.xlu0 %v3461, 94
  %v3463 = vpop.permute.xlu0 %3462
  %vm3464 = vcmask 15360
  %s3465 = scalar_lea.vmem %s1, 4017
  %3466 = vst.msk [vmem:[%s3465] ss:$450 sm:$0x3] %vm3464, %v3463
  %s3467 = scalar_lea.vmem %s1, 3217
  %3468 = vst.msk [vmem:[%s3467] ss:$450 sm:$0xc] %vm3464, %v3463
  %s3469 = scalar_lea.vmem %s1, 2417
  %3470 = vst.msk [vmem:[%s3469] ss:$450 sm:$0x30] %vm3464, %v3463
  %s3471 = scalar_lea.vmem %s1, 817
  %3472 = vst.msk [vmem:[%s3471] ss:$450 sm:$0xc0] %vm3464, %v3463
  %s3473 = scalar_lea.vmem %s0, 92
  %v3474 = vld.sshfl [vmem:[%s3473] sm:$0xff pattern:$0x999990ca]
  %3475 = vrot.lane.b32.xlu0 %v3474, 94
  %v3476 = vpop.permute.xlu0 %3475
  %vm3477 = vcmask 15360
  %s3478 = scalar_lea.vmem %s1, 4817
  %3479 = vst.msk [vmem:[%s3478] ss:$100 sm:$0x3] %vm3477, %v3476
  %s3480 = scalar_lea.vmem %s1, 3417
  %3481 = vst.msk [vmem:[%s3480] ss:$450 sm:$0xc] %vm3477, %v3476
  %s3482 = scalar_lea.vmem %s0, 1
  %v3483 = vld.sshfl [vmem:[%s3482] sm:$0xff pattern:$0xd4b2907e]
  %3484 = vrot.lane.b32.xlu0 %v3483, 92
  %v3485 = vpop.permute.xlu0 %3484
  %vm3486 = vcmask 15360
  %s3487 = scalar_lea.vmem %s1, 768
  %3488 = vst.msk [vmem:[%s3487] ss:$-350 sm:$0x7] %vm3486, %v3485
  %s3489 = scalar_lea.vmem %s1, 1568
  %3490 = vst.msk [vmem:[%s3489] ss:$-350 sm:$0x18] %vm3486, %v3485
  %s3491 = scalar_lea.vmem %s1, 2368
  %3492 = vst.msk [vmem:[%s3491] ss:$-350 sm:$0x60] %vm3486, %v3485
  %s3493 = scalar_lea.vmem %s1, 711
  %3494 = vst.msk [vmem:[%s3493] sm:$0x80] %vm3486, %v3485
  %s3495 = scalar_lea.vmem %s0, 17
  %v3496 = vld.sshfl [vmem:[%s3495] sm:$0xff pattern:$0xd4b2907e]
  %3497 = vrot.lane.b32.xlu0 %v3496, 92
  %v3498 = vpop.permute.xlu0 %3497
  %vm3499 = vcmask 15360
  %s3500 = scalar_lea.vmem %s1, 1568
  %3501 = vst.msk [vmem:[%s3500] ss:$-350 sm:$0x7] %vm3499, %v3498
  %s3502 = scalar_lea.vmem %s1, 2368
  %3503 = vst.msk [vmem:[%s3502] ss:$-350 sm:$0x18] %vm3499, %v3498
  %s3504 = scalar_lea.vmem %s1, 3168
  %3505 = vst.msk [vmem:[%s3504] ss:$-350 sm:$0x60] %vm3499, %v3498
  %s3506 = scalar_lea.vmem %s1, 1511
  %3507 = vst.msk [vmem:[%s3506] sm:$0x80] %vm3499, %v3498
  %s3508 = scalar_lea.vmem %s0, 33
  %v3509 = vld.sshfl [vmem:[%s3508] sm:$0xff pattern:$0xd4b2907e]
  %3510 = vrot.lane.b32.xlu0 %v3509, 92
  %v3511 = vpop.permute.xlu0 %3510
  %vm3512 = vcmask 15360
  %s3513 = scalar_lea.vmem %s1, 2368
  %3514 = vst.msk [vmem:[%s3513] ss:$-350 sm:$0x7] %vm3512, %v3511
  %s3515 = scalar_lea.vmem %s1, 3168
  %3516 = vst.msk [vmem:[%s3515] ss:$-350 sm:$0x18] %vm3512, %v3511
  %s3517 = scalar_lea.vmem %s1, 3968
  %3518 = vst.msk [vmem:[%s3517] ss:$-350 sm:$0x60] %vm3512, %v3511
  %s3519 = scalar_lea.vmem %s1, 2311
  %3520 = vst.msk [vmem:[%s3519] sm:$0x80] %vm3512, %v3511
  %s3521 = scalar_lea.vmem %s0, 69
  %s3522 = smov 3
  %v3523 = vld [vmem:[%s3521] ss:$-7 sm:%s3522]
  %s3524 = scalar_lea.vmem %s0, 49
  %v3525 = vld.sshfl [vmem:[%s3524] sm:$0xff pattern:$0x8888f000]
  %vm3526 = vcmask 1044482
  %v3527 = vsel %vm3526, %v3525, %v3523
  %s3528 = scalar_lea.vmem %s0, 59
  %v3529 = vld.sshfl [vmem:[%s3528] sm:$0xff pattern:$0x90777777]
  %vm3530 = vcmask 1047557
  %v3531 = vsel %vm3530, %v3529, %v3527
  %3532 = vrot.lane.b32.xlu0 %v3531, 92
  %v3533 = vpop.permute.xlu0 %3532
  %vm3534 = vcmask 15360
  %s3535 = scalar_lea.vmem %s1, 3168
  %3536 = vst.msk [vmem:[%s3535] ss:$-350 sm:$0x7] %vm3534, %v3533
  %s3537 = scalar_lea.vmem %s1, 3968
  %3538 = vst.msk [vmem:[%s3537] ss:$-350 sm:$0x18] %vm3534, %v3533
  %s3539 = scalar_lea.vmem %s1, 4768
  %3540 = vst.msk [vmem:[%s3539] ss:$-350 sm:$0x60] %vm3534, %v3533
  %s3541 = scalar_lea.vmem %s1, 3111
  %3542 = vst.msk [vmem:[%s3541] sm:$0x80] %vm3534, %v3533
  %s3543 = scalar_lea.vmem %s0, 71
  %v3544 = vld.sshfl [vmem:[%s3543] sm:$0xff pattern:$0xd4b2907e]
  %3545 = vrot.lane.b32.xlu0 %v3544, 92
  %v3546 = vpop.permute.xlu0 %3545
  %vm3547 = vcmask 15360
  %s3548 = scalar_lea.vmem %s1, 3968
  %3549 = vst.msk [vmem:[%s3548] ss:$-350 sm:$0x7] %vm3547, %v3546
  %s3550 = scalar_lea.vmem %s1, 4768
  %3551 = vst.msk [vmem:[%s3550] ss:$-350 sm:$0x18] %vm3547, %v3546
  %s3552 = scalar_lea.vmem %s1, 5568
  %3553 = vst.msk [vmem:[%s3552] ss:$-350 sm:$0x60] %vm3547, %v3546
  %s3554 = scalar_lea.vmem %s1, 3911
  %3555 = vst.msk [vmem:[%s3554] sm:$0x80] %vm3547, %v3546
  %s3556 = scalar_lea.vmem %s0, 87
  %v3557 = vld.sshfl [vmem:[%s3556] sm:$0xff pattern:$0xd4b2907e]
  %3558 = vrot.lane.b32.xlu0 %v3557, 92
  %v3559 = vpop.permute.xlu0 %3558
  %vm3560 = vcmask 15360
  %s3561 = scalar_lea.vmem %s1, 4768
  %3562 = vst.msk [vmem:[%s3561] ss:$-350 sm:$0x7] %vm3560, %v3559
  %s3563 = scalar_lea.vmem %s1, 5568
  %3564 = vst.msk [vmem:[%s3563] ss:$-350 sm:$0x18] %vm3560, %v3559
  %s3565 = scalar_lea.vmem %s1, 6368
  %3566 = vst.msk [vmem:[%s3565] ss:$-350 sm:$0x60] %vm3560, %v3559
  %s3567 = scalar_lea.vmem %s1, 4711
  %3568 = vst.msk [vmem:[%s3567] sm:$0x80] %vm3560, %v3559
  %s3569 = scalar_lea.vmem %s0, 103
  %s3570 = smov 3
  %v3571 = vld [vmem:[%s3569] ss:$2 sm:%s3570]
  %v3572 = vld.sshfl [vmem:[%s0] sm:$0xff pattern:$0x4b290777]
  %vm3573 = vcmask 1047554
  %v3574 = vsel %vm3573, %v3572, %v3571
  %3575 = vrot.lane.b32.xlu0 %v3574, 92
  %v3576 = vpop.permute.xlu0 %3575
  %vm3577 = vcmask 15360
  %s3578 = scalar_lea.vmem %s1, 4868
  %3579 = vst.msk [vmem:[%s3578] ss:$100 sm:$0x3] %vm3577, %v3576
  %s3580 = scalar_lea.vmem %s1, 1068
  %3581 = vst.msk [vmem:[%s3580] ss:$-350 sm:$0xc] %vm3577, %v3576
  %s3582 = scalar_lea.vmem %s1, 1868
  %3583 = vst.msk [vmem:[%s3582] ss:$-350 sm:$0x30] %vm3577, %v3576
  %s3584 = scalar_lea.vmem %s1, 2668
  %3585 = vst.msk [vmem:[%s3584] ss:$-350 sm:$0xc0] %vm3577, %v3576
  %s3586 = scalar_lea.vmem %s0, 13
  %v3587 = vld.sshfl [vmem:[%s3586] sm:$0xff pattern:$0x7e5c3a]
  %s3588 = scalar_lea.vmem %s0, 4294967295
  %v3589 = vld [vmem:[%s3588] sm:$0x80]
  %vm3590 = vcmask 1047559
  %v3591 = vsel %vm3590, %v3589, %v3587
  %3592 = vrot.lane.b32.xlu0 %v3591, 92
  %v3593 = vpop.permute.xlu0 %3592
  %vm3594 = vcmask 15360
  %s3595 = scalar_lea.vmem %s1, 1168
  %3596 = vst.msk [vmem:[%s3595] ss:$-350 sm:$0x3] %vm3594, %v3593
  %s3597 = scalar_lea.vmem %s1, 1968
  %3598 = vst.msk [vmem:[%s3597] ss:$-350 sm:$0xc] %vm3594, %v3593
  %s3599 = scalar_lea.vmem %s1, 2768
  %3600 = vst.msk [vmem:[%s3599] ss:$-350 sm:$0xf0] %vm3594, %v3593
  %s3601 = scalar_lea.vmem %s0, 29
  %v3602 = vld.sshfl [vmem:[%s3601] sm:$0xff pattern:$0x7e5c3a]
  %s3603 = scalar_lea.vmem %s0, 15
  %v3604 = vld [vmem:[%s3603] sm:$0x80]
  %vm3605 = vcmask 1047559
  %v3606 = vsel %vm3605, %v3604, %v3602
  %3607 = vrot.lane.b32.xlu0 %v3606, 92
  %v3608 = vpop.permute.xlu0 %3607
  %vm3609 = vcmask 15360
  %s3610 = scalar_lea.vmem %s1, 1968
  %3611 = vst.msk [vmem:[%s3610] ss:$-350 sm:$0x3] %vm3609, %v3608
  %s3612 = scalar_lea.vmem %s1, 2768
  %3613 = vst.msk [vmem:[%s3612] ss:$-350 sm:$0xc] %vm3609, %v3608
  %s3614 = scalar_lea.vmem %s1, 3568
  %3615 = vst.msk [vmem:[%s3614] ss:$-350 sm:$0xf0] %vm3609, %v3608
  %s3616 = scalar_lea.vmem %s0, 48
  %v3617 = vld.sshfl [vmem:[%s3616] sm:$0xff pattern:$0x88888f0d]
  %s3618 = scalar_lea.vmem %s0, 93
  %s3619 = smov 48
  %v3620 = vld [vmem:[%s3618] ss:$-7 sm:%s3619]
  %vm3621 = vcmask 1045508
  %v3622 = vsel %vm3621, %v3620, %v3617
  %s3623 = scalar_lea.vmem %s0, 87
  %s3624 = smov 192
  %v3625 = vld [vmem:[%s3623] ss:$-7 sm:%s3624]
  %vm3626 = vcmask 1047558
  %v3627 = vsel %vm3626, %v3625, %v3622
  %3628 = vrot.lane.b32.xlu0 %v3627, 92
  %v3629 = vpop.permute.xlu0 %3628
  %vm3630 = vcmask 15360
  %s3631 = scalar_lea.vmem %s1, 2768
  %3632 = vst.msk [vmem:[%s3631] ss:$-350 sm:$0x3] %vm3630, %v3629
  %s3633 = scalar_lea.vmem %s1, 3568
  %3634 = vst.msk [vmem:[%s3633] ss:$-350 sm:$0xc] %vm3630, %v3629
  %s3635 = scalar_lea.vmem %s1, 4368
  %3636 = vst.msk [vmem:[%s3635] ss:$-350 sm:$0xf0] %vm3630, %v3629
  %s3637 = scalar_lea.vmem %s0, 67
  %v3638 = vld.sshfl [vmem:[%s3637] sm:$0xff pattern:$0x7e5c3a]
  %s3639 = scalar_lea.vmem %s0, 53
  %v3640 = vld [vmem:[%s3639] sm:$0x80]
  %vm3641 = vcmask 1047559
  %v3642 = vsel %vm3641, %v3640, %v3638
  %3643 = vrot.lane.b32.xlu0 %v3642, 92
  %v3644 = vpop.permute.xlu0 %3643
  %vm3645 = vcmask 15360
  %s3646 = scalar_lea.vmem %s1, 3568
  %3647 = vst.msk [vmem:[%s3646] ss:$-350 sm:$0x3] %vm3645, %v3644
  %s3648 = scalar_lea.vmem %s1, 4368
  %3649 = vst.msk [vmem:[%s3648] ss:$-350 sm:$0xc] %vm3645, %v3644
  %s3650 = scalar_lea.vmem %s1, 5168
  %3651 = vst.msk [vmem:[%s3650] ss:$-350 sm:$0xf0] %vm3645, %v3644
  %s3652 = scalar_lea.vmem %s0, 83
  %v3653 = vld.sshfl [vmem:[%s3652] sm:$0xff pattern:$0x7e5c3a]
  %s3654 = scalar_lea.vmem %s0, 69
  %v3655 = vld [vmem:[%s3654] sm:$0x80]
  %vm3656 = vcmask 1047559
  %v3657 = vsel %vm3656, %v3655, %v3653
  %3658 = vrot.lane.b32.xlu0 %v3657, 92
  %v3659 = vpop.permute.xlu0 %3658
  %vm3660 = vcmask 15360
  %s3661 = scalar_lea.vmem %s1, 4368
  %3662 = vst.msk [vmem:[%s3661] ss:$-350 sm:$0x3] %vm3660, %v3659
  %s3663 = scalar_lea.vmem %s1, 5168
  %3664 = vst.msk [vmem:[%s3663] ss:$-350 sm:$0xc] %vm3660, %v3659
  %s3665 = scalar_lea.vmem %s1, 5968
  %3666 = vst.msk [vmem:[%s3665] ss:$-350 sm:$0xf0] %vm3660, %v3659
  %s3667 = scalar_lea.vmem %s0, 92
  %v3668 = vld.sshfl [vmem:[%s3667] sm:$0xff pattern:$0x7ca]
  %3669 = vrot.lane.b32.xlu0 %v3668, 92
  %v3670 = vpop.permute.xlu0 %3669
  %vm3671 = vcmask 15360
  %s3672 = scalar_lea.vmem %s1, 4818
  %3673 = vst.msk [vmem:[%s3672] ss:$100 sm:$0x3] %vm3671, %v3670
  %s3674 = scalar_lea.vmem %s1, 5368
  %3675 = vst.msk [vmem:[%s3674] ss:$-350 sm:$0xc] %vm3671, %v3670
  %s3676 = scalar_lea.vmem %s0, 1
  %v3677 = vld.sshfl [vmem:[%s3676] sm:$0xff pattern:$0xd4b2907e]
  %3678 = vrot.lane.b32.xlu0 %v3677, 90
  %v3679 = vpop.permute.xlu0 %3678
  %vm3680 = vcmask 15360
  %s3681 = scalar_lea.vmem %s1, 769
  %3682 = vst.msk [vmem:[%s3681] ss:$-350 sm:$0x7] %vm3680, %v3679
  %s3683 = scalar_lea.vmem %s1, 1569
  %3684 = vst.msk [vmem:[%s3683] ss:$-350 sm:$0x18] %vm3680, %v3679
  %s3685 = scalar_lea.vmem %s1, 2369
  %3686 = vst.msk [vmem:[%s3685] ss:$-350 sm:$0x60] %vm3680, %v3679
  %s3687 = scalar_lea.vmem %s1, 712
  %3688 = vst.msk [vmem:[%s3687] sm:$0x80] %vm3680, %v3679
  %s3689 = scalar_lea.vmem %s0, 17
  %v3690 = vld.sshfl [vmem:[%s3689] sm:$0xff pattern:$0xd4b2907e]
  %3691 = vrot.lane.b32.xlu0 %v3690, 90
  %v3692 = vpop.permute.xlu0 %3691
  %vm3693 = vcmask 15360
  %s3694 = scalar_lea.vmem %s1, 1569
  %3695 = vst.msk [vmem:[%s3694] ss:$-350 sm:$0x7] %vm3693, %v3692
  %s3696 = scalar_lea.vmem %s1, 2369
  %3697 = vst.msk [vmem:[%s3696] ss:$-350 sm:$0x18] %vm3693, %v3692
  %s3698 = scalar_lea.vmem %s1, 3169
  %3699 = vst.msk [vmem:[%s3698] ss:$-350 sm:$0x60] %vm3693, %v3692
  %s3700 = scalar_lea.vmem %s1, 1512
  %3701 = vst.msk [vmem:[%s3700] sm:$0x80] %vm3693, %v3692
  %s3702 = scalar_lea.vmem %s0, 33
  %v3703 = vld.sshfl [vmem:[%s3702] sm:$0xff pattern:$0xd4b2907e]
  %3704 = vrot.lane.b32.xlu0 %v3703, 90
  %v3705 = vpop.permute.xlu0 %3704
  %vm3706 = vcmask 15360
  %s3707 = scalar_lea.vmem %s1, 2369
  %3708 = vst.msk [vmem:[%s3707] ss:$-350 sm:$0x7] %vm3706, %v3705
  %s3709 = scalar_lea.vmem %s1, 3169
  %3710 = vst.msk [vmem:[%s3709] ss:$-350 sm:$0x18] %vm3706, %v3705
  %s3711 = scalar_lea.vmem %s1, 3969
  %3712 = vst.msk [vmem:[%s3711] ss:$-350 sm:$0x60] %vm3706, %v3705
  %s3713 = scalar_lea.vmem %s1, 2312
  %3714 = vst.msk [vmem:[%s3713] sm:$0x80] %vm3706, %v3705
  %s3715 = scalar_lea.vmem %s0, 69
  %s3716 = smov 3
  %v3717 = vld [vmem:[%s3715] ss:$-7 sm:%s3716]
  %s3718 = scalar_lea.vmem %s0, 49
  %v3719 = vld.sshfl [vmem:[%s3718] sm:$0xff pattern:$0x8888f000]
  %vm3720 = vcmask 1044482
  %v3721 = vsel %vm3720, %v3719, %v3717
  %s3722 = scalar_lea.vmem %s0, 59
  %v3723 = vld.sshfl [vmem:[%s3722] sm:$0xff pattern:$0x90777777]
  %vm3724 = vcmask 1047557
  %v3725 = vsel %vm3724, %v3723, %v3721
  %3726 = vrot.lane.b32.xlu0 %v3725, 90
  %v3727 = vpop.permute.xlu0 %3726
  %vm3728 = vcmask 15360
  %s3729 = scalar_lea.vmem %s1, 3169
  %3730 = vst.msk [vmem:[%s3729] ss:$-350 sm:$0x7] %vm3728, %v3727
  %s3731 = scalar_lea.vmem %s1, 3969
  %3732 = vst.msk [vmem:[%s3731] ss:$-350 sm:$0x18] %vm3728, %v3727
  %s3733 = scalar_lea.vmem %s1, 4769
  %3734 = vst.msk [vmem:[%s3733] ss:$-350 sm:$0x60] %vm3728, %v3727
  %s3735 = scalar_lea.vmem %s1, 3112
  %3736 = vst.msk [vmem:[%s3735] sm:$0x80] %vm3728, %v3727
  %s3737 = scalar_lea.vmem %s0, 71
  %v3738 = vld.sshfl [vmem:[%s3737] sm:$0xff pattern:$0xd4b2907e]
  %3739 = vrot.lane.b32.xlu0 %v3738, 90
  %v3740 = vpop.permute.xlu0 %3739
  %vm3741 = vcmask 15360
  %s3742 = scalar_lea.vmem %s1, 3969
  %3743 = vst.msk [vmem:[%s3742] ss:$-350 sm:$0x7] %vm3741, %v3740
  %s3744 = scalar_lea.vmem %s1, 4769
  %3745 = vst.msk [vmem:[%s3744] ss:$-350 sm:$0x18] %vm3741, %v3740
  %s3746 = scalar_lea.vmem %s1, 5569
  %3747 = vst.msk [vmem:[%s3746] ss:$-350 sm:$0x60] %vm3741, %v3740
  %s3748 = scalar_lea.vmem %s1, 3912
  %3749 = vst.msk [vmem:[%s3748] sm:$0x80] %vm3741, %v3740
  %s3750 = scalar_lea.vmem %s0, 87
  %v3751 = vld.sshfl [vmem:[%s3750] sm:$0xff pattern:$0xd4b2907e]
  %3752 = vrot.lane.b32.xlu0 %v3751, 90
  %v3753 = vpop.permute.xlu0 %3752
  %vm3754 = vcmask 15360
  %s3755 = scalar_lea.vmem %s1, 4769
  %3756 = vst.msk [vmem:[%s3755] ss:$-350 sm:$0x7] %vm3754, %v3753
  %s3757 = scalar_lea.vmem %s1, 5569
  %3758 = vst.msk [vmem:[%s3757] ss:$-350 sm:$0x18] %vm3754, %v3753
  %s3759 = scalar_lea.vmem %s1, 6369
  %3760 = vst.msk [vmem:[%s3759] ss:$-350 sm:$0x60] %vm3754, %v3753
  %s3761 = scalar_lea.vmem %s1, 4712
  %3762 = vst.msk [vmem:[%s3761] sm:$0x80] %vm3754, %v3753
  %s3763 = scalar_lea.vmem %s0, 103
  %s3764 = smov 3
  %v3765 = vld [vmem:[%s3763] ss:$2 sm:%s3764]
  %v3766 = vld.sshfl [vmem:[%s0] sm:$0xff pattern:$0x4b290777]
  %vm3767 = vcmask 1047554
  %v3768 = vsel %vm3767, %v3766, %v3765
  %3769 = vrot.lane.b32.xlu0 %v3768, 90
  %v3770 = vpop.permute.xlu0 %3769
  %vm3771 = vcmask 15360
  %s3772 = scalar_lea.vmem %s1, 4869
  %3773 = vst.msk [vmem:[%s3772] ss:$100 sm:$0x3] %vm3771, %v3770
  %s3774 = scalar_lea.vmem %s1, 1069
  %3775 = vst.msk [vmem:[%s3774] ss:$-350 sm:$0xc] %vm3771, %v3770
  %s3776 = scalar_lea.vmem %s1, 1869
  %3777 = vst.msk [vmem:[%s3776] ss:$-350 sm:$0x30] %vm3771, %v3770
  %s3778 = scalar_lea.vmem %s1, 2669
  %3779 = vst.msk [vmem:[%s3778] ss:$-350 sm:$0xc0] %vm3771, %v3770
  %s3780 = scalar_lea.vmem %s0, 13
  %v3781 = vld.sshfl [vmem:[%s3780] sm:$0xff pattern:$0x7e5c3a]
  %s3782 = scalar_lea.vmem %s0, 4294967295
  %v3783 = vld [vmem:[%s3782] sm:$0x80]
  %vm3784 = vcmask 1047559
  %v3785 = vsel %vm3784, %v3783, %v3781
  %3786 = vrot.lane.b32.xlu0 %v3785, 90
  %v3787 = vpop.permute.xlu0 %3786
  %vm3788 = vcmask 15360
  %s3789 = scalar_lea.vmem %s1, 1169
  %3790 = vst.msk [vmem:[%s3789] ss:$-350 sm:$0x3] %vm3788, %v3787
  %s3791 = scalar_lea.vmem %s1, 1969
  %3792 = vst.msk [vmem:[%s3791] ss:$-350 sm:$0xc] %vm3788, %v3787
  %s3793 = scalar_lea.vmem %s1, 2769
  %3794 = vst.msk [vmem:[%s3793] ss:$-350 sm:$0xf0] %vm3788, %v3787
  %s3795 = scalar_lea.vmem %s0, 29
  %v3796 = vld.sshfl [vmem:[%s3795] sm:$0xff pattern:$0x7e5c3a]
  %s3797 = scalar_lea.vmem %s0, 15
  %v3798 = vld [vmem:[%s3797] sm:$0x80]
  %vm3799 = vcmask 1047559
  %v3800 = vsel %vm3799, %v3798, %v3796
  %3801 = vrot.lane.b32.xlu0 %v3800, 90
  %v3802 = vpop.permute.xlu0 %3801
  %vm3803 = vcmask 15360
  %s3804 = scalar_lea.vmem %s1, 1969
  %3805 = vst.msk [vmem:[%s3804] ss:$-350 sm:$0x3] %vm3803, %v3802
  %s3806 = scalar_lea.vmem %s1, 2769
  %3807 = vst.msk [vmem:[%s3806] ss:$-350 sm:$0xc] %vm3803, %v3802
  %s3808 = scalar_lea.vmem %s1, 3569
  %3809 = vst.msk [vmem:[%s3808] ss:$-350 sm:$0xf0] %vm3803, %v3802
  %s3810 = scalar_lea.vmem %s0, 48
  %v3811 = vld.sshfl [vmem:[%s3810] sm:$0xff pattern:$0x88888f0d]
  %s3812 = scalar_lea.vmem %s0, 93
  %s3813 = smov 48
  %v3814 = vld [vmem:[%s3812] ss:$-7 sm:%s3813]
  %vm3815 = vcmask 1045508
  %v3816 = vsel %vm3815, %v3814, %v3811
  %s3817 = scalar_lea.vmem %s0, 87
  %s3818 = smov 192
  %v3819 = vld [vmem:[%s3817] ss:$-7 sm:%s3818]
  %vm3820 = vcmask 1047558
  %v3821 = vsel %vm3820, %v3819, %v3816
  %3822 = vrot.lane.b32.xlu0 %v3821, 90
  %v3823 = vpop.permute.xlu0 %3822
  %vm3824 = vcmask 15360
  %s3825 = scalar_lea.vmem %s1, 2769
  %3826 = vst.msk [vmem:[%s3825] ss:$-350 sm:$0x3] %vm3824, %v3823
  %s3827 = scalar_lea.vmem %s1, 3569
  %3828 = vst.msk [vmem:[%s3827] ss:$-350 sm:$0xc] %vm3824, %v3823
  %s3829 = scalar_lea.vmem %s1, 4369
  %3830 = vst.msk [vmem:[%s3829] ss:$-350 sm:$0xf0] %vm3824, %v3823
  %s3831 = scalar_lea.vmem %s0, 67
  %v3832 = vld.sshfl [vmem:[%s3831] sm:$0xff pattern:$0x7e5c3a]
  %s3833 = scalar_lea.vmem %s0, 53
  %v3834 = vld [vmem:[%s3833] sm:$0x80]
  %vm3835 = vcmask 1047559
  %v3836 = vsel %vm3835, %v3834, %v3832
  %3837 = vrot.lane.b32.xlu0 %v3836, 90
  %v3838 = vpop.permute.xlu0 %3837
  %vm3839 = vcmask 15360
  %s3840 = scalar_lea.vmem %s1, 3569
  %3841 = vst.msk [vmem:[%s3840] ss:$-350 sm:$0x3] %vm3839, %v3838
  %s3842 = scalar_lea.vmem %s1, 4369
  %3843 = vst.msk [vmem:[%s3842] ss:$-350 sm:$0xc] %vm3839, %v3838
  %s3844 = scalar_lea.vmem %s1, 5169
  %3845 = vst.msk [vmem:[%s3844] ss:$-350 sm:$0xf0] %vm3839, %v3838
  %s3846 = scalar_lea.vmem %s0, 83
  %v3847 = vld.sshfl [vmem:[%s3846] sm:$0xff pattern:$0x7e5c3a]
  %s3848 = scalar_lea.vmem %s0, 69
  %v3849 = vld [vmem:[%s3848] sm:$0x80]
  %vm3850 = vcmask 1047559
  %v3851 = vsel %vm3850, %v3849, %v3847
  %3852 = vrot.lane.b32.xlu0 %v3851, 90
  %v3853 = vpop.permute.xlu0 %3852
  %vm3854 = vcmask 15360
  %s3855 = scalar_lea.vmem %s1, 4369
  %3856 = vst.msk [vmem:[%s3855] ss:$-350 sm:$0x3] %vm3854, %v3853
  %s3857 = scalar_lea.vmem %s1, 5169
  %3858 = vst.msk [vmem:[%s3857] ss:$-350 sm:$0xc] %vm3854, %v3853
  %s3859 = scalar_lea.vmem %s1, 5969
  %3860 = vst.msk [vmem:[%s3859] ss:$-350 sm:$0xf0] %vm3854, %v3853
  %s3861 = scalar_lea.vmem %s0, 92
  %v3862 = vld.sshfl [vmem:[%s3861] sm:$0xff pattern:$0x7ca]
  %3863 = vrot.lane.b32.xlu0 %v3862, 90
  %v3864 = vpop.permute.xlu0 %3863
  %vm3865 = vcmask 15360
  %s3866 = scalar_lea.vmem %s1, 4819
  %3867 = vst.msk [vmem:[%s3866] ss:$100 sm:$0x3] %vm3865, %v3864
  %s3868 = scalar_lea.vmem %s1, 5369
  %3869 = vst.msk [vmem:[%s3868] ss:$-350 sm:$0xc] %vm3865, %v3864
  %s3870 = scalar_lea.vmem %s0, 1
  %v3871 = vld.sshfl [vmem:[%s3870] sm:$0xff pattern:$0x4b2907e5]
  %3872 = vrot.lane.b32.xlu0 %v3871, 88
  %v3873 = vpop.permute.xlu0 %3872
  %vm3874 = vcmask 15360
  %s3875 = scalar_lea.vmem %s1, 320
  %3876 = vst.msk [vmem:[%s3875] ss:$450 sm:$0x3] %vm3874, %v3873
  %s3877 = scalar_lea.vmem %s1, 1120
  %3878 = vst.msk [vmem:[%s3877] ss:$-350 sm:$0xc] %vm3874, %v3873
  %s3879 = scalar_lea.vmem %s1, 1920
  %3880 = vst.msk [vmem:[%s3879] ss:$-350 sm:$0x30] %vm3874, %v3873
  %s3881 = scalar_lea.vmem %s1, 2720
  %3882 = vst.msk [vmem:[%s3881] ss:$-350 sm:$0xc0] %vm3874, %v3873
  %s3883 = scalar_lea.vmem %s0, 17
  %v3884 = vld.sshfl [vmem:[%s3883] sm:$0xff pattern:$0x4b2907e5]
  %3885 = vrot.lane.b32.xlu0 %v3884, 88
  %v3886 = vpop.permute.xlu0 %3885
  %vm3887 = vcmask 15360
  %s3888 = scalar_lea.vmem %s1, 1120
  %3889 = vst.msk [vmem:[%s3888] ss:$450 sm:$0x3] %vm3887, %v3886
  %s3890 = scalar_lea.vmem %s1, 1920
  %3891 = vst.msk [vmem:[%s3890] ss:$-350 sm:$0xc] %vm3887, %v3886
  %s3892 = scalar_lea.vmem %s1, 2720
  %3893 = vst.msk [vmem:[%s3892] ss:$-350 sm:$0x30] %vm3887, %v3886
  %s3894 = scalar_lea.vmem %s1, 3520
  %3895 = vst.msk [vmem:[%s3894] ss:$-350 sm:$0xc0] %vm3887, %v3886
  %s3896 = scalar_lea.vmem %s0, 33
  %v3897 = vld.sshfl [vmem:[%s3896] sm:$0xff pattern:$0x4b2907e5]
  %3898 = vrot.lane.b32.xlu0 %v3897, 88
  %v3899 = vpop.permute.xlu0 %3898
  %vm3900 = vcmask 15360
  %s3901 = scalar_lea.vmem %s1, 1920
  %3902 = vst.msk [vmem:[%s3901] ss:$450 sm:$0x3] %vm3900, %v3899
  %s3903 = scalar_lea.vmem %s1, 2720
  %3904 = vst.msk [vmem:[%s3903] ss:$-350 sm:$0xc] %vm3900, %v3899
  %s3905 = scalar_lea.vmem %s1, 3520
  %3906 = vst.msk [vmem:[%s3905] ss:$-350 sm:$0x30] %vm3900, %v3899
  %s3907 = scalar_lea.vmem %s1, 4320
  %3908 = vst.msk [vmem:[%s3907] ss:$-350 sm:$0xc0] %vm3900, %v3899
  %s3909 = scalar_lea.vmem %s0, 60
  %v3910 = vld.sshfl [vmem:[%s3909] sm:$0xff pattern:$0x22222290]
  %s3911 = scalar_lea.vmem %s0, 49
  %v3912 = vld.sshfl [vmem:[%s3911] sm:$0xff pattern:$0x888f0000]
  %vm3913 = vcmask 1045507
  %v3914 = vsel %vm3913, %v3912, %v3910
  %s3915 = scalar_lea.vmem %s0, 108
  %s3916 = smov 192
  %v3917 = vld [vmem:[%s3915] ss:$-7 sm:%s3916]
  %vm3918 = vcmask 1047558
  %v3919 = vsel %vm3918, %v3917, %v3914
  %3920 = vrot.lane.b32.xlu0 %v3919, 88
  %v3921 = vpop.permute.xlu0 %3920
  %vm3922 = vcmask 15360
  %s3923 = scalar_lea.vmem %s1, 2720
  %3924 = vst.msk [vmem:[%s3923] ss:$450 sm:$0x3] %vm3922, %v3921
  %s3925 = scalar_lea.vmem %s1, 3520
  %3926 = vst.msk [vmem:[%s3925] ss:$-350 sm:$0xc] %vm3922, %v3921
  %s3927 = scalar_lea.vmem %s1, 4320
  %3928 = vst.msk [vmem:[%s3927] ss:$-350 sm:$0x30] %vm3922, %v3921
  %s3929 = scalar_lea.vmem %s1, 5120
  %3930 = vst.msk [vmem:[%s3929] ss:$-350 sm:$0xc0] %vm3922, %v3921
  %s3931 = scalar_lea.vmem %s0, 71
  %v3932 = vld.sshfl [vmem:[%s3931] sm:$0xff pattern:$0x4b2907e5]
  %3933 = vrot.lane.b32.xlu0 %v3932, 88
  %v3934 = vpop.permute.xlu0 %3933
  %vm3935 = vcmask 15360
  %s3936 = scalar_lea.vmem %s1, 3520
  %3937 = vst.msk [vmem:[%s3936] ss:$450 sm:$0x3] %vm3935, %v3934
  %s3938 = scalar_lea.vmem %s1, 4320
  %3939 = vst.msk [vmem:[%s3938] ss:$-350 sm:$0xc] %vm3935, %v3934
  %s3940 = scalar_lea.vmem %s1, 5120
  %3941 = vst.msk [vmem:[%s3940] ss:$-350 sm:$0x30] %vm3935, %v3934
  %s3942 = scalar_lea.vmem %s1, 5920
  %3943 = vst.msk [vmem:[%s3942] ss:$-350 sm:$0xc0] %vm3935, %v3934
  %s3944 = scalar_lea.vmem %s0, 87
  %v3945 = vld.sshfl [vmem:[%s3944] sm:$0xff pattern:$0x4b2907e5]
  %3946 = vrot.lane.b32.xlu0 %v3945, 88
  %v3947 = vpop.permute.xlu0 %3946
  %vm3948 = vcmask 15360
  %s3949 = scalar_lea.vmem %s1, 4320
  %3950 = vst.msk [vmem:[%s3949] ss:$450 sm:$0x3] %vm3948, %v3947
  %s3951 = scalar_lea.vmem %s1, 5120
  %3952 = vst.msk [vmem:[%s3951] ss:$-350 sm:$0xc] %vm3948, %v3947
  %s3953 = scalar_lea.vmem %s1, 5920
  %3954 = vst.msk [vmem:[%s3953] ss:$-350 sm:$0x30] %vm3948, %v3947
  %s3955 = scalar_lea.vmem %s1, 6720
  %3956 = vst.msk [vmem:[%s3955] ss:$-350 sm:$0xc0] %vm3948, %v3947
  %s3957 = scalar_lea.vmem %s0, 103
  %s3958 = smov 3
  %v3959 = vld [vmem:[%s3957] ss:$2 sm:%s3958]
  %v3960 = vld.sshfl [vmem:[%s0] sm:$0xff pattern:$0xb2907eee]
  %vm3961 = vcmask 1047554
  %v3962 = vsel %vm3961, %v3960, %v3959
  %3963 = vrot.lane.b32.xlu0 %v3962, 88
  %v3964 = vpop.permute.xlu0 %3963
  %vm3965 = vcmask 15360
  %s3966 = scalar_lea.vmem %s1, 4870
  %3967 = vst.msk [vmem:[%s3966] ss:$100 sm:$0x3] %vm3965, %v3964
  %s3968 = scalar_lea.vmem %s1, 1420
  %3969 = vst.msk [vmem:[%s3968] ss:$-350 sm:$0x1c] %vm3965, %v3964
  %s3970 = scalar_lea.vmem %s1, 2220
  %3971 = vst.msk [vmem:[%s3970] ss:$-350 sm:$0x60] %vm3965, %v3964
  %s3972 = scalar_lea.vmem %s1, 563
  %3973 = vst.msk [vmem:[%s3972] sm:$0x80] %vm3965, %v3964
  %s3974 = scalar_lea.vmem %s0, 16
  %v3975 = vld.sshfl [vmem:[%s3974] sm:$0xff pattern:$0xbbb2907e]
  %s3976 = scalar_lea.vmem %s0, 4294967246
  %s3977 = smov 192
  %v3978 = vld [vmem:[%s3976] ss:$9 sm:%s3977]
  %vm3979 = vcmask 1047558
  %v3980 = vsel %vm3979, %v3978, %v3975
  %3981 = vrot.lane.b32.xlu0 %v3980, 88
  %v3982 = vpop.permute.xlu0 %3981
  %vm3983 = vcmask 15360
  %s3984 = scalar_lea.vmem %s1, 1520
  %3985 = vst.msk [vmem:[%s3984] ss:$-350 sm:$0x7] %vm3983, %v3982
  %s3986 = scalar_lea.vmem %s1, 2320
  %3987 = vst.msk [vmem:[%s3986] ss:$-350 sm:$0x18] %vm3983, %v3982
  %s3988 = scalar_lea.vmem %s1, 7120
  %3989 = vst.msk [vmem:[%s3988] ss:$-1150 sm:$0x60] %vm3983, %v3982
  %s3990 = scalar_lea.vmem %s1, 663
  %3991 = vst.msk [vmem:[%s3990] sm:$0x80] %vm3983, %v3982
  %s3992 = scalar_lea.vmem %s0, 32
  %v3993 = vld.sshfl [vmem:[%s3992] sm:$0xff pattern:$0xbbb2907e]
  %s3994 = scalar_lea.vmem %s0, 4294967262
  %s3995 = smov 192
  %v3996 = vld [vmem:[%s3994] ss:$9 sm:%s3995]
  %vm3997 = vcmask 1047558
  %v3998 = vsel %vm3997, %v3996, %v3993
  %3999 = vrot.lane.b32.xlu0 %v3998, 88
  %v4000 = vpop.permute.xlu0 %3999
  %vm4001 = vcmask 15360
  %s4002 = scalar_lea.vmem %s1, 2320
  %4003 = vst.msk [vmem:[%s4002] ss:$-350 sm:$0x7] %vm4001, %v4000
  %s4004 = scalar_lea.vmem %s1, 3120
  %4005 = vst.msk [vmem:[%s4004] ss:$-350 sm:$0x18] %vm4001, %v4000
  %s4006 = scalar_lea.vmem %s1, 7920
  %4007 = vst.msk [vmem:[%s4006] ss:$-1150 sm:$0x60] %vm4001, %v4000
  %s4008 = scalar_lea.vmem %s1, 1463
  %4009 = vst.msk [vmem:[%s4008] sm:$0x80] %vm4001, %v4000
  %s4010 = scalar_lea.vmem %s0, 68
  %s4011 = smov 3
  %v4012 = vld [vmem:[%s4010] ss:$-7 sm:%s4011]
  %s4013 = scalar_lea.vmem %s0, 48
  %v4014 = vld.sshfl [vmem:[%s4013] sm:$0xff pattern:$0x8888f000]
  %vm4015 = vcmask 1044482
  %v4016 = vsel %vm4015, %v4014, %v4012
  %s4017 = scalar_lea.vmem %s0, 210
  %s4018 = smov 96
  %v4019 = vld [vmem:[%s4017] ss:$-29 sm:%s4018]
  %vm4020 = vcmask 1046533
  %v4021 = vsel %vm4020, %v4019, %v4016
  %s4022 = scalar_lea.vmem %s0, 38
  %v4023 = vld [vmem:[%s4022] sm:$0x80]
  %vm4024 = vcmask 1047559
  %v4025 = vsel %vm4024, %v4023, %v4021
  %4026 = vrot.lane.b32.xlu0 %v4025, 88
  %v4027 = vpop.permute.xlu0 %4026
  %vm4028 = vcmask 15360
  %s4029 = scalar_lea.vmem %s1, 3120
  %4030 = vst.msk [vmem:[%s4029] ss:$-350 sm:$0x7] %vm4028, %v4027
  %s4031 = scalar_lea.vmem %s1, 3920
  %4032 = vst.msk [vmem:[%s4031] ss:$-350 sm:$0x18] %vm4028, %v4027
  %s4033 = scalar_lea.vmem %s1, 8720
  %4034 = vst.msk [vmem:[%s4033] ss:$-1150 sm:$0x60] %vm4028, %v4027
  %s4035 = scalar_lea.vmem %s1, 2263
  %4036 = vst.msk [vmem:[%s4035] sm:$0x80] %vm4028, %v4027
  %s4037 = scalar_lea.vmem %s0, 70
  %v4038 = vld.sshfl [vmem:[%s4037] sm:$0xff pattern:$0xbbb2907e]
  %s4039 = scalar_lea.vmem %s0, 4
  %s4040 = smov 192
  %v4041 = vld [vmem:[%s4039] ss:$9 sm:%s4040]
  %vm4042 = vcmask 1047558
  %v4043 = vsel %vm4042, %v4041, %v4038
  %4044 = vrot.lane.b32.xlu0 %v4043, 88
  %v4045 = vpop.permute.xlu0 %4044
  %vm4046 = vcmask 15360
  %s4047 = scalar_lea.vmem %s1, 3920
  %4048 = vst.msk [vmem:[%s4047] ss:$-350 sm:$0x7] %vm4046, %v4045
  %s4049 = scalar_lea.vmem %s1, 4720
  %4050 = vst.msk [vmem:[%s4049] ss:$-350 sm:$0x18] %vm4046, %v4045
  %s4051 = scalar_lea.vmem %s1, 9520
  %4052 = vst.msk [vmem:[%s4051] ss:$-1150 sm:$0x60] %vm4046, %v4045
  %s4053 = scalar_lea.vmem %s1, 3063
  %4054 = vst.msk [vmem:[%s4053] sm:$0x80] %vm4046, %v4045
  %s4055 = scalar_lea.vmem %s0, 86
  %v4056 = vld.sshfl [vmem:[%s4055] sm:$0xff pattern:$0xbbb2907e]
  %s4057 = scalar_lea.vmem %s0, 20
  %s4058 = smov 192
  %v4059 = vld [vmem:[%s4057] ss:$9 sm:%s4058]
  %vm4060 = vcmask 1047558
  %v4061 = vsel %vm4060, %v4059, %v4056
  %4062 = vrot.lane.b32.xlu0 %v4061, 88
  %v4063 = vpop.permute.xlu0 %4062
  %vm4064 = vcmask 15360
  %s4065 = scalar_lea.vmem %s1, 4720
  %4066 = vst.msk [vmem:[%s4065] ss:$-350 sm:$0x7] %vm4064, %v4063
  %s4067 = scalar_lea.vmem %s1, 5520
  %4068 = vst.msk [vmem:[%s4067] ss:$-350 sm:$0x18] %vm4064, %v4063
  %s4069 = scalar_lea.vmem %s1, 10320
  %4070 = vst.msk [vmem:[%s4069] ss:$-1150 sm:$0x60] %vm4064, %v4063
  %s4071 = scalar_lea.vmem %s1, 3863
  %4072 = vst.msk [vmem:[%s4071] sm:$0x80] %vm4064, %v4063
  %s4073 = scalar_lea.vmem %s0, 90
  %v4074 = vld.sshfl [vmem:[%s4073] sm:$0xff pattern:$0x999990ec]
  %4075 = vrot.lane.b32.xlu0 %v4074, 88
  %v4076 = vpop.permute.xlu0 %4075
  %vm4077 = vcmask 15360
  %s4078 = scalar_lea.vmem %s1, 4820
  %4079 = vst.msk [vmem:[%s4078] ss:$100 sm:$0x3] %vm4077, %v4076
  %s4080 = scalar_lea.vmem %s1, 3320
  %4081 = vst.msk [vmem:[%s4080] ss:$450 sm:$0xc] %vm4077, %v4076
  %s4082 = scalar_lea.vmem %s0, 1
  %v4083 = vld.sshfl [vmem:[%s4082] sm:$0xff pattern:$0x4b2907e5]
  %4084 = vrot.lane.b32.xlu0 %v4083, 86
  %v4085 = vpop.permute.xlu0 %4084
  %vm4086 = vcmask 15360
  %s4087 = scalar_lea.vmem %s1, 321
  %4088 = vst.msk [vmem:[%s4087] ss:$450 sm:$0x3] %vm4086, %v4085
  %s4089 = scalar_lea.vmem %s1, 1121
  %4090 = vst.msk [vmem:[%s4089] ss:$-350 sm:$0xc] %vm4086, %v4085
  %s4091 = scalar_lea.vmem %s1, 1921
  %4092 = vst.msk [vmem:[%s4091] ss:$-350 sm:$0x30] %vm4086, %v4085
  %s4093 = scalar_lea.vmem %s1, 2721
  %4094 = vst.msk [vmem:[%s4093] ss:$-350 sm:$0xc0] %vm4086, %v4085
  %s4095 = scalar_lea.vmem %s0, 17
  %v4096 = vld.sshfl [vmem:[%s4095] sm:$0xff pattern:$0x4b2907e5]
  %4097 = vrot.lane.b32.xlu0 %v4096, 86
  %v4098 = vpop.permute.xlu0 %4097
  %vm4099 = vcmask 15360
  %s4100 = scalar_lea.vmem %s1, 1121
  %4101 = vst.msk [vmem:[%s4100] ss:$450 sm:$0x3] %vm4099, %v4098
  %s4102 = scalar_lea.vmem %s1, 1921
  %4103 = vst.msk [vmem:[%s4102] ss:$-350 sm:$0xc] %vm4099, %v4098
  %s4104 = scalar_lea.vmem %s1, 2721
  %4105 = vst.msk [vmem:[%s4104] ss:$-350 sm:$0x30] %vm4099, %v4098
  %s4106 = scalar_lea.vmem %s1, 3521
  %4107 = vst.msk [vmem:[%s4106] ss:$-350 sm:$0xc0] %vm4099, %v4098
  %s4108 = scalar_lea.vmem %s0, 33
  %v4109 = vld.sshfl [vmem:[%s4108] sm:$0xff pattern:$0x4b2907e5]
  %4110 = vrot.lane.b32.xlu0 %v4109, 86
  %v4111 = vpop.permute.xlu0 %4110
  %vm4112 = vcmask 15360
  %s4113 = scalar_lea.vmem %s1, 1921
  %4114 = vst.msk [vmem:[%s4113] ss:$450 sm:$0x3] %vm4112, %v4111
  %s4115 = scalar_lea.vmem %s1, 2721
  %4116 = vst.msk [vmem:[%s4115] ss:$-350 sm:$0xc] %vm4112, %v4111
  %s4117 = scalar_lea.vmem %s1, 3521
  %4118 = vst.msk [vmem:[%s4117] ss:$-350 sm:$0x30] %vm4112, %v4111
  %s4119 = scalar_lea.vmem %s1, 4321
  %4120 = vst.msk [vmem:[%s4119] ss:$-350 sm:$0xc0] %vm4112, %v4111
  %s4121 = scalar_lea.vmem %s0, 60
  %v4122 = vld.sshfl [vmem:[%s4121] sm:$0xff pattern:$0x22222290]
  %s4123 = scalar_lea.vmem %s0, 49
  %v4124 = vld.sshfl [vmem:[%s4123] sm:$0xff pattern:$0x888f0000]
  %vm4125 = vcmask 1045507
  %v4126 = vsel %vm4125, %v4124, %v4122
  %s4127 = scalar_lea.vmem %s0, 108
  %s4128 = smov 192
  %v4129 = vld [vmem:[%s4127] ss:$-7 sm:%s4128]
  %vm4130 = vcmask 1047558
  %v4131 = vsel %vm4130, %v4129, %v4126
  %4132 = vrot.lane.b32.xlu0 %v4131, 86
  %v4133 = vpop.permute.xlu0 %4132
  %vm4134 = vcmask 15360
  %s4135 = scalar_lea.vmem %s1, 2721
  %4136 = vst.msk [vmem:[%s4135] ss:$450 sm:$0x3] %vm4134, %v4133
  %s4137 = scalar_lea.vmem %s1, 3521
  %4138 = vst.msk [vmem:[%s4137] ss:$-350 sm:$0xc] %vm4134, %v4133
  %s4139 = scalar_lea.vmem %s1, 4321
  %4140 = vst.msk [vmem:[%s4139] ss:$-350 sm:$0x30] %vm4134, %v4133
  %s4141 = scalar_lea.vmem %s1, 5121
  %4142 = vst.msk [vmem:[%s4141] ss:$-350 sm:$0xc0] %vm4134, %v4133
  %s4143 = scalar_lea.vmem %s0, 71
  %v4144 = vld.sshfl [vmem:[%s4143] sm:$0xff pattern:$0x4b2907e5]
  %4145 = vrot.lane.b32.xlu0 %v4144, 86
  %v4146 = vpop.permute.xlu0 %4145
  %vm4147 = vcmask 15360
  %s4148 = scalar_lea.vmem %s1, 3521
  %4149 = vst.msk [vmem:[%s4148] ss:$450 sm:$0x3] %vm4147, %v4146
  %s4150 = scalar_lea.vmem %s1, 4321
  %4151 = vst.msk [vmem:[%s4150] ss:$-350 sm:$0xc] %vm4147, %v4146
  %s4152 = scalar_lea.vmem %s1, 5121
  %4153 = vst.msk [vmem:[%s4152] ss:$-350 sm:$0x30] %vm4147, %v4146
  %s4154 = scalar_lea.vmem %s1, 5921
  %4155 = vst.msk [vmem:[%s4154] ss:$-350 sm:$0xc0] %vm4147, %v4146
  %s4156 = scalar_lea.vmem %s0, 87
  %v4157 = vld.sshfl [vmem:[%s4156] sm:$0xff pattern:$0x4b2907e5]
  %4158 = vrot.lane.b32.xlu0 %v4157, 86
  %v4159 = vpop.permute.xlu0 %4158
  %vm4160 = vcmask 15360
  %s4161 = scalar_lea.vmem %s1, 4321
  %4162 = vst.msk [vmem:[%s4161] ss:$450 sm:$0x3] %vm4160, %v4159
  %s4163 = scalar_lea.vmem %s1, 5121
  %4164 = vst.msk [vmem:[%s4163] ss:$-350 sm:$0xc] %vm4160, %v4159
  %s4165 = scalar_lea.vmem %s1, 5921
  %4166 = vst.msk [vmem:[%s4165] ss:$-350 sm:$0x30] %vm4160, %v4159
  %s4167 = scalar_lea.vmem %s1, 6721
  %4168 = vst.msk [vmem:[%s4167] ss:$-350 sm:$0xc0] %vm4160, %v4159
  %s4169 = scalar_lea.vmem %s0, 103
  %s4170 = smov 3
  %v4171 = vld [vmem:[%s4169] ss:$2 sm:%s4170]
  %v4172 = vld.sshfl [vmem:[%s0] sm:$0xff pattern:$0xb2907eee]
  %vm4173 = vcmask 1047554
  %v4174 = vsel %vm4173, %v4172, %v4171
  %4175 = vrot.lane.b32.xlu0 %v4174, 86
  %v4176 = vpop.permute.xlu0 %4175
  %vm4177 = vcmask 15360
  %s4178 = scalar_lea.vmem %s1, 4871
  %4179 = vst.msk [vmem:[%s4178] ss:$100 sm:$0x3] %vm4177, %v4176
  %s4180 = scalar_lea.vmem %s1, 1421
  %4181 = vst.msk [vmem:[%s4180] ss:$-350 sm:$0x1c] %vm4177, %v4176
  %s4182 = scalar_lea.vmem %s1, 2221
  %4183 = vst.msk [vmem:[%s4182] ss:$-350 sm:$0x60] %vm4177, %v4176
  %s4184 = scalar_lea.vmem %s1, 564
  %4185 = vst.msk [vmem:[%s4184] sm:$0x80] %vm4177, %v4176
  %s4186 = scalar_lea.vmem %s0, 16
  %v4187 = vld.sshfl [vmem:[%s4186] sm:$0xff pattern:$0xbbb2907e]
  %s4188 = scalar_lea.vmem %s0, 4294967246
  %s4189 = smov 192
  %v4190 = vld [vmem:[%s4188] ss:$9 sm:%s4189]
  %vm4191 = vcmask 1047558
  %v4192 = vsel %vm4191, %v4190, %v4187
  %4193 = vrot.lane.b32.xlu0 %v4192, 86
  %v4194 = vpop.permute.xlu0 %4193
  %vm4195 = vcmask 15360
  %s4196 = scalar_lea.vmem %s1, 1521
  %4197 = vst.msk [vmem:[%s4196] ss:$-350 sm:$0x7] %vm4195, %v4194
  %s4198 = scalar_lea.vmem %s1, 2321
  %4199 = vst.msk [vmem:[%s4198] ss:$-350 sm:$0x18] %vm4195, %v4194
  %s4200 = scalar_lea.vmem %s1, 7121
  %4201 = vst.msk [vmem:[%s4200] ss:$-1150 sm:$0x60] %vm4195, %v4194
  %s4202 = scalar_lea.vmem %s1, 664
  %4203 = vst.msk [vmem:[%s4202] sm:$0x80] %vm4195, %v4194
  %s4204 = scalar_lea.vmem %s0, 32
  %v4205 = vld.sshfl [vmem:[%s4204] sm:$0xff pattern:$0xbbb2907e]
  %s4206 = scalar_lea.vmem %s0, 4294967262
  %s4207 = smov 192
  %v4208 = vld [vmem:[%s4206] ss:$9 sm:%s4207]
  %vm4209 = vcmask 1047558
  %v4210 = vsel %vm4209, %v4208, %v4205
  %4211 = vrot.lane.b32.xlu0 %v4210, 86
  %v4212 = vpop.permute.xlu0 %4211
  %vm4213 = vcmask 15360
  %s4214 = scalar_lea.vmem %s1, 2321
  %4215 = vst.msk [vmem:[%s4214] ss:$-350 sm:$0x7] %vm4213, %v4212
  %s4216 = scalar_lea.vmem %s1, 3121
  %4217 = vst.msk [vmem:[%s4216] ss:$-350 sm:$0x18] %vm4213, %v4212
  %s4218 = scalar_lea.vmem %s1, 7921
  %4219 = vst.msk [vmem:[%s4218] ss:$-1150 sm:$0x60] %vm4213, %v4212
  %s4220 = scalar_lea.vmem %s1, 1464
  %4221 = vst.msk [vmem:[%s4220] sm:$0x80] %vm4213, %v4212
  %s4222 = scalar_lea.vmem %s0, 68
  %s4223 = smov 3
  %v4224 = vld [vmem:[%s4222] ss:$-7 sm:%s4223]
  %s4225 = scalar_lea.vmem %s0, 48
  %v4226 = vld.sshfl [vmem:[%s4225] sm:$0xff pattern:$0x8888f000]
  %vm4227 = vcmask 1044482
  %v4228 = vsel %vm4227, %v4226, %v4224
  %s4229 = scalar_lea.vmem %s0, 210
  %s4230 = smov 96
  %v4231 = vld [vmem:[%s4229] ss:$-29 sm:%s4230]
  %vm4232 = vcmask 1046533
  %v4233 = vsel %vm4232, %v4231, %v4228
  %s4234 = scalar_lea.vmem %s0, 38
  %v4235 = vld [vmem:[%s4234] sm:$0x80]
  %vm4236 = vcmask 1047559
  %v4237 = vsel %vm4236, %v4235, %v4233
  %4238 = vrot.lane.b32.xlu0 %v4237, 86
  %v4239 = vpop.permute.xlu0 %4238
  %vm4240 = vcmask 15360
  %s4241 = scalar_lea.vmem %s1, 3121
  %4242 = vst.msk [vmem:[%s4241] ss:$-350 sm:$0x7] %vm4240, %v4239
  %s4243 = scalar_lea.vmem %s1, 3921
  %4244 = vst.msk [vmem:[%s4243] ss:$-350 sm:$0x18] %vm4240, %v4239
  %s4245 = scalar_lea.vmem %s1, 8721
  %4246 = vst.msk [vmem:[%s4245] ss:$-1150 sm:$0x60] %vm4240, %v4239
  %s4247 = scalar_lea.vmem %s1, 2264
  %4248 = vst.msk [vmem:[%s4247] sm:$0x80] %vm4240, %v4239
  %s4249 = scalar_lea.vmem %s0, 70
  %v4250 = vld.sshfl [vmem:[%s4249] sm:$0xff pattern:$0xbbb2907e]
  %s4251 = scalar_lea.vmem %s0, 4
  %s4252 = smov 192
  %v4253 = vld [vmem:[%s4251] ss:$9 sm:%s4252]
  %vm4254 = vcmask 1047558
  %v4255 = vsel %vm4254, %v4253, %v4250
  %4256 = vrot.lane.b32.xlu0 %v4255, 86
  %v4257 = vpop.permute.xlu0 %4256
  %vm4258 = vcmask 15360
  %s4259 = scalar_lea.vmem %s1, 3921
  %4260 = vst.msk [vmem:[%s4259] ss:$-350 sm:$0x7] %vm4258, %v4257
  %s4261 = scalar_lea.vmem %s1, 4721
  %4262 = vst.msk [vmem:[%s4261] ss:$-350 sm:$0x18] %vm4258, %v4257
  %s4263 = scalar_lea.vmem %s1, 9521
  %4264 = vst.msk [vmem:[%s4263] ss:$-1150 sm:$0x60] %vm4258, %v4257
  %s4265 = scalar_lea.vmem %s1, 3064
  %4266 = vst.msk [vmem:[%s4265] sm:$0x80] %vm4258, %v4257
  %s4267 = scalar_lea.vmem %s0, 86
  %v4268 = vld.sshfl [vmem:[%s4267] sm:$0xff pattern:$0xbbb2907e]
  %s4269 = scalar_lea.vmem %s0, 20
  %s4270 = smov 192
  %v4271 = vld [vmem:[%s4269] ss:$9 sm:%s4270]
  %vm4272 = vcmask 1047558
  %v4273 = vsel %vm4272, %v4271, %v4268
  %4274 = vrot.lane.b32.xlu0 %v4273, 86
  %v4275 = vpop.permute.xlu0 %4274
  %vm4276 = vcmask 15360
  %s4277 = scalar_lea.vmem %s1, 4721
  %4278 = vst.msk [vmem:[%s4277] ss:$-350 sm:$0x7] %vm4276, %v4275
  %s4279 = scalar_lea.vmem %s1, 5521
  %4280 = vst.msk [vmem:[%s4279] ss:$-350 sm:$0x18] %vm4276, %v4275
  %s4281 = scalar_lea.vmem %s1, 10321
  %4282 = vst.msk [vmem:[%s4281] ss:$-1150 sm:$0x60] %vm4276, %v4275
  %s4283 = scalar_lea.vmem %s1, 3864
  %4284 = vst.msk [vmem:[%s4283] sm:$0x80] %vm4276, %v4275
  %s4285 = scalar_lea.vmem %s0, 90
  %v4286 = vld.sshfl [vmem:[%s4285] sm:$0xff pattern:$0x999990ec]
  %4287 = vrot.lane.b32.xlu0 %v4286, 86
  %v4288 = vpop.permute.xlu0 %4287
  %vm4289 = vcmask 15360
  %s4290 = scalar_lea.vmem %s1, 4821
  %4291 = vst.msk [vmem:[%s4290] ss:$100 sm:$0x3] %vm4289, %v4288
  %s4292 = scalar_lea.vmem %s1, 3321
  %4293 = vst.msk [vmem:[%s4292] ss:$450 sm:$0xc] %vm4289, %v4288
  %s4294 = scalar_lea.vmem %s0, 1
  %v4295 = vld.sshfl [vmem:[%s4294] sm:$0xff pattern:$0xb2907e5c]
  %4296 = vrot.lane.b32.xlu0 %v4295, 84
  %v4297 = vpop.permute.xlu0 %4296
  %vm4298 = vcmask 15360
  %s4299 = scalar_lea.vmem %s1, 672
  %4300 = vst.msk [vmem:[%s4299] ss:$-350 sm:$0x3] %vm4298, %v4297
  %s4301 = scalar_lea.vmem %s1, 1472
  %4302 = vst.msk [vmem:[%s4301] ss:$-350 sm:$0x1c] %vm4298, %v4297
  %s4303 = scalar_lea.vmem %s1, 2272
  %4304 = vst.msk [vmem:[%s4303] ss:$-350 sm:$0x60] %vm4298, %v4297
  %s4305 = scalar_lea.vmem %s1, 615
  %4306 = vst.msk [vmem:[%s4305] sm:$0x80] %vm4298, %v4297
  %s4307 = scalar_lea.vmem %s0, 17
  %v4308 = vld.sshfl [vmem:[%s4307] sm:$0xff pattern:$0xb2907e5c]
  %4309 = vrot.lane.b32.xlu0 %v4308, 84
  %v4310 = vpop.permute.xlu0 %4309
  %vm4311 = vcmask 15360
  %s4312 = scalar_lea.vmem %s1, 1472
  %4313 = vst.msk [vmem:[%s4312] ss:$-350 sm:$0x3] %vm4311, %v4310
  %s4314 = scalar_lea.vmem %s1, 2272
  %4315 = vst.msk [vmem:[%s4314] ss:$-350 sm:$0x1c] %vm4311, %v4310
  %s4316 = scalar_lea.vmem %s1, 3072
  %4317 = vst.msk [vmem:[%s4316] ss:$-350 sm:$0x60] %vm4311, %v4310
  %s4318 = scalar_lea.vmem %s1, 1415
  %4319 = vst.msk [vmem:[%s4318] sm:$0x80] %vm4311, %v4310
  %s4320 = scalar_lea.vmem %s0, 33
  %v4321 = vld.sshfl [vmem:[%s4320] sm:$0xff pattern:$0xb2907e5c]
  %4322 = vrot.lane.b32.xlu0 %v4321, 84
  %v4323 = vpop.permute.xlu0 %4322
  %vm4324 = vcmask 15360
  %s4325 = scalar_lea.vmem %s1, 2272
  %4326 = vst.msk [vmem:[%s4325] ss:$-350 sm:$0x3] %vm4324, %v4323
  %s4327 = scalar_lea.vmem %s1, 3072
  %4328 = vst.msk [vmem:[%s4327] ss:$-350 sm:$0x1c] %vm4324, %v4323
  %s4329 = scalar_lea.vmem %s1, 3872
  %4330 = vst.msk [vmem:[%s4329] ss:$-350 sm:$0x60] %vm4324, %v4323
  %s4331 = scalar_lea.vmem %s1, 2215
  %4332 = vst.msk [vmem:[%s4331] sm:$0x80] %vm4324, %v4323
  %s4333 = scalar_lea.vmem %s0, 60
  %v4334 = vld.sshfl [vmem:[%s4333] sm:$0xff pattern:$0x22222907]
  %s4335 = scalar_lea.vmem %s0, 49
  %v4336 = vld.sshfl [vmem:[%s4335] sm:$0xff pattern:$0x88f00000]
  %vm4337 = vcmask 1046532
  %v4338 = vsel %vm4337, %v4336, %v4334
  %s4339 = scalar_lea.vmem %s0, 59
  %v4340 = vld [vmem:[%s4339] sm:$0x80]
  %vm4341 = vcmask 1047559
  %v4342 = vsel %vm4341, %v4340, %v4338
  %4343 = vrot.lane.b32.xlu0 %v4342, 84
  %v4344 = vpop.permute.xlu0 %4343
  %vm4345 = vcmask 15360
  %s4346 = scalar_lea.vmem %s1, 3072
  %4347 = vst.msk [vmem:[%s4346] ss:$-350 sm:$0x3] %vm4345, %v4344
  %s4348 = scalar_lea.vmem %s1, 3872
  %4349 = vst.msk [vmem:[%s4348] ss:$-350 sm:$0x1c] %vm4345, %v4344
  %s4350 = scalar_lea.vmem %s1, 4672
  %4351 = vst.msk [vmem:[%s4350] ss:$-350 sm:$0x60] %vm4345, %v4344
  %s4352 = scalar_lea.vmem %s1, 3015
  %4353 = vst.msk [vmem:[%s4352] sm:$0x80] %vm4345, %v4344
  %s4354 = scalar_lea.vmem %s0, 71
  %v4355 = vld.sshfl [vmem:[%s4354] sm:$0xff pattern:$0xb2907e5c]
  %4356 = vrot.lane.b32.xlu0 %v4355, 84
  %v4357 = vpop.permute.xlu0 %4356
  %vm4358 = vcmask 15360
  %s4359 = scalar_lea.vmem %s1, 3872
  %4360 = vst.msk [vmem:[%s4359] ss:$-350 sm:$0x3] %vm4358, %v4357
  %s4361 = scalar_lea.vmem %s1, 4672
  %4362 = vst.msk [vmem:[%s4361] ss:$-350 sm:$0x1c] %vm4358, %v4357
  %s4363 = scalar_lea.vmem %s1, 5472
  %4364 = vst.msk [vmem:[%s4363] ss:$-350 sm:$0x60] %vm4358, %v4357
  %s4365 = scalar_lea.vmem %s1, 3815
  %4366 = vst.msk [vmem:[%s4365] sm:$0x80] %vm4358, %v4357
  %s4367 = scalar_lea.vmem %s0, 87
  %v4368 = vld.sshfl [vmem:[%s4367] sm:$0xff pattern:$0xb2907e5c]
  %4369 = vrot.lane.b32.xlu0 %v4368, 84
  %v4370 = vpop.permute.xlu0 %4369
  %vm4371 = vcmask 15360
  %s4372 = scalar_lea.vmem %s1, 4672
  %4373 = vst.msk [vmem:[%s4372] ss:$-350 sm:$0x3] %vm4371, %v4370
  %s4374 = scalar_lea.vmem %s1, 5472
  %4375 = vst.msk [vmem:[%s4374] ss:$-350 sm:$0x1c] %vm4371, %v4370
  %s4376 = scalar_lea.vmem %s1, 6272
  %4377 = vst.msk [vmem:[%s4376] ss:$-350 sm:$0x60] %vm4371, %v4370
  %s4378 = scalar_lea.vmem %s1, 4615
  %4379 = vst.msk [vmem:[%s4378] sm:$0x80] %vm4371, %v4370
  %s4380 = scalar_lea.vmem %s0, 103
  %s4381 = smov 3
  %v4382 = vld [vmem:[%s4380] ss:$2 sm:%s4381]
  %v4383 = vld.sshfl [vmem:[%s0] sm:$0xff pattern:$0x2907e555]
  %vm4384 = vcmask 1047554
  %v4385 = vsel %vm4384, %v4383, %v4382
  %4386 = vrot.lane.b32.xlu0 %v4385, 84
  %v4387 = vpop.permute.xlu0 %4386
  %vm4388 = vcmask 15360
  %s4389 = scalar_lea.vmem %s1, 4872
  %4390 = vst.msk [vmem:[%s4389] ss:$100 sm:$0x3] %vm4388, %v4387
  %s4391 = scalar_lea.vmem %s1, 4294966668
  %4392 = vst.msk [vmem:[%s4391] ss:$450 sm:$0xc] %vm4388, %v4387
  %s4393 = scalar_lea.vmem %s1, 1772
  %4394 = vst.msk [vmem:[%s4393] ss:$-350 sm:$0x30] %vm4388, %v4387
  %s4395 = scalar_lea.vmem %s1, 2572
  %4396 = vst.msk [vmem:[%s4395] ss:$-350 sm:$0xc0] %vm4388, %v4387
  %s4397 = scalar_lea.vmem %s0, 16
  %v4398 = vld.sshfl [vmem:[%s4397] sm:$0xff pattern:$0x222907e5]
  %s4399 = scalar_lea.vmem %s0, 53
  %s4400 = smov 192
  %v4401 = vld [vmem:[%s4399] ss:$-7 sm:%s4400]
  %vm4402 = vcmask 1047558
  %v4403 = vsel %vm4402, %v4401, %v4398
  %4404 = vrot.lane.b32.xlu0 %v4403, 84
  %v4405 = vpop.permute.xlu0 %4404
  %vm4406 = vcmask 15360
  %s4407 = scalar_lea.vmem %s1, 1072
  %4408 = vst.msk [vmem:[%s4407] ss:$450 sm:$0x3] %vm4406, %v4405
  %s4409 = scalar_lea.vmem %s1, 1872
  %4410 = vst.msk [vmem:[%s4409] ss:$-350 sm:$0xc] %vm4406, %v4405
  %s4411 = scalar_lea.vmem %s1, 2672
  %4412 = vst.msk [vmem:[%s4411] ss:$-350 sm:$0xf0] %vm4406, %v4405
  %s4413 = scalar_lea.vmem %s0, 32
  %v4414 = vld.sshfl [vmem:[%s4413] sm:$0xff pattern:$0x222907e5]
  %s4415 = scalar_lea.vmem %s0, 69
  %s4416 = smov 192
  %v4417 = vld [vmem:[%s4415] ss:$-7 sm:%s4416]
  %vm4418 = vcmask 1047558
  %v4419 = vsel %vm4418, %v4417, %v4414
  %4420 = vrot.lane.b32.xlu0 %v4419, 84
  %v4421 = vpop.permute.xlu0 %4420
  %vm4422 = vcmask 15360
  %s4423 = scalar_lea.vmem %s1, 1872
  %4424 = vst.msk [vmem:[%s4423] ss:$450 sm:$0x3] %vm4422, %v4421
  %s4425 = scalar_lea.vmem %s1, 2672
  %4426 = vst.msk [vmem:[%s4425] ss:$-350 sm:$0xc] %vm4422, %v4421
  %s4427 = scalar_lea.vmem %s1, 3472
  %4428 = vst.msk [vmem:[%s4427] ss:$-350 sm:$0xf0] %vm4422, %v4421
  %s4429 = scalar_lea.vmem %s0, 59
  %v4430 = vld.sshfl [vmem:[%s4429] sm:$0xff pattern:$0x22222290]
  %s4431 = scalar_lea.vmem %s0, 48
  %v4432 = vld.sshfl [vmem:[%s4431] sm:$0xff pattern:$0x888f0000]
  %vm4433 = vcmask 1045507
  %v4434 = vsel %vm4433, %v4432, %v4430
  %s4435 = scalar_lea.vmem %s0, 85
  %s4436 = smov 192
  %v4437 = vld [vmem:[%s4435] ss:$-7 sm:%s4436]
  %vm4438 = vcmask 1047558
  %v4439 = vsel %vm4438, %v4437, %v4434
  %4440 = vrot.lane.b32.xlu0 %v4439, 84
  %v4441 = vpop.permute.xlu0 %4440
  %vm4442 = vcmask 15360
  %s4443 = scalar_lea.vmem %s1, 2672
  %4444 = vst.msk [vmem:[%s4443] ss:$450 sm:$0x3] %vm4442, %v4441
  %s4445 = scalar_lea.vmem %s1, 3472
  %4446 = vst.msk [vmem:[%s4445] ss:$-350 sm:$0xc] %vm4442, %v4441
  %s4447 = scalar_lea.vmem %s1, 4272
  %4448 = vst.msk [vmem:[%s4447] ss:$-350 sm:$0xf0] %vm4442, %v4441
  %s4449 = scalar_lea.vmem %s0, 70
  %v4450 = vld.sshfl [vmem:[%s4449] sm:$0xff pattern:$0x222907e5]
  %s4451 = scalar_lea.vmem %s0, 107
  %s4452 = smov 192
  %v4453 = vld [vmem:[%s4451] ss:$-7 sm:%s4452]
  %vm4454 = vcmask 1047558
  %v4455 = vsel %vm4454, %v4453, %v4450
  %4456 = vrot.lane.b32.xlu0 %v4455, 84
  %v4457 = vpop.permute.xlu0 %4456
  %vm4458 = vcmask 15360
  %s4459 = scalar_lea.vmem %s1, 3472
  %4460 = vst.msk [vmem:[%s4459] ss:$450 sm:$0x3] %vm4458, %v4457
  %s4461 = scalar_lea.vmem %s1, 4272
  %4462 = vst.msk [vmem:[%s4461] ss:$-350 sm:$0xc] %vm4458, %v4457
  %s4463 = scalar_lea.vmem %s1, 5072
  %4464 = vst.msk [vmem:[%s4463] ss:$-350 sm:$0xf0] %vm4458, %v4457
  %s4465 = scalar_lea.vmem %s0, 86
  %v4466 = vld.sshfl [vmem:[%s4465] sm:$0xff pattern:$0x222907e5]
  %s4467 = scalar_lea.vmem %s0, 123
  %s4468 = smov 192
  %v4469 = vld [vmem:[%s4467] ss:$-7 sm:%s4468]
  %vm4470 = vcmask 1047558
  %v4471 = vsel %vm4470, %v4469, %v4466
  %4472 = vrot.lane.b32.xlu0 %v4471, 84
  %v4473 = vpop.permute.xlu0 %4472
  %vm4474 = vcmask 15360
  %s4475 = scalar_lea.vmem %s1, 4272
  %4476 = vst.msk [vmem:[%s4475] ss:$450 sm:$0x3] %vm4474, %v4473
  %s4477 = scalar_lea.vmem %s1, 5072
  %4478 = vst.msk [vmem:[%s4477] ss:$-350 sm:$0xc] %vm4474, %v4473
  %s4479 = scalar_lea.vmem %s1, 5872
  %4480 = vst.msk [vmem:[%s4479] ss:$-350 sm:$0xf0] %vm4474, %v4473
  %s4481 = scalar_lea.vmem %s0, 90
  %v4482 = vld.sshfl [vmem:[%s4481] sm:$0xff pattern:$0x7ec]
  %4483 = vrot.lane.b32.xlu0 %v4482, 84
  %v4484 = vpop.permute.xlu0 %4483
  %vm4485 = vcmask 15360
  %s4486 = scalar_lea.vmem %s1, 4822
  %4487 = vst.msk [vmem:[%s4486] ss:$100 sm:$0x3] %vm4485, %v4484
  %s4488 = scalar_lea.vmem %s1, 5272
  %4489 = vst.msk [vmem:[%s4488] ss:$-350 sm:$0xc] %vm4485, %v4484
  %s4490 = scalar_lea.vmem %s0, 1
  %v4491 = vld.sshfl [vmem:[%s4490] sm:$0xff pattern:$0xb2907e5c]
  %4492 = vrot.lane.b32.xlu0 %v4491, 82
  %v4493 = vpop.permute.xlu0 %4492
  %vm4494 = vcmask 15360
  %s4495 = scalar_lea.vmem %s1, 673
  %4496 = vst.msk [vmem:[%s4495] ss:$-350 sm:$0x3] %vm4494, %v4493
  %s4497 = scalar_lea.vmem %s1, 1473
  %4498 = vst.msk [vmem:[%s4497] ss:$-350 sm:$0x1c] %vm4494, %v4493
  %s4499 = scalar_lea.vmem %s1, 2273
  %4500 = vst.msk [vmem:[%s4499] ss:$-350 sm:$0x60] %vm4494, %v4493
  %s4501 = scalar_lea.vmem %s1, 616
  %4502 = vst.msk [vmem:[%s4501] sm:$0x80] %vm4494, %v4493
  %s4503 = scalar_lea.vmem %s0, 17
  %v4504 = vld.sshfl [vmem:[%s4503] sm:$0xff pattern:$0xb2907e5c]
  %4505 = vrot.lane.b32.xlu0 %v4504, 82
  %v4506 = vpop.permute.xlu0 %4505
  %vm4507 = vcmask 15360
  %s4508 = scalar_lea.vmem %s1, 1473
  %4509 = vst.msk [vmem:[%s4508] ss:$-350 sm:$0x3] %vm4507, %v4506
  %s4510 = scalar_lea.vmem %s1, 2273
  %4511 = vst.msk [vmem:[%s4510] ss:$-350 sm:$0x1c] %vm4507, %v4506
  %s4512 = scalar_lea.vmem %s1, 3073
  %4513 = vst.msk [vmem:[%s4512] ss:$-350 sm:$0x60] %vm4507, %v4506
  %s4514 = scalar_lea.vmem %s1, 1416
  %4515 = vst.msk [vmem:[%s4514] sm:$0x80] %vm4507, %v4506
  %s4516 = scalar_lea.vmem %s0, 33
  %v4517 = vld.sshfl [vmem:[%s4516] sm:$0xff pattern:$0xb2907e5c]
  %4518 = vrot.lane.b32.xlu0 %v4517, 82
  %v4519 = vpop.permute.xlu0 %4518
  %vm4520 = vcmask 15360
  %s4521 = scalar_lea.vmem %s1, 2273
  %4522 = vst.msk [vmem:[%s4521] ss:$-350 sm:$0x3] %vm4520, %v4519
  %s4523 = scalar_lea.vmem %s1, 3073
  %4524 = vst.msk [vmem:[%s4523] ss:$-350 sm:$0x1c] %vm4520, %v4519
  %s4525 = scalar_lea.vmem %s1, 3873
  %4526 = vst.msk [vmem:[%s4525] ss:$-350 sm:$0x60] %vm4520, %v4519
  %s4527 = scalar_lea.vmem %s1, 2216
  %4528 = vst.msk [vmem:[%s4527] sm:$0x80] %vm4520, %v4519
  %s4529 = scalar_lea.vmem %s0, 60
  %v4530 = vld.sshfl [vmem:[%s4529] sm:$0xff pattern:$0x22222907]
  %s4531 = scalar_lea.vmem %s0, 49
  %v4532 = vld.sshfl [vmem:[%s4531] sm:$0xff pattern:$0x88f00000]
  %vm4533 = vcmask 1046532
  %v4534 = vsel %vm4533, %v4532, %v4530
  %s4535 = scalar_lea.vmem %s0, 59
  %v4536 = vld [vmem:[%s4535] sm:$0x80]
  %vm4537 = vcmask 1047559
  %v4538 = vsel %vm4537, %v4536, %v4534
  %4539 = vrot.lane.b32.xlu0 %v4538, 82
  %v4540 = vpop.permute.xlu0 %4539
  %vm4541 = vcmask 15360
  %s4542 = scalar_lea.vmem %s1, 3073
  %4543 = vst.msk [vmem:[%s4542] ss:$-350 sm:$0x3] %vm4541, %v4540
  %s4544 = scalar_lea.vmem %s1, 3873
  %4545 = vst.msk [vmem:[%s4544] ss:$-350 sm:$0x1c] %vm4541, %v4540
  %s4546 = scalar_lea.vmem %s1, 4673
  %4547 = vst.msk [vmem:[%s4546] ss:$-350 sm:$0x60] %vm4541, %v4540
  %s4548 = scalar_lea.vmem %s1, 3016
  %4549 = vst.msk [vmem:[%s4548] sm:$0x80] %vm4541, %v4540
  %s4550 = scalar_lea.vmem %s0, 71
  %v4551 = vld.sshfl [vmem:[%s4550] sm:$0xff pattern:$0xb2907e5c]
  %4552 = vrot.lane.b32.xlu0 %v4551, 82
  %v4553 = vpop.permute.xlu0 %4552
  %vm4554 = vcmask 15360
  %s4555 = scalar_lea.vmem %s1, 3873
  %4556 = vst.msk [vmem:[%s4555] ss:$-350 sm:$0x3] %vm4554, %v4553
  %s4557 = scalar_lea.vmem %s1, 4673
  %4558 = vst.msk [vmem:[%s4557] ss:$-350 sm:$0x1c] %vm4554, %v4553
  %s4559 = scalar_lea.vmem %s1, 5473
  %4560 = vst.msk [vmem:[%s4559] ss:$-350 sm:$0x60] %vm4554, %v4553
  %s4561 = scalar_lea.vmem %s1, 3816
  %4562 = vst.msk [vmem:[%s4561] sm:$0x80] %vm4554, %v4553
  %s4563 = scalar_lea.vmem %s0, 87
  %v4564 = vld.sshfl [vmem:[%s4563] sm:$0xff pattern:$0xb2907e5c]
  %4565 = vrot.lane.b32.xlu0 %v4564, 82
  %v4566 = vpop.permute.xlu0 %4565
  %vm4567 = vcmask 15360
  %s4568 = scalar_lea.vmem %s1, 4673
  %4569 = vst.msk [vmem:[%s4568] ss:$-350 sm:$0x3] %vm4567, %v4566
  %s4570 = scalar_lea.vmem %s1, 5473
  %4571 = vst.msk [vmem:[%s4570] ss:$-350 sm:$0x1c] %vm4567, %v4566
  %s4572 = scalar_lea.vmem %s1, 6273
  %4573 = vst.msk [vmem:[%s4572] ss:$-350 sm:$0x60] %vm4567, %v4566
  %s4574 = scalar_lea.vmem %s1, 4616
  %4575 = vst.msk [vmem:[%s4574] sm:$0x80] %vm4567, %v4566
  %s4576 = scalar_lea.vmem %s0, 103
  %s4577 = smov 3
  %v4578 = vld [vmem:[%s4576] ss:$2 sm:%s4577]
  %v4579 = vld.sshfl [vmem:[%s0] sm:$0xff pattern:$0x2907e555]
  %vm4580 = vcmask 1047554
  %v4581 = vsel %vm4580, %v4579, %v4578
  %4582 = vrot.lane.b32.xlu0 %v4581, 82
  %v4583 = vpop.permute.xlu0 %4582
  %vm4584 = vcmask 15360
  %s4585 = scalar_lea.vmem %s1, 4873
  %4586 = vst.msk [vmem:[%s4585] ss:$100 sm:$0x3] %vm4584, %v4583
  %s4587 = scalar_lea.vmem %s1, 4294966669
  %4588 = vst.msk [vmem:[%s4587] ss:$450 sm:$0xc] %vm4584, %v4583
  %s4589 = scalar_lea.vmem %s1, 1773
  %4590 = vst.msk [vmem:[%s4589] ss:$-350 sm:$0x30] %vm4584, %v4583
  %s4591 = scalar_lea.vmem %s1, 2573
  %4592 = vst.msk [vmem:[%s4591] ss:$-350 sm:$0xc0] %vm4584, %v4583
  %s4593 = scalar_lea.vmem %s0, 16
  %v4594 = vld.sshfl [vmem:[%s4593] sm:$0xff pattern:$0x222907e5]
  %s4595 = scalar_lea.vmem %s0, 53
  %s4596 = smov 192
  %v4597 = vld [vmem:[%s4595] ss:$-7 sm:%s4596]
  %vm4598 = vcmask 1047558
  %v4599 = vsel %vm4598, %v4597, %v4594
  %4600 = vrot.lane.b32.xlu0 %v4599, 82
  %v4601 = vpop.permute.xlu0 %4600
  %vm4602 = vcmask 15360
  %s4603 = scalar_lea.vmem %s1, 1073
  %4604 = vst.msk [vmem:[%s4603] ss:$450 sm:$0x3] %vm4602, %v4601
  %s4605 = scalar_lea.vmem %s1, 1873
  %4606 = vst.msk [vmem:[%s4605] ss:$-350 sm:$0xc] %vm4602, %v4601
  %s4607 = scalar_lea.vmem %s1, 2673
  %4608 = vst.msk [vmem:[%s4607] ss:$-350 sm:$0xf0] %vm4602, %v4601
  %s4609 = scalar_lea.vmem %s0, 32
  %v4610 = vld.sshfl [vmem:[%s4609] sm:$0xff pattern:$0x222907e5]
  %s4611 = scalar_lea.vmem %s0, 69
  %s4612 = smov 192
  %v4613 = vld [vmem:[%s4611] ss:$-7 sm:%s4612]
  %vm4614 = vcmask 1047558
  %v4615 = vsel %vm4614, %v4613, %v4610
  %4616 = vrot.lane.b32.xlu0 %v4615, 82
  %v4617 = vpop.permute.xlu0 %4616
  %vm4618 = vcmask 15360
  %s4619 = scalar_lea.vmem %s1, 1873
  %4620 = vst.msk [vmem:[%s4619] ss:$450 sm:$0x3] %vm4618, %v4617
  %s4621 = scalar_lea.vmem %s1, 2673
  %4622 = vst.msk [vmem:[%s4621] ss:$-350 sm:$0xc] %vm4618, %v4617
  %s4623 = scalar_lea.vmem %s1, 3473
  %4624 = vst.msk [vmem:[%s4623] ss:$-350 sm:$0xf0] %vm4618, %v4617
  %s4625 = scalar_lea.vmem %s0, 59
  %v4626 = vld.sshfl [vmem:[%s4625] sm:$0xff pattern:$0x22222290]
  %s4627 = scalar_lea.vmem %s0, 48
  %v4628 = vld.sshfl [vmem:[%s4627] sm:$0xff pattern:$0x888f0000]
  %vm4629 = vcmask 1045507
  %v4630 = vsel %vm4629, %v4628, %v4626
  %s4631 = scalar_lea.vmem %s0, 85
  %s4632 = smov 192
  %v4633 = vld [vmem:[%s4631] ss:$-7 sm:%s4632]
  %vm4634 = vcmask 1047558
  %v4635 = vsel %vm4634, %v4633, %v4630
  %4636 = vrot.lane.b32.xlu0 %v4635, 82
  %v4637 = vpop.permute.xlu0 %4636
  %vm4638 = vcmask 15360
  %s4639 = scalar_lea.vmem %s1, 2673
  %4640 = vst.msk [vmem:[%s4639] ss:$450 sm:$0x3] %vm4638, %v4637
  %s4641 = scalar_lea.vmem %s1, 3473
  %4642 = vst.msk [vmem:[%s4641] ss:$-350 sm:$0xc] %vm4638, %v4637
  %s4643 = scalar_lea.vmem %s1, 4273
  %4644 = vst.msk [vmem:[%s4643] ss:$-350 sm:$0xf0] %vm4638, %v4637
  %s4645 = scalar_lea.vmem %s0, 70
  %v4646 = vld.sshfl [vmem:[%s4645] sm:$0xff pattern:$0x222907e5]
  %s4647 = scalar_lea.vmem %s0, 107
  %s4648 = smov 192
  %v4649 = vld [vmem:[%s4647] ss:$-7 sm:%s4648]
  %vm4650 = vcmask 1047558
  %v4651 = vsel %vm4650, %v4649, %v4646
  %4652 = vrot.lane.b32.xlu0 %v4651, 82
  %v4653 = vpop.permute.xlu0 %4652
  %vm4654 = vcmask 15360
  %s4655 = scalar_lea.vmem %s1, 3473
  %4656 = vst.msk [vmem:[%s4655] ss:$450 sm:$0x3] %vm4654, %v4653
  %s4657 = scalar_lea.vmem %s1, 4273
  %4658 = vst.msk [vmem:[%s4657] ss:$-350 sm:$0xc] %vm4654, %v4653
  %s4659 = scalar_lea.vmem %s1, 5073
  %4660 = vst.msk [vmem:[%s4659] ss:$-350 sm:$0xf0] %vm4654, %v4653
  %s4661 = scalar_lea.vmem %s0, 86
  %v4662 = vld.sshfl [vmem:[%s4661] sm:$0xff pattern:$0x222907e5]
  %s4663 = scalar_lea.vmem %s0, 123
  %s4664 = smov 192
  %v4665 = vld [vmem:[%s4663] ss:$-7 sm:%s4664]
  %vm4666 = vcmask 1047558
  %v4667 = vsel %vm4666, %v4665, %v4662
  %4668 = vrot.lane.b32.xlu0 %v4667, 82
  %v4669 = vpop.permute.xlu0 %4668
  %vm4670 = vcmask 15360
  %s4671 = scalar_lea.vmem %s1, 4273
  %4672 = vst.msk [vmem:[%s4671] ss:$450 sm:$0x3] %vm4670, %v4669
  %s4673 = scalar_lea.vmem %s1, 5073
  %4674 = vst.msk [vmem:[%s4673] ss:$-350 sm:$0xc] %vm4670, %v4669
  %s4675 = scalar_lea.vmem %s1, 5873
  %4676 = vst.msk [vmem:[%s4675] ss:$-350 sm:$0xf0] %vm4670, %v4669
  %s4677 = scalar_lea.vmem %s0, 90
  %v4678 = vld.sshfl [vmem:[%s4677] sm:$0xff pattern:$0x7ec]
  %4679 = vrot.lane.b32.xlu0 %v4678, 82
  %v4680 = vpop.permute.xlu0 %4679
  %vm4681 = vcmask 15360
  %s4682 = scalar_lea.vmem %s1, 4823
  %4683 = vst.msk [vmem:[%s4682] ss:$100 sm:$0x3] %vm4681, %v4680
  %s4684 = scalar_lea.vmem %s1, 5273
  %4685 = vst.msk [vmem:[%s4684] ss:$-350 sm:$0xc] %vm4681, %v4680
  %s4686 = scalar_lea.vmem %s0, 1
  %v4687 = vld.sshfl [vmem:[%s4686] sm:$0xff pattern:$0x2907e5c3]
  %4688 = vrot.lane.b32.xlu0 %v4687, 80
  %v4689 = vpop.permute.xlu0 %4688
  %vm4690 = vcmask 15360
  %s4691 = scalar_lea.vmem %s1, 224
  %4692 = vst.msk [vmem:[%s4691] ss:$450 sm:$0x3] %vm4690, %v4689
  %s4693 = scalar_lea.vmem %s1, 4294966720
  %4694 = vst.msk [vmem:[%s4693] ss:$450 sm:$0xc] %vm4690, %v4689
  %s4695 = scalar_lea.vmem %s1, 1824
  %4696 = vst.msk [vmem:[%s4695] ss:$-350 sm:$0x30] %vm4690, %v4689
  %s4697 = scalar_lea.vmem %s1, 2624
  %4698 = vst.msk [vmem:[%s4697] ss:$-350 sm:$0xc0] %vm4690, %v4689
  %s4699 = scalar_lea.vmem %s0, 17
  %v4700 = vld.sshfl [vmem:[%s4699] sm:$0xff pattern:$0x2907e5c3]
  %4701 = vrot.lane.b32.xlu0 %v4700, 80
  %v4702 = vpop.permute.xlu0 %4701
  %vm4703 = vcmask 15360
  %s4704 = scalar_lea.vmem %s1, 1024
  %4705 = vst.msk [vmem:[%s4704] ss:$450 sm:$0x3] %vm4703, %v4702
  %s4706 = scalar_lea.vmem %s1, 224
  %4707 = vst.msk [vmem:[%s4706] ss:$450 sm:$0xc] %vm4703, %v4702
  %s4708 = scalar_lea.vmem %s1, 2624
  %4709 = vst.msk [vmem:[%s4708] ss:$-350 sm:$0x30] %vm4703, %v4702
  %s4710 = scalar_lea.vmem %s1, 3424
  %4711 = vst.msk [vmem:[%s4710] ss:$-350 sm:$0xc0] %vm4703, %v4702
  %s4712 = scalar_lea.vmem %s0, 33
  %v4713 = vld.sshfl [vmem:[%s4712] sm:$0xff pattern:$0x2907e5c3]
  %4714 = vrot.lane.b32.xlu0 %v4713, 80
  %v4715 = vpop.permute.xlu0 %4714
  %vm4716 = vcmask 15360
  %s4717 = scalar_lea.vmem %s1, 1824
  %4718 = vst.msk [vmem:[%s4717] ss:$450 sm:$0x3] %vm4716, %v4715
  %s4719 = scalar_lea.vmem %s1, 1024
  %4720 = vst.msk [vmem:[%s4719] ss:$450 sm:$0xc] %vm4716, %v4715
  %s4721 = scalar_lea.vmem %s1, 3424
  %4722 = vst.msk [vmem:[%s4721] ss:$-350 sm:$0x30] %vm4716, %v4715
  %s4723 = scalar_lea.vmem %s1, 4224
  %4724 = vst.msk [vmem:[%s4723] ss:$-350 sm:$0xc0] %vm4716, %v4715
  %s4725 = scalar_lea.vmem %s0, 58
  %v4726 = vld.sshfl [vmem:[%s4725] sm:$0xff pattern:$0x4444b290]
  %s4727 = scalar_lea.vmem %s0, 49
  %v4728 = vld.sshfl [vmem:[%s4727] sm:$0xff pattern:$0x8f000000]
  %vm4729 = vcmask 1047557
  %v4730 = vsel %vm4729, %v4728, %v4726
  %4731 = vrot.lane.b32.xlu0 %v4730, 80
  %v4732 = vpop.permute.xlu0 %4731
  %vm4733 = vcmask 15360
  %s4734 = scalar_lea.vmem %s1, 2624
  %4735 = vst.msk [vmem:[%s4734] ss:$450 sm:$0x3] %vm4733, %v4732
  %s4736 = scalar_lea.vmem %s1, 1824
  %4737 = vst.msk [vmem:[%s4736] ss:$450 sm:$0xc] %vm4733, %v4732
  %s4738 = scalar_lea.vmem %s1, 4224
  %4739 = vst.msk [vmem:[%s4738] ss:$-350 sm:$0x30] %vm4733, %v4732
  %s4740 = scalar_lea.vmem %s1, 5024
  %4741 = vst.msk [vmem:[%s4740] ss:$-350 sm:$0xc0] %vm4733, %v4732
  %s4742 = scalar_lea.vmem %s0, 71
  %v4743 = vld.sshfl [vmem:[%s4742] sm:$0xff pattern:$0x2907e5c3]
  %4744 = vrot.lane.b32.xlu0 %v4743, 80
  %v4745 = vpop.permute.xlu0 %4744
  %vm4746 = vcmask 15360
  %s4747 = scalar_lea.vmem %s1, 3424
  %4748 = vst.msk [vmem:[%s4747] ss:$450 sm:$0x3] %vm4746, %v4745
  %s4749 = scalar_lea.vmem %s1, 2624
  %4750 = vst.msk [vmem:[%s4749] ss:$450 sm:$0xc] %vm4746, %v4745
  %s4751 = scalar_lea.vmem %s1, 5024
  %4752 = vst.msk [vmem:[%s4751] ss:$-350 sm:$0x30] %vm4746, %v4745
  %s4753 = scalar_lea.vmem %s1, 5824
  %4754 = vst.msk [vmem:[%s4753] ss:$-350 sm:$0xc0] %vm4746, %v4745
  %s4755 = scalar_lea.vmem %s0, 87
  %v4756 = vld.sshfl [vmem:[%s4755] sm:$0xff pattern:$0x2907e5c3]
  %4757 = vrot.lane.b32.xlu0 %v4756, 80
  %v4758 = vpop.permute.xlu0 %4757
  %vm4759 = vcmask 15360
  %s4760 = scalar_lea.vmem %s1, 4224
  %4761 = vst.msk [vmem:[%s4760] ss:$450 sm:$0x3] %vm4759, %v4758
  %s4762 = scalar_lea.vmem %s1, 3424
  %4763 = vst.msk [vmem:[%s4762] ss:$450 sm:$0xc] %vm4759, %v4758
  %s4764 = scalar_lea.vmem %s1, 5824
  %4765 = vst.msk [vmem:[%s4764] ss:$-350 sm:$0x30] %vm4759, %v4758
  %s4766 = scalar_lea.vmem %s1, 6624
  %4767 = vst.msk [vmem:[%s4766] ss:$-350 sm:$0xc0] %vm4759, %v4758
  %s4768 = scalar_lea.vmem %s0, 103
  %s4769 = smov 3
  %v4770 = vld [vmem:[%s4768] ss:$2 sm:%s4769]
  %v4771 = vld.sshfl [vmem:[%s0] sm:$0xff pattern:$0x907e5ccc]
  %vm4772 = vcmask 1047554
  %v4773 = vsel %vm4772, %v4771, %v4770
  %4774 = vrot.lane.b32.xlu0 %v4773, 80
  %v4775 = vpop.permute.xlu0 %4774
  %vm4776 = vcmask 15360
  %s4777 = scalar_lea.vmem %s1, 4874
  %4778 = vst.msk [vmem:[%s4777] ss:$100 sm:$0x3] %vm4776, %v4775
  %s4779 = scalar_lea.vmem %s1, 1324
  %4780 = vst.msk [vmem:[%s4779] ss:$-350 sm:$0xc] %vm4776, %v4775
  %s4781 = scalar_lea.vmem %s1, 2124
  %4782 = vst.msk [vmem:[%s4781] ss:$-350 sm:$0x70] %vm4776, %v4775
  %s4783 = scalar_lea.vmem %s1, 467
  %4784 = vst.msk [vmem:[%s4783] sm:$0x80] %vm4776, %v4775
  %s4785 = scalar_lea.vmem %s0, 16
  %v4786 = vld.sshfl [vmem:[%s4785] sm:$0xff pattern:$0x99907e5c]
  %s4787 = scalar_lea.vmem %s0, 4294967244
  %s4788 = smov 192
  %v4789 = vld [vmem:[%s4787] ss:$9 sm:%s4788]
  %vm4790 = vcmask 1047558
  %v4791 = vsel %vm4790, %v4789, %v4786
  %4792 = vrot.lane.b32.xlu0 %v4791, 80
  %v4793 = vpop.permute.xlu0 %4792
  %vm4794 = vcmask 15360
  %s4795 = scalar_lea.vmem %s1, 1424
  %4796 = vst.msk [vmem:[%s4795] ss:$-350 sm:$0x3] %vm4794, %v4793
  %s4797 = scalar_lea.vmem %s1, 2224
  %4798 = vst.msk [vmem:[%s4797] ss:$-350 sm:$0x1c] %vm4794, %v4793
  %s4799 = scalar_lea.vmem %s1, 7024
  %4800 = vst.msk [vmem:[%s4799] ss:$-1150 sm:$0x60] %vm4794, %v4793
  %s4801 = scalar_lea.vmem %s1, 567
  %4802 = vst.msk [vmem:[%s4801] sm:$0x80] %vm4794, %v4793
  %s4803 = scalar_lea.vmem %s0, 32
  %v4804 = vld.sshfl [vmem:[%s4803] sm:$0xff pattern:$0x99907e5c]
  %s4805 = scalar_lea.vmem %s0, 4294967260
  %s4806 = smov 192
  %v4807 = vld [vmem:[%s4805] ss:$9 sm:%s4806]
  %vm4808 = vcmask 1047558
  %v4809 = vsel %vm4808, %v4807, %v4804
  %4810 = vrot.lane.b32.xlu0 %v4809, 80
  %v4811 = vpop.permute.xlu0 %4810
  %vm4812 = vcmask 15360
  %s4813 = scalar_lea.vmem %s1, 2224
  %4814 = vst.msk [vmem:[%s4813] ss:$-350 sm:$0x3] %vm4812, %v4811
  %s4815 = scalar_lea.vmem %s1, 3024
  %4816 = vst.msk [vmem:[%s4815] ss:$-350 sm:$0x1c] %vm4812, %v4811
  %s4817 = scalar_lea.vmem %s1, 7824
  %4818 = vst.msk [vmem:[%s4817] ss:$-1150 sm:$0x60] %vm4812, %v4811
  %s4819 = scalar_lea.vmem %s1, 1367
  %4820 = vst.msk [vmem:[%s4819] sm:$0x80] %vm4812, %v4811
  %s4821 = scalar_lea.vmem %s0, 59
  %v4822 = vld.sshfl [vmem:[%s4821] sm:$0xff pattern:$0x22222907]
  %s4823 = scalar_lea.vmem %s0, 4294967284
  %s4824 = smov 48
  %v4825 = vld [vmem:[%s4823] ss:$15 sm:%s4824]
  %vm4826 = vcmask 1045508
  %v4827 = vsel %vm4826, %v4825, %v4822
  %s4828 = scalar_lea.vmem %s0, 4294967276
  %s4829 = smov 192
  %v4830 = vld [vmem:[%s4828] ss:$9 sm:%s4829]
  %vm4831 = vcmask 1047558
  %v4832 = vsel %vm4831, %v4830, %v4827
  %4833 = vrot.lane.b32.xlu0 %v4832, 80
  %v4834 = vpop.permute.xlu0 %4833
  %vm4835 = vcmask 15360
  %s4836 = scalar_lea.vmem %s1, 3024
  %4837 = vst.msk [vmem:[%s4836] ss:$-350 sm:$0x3] %vm4835, %v4834
  %s4838 = scalar_lea.vmem %s1, 3824
  %4839 = vst.msk [vmem:[%s4838] ss:$-350 sm:$0x1c] %vm4835, %v4834
  %s4840 = scalar_lea.vmem %s1, 8624
  %4841 = vst.msk [vmem:[%s4840] ss:$-1150 sm:$0x60] %vm4835, %v4834
  %s4842 = scalar_lea.vmem %s1, 2167
  %4843 = vst.msk [vmem:[%s4842] sm:$0x80] %vm4835, %v4834
  %s4844 = scalar_lea.vmem %s0, 70
  %v4845 = vld.sshfl [vmem:[%s4844] sm:$0xff pattern:$0x99907e5c]
  %s4846 = scalar_lea.vmem %s0, 2
  %s4847 = smov 192
  %v4848 = vld [vmem:[%s4846] ss:$9 sm:%s4847]
  %vm4849 = vcmask 1047558
  %v4850 = vsel %vm4849, %v4848, %v4845
  %4851 = vrot.lane.b32.xlu0 %v4850, 80
  %v4852 = vpop.permute.xlu0 %4851
  %vm4853 = vcmask 15360
  %s4854 = scalar_lea.vmem %s1, 3824
  %4855 = vst.msk [vmem:[%s4854] ss:$-350 sm:$0x3] %vm4853, %v4852
  %s4856 = scalar_lea.vmem %s1, 4624
  %4857 = vst.msk [vmem:[%s4856] ss:$-350 sm:$0x1c] %vm4853, %v4852
  %s4858 = scalar_lea.vmem %s1, 9424
  %4859 = vst.msk [vmem:[%s4858] ss:$-1150 sm:$0x60] %vm4853, %v4852
  %s4860 = scalar_lea.vmem %s1, 2967
  %4861 = vst.msk [vmem:[%s4860] sm:$0x80] %vm4853, %v4852
  %s4862 = scalar_lea.vmem %s0, 86
  %v4863 = vld.sshfl [vmem:[%s4862] sm:$0xff pattern:$0x99907e5c]
  %s4864 = scalar_lea.vmem %s0, 18
  %s4865 = smov 192
  %v4866 = vld [vmem:[%s4864] ss:$9 sm:%s4865]
  %vm4867 = vcmask 1047558
  %v4868 = vsel %vm4867, %v4866, %v4863
  %4869 = vrot.lane.b32.xlu0 %v4868, 80
  %v4870 = vpop.permute.xlu0 %4869
  %vm4871 = vcmask 15360
  %s4872 = scalar_lea.vmem %s1, 4624
  %4873 = vst.msk [vmem:[%s4872] ss:$-350 sm:$0x3] %vm4871, %v4870
  %s4874 = scalar_lea.vmem %s1, 5424
  %4875 = vst.msk [vmem:[%s4874] ss:$-350 sm:$0x1c] %vm4871, %v4870
  %s4876 = scalar_lea.vmem %s1, 10224
  %4877 = vst.msk [vmem:[%s4876] ss:$-1150 sm:$0x60] %vm4871, %v4870
  %s4878 = scalar_lea.vmem %s1, 3767
  %4879 = vst.msk [vmem:[%s4878] sm:$0x80] %vm4871, %v4870
  %s4880 = scalar_lea.vmem %s0, 88
  %v4881 = vld.sshfl [vmem:[%s4880] sm:$0xff pattern:$0x9999990e]
  %s4882 = scalar_lea.vmem %s0, 101
  %v4883 = vld [vmem:[%s4882] sm:$0x8]
  %vm4884 = vcmask 1043459
  %v4885 = vsel %vm4884, %v4883, %v4881
  %4886 = vrot.lane.b32.xlu0 %v4885, 80
  %v4887 = vpop.permute.xlu0 %4886
  %vm4888 = vcmask 15360
  %s4889 = scalar_lea.vmem %s1, 4824
  %4890 = vst.msk [vmem:[%s4889] ss:$-700 sm:$0x3] %vm4888, %v4887
  %s4891 = scalar_lea.vmem %s1, 3874
  %4892 = vst.msk [vmem:[%s4891] ss:$350 sm:$0xc] %vm4888, %v4887
  %s4893 = scalar_lea.vmem %s0, 1
  %v4894 = vld.sshfl [vmem:[%s4893] sm:$0xff pattern:$0x2907e5c3]
  %4895 = vrot.lane.b32.xlu0 %v4894, 78
  %v4896 = vpop.permute.xlu0 %4895
  %vm4897 = vcmask 15360
  %s4898 = scalar_lea.vmem %s1, 225
  %4899 = vst.msk [vmem:[%s4898] ss:$450 sm:$0x3] %vm4897, %v4896
  %s4900 = scalar_lea.vmem %s1, 4294966721
  %4901 = vst.msk [vmem:[%s4900] ss:$450 sm:$0xc] %vm4897, %v4896
  %s4902 = scalar_lea.vmem %s1, 1825
  %4903 = vst.msk [vmem:[%s4902] ss:$-350 sm:$0x30] %vm4897, %v4896
  %s4904 = scalar_lea.vmem %s1, 2625
  %4905 = vst.msk [vmem:[%s4904] ss:$-350 sm:$0xc0] %vm4897, %v4896
  %s4906 = scalar_lea.vmem %s0, 17
  %v4907 = vld.sshfl [vmem:[%s4906] sm:$0xff pattern:$0x2907e5c3]
  %4908 = vrot.lane.b32.xlu0 %v4907, 78
  %v4909 = vpop.permute.xlu0 %4908
  %vm4910 = vcmask 15360
  %s4911 = scalar_lea.vmem %s1, 1025
  %4912 = vst.msk [vmem:[%s4911] ss:$450 sm:$0x3] %vm4910, %v4909
  %s4913 = scalar_lea.vmem %s1, 225
  %4914 = vst.msk [vmem:[%s4913] ss:$450 sm:$0xc] %vm4910, %v4909
  %s4915 = scalar_lea.vmem %s1, 2625
  %4916 = vst.msk [vmem:[%s4915] ss:$-350 sm:$0x30] %vm4910, %v4909
  %s4917 = scalar_lea.vmem %s1, 3425
  %4918 = vst.msk [vmem:[%s4917] ss:$-350 sm:$0xc0] %vm4910, %v4909
  %s4919 = scalar_lea.vmem %s0, 33
  %v4920 = vld.sshfl [vmem:[%s4919] sm:$0xff pattern:$0x2907e5c3]
  %4921 = vrot.lane.b32.xlu0 %v4920, 78
  %v4922 = vpop.permute.xlu0 %4921
  %vm4923 = vcmask 15360
  %s4924 = scalar_lea.vmem %s1, 1825
  %4925 = vst.msk [vmem:[%s4924] ss:$450 sm:$0x3] %vm4923, %v4922
  %s4926 = scalar_lea.vmem %s1, 1025
  %4927 = vst.msk [vmem:[%s4926] ss:$450 sm:$0xc] %vm4923, %v4922
  %s4928 = scalar_lea.vmem %s1, 3425
  %4929 = vst.msk [vmem:[%s4928] ss:$-350 sm:$0x30] %vm4923, %v4922
  %s4930 = scalar_lea.vmem %s1, 4225
  %4931 = vst.msk [vmem:[%s4930] ss:$-350 sm:$0xc0] %vm4923, %v4922
  %s4932 = scalar_lea.vmem %s0, 58
  %v4933 = vld.sshfl [vmem:[%s4932] sm:$0xff pattern:$0x4444b290]
  %s4934 = scalar_lea.vmem %s0, 49
  %v4935 = vld.sshfl [vmem:[%s4934] sm:$0xff pattern:$0x8f000000]
  %vm4936 = vcmask 1047557
  %v4937 = vsel %vm4936, %v4935, %v4933
  %4938 = vrot.lane.b32.xlu0 %v4937, 78
  %v4939 = vpop.permute.xlu0 %4938
  %vm4940 = vcmask 15360
  %s4941 = scalar_lea.vmem %s1, 2625
  %4942 = vst.msk [vmem:[%s4941] ss:$450 sm:$0x3] %vm4940, %v4939
  %s4943 = scalar_lea.vmem %s1, 1825
  %4944 = vst.msk [vmem:[%s4943] ss:$450 sm:$0xc] %vm4940, %v4939
  %s4945 = scalar_lea.vmem %s1, 4225
  %4946 = vst.msk [vmem:[%s4945] ss:$-350 sm:$0x30] %vm4940, %v4939
  %s4947 = scalar_lea.vmem %s1, 5025
  %4948 = vst.msk [vmem:[%s4947] ss:$-350 sm:$0xc0] %vm4940, %v4939
  %s4949 = scalar_lea.vmem %s0, 71
  %v4950 = vld.sshfl [vmem:[%s4949] sm:$0xff pattern:$0x2907e5c3]
  %4951 = vrot.lane.b32.xlu0 %v4950, 78
  %v4952 = vpop.permute.xlu0 %4951
  %vm4953 = vcmask 15360
  %s4954 = scalar_lea.vmem %s1, 3425
  %4955 = vst.msk [vmem:[%s4954] ss:$450 sm:$0x3] %vm4953, %v4952
  %s4956 = scalar_lea.vmem %s1, 2625
  %4957 = vst.msk [vmem:[%s4956] ss:$450 sm:$0xc] %vm4953, %v4952
  %s4958 = scalar_lea.vmem %s1, 5025
  %4959 = vst.msk [vmem:[%s4958] ss:$-350 sm:$0x30] %vm4953, %v4952
  %s4960 = scalar_lea.vmem %s1, 5825
  %4961 = vst.msk [vmem:[%s4960] ss:$-350 sm:$0xc0] %vm4953, %v4952
  %s4962 = scalar_lea.vmem %s0, 87
  %v4963 = vld.sshfl [vmem:[%s4962] sm:$0xff pattern:$0x2907e5c3]
  %4964 = vrot.lane.b32.xlu0 %v4963, 78
  %v4965 = vpop.permute.xlu0 %4964
  %vm4966 = vcmask 15360
  %s4967 = scalar_lea.vmem %s1, 4225
  %4968 = vst.msk [vmem:[%s4967] ss:$450 sm:$0x3] %vm4966, %v4965
  %s4969 = scalar_lea.vmem %s1, 3425
  %4970 = vst.msk [vmem:[%s4969] ss:$450 sm:$0xc] %vm4966, %v4965
  %s4971 = scalar_lea.vmem %s1, 5825
  %4972 = vst.msk [vmem:[%s4971] ss:$-350 sm:$0x30] %vm4966, %v4965
  %s4973 = scalar_lea.vmem %s1, 6625
  %4974 = vst.msk [vmem:[%s4973] ss:$-350 sm:$0xc0] %vm4966, %v4965
  %s4975 = scalar_lea.vmem %s0, 103
  %s4976 = smov 3
  %v4977 = vld [vmem:[%s4975] ss:$2 sm:%s4976]
  %v4978 = vld.sshfl [vmem:[%s0] sm:$0xff pattern:$0x907e5ccc]
  %vm4979 = vcmask 1047554
  %v4980 = vsel %vm4979, %v4978, %v4977
  %4981 = vrot.lane.b32.xlu0 %v4980, 78
  %v4982 = vpop.permute.xlu0 %4981
  %vm4983 = vcmask 15360
  %s4984 = scalar_lea.vmem %s1, 4875
  %4985 = vst.msk [vmem:[%s4984] ss:$100 sm:$0x3] %vm4983, %v4982
  %s4986 = scalar_lea.vmem %s1, 1325
  %4987 = vst.msk [vmem:[%s4986] ss:$-350 sm:$0xc] %vm4983, %v4982
  %s4988 = scalar_lea.vmem %s1, 2125
  %4989 = vst.msk [vmem:[%s4988] ss:$-350 sm:$0x70] %vm4983, %v4982
  %s4990 = scalar_lea.vmem %s1, 468
  %4991 = vst.msk [vmem:[%s4990] sm:$0x80] %vm4983, %v4982
  %s4992 = scalar_lea.vmem %s0, 16
  %v4993 = vld.sshfl [vmem:[%s4992] sm:$0xff pattern:$0x99907e5c]
  %s4994 = scalar_lea.vmem %s0, 4294967244
  %s4995 = smov 192
  %v4996 = vld [vmem:[%s4994] ss:$9 sm:%s4995]
  %vm4997 = vcmask 1047558
  %v4998 = vsel %vm4997, %v4996, %v4993
  %4999 = vrot.lane.b32.xlu0 %v4998, 78
  %v5000 = vpop.permute.xlu0 %4999
  %vm5001 = vcmask 15360
  %s5002 = scalar_lea.vmem %s1, 1425
  %5003 = vst.msk [vmem:[%s5002] ss:$-350 sm:$0x3] %vm5001, %v5000
  %s5004 = scalar_lea.vmem %s1, 2225
  %5005 = vst.msk [vmem:[%s5004] ss:$-350 sm:$0x1c] %vm5001, %v5000
  %s5006 = scalar_lea.vmem %s1, 7025
  %5007 = vst.msk [vmem:[%s5006] ss:$-1150 sm:$0x60] %vm5001, %v5000
  %s5008 = scalar_lea.vmem %s1, 568
  %5009 = vst.msk [vmem:[%s5008] sm:$0x80] %vm5001, %v5000
  %s5010 = scalar_lea.vmem %s0, 32
  %v5011 = vld.sshfl [vmem:[%s5010] sm:$0xff pattern:$0x99907e5c]
  %s5012 = scalar_lea.vmem %s0, 4294967260
  %s5013 = smov 192
  %v5014 = vld [vmem:[%s5012] ss:$9 sm:%s5013]
  %vm5015 = vcmask 1047558
  %v5016 = vsel %vm5015, %v5014, %v5011
  %5017 = vrot.lane.b32.xlu0 %v5016, 78
  %v5018 = vpop.permute.xlu0 %5017
  %vm5019 = vcmask 15360
  %s5020 = scalar_lea.vmem %s1, 2225
  %5021 = vst.msk [vmem:[%s5020] ss:$-350 sm:$0x3] %vm5019, %v5018
  %s5022 = scalar_lea.vmem %s1, 3025
  %5023 = vst.msk [vmem:[%s5022] ss:$-350 sm:$0x1c] %vm5019, %v5018
  %s5024 = scalar_lea.vmem %s1, 7825
  %5025 = vst.msk [vmem:[%s5024] ss:$-1150 sm:$0x60] %vm5019, %v5018
  %s5026 = scalar_lea.vmem %s1, 1368
  %5027 = vst.msk [vmem:[%s5026] sm:$0x80] %vm5019, %v5018
  %s5028 = scalar_lea.vmem %s0, 59
  %v5029 = vld.sshfl [vmem:[%s5028] sm:$0xff pattern:$0x22222907]
  %s5030 = scalar_lea.vmem %s0, 4294967284
  %s5031 = smov 48
  %v5032 = vld [vmem:[%s5030] ss:$15 sm:%s5031]
  %vm5033 = vcmask 1045508
  %v5034 = vsel %vm5033, %v5032, %v5029
  %s5035 = scalar_lea.vmem %s0, 4294967276
  %s5036 = smov 192
  %v5037 = vld [vmem:[%s5035] ss:$9 sm:%s5036]
  %vm5038 = vcmask 1047558
  %v5039 = vsel %vm5038, %v5037, %v5034
  %5040 = vrot.lane.b32.xlu0 %v5039, 78
  %v5041 = vpop.permute.xlu0 %5040
  %vm5042 = vcmask 15360
  %s5043 = scalar_lea.vmem %s1, 3025
  %5044 = vst.msk [vmem:[%s5043] ss:$-350 sm:$0x3] %vm5042, %v5041
  %s5045 = scalar_lea.vmem %s1, 3825
  %5046 = vst.msk [vmem:[%s5045] ss:$-350 sm:$0x1c] %vm5042, %v5041
  %s5047 = scalar_lea.vmem %s1, 8625
  %5048 = vst.msk [vmem:[%s5047] ss:$-1150 sm:$0x60] %vm5042, %v5041
  %s5049 = scalar_lea.vmem %s1, 2168
  %5050 = vst.msk [vmem:[%s5049] sm:$0x80] %vm5042, %v5041
  %s5051 = scalar_lea.vmem %s0, 70
  %v5052 = vld.sshfl [vmem:[%s5051] sm:$0xff pattern:$0x99907e5c]
  %s5053 = scalar_lea.vmem %s0, 2
  %s5054 = smov 192
  %v5055 = vld [vmem:[%s5053] ss:$9 sm:%s5054]
  %vm5056 = vcmask 1047558
  %v5057 = vsel %vm5056, %v5055, %v5052
  %5058 = vrot.lane.b32.xlu0 %v5057, 78
  %v5059 = vpop.permute.xlu0 %5058
  %vm5060 = vcmask 15360
  %s5061 = scalar_lea.vmem %s1, 3825
  %5062 = vst.msk [vmem:[%s5061] ss:$-350 sm:$0x3] %vm5060, %v5059
  %s5063 = scalar_lea.vmem %s1, 4625
  %5064 = vst.msk [vmem:[%s5063] ss:$-350 sm:$0x1c] %vm5060, %v5059
  %s5065 = scalar_lea.vmem %s1, 9425
  %5066 = vst.msk [vmem:[%s5065] ss:$-1150 sm:$0x60] %vm5060, %v5059
  %s5067 = scalar_lea.vmem %s1, 2968
  %5068 = vst.msk [vmem:[%s5067] sm:$0x80] %vm5060, %v5059
  %s5069 = scalar_lea.vmem %s0, 86
  %v5070 = vld.sshfl [vmem:[%s5069] sm:$0xff pattern:$0x99907e5c]
  %s5071 = scalar_lea.vmem %s0, 18
  %s5072 = smov 192
  %v5073 = vld [vmem:[%s5071] ss:$9 sm:%s5072]
  %vm5074 = vcmask 1047558
  %v5075 = vsel %vm5074, %v5073, %v5070
  %5076 = vrot.lane.b32.xlu0 %v5075, 78
  %v5077 = vpop.permute.xlu0 %5076
  %vm5078 = vcmask 15360
  %s5079 = scalar_lea.vmem %s1, 4625
  %5080 = vst.msk [vmem:[%s5079] ss:$-350 sm:$0x3] %vm5078, %v5077
  %s5081 = scalar_lea.vmem %s1, 5425
  %5082 = vst.msk [vmem:[%s5081] ss:$-350 sm:$0x1c] %vm5078, %v5077
  %s5083 = scalar_lea.vmem %s1, 10225
  %5084 = vst.msk [vmem:[%s5083] ss:$-1150 sm:$0x60] %vm5078, %v5077
  %s5085 = scalar_lea.vmem %s1, 3768
  %5086 = vst.msk [vmem:[%s5085] sm:$0x80] %vm5078, %v5077
  %s5087 = scalar_lea.vmem %s0, 88
  %v5088 = vld.sshfl [vmem:[%s5087] sm:$0xff pattern:$0x9999990e]
  %s5089 = scalar_lea.vmem %s0, 101
  %v5090 = vld [vmem:[%s5089] sm:$0x8]
  %vm5091 = vcmask 1043459
  %v5092 = vsel %vm5091, %v5090, %v5088
  %5093 = vrot.lane.b32.xlu0 %v5092, 78
  %v5094 = vpop.permute.xlu0 %5093
  %vm5095 = vcmask 15360
  %s5096 = scalar_lea.vmem %s1, 4825
  %5097 = vst.msk [vmem:[%s5096] ss:$-700 sm:$0x3] %vm5095, %v5094
  %s5098 = scalar_lea.vmem %s1, 3875
  %5099 = vst.msk [vmem:[%s5098] ss:$350 sm:$0xc] %vm5095, %v5094
  %s5100 = scalar_lea.vmem %s0, 1
  %v5101 = vld.sshfl [vmem:[%s5100] sm:$0xff pattern:$0x907e5c3a]
  %5102 = vrot.lane.b32.xlu0 %v5101, 76
  %v5103 = vpop.permute.xlu0 %5102
  %vm5104 = vcmask 15360
  %s5105 = scalar_lea.vmem %s1, 576
  %5106 = vst.msk [vmem:[%s5105] ss:$-350 sm:$0x3] %vm5104, %v5103
  %s5107 = scalar_lea.vmem %s1, 1376
  %5108 = vst.msk [vmem:[%s5107] ss:$-350 sm:$0xc] %vm5104, %v5103
  %s5109 = scalar_lea.vmem %s1, 2176
  %5110 = vst.msk [vmem:[%s5109] ss:$-350 sm:$0x70] %vm5104, %v5103
  %s5111 = scalar_lea.vmem %s1, 519
  %5112 = vst.msk [vmem:[%s5111] sm:$0x80] %vm5104, %v5103
  %s5113 = scalar_lea.vmem %s0, 17
  %v5114 = vld.sshfl [vmem:[%s5113] sm:$0xff pattern:$0x907e5c3a]
  %5115 = vrot.lane.b32.xlu0 %v5114, 76
  %v5116 = vpop.permute.xlu0 %5115
  %vm5117 = vcmask 15360
  %s5118 = scalar_lea.vmem %s1, 1376
  %5119 = vst.msk [vmem:[%s5118] ss:$-350 sm:$0x3] %vm5117, %v5116
  %s5120 = scalar_lea.vmem %s1, 2176
  %5121 = vst.msk [vmem:[%s5120] ss:$-350 sm:$0xc] %vm5117, %v5116
  %s5122 = scalar_lea.vmem %s1, 2976
  %5123 = vst.msk [vmem:[%s5122] ss:$-350 sm:$0x70] %vm5117, %v5116
  %s5124 = scalar_lea.vmem %s1, 1319
  %5125 = vst.msk [vmem:[%s5124] sm:$0x80] %vm5117, %v5116
  %s5126 = scalar_lea.vmem %s0, 33
  %v5127 = vld.sshfl [vmem:[%s5126] sm:$0xff pattern:$0x907e5c3a]
  %5128 = vrot.lane.b32.xlu0 %v5127, 76
  %v5129 = vpop.permute.xlu0 %5128
  %vm5130 = vcmask 15360
  %s5131 = scalar_lea.vmem %s1, 2176
  %5132 = vst.msk [vmem:[%s5131] ss:$-350 sm:$0x3] %vm5130, %v5129
  %s5133 = scalar_lea.vmem %s1, 2976
  %5134 = vst.msk [vmem:[%s5133] ss:$-350 sm:$0xc] %vm5130, %v5129
  %s5135 = scalar_lea.vmem %s1, 3776
  %5136 = vst.msk [vmem:[%s5135] ss:$-350 sm:$0x70] %vm5130, %v5129
  %s5137 = scalar_lea.vmem %s1, 2119
  %5138 = vst.msk [vmem:[%s5137] sm:$0x80] %vm5130, %v5129
  %s5139 = scalar_lea.vmem %s0, 58
  %v5140 = vld.sshfl [vmem:[%s5139] sm:$0xff pattern:$0x444b2907]
  %s5141 = scalar_lea.vmem %s0, 4294967255
  %s5142 = smov 192
  %v5143 = vld [vmem:[%s5141] ss:$15 sm:%s5142]
  %vm5144 = vcmask 1047558
  %v5145 = vsel %vm5144, %v5143, %v5140
  %5146 = vrot.lane.b32.xlu0 %v5145, 76
  %v5147 = vpop.permute.xlu0 %5146
  %vm5148 = vcmask 15360
  %s5149 = scalar_lea.vmem %s1, 2976
  %5150 = vst.msk [vmem:[%s5149] ss:$-350 sm:$0x3] %vm5148, %v5147
  %s5151 = scalar_lea.vmem %s1, 3776
  %5152 = vst.msk [vmem:[%s5151] ss:$-350 sm:$0xc] %vm5148, %v5147
  %s5153 = scalar_lea.vmem %s1, 4576
  %5154 = vst.msk [vmem:[%s5153] ss:$-350 sm:$0x70] %vm5148, %v5147
  %s5155 = scalar_lea.vmem %s1, 2919
  %5156 = vst.msk [vmem:[%s5155] sm:$0x80] %vm5148, %v5147
  %s5157 = scalar_lea.vmem %s0, 71
  %v5158 = vld.sshfl [vmem:[%s5157] sm:$0xff pattern:$0x907e5c3a]
  %5159 = vrot.lane.b32.xlu0 %v5158, 76
  %v5160 = vpop.permute.xlu0 %5159
  %vm5161 = vcmask 15360
  %s5162 = scalar_lea.vmem %s1, 3776
  %5163 = vst.msk [vmem:[%s5162] ss:$-350 sm:$0x3] %vm5161, %v5160
  %s5164 = scalar_lea.vmem %s1, 4576
  %5165 = vst.msk [vmem:[%s5164] ss:$-350 sm:$0xc] %vm5161, %v5160
  %s5166 = scalar_lea.vmem %s1, 5376
  %5167 = vst.msk [vmem:[%s5166] ss:$-350 sm:$0x70] %vm5161, %v5160
  %s5168 = scalar_lea.vmem %s1, 3719
  %5169 = vst.msk [vmem:[%s5168] sm:$0x80] %vm5161, %v5160
  %s5170 = scalar_lea.vmem %s0, 87
  %v5171 = vld.sshfl [vmem:[%s5170] sm:$0xff pattern:$0x907e5c3a]
  %5172 = vrot.lane.b32.xlu0 %v5171, 76
  %v5173 = vpop.permute.xlu0 %5172
  %vm5174 = vcmask 15360
  %s5175 = scalar_lea.vmem %s1, 4576
  %5176 = vst.msk [vmem:[%s5175] ss:$-350 sm:$0x3] %vm5174, %v5173
  %s5177 = scalar_lea.vmem %s1, 5376
  %5178 = vst.msk [vmem:[%s5177] ss:$-350 sm:$0xc] %vm5174, %v5173
  %s5179 = scalar_lea.vmem %s1, 6176
  %5180 = vst.msk [vmem:[%s5179] ss:$-350 sm:$0x70] %vm5174, %v5173
  %s5181 = scalar_lea.vmem %s1, 4519
  %5182 = vst.msk [vmem:[%s5181] sm:$0x80] %vm5174, %v5173
  %s5183 = scalar_lea.vmem %s0, 103
  %s5184 = smov 3
  %v5185 = vld [vmem:[%s5183] ss:$-100 sm:%s5184]
  %v5186 = vld.sshfl [vmem:[%s0] sm:$0xff pattern:$0x907e5ccc]
  %vm5187 = vcmask 1047554
  %v5188 = vsel %vm5187, %v5186, %v5185
  %5189 = vrot.lane.b32.xlu0 %v5188, 76
  %v5190 = vpop.permute.xlu0 %5189
  %vm5191 = vcmask 15360
  %s5192 = scalar_lea.vmem %s1, 4876
  %5193 = vst.msk [vmem:[%s5192] ss:$-4700 sm:$0x3] %vm5191, %v5190
  %s5194 = scalar_lea.vmem %s1, 1326
  %5195 = vst.msk [vmem:[%s5194] ss:$-350 sm:$0xc] %vm5191, %v5190
  %s5196 = scalar_lea.vmem %s1, 2126
  %5197 = vst.msk [vmem:[%s5196] ss:$-350 sm:$0x70] %vm5191, %v5190
  %s5198 = scalar_lea.vmem %s1, 469
  %5199 = vst.msk [vmem:[%s5198] sm:$0x80] %vm5191, %v5190
  %s5200 = scalar_lea.vmem %s0, 16
  %v5201 = vld.sshfl [vmem:[%s5200] sm:$0xff pattern:$0x9907e5c3]
  %s5202 = scalar_lea.vmem %s0, 4294967291
  %v5203 = vld [vmem:[%s5202] sm:$0x80]
  %vm5204 = vcmask 1047559
  %v5205 = vsel %vm5204, %v5203, %v5201
  %5206 = vrot.lane.b32.xlu0 %v5205, 76
  %v5207 = vpop.permute.xlu0 %5206
  %vm5208 = vcmask 15360
  %s5209 = scalar_lea.vmem %s1, 976
  %5210 = vst.msk [vmem:[%s5209] ss:$450 sm:$0x3] %vm5208, %v5207
  %s5211 = scalar_lea.vmem %s1, 176
  %5212 = vst.msk [vmem:[%s5211] ss:$450 sm:$0xc] %vm5208, %v5207
  %s5213 = scalar_lea.vmem %s1, 2576
  %5214 = vst.msk [vmem:[%s5213] ss:$-350 sm:$0x30] %vm5208, %v5207
  %s5215 = scalar_lea.vmem %s1, 8176
  %5216 = vst.msk [vmem:[%s5215] ss:$-1150 sm:$0xc0] %vm5208, %v5207
  %s5217 = scalar_lea.vmem %s0, 32
  %v5218 = vld.sshfl [vmem:[%s5217] sm:$0xff pattern:$0x9907e5c3]
  %s5219 = scalar_lea.vmem %s0, 11
  %v5220 = vld [vmem:[%s5219] sm:$0x80]
  %vm5221 = vcmask 1047559
  %v5222 = vsel %vm5221, %v5220, %v5218
  %5223 = vrot.lane.b32.xlu0 %v5222, 76
  %v5224 = vpop.permute.xlu0 %5223
  %vm5225 = vcmask 15360
  %s5226 = scalar_lea.vmem %s1, 1776
  %5227 = vst.msk [vmem:[%s5226] ss:$450 sm:$0x3] %vm5225, %v5224
  %s5228 = scalar_lea.vmem %s1, 976
  %5229 = vst.msk [vmem:[%s5228] ss:$450 sm:$0xc] %vm5225, %v5224
  %s5230 = scalar_lea.vmem %s1, 3376
  %5231 = vst.msk [vmem:[%s5230] ss:$-350 sm:$0x30] %vm5225, %v5224
  %s5232 = scalar_lea.vmem %s1, 8976
  %5233 = vst.msk [vmem:[%s5232] ss:$-1150 sm:$0xc0] %vm5225, %v5224
  %s5234 = scalar_lea.vmem %s0, 57
  %v5235 = vld.sshfl [vmem:[%s5234] sm:$0xff pattern:$0x4444b290]
  %s5236 = scalar_lea.vmem %s0, 4294967269
  %s5237 = smov 96
  %v5238 = vld [vmem:[%s5236] ss:$15 sm:%s5237]
  %vm5239 = vcmask 1046533
  %v5240 = vsel %vm5239, %v5238, %v5235
  %s5241 = scalar_lea.vmem %s0, 27
  %v5242 = vld [vmem:[%s5241] sm:$0x80]
  %vm5243 = vcmask 1047559
  %v5244 = vsel %vm5243, %v5242, %v5240
  %5245 = vrot.lane.b32.xlu0 %v5244, 76
  %v5246 = vpop.permute.xlu0 %5245
  %vm5247 = vcmask 15360
  %s5248 = scalar_lea.vmem %s1, 2576
  %5249 = vst.msk [vmem:[%s5248] ss:$450 sm:$0x3] %vm5247, %v5246
  %s5250 = scalar_lea.vmem %s1, 1776
  %5251 = vst.msk [vmem:[%s5250] ss:$450 sm:$0xc] %vm5247, %v5246
  %s5252 = scalar_lea.vmem %s1, 4176
  %5253 = vst.msk [vmem:[%s5252] ss:$-350 sm:$0x30] %vm5247, %v5246
  %s5254 = scalar_lea.vmem %s1, 9776
  %5255 = vst.msk [vmem:[%s5254] ss:$-1150 sm:$0xc0] %vm5247, %v5246
  %s5256 = scalar_lea.vmem %s0, 70
  %v5257 = vld.sshfl [vmem:[%s5256] sm:$0xff pattern:$0x9907e5c3]
  %s5258 = scalar_lea.vmem %s0, 49
  %v5259 = vld [vmem:[%s5258] sm:$0x80]
  %vm5260 = vcmask 1047559
  %v5261 = vsel %vm5260, %v5259, %v5257
  %5262 = vrot.lane.b32.xlu0 %v5261, 76
  %v5263 = vpop.permute.xlu0 %5262
  %vm5264 = vcmask 15360
  %s5265 = scalar_lea.vmem %s1, 3376
  %5266 = vst.msk [vmem:[%s5265] ss:$450 sm:$0x3] %vm5264, %v5263
  %s5267 = scalar_lea.vmem %s1, 2576
  %5268 = vst.msk [vmem:[%s5267] ss:$450 sm:$0xc] %vm5264, %v5263
  %s5269 = scalar_lea.vmem %s1, 4976
  %5270 = vst.msk [vmem:[%s5269] ss:$-350 sm:$0x30] %vm5264, %v5263
  %s5271 = scalar_lea.vmem %s1, 10576
  %5272 = vst.msk [vmem:[%s5271] ss:$-1150 sm:$0xc0] %vm5264, %v5263
  %s5273 = scalar_lea.vmem %s0, 86
  %v5274 = vld.sshfl [vmem:[%s5273] sm:$0xff pattern:$0x9907e5c3]
  %s5275 = scalar_lea.vmem %s0, 65
  %v5276 = vld [vmem:[%s5275] sm:$0x80]
  %vm5277 = vcmask 1047559
  %v5278 = vsel %vm5277, %v5276, %v5274
  %5279 = vrot.lane.b32.xlu0 %v5278, 76
  %v5280 = vpop.permute.xlu0 %5279
  %vm5281 = vcmask 15360
  %s5282 = scalar_lea.vmem %s1, 4176
  %5283 = vst.msk [vmem:[%s5282] ss:$450 sm:$0x3] %vm5281, %v5280
  %s5284 = scalar_lea.vmem %s1, 3376
  %5285 = vst.msk [vmem:[%s5284] ss:$450 sm:$0xc] %vm5281, %v5280
  %s5286 = scalar_lea.vmem %s1, 5776
  %5287 = vst.msk [vmem:[%s5286] ss:$-350 sm:$0x30] %vm5281, %v5280
  %s5288 = scalar_lea.vmem %s1, 11376
  %5289 = vst.msk [vmem:[%s5288] ss:$-1150 sm:$0xc0] %vm5281, %v5280
  %s5290 = scalar_lea.vmem %s0, 105
  %s5291 = smov 3
  %v5292 = vld [vmem:[%s5290] ss:$-3 sm:%s5291]
  %s5293 = scalar_lea.vmem %s0, 56
  %s5294 = smov 12
  %v5295 = vld [vmem:[%s5293] ss:$16 sm:%s5294]
  %vm5296 = vcmask 1043458
  %v5297 = vsel %vm5296, %v5295, %v5292
  %5298 = vrot.lane.b32.xlu0 %v5297, 76
  %v5299 = vpop.permute.xlu0 %5298
  %vm5300 = vcmask 15360
  %s5301 = scalar_lea.vmem %s1, 4976
  %5302 = vst.msk [vmem:[%s5301] ss:$-150 sm:$0x3] %vm5300, %v5299
  %s5303 = scalar_lea.vmem %s1, 4124
  %5304 = vst.msk [vmem:[%s5303] sm:$0x4] %vm5300, %v5299
  %s5305 = scalar_lea.vmem %s1, 4923
  %5306 = vst.msk [vmem:[%s5305] sm:$0x8] %vm5300, %v5299
  %s5307 = scalar_lea.vmem %s0, 1
  %v5308 = vld.sshfl [vmem:[%s5307] sm:$0xff pattern:$0x907e5c3a]
  %5309 = vrot.lane.b32.xlu0 %v5308, 74
  %v5310 = vpop.permute.xlu0 %5309
  %vm5311 = vcmask 15360
  %s5312 = scalar_lea.vmem %s1, 577
  %5313 = vst.msk [vmem:[%s5312] ss:$-350 sm:$0x3] %vm5311, %v5310
  %s5314 = scalar_lea.vmem %s1, 1377
  %5315 = vst.msk [vmem:[%s5314] ss:$-350 sm:$0xc] %vm5311, %v5310
  %s5316 = scalar_lea.vmem %s1, 2177
  %5317 = vst.msk [vmem:[%s5316] ss:$-350 sm:$0x70] %vm5311, %v5310
  %s5318 = scalar_lea.vmem %s1, 520
  %5319 = vst.msk [vmem:[%s5318] sm:$0x80] %vm5311, %v5310
  %s5320 = scalar_lea.vmem %s0, 17
  %v5321 = vld.sshfl [vmem:[%s5320] sm:$0xff pattern:$0x907e5c3a]
  %5322 = vrot.lane.b32.xlu0 %v5321, 74
  %v5323 = vpop.permute.xlu0 %5322
  %vm5324 = vcmask 15360
  %s5325 = scalar_lea.vmem %s1, 1377
  %5326 = vst.msk [vmem:[%s5325] ss:$-350 sm:$0x3] %vm5324, %v5323
  %s5327 = scalar_lea.vmem %s1, 2177
  %5328 = vst.msk [vmem:[%s5327] ss:$-350 sm:$0xc] %vm5324, %v5323
  %s5329 = scalar_lea.vmem %s1, 2977
  %5330 = vst.msk [vmem:[%s5329] ss:$-350 sm:$0x70] %vm5324, %v5323
  %s5331 = scalar_lea.vmem %s1, 1320
  %5332 = vst.msk [vmem:[%s5331] sm:$0x80] %vm5324, %v5323
  %s5333 = scalar_lea.vmem %s0, 33
  %v5334 = vld.sshfl [vmem:[%s5333] sm:$0xff pattern:$0x907e5c3a]
  %5335 = vrot.lane.b32.xlu0 %v5334, 74
  %v5336 = vpop.permute.xlu0 %5335
  %vm5337 = vcmask 15360
  %s5338 = scalar_lea.vmem %s1, 2177
  %5339 = vst.msk [vmem:[%s5338] ss:$-350 sm:$0x3] %vm5337, %v5336
  %s5340 = scalar_lea.vmem %s1, 2977
  %5341 = vst.msk [vmem:[%s5340] ss:$-350 sm:$0xc] %vm5337, %v5336
  %s5342 = scalar_lea.vmem %s1, 3777
  %5343 = vst.msk [vmem:[%s5342] ss:$-350 sm:$0x70] %vm5337, %v5336
  %s5344 = scalar_lea.vmem %s1, 2120
  %5345 = vst.msk [vmem:[%s5344] sm:$0x80] %vm5337, %v5336
  %s5346 = scalar_lea.vmem %s0, 58
  %v5347 = vld.sshfl [vmem:[%s5346] sm:$0xff pattern:$0x444b2907]
  %s5348 = scalar_lea.vmem %s0, 4294967255
  %s5349 = smov 192
  %v5350 = vld [vmem:[%s5348] ss:$15 sm:%s5349]
  %vm5351 = vcmask 1047558
  %v5352 = vsel %vm5351, %v5350, %v5347
  %5353 = vrot.lane.b32.xlu0 %v5352, 74
  %v5354 = vpop.permute.xlu0 %5353
  %vm5355 = vcmask 15360
  %s5356 = scalar_lea.vmem %s1, 2977
  %5357 = vst.msk [vmem:[%s5356] ss:$-350 sm:$0x3] %vm5355, %v5354
  %s5358 = scalar_lea.vmem %s1, 3777
  %5359 = vst.msk [vmem:[%s5358] ss:$-350 sm:$0xc] %vm5355, %v5354
  %s5360 = scalar_lea.vmem %s1, 4577
  %5361 = vst.msk [vmem:[%s5360] ss:$-350 sm:$0x70] %vm5355, %v5354
  %s5362 = scalar_lea.vmem %s1, 2920
  %5363 = vst.msk [vmem:[%s5362] sm:$0x80] %vm5355, %v5354
  %s5364 = scalar_lea.vmem %s0, 71
  %v5365 = vld.sshfl [vmem:[%s5364] sm:$0xff pattern:$0x907e5c3a]
  %5366 = vrot.lane.b32.xlu0 %v5365, 74
  %v5367 = vpop.permute.xlu0 %5366
  %vm5368 = vcmask 15360
  %s5369 = scalar_lea.vmem %s1, 3777
  %5370 = vst.msk [vmem:[%s5369] ss:$-350 sm:$0x3] %vm5368, %v5367
  %s5371 = scalar_lea.vmem %s1, 4577
  %5372 = vst.msk [vmem:[%s5371] ss:$-350 sm:$0xc] %vm5368, %v5367
  %s5373 = scalar_lea.vmem %s1, 5377
  %5374 = vst.msk [vmem:[%s5373] ss:$-350 sm:$0x70] %vm5368, %v5367
  %s5375 = scalar_lea.vmem %s1, 3720
  %5376 = vst.msk [vmem:[%s5375] sm:$0x80] %vm5368, %v5367
  %s5377 = scalar_lea.vmem %s0, 87
  %v5378 = vld.sshfl [vmem:[%s5377] sm:$0xff pattern:$0x907e5c3a]
  %5379 = vrot.lane.b32.xlu0 %v5378, 74
  %v5380 = vpop.permute.xlu0 %5379
  %vm5381 = vcmask 15360
  %s5382 = scalar_lea.vmem %s1, 4577
  %5383 = vst.msk [vmem:[%s5382] ss:$-350 sm:$0x3] %vm5381, %v5380
  %s5384 = scalar_lea.vmem %s1, 5377
  %5385 = vst.msk [vmem:[%s5384] ss:$-350 sm:$0xc] %vm5381, %v5380
  %s5386 = scalar_lea.vmem %s1, 6177
  %5387 = vst.msk [vmem:[%s5386] ss:$-350 sm:$0x70] %vm5381, %v5380
  %s5388 = scalar_lea.vmem %s1, 4520
  %5389 = vst.msk [vmem:[%s5388] sm:$0x80] %vm5381, %v5380
  %s5390 = scalar_lea.vmem %s0, 103
  %s5391 = smov 3
  %v5392 = vld [vmem:[%s5390] ss:$-100 sm:%s5391]
  %v5393 = vld.sshfl [vmem:[%s0] sm:$0xff pattern:$0x907e5ccc]
  %vm5394 = vcmask 1047554
  %v5395 = vsel %vm5394, %v5393, %v5392
  %5396 = vrot.lane.b32.xlu0 %v5395, 74
  %v5397 = vpop.permute.xlu0 %5396
  %vm5398 = vcmask 15360
  %s5399 = scalar_lea.vmem %s1, 4877
  %5400 = vst.msk [vmem:[%s5399] ss:$-4700 sm:$0x3] %vm5398, %v5397
  %s5401 = scalar_lea.vmem %s1, 1327
  %5402 = vst.msk [vmem:[%s5401] ss:$-350 sm:$0xc] %vm5398, %v5397
  %s5403 = scalar_lea.vmem %s1, 2127
  %5404 = vst.msk [vmem:[%s5403] ss:$-350 sm:$0x70] %vm5398, %v5397
  %s5405 = scalar_lea.vmem %s1, 470
  %5406 = vst.msk [vmem:[%s5405] sm:$0x80] %vm5398, %v5397
  %s5407 = scalar_lea.vmem %s0, 16
  %v5408 = vld.sshfl [vmem:[%s5407] sm:$0xff pattern:$0x9907e5c3]
  %s5409 = scalar_lea.vmem %s0, 4294967291
  %v5410 = vld [vmem:[%s5409] sm:$0x80]
  %vm5411 = vcmask 1047559
  %v5412 = vsel %vm5411, %v5410, %v5408
  %5413 = vrot.lane.b32.xlu0 %v5412, 74
  %v5414 = vpop.permute.xlu0 %5413
  %vm5415 = vcmask 15360
  %s5416 = scalar_lea.vmem %s1, 977
  %5417 = vst.msk [vmem:[%s5416] ss:$450 sm:$0x3] %vm5415, %v5414
  %s5418 = scalar_lea.vmem %s1, 177
  %5419 = vst.msk [vmem:[%s5418] ss:$450 sm:$0xc] %vm5415, %v5414
  %s5420 = scalar_lea.vmem %s1, 2577
  %5421 = vst.msk [vmem:[%s5420] ss:$-350 sm:$0x30] %vm5415, %v5414
  %s5422 = scalar_lea.vmem %s1, 8177
  %5423 = vst.msk [vmem:[%s5422] ss:$-1150 sm:$0xc0] %vm5415, %v5414
  %s5424 = scalar_lea.vmem %s0, 32
  %v5425 = vld.sshfl [vmem:[%s5424] sm:$0xff pattern:$0x9907e5c3]
  %s5426 = scalar_lea.vmem %s0, 11
  %v5427 = vld [vmem:[%s5426] sm:$0x80]
  %vm5428 = vcmask 1047559
  %v5429 = vsel %vm5428, %v5427, %v5425
  %5430 = vrot.lane.b32.xlu0 %v5429, 74
  %v5431 = vpop.permute.xlu0 %5430
  %vm5432 = vcmask 15360
  %s5433 = scalar_lea.vmem %s1, 1777
  %5434 = vst.msk [vmem:[%s5433] ss:$450 sm:$0x3] %vm5432, %v5431
  %s5435 = scalar_lea.vmem %s1, 977
  %5436 = vst.msk [vmem:[%s5435] ss:$450 sm:$0xc] %vm5432, %v5431
  %s5437 = scalar_lea.vmem %s1, 3377
  %5438 = vst.msk [vmem:[%s5437] ss:$-350 sm:$0x30] %vm5432, %v5431
  %s5439 = scalar_lea.vmem %s1, 8977
  %5440 = vst.msk [vmem:[%s5439] ss:$-1150 sm:$0xc0] %vm5432, %v5431
  %s5441 = scalar_lea.vmem %s0, 57
  %v5442 = vld.sshfl [vmem:[%s5441] sm:$0xff pattern:$0x4444b290]
  %s5443 = scalar_lea.vmem %s0, 4294967269
  %s5444 = smov 96
  %v5445 = vld [vmem:[%s5443] ss:$15 sm:%s5444]
  %vm5446 = vcmask 1046533
  %v5447 = vsel %vm5446, %v5445, %v5442
  %s5448 = scalar_lea.vmem %s0, 27
  %v5449 = vld [vmem:[%s5448] sm:$0x80]
  %vm5450 = vcmask 1047559
  %v5451 = vsel %vm5450, %v5449, %v5447
  %5452 = vrot.lane.b32.xlu0 %v5451, 74
  %v5453 = vpop.permute.xlu0 %5452
  %vm5454 = vcmask 15360
  %s5455 = scalar_lea.vmem %s1, 2577
  %5456 = vst.msk [vmem:[%s5455] ss:$450 sm:$0x3] %vm5454, %v5453
  %s5457 = scalar_lea.vmem %s1, 1777
  %5458 = vst.msk [vmem:[%s5457] ss:$450 sm:$0xc] %vm5454, %v5453
  %s5459 = scalar_lea.vmem %s1, 4177
  %5460 = vst.msk [vmem:[%s5459] ss:$-350 sm:$0x30] %vm5454, %v5453
  %s5461 = scalar_lea.vmem %s1, 9777
  %5462 = vst.msk [vmem:[%s5461] ss:$-1150 sm:$0xc0] %vm5454, %v5453
  %s5463 = scalar_lea.vmem %s0, 70
  %v5464 = vld.sshfl [vmem:[%s5463] sm:$0xff pattern:$0x9907e5c3]
  %s5465 = scalar_lea.vmem %s0, 49
  %v5466 = vld [vmem:[%s5465] sm:$0x80]
  %vm5467 = vcmask 1047559
  %v5468 = vsel %vm5467, %v5466, %v5464
  %5469 = vrot.lane.b32.xlu0 %v5468, 74
  %v5470 = vpop.permute.xlu0 %5469
  %vm5471 = vcmask 15360
  %s5472 = scalar_lea.vmem %s1, 3377
  %5473 = vst.msk [vmem:[%s5472] ss:$450 sm:$0x3] %vm5471, %v5470
  %s5474 = scalar_lea.vmem %s1, 2577
  %5475 = vst.msk [vmem:[%s5474] ss:$450 sm:$0xc] %vm5471, %v5470
  %s5476 = scalar_lea.vmem %s1, 4977
  %5477 = vst.msk [vmem:[%s5476] ss:$-350 sm:$0x30] %vm5471, %v5470
  %s5478 = scalar_lea.vmem %s1, 10577
  %5479 = vst.msk [vmem:[%s5478] ss:$-1150 sm:$0xc0] %vm5471, %v5470
  %s5480 = scalar_lea.vmem %s0, 86
  %v5481 = vld.sshfl [vmem:[%s5480] sm:$0xff pattern:$0x9907e5c3]
  %s5482 = scalar_lea.vmem %s0, 65
  %v5483 = vld [vmem:[%s5482] sm:$0x80]
  %vm5484 = vcmask 1047559
  %v5485 = vsel %vm5484, %v5483, %v5481
  %5486 = vrot.lane.b32.xlu0 %v5485, 74
  %v5487 = vpop.permute.xlu0 %5486
  %vm5488 = vcmask 15360
  %s5489 = scalar_lea.vmem %s1, 4177
  %5490 = vst.msk [vmem:[%s5489] ss:$450 sm:$0x3] %vm5488, %v5487
  %s5491 = scalar_lea.vmem %s1, 3377
  %5492 = vst.msk [vmem:[%s5491] ss:$450 sm:$0xc] %vm5488, %v5487
  %s5493 = scalar_lea.vmem %s1, 5777
  %5494 = vst.msk [vmem:[%s5493] ss:$-350 sm:$0x30] %vm5488, %v5487
  %s5495 = scalar_lea.vmem %s1, 11377
  %5496 = vst.msk [vmem:[%s5495] ss:$-1150 sm:$0xc0] %vm5488, %v5487
  %s5497 = scalar_lea.vmem %s0, 105
  %s5498 = smov 3
  %v5499 = vld [vmem:[%s5497] ss:$-3 sm:%s5498]
  %s5500 = scalar_lea.vmem %s0, 56
  %s5501 = smov 12
  %v5502 = vld [vmem:[%s5500] ss:$16 sm:%s5501]
  %vm5503 = vcmask 1043458
  %v5504 = vsel %vm5503, %v5502, %v5499
  %5505 = vrot.lane.b32.xlu0 %v5504, 74
  %v5506 = vpop.permute.xlu0 %5505
  %vm5507 = vcmask 15360
  %s5508 = scalar_lea.vmem %s1, 4977
  %5509 = vst.msk [vmem:[%s5508] ss:$-150 sm:$0x3] %vm5507, %v5506
  %s5510 = scalar_lea.vmem %s1, 4125
  %5511 = vst.msk [vmem:[%s5510] sm:$0x4] %vm5507, %v5506
  %s5512 = scalar_lea.vmem %s1, 4924
  %5513 = vst.msk [vmem:[%s5512] sm:$0x8] %vm5507, %v5506
  %s5514 = scalar_lea.vmem %s0, 1
  %v5515 = vld.sshfl [vmem:[%s5514] sm:$0xff pattern:$0x7e5c3a1]
  %5516 = vrot.lane.b32.xlu0 %v5515, 72
  %v5517 = vpop.permute.xlu0 %5516
  %vm5518 = vcmask 15360
  %s5519 = scalar_lea.vmem %s1, 128
  %5520 = vst.msk [vmem:[%s5519] ss:$450 sm:$0x3] %vm5518, %v5517
  %s5521 = scalar_lea.vmem %s1, 4294966624
  %5522 = vst.msk [vmem:[%s5521] ss:$450 sm:$0xc] %vm5518, %v5517
  %s5523 = scalar_lea.vmem %s1, 4294965824
  %5524 = vst.msk [vmem:[%s5523] ss:$450 sm:$0x30] %vm5518, %v5517
  %s5525 = scalar_lea.vmem %s1, 2528
  %5526 = vst.msk [vmem:[%s5525] ss:$-350 sm:$0xc0] %vm5518, %v5517
  %s5527 = scalar_lea.vmem %s0, 17
  %v5528 = vld.sshfl [vmem:[%s5527] sm:$0xff pattern:$0x7e5c3a1]
  %5529 = vrot.lane.b32.xlu0 %v5528, 72
  %v5530 = vpop.permute.xlu0 %5529
  %vm5531 = vcmask 15360
  %s5532 = scalar_lea.vmem %s1, 928
  %5533 = vst.msk [vmem:[%s5532] ss:$450 sm:$0x3] %vm5531, %v5530
  %s5534 = scalar_lea.vmem %s1, 128
  %5535 = vst.msk [vmem:[%s5534] ss:$450 sm:$0xc] %vm5531, %v5530
  %s5536 = scalar_lea.vmem %s1, 4294966624
  %5537 = vst.msk [vmem:[%s5536] ss:$450 sm:$0x30] %vm5531, %v5530
  %s5538 = scalar_lea.vmem %s1, 3328
  %5539 = vst.msk [vmem:[%s5538] ss:$-350 sm:$0xc0] %vm5531, %v5530
  %s5540 = scalar_lea.vmem %s0, 33
  %v5541 = vld.sshfl [vmem:[%s5540] sm:$0xff pattern:$0x7e5c3a1]
  %5542 = vrot.lane.b32.xlu0 %v5541, 72
  %v5543 = vpop.permute.xlu0 %5542
  %vm5544 = vcmask 15360
  %s5545 = scalar_lea.vmem %s1, 1728
  %5546 = vst.msk [vmem:[%s5545] ss:$450 sm:$0x3] %vm5544, %v5543
  %s5547 = scalar_lea.vmem %s1, 928
  %5548 = vst.msk [vmem:[%s5547] ss:$450 sm:$0xc] %vm5544, %v5543
  %s5549 = scalar_lea.vmem %s1, 128
  %5550 = vst.msk [vmem:[%s5549] ss:$450 sm:$0x30] %vm5544, %v5543
  %s5551 = scalar_lea.vmem %s1, 4128
  %5552 = vst.msk [vmem:[%s5551] ss:$-350 sm:$0xc0] %vm5544, %v5543
  %s5553 = scalar_lea.vmem %s0, 56
  %v5554 = vld.sshfl [vmem:[%s5553] sm:$0xff pattern:$0x66d4b290]
  %s5555 = scalar_lea.vmem %s0, 42
  %v5556 = vld [vmem:[%s5555] sm:$0x80]
  %vm5557 = vcmask 1047559
  %v5558 = vsel %vm5557, %v5556, %v5554
  %5559 = vrot.lane.b32.xlu0 %v5558, 72
  %v5560 = vpop.permute.xlu0 %5559
  %vm5561 = vcmask 15360
  %s5562 = scalar_lea.vmem %s1, 2528
  %5563 = vst.msk [vmem:[%s5562] ss:$450 sm:$0x3] %vm5561, %v5560
  %s5564 = scalar_lea.vmem %s1, 1728
  %5565 = vst.msk [vmem:[%s5564] ss:$450 sm:$0xc] %vm5561, %v5560
  %s5566 = scalar_lea.vmem %s1, 928
  %5567 = vst.msk [vmem:[%s5566] ss:$450 sm:$0x30] %vm5561, %v5560
  %s5568 = scalar_lea.vmem %s1, 4928
  %5569 = vst.msk [vmem:[%s5568] ss:$-350 sm:$0xc0] %vm5561, %v5560
  %s5570 = scalar_lea.vmem %s0, 71
  %v5571 = vld.sshfl [vmem:[%s5570] sm:$0xff pattern:$0x7e5c3a1]
  %5572 = vrot.lane.b32.xlu0 %v5571, 72
  %v5573 = vpop.permute.xlu0 %5572
  %vm5574 = vcmask 15360
  %s5575 = scalar_lea.vmem %s1, 3328
  %5576 = vst.msk [vmem:[%s5575] ss:$450 sm:$0x3] %vm5574, %v5573
  %s5577 = scalar_lea.vmem %s1, 2528
  %5578 = vst.msk [vmem:[%s5577] ss:$450 sm:$0xc] %vm5574, %v5573
  %s5579 = scalar_lea.vmem %s1, 1728
  %5580 = vst.msk [vmem:[%s5579] ss:$450 sm:$0x30] %vm5574, %v5573
  %s5581 = scalar_lea.vmem %s1, 5728
  %5582 = vst.msk [vmem:[%s5581] ss:$-350 sm:$0xc0] %vm5574, %v5573
  %s5583 = scalar_lea.vmem %s0, 87
  %v5584 = vld.sshfl [vmem:[%s5583] sm:$0xff pattern:$0x7e5c3a1]
  %5585 = vrot.lane.b32.xlu0 %v5584, 72
  %v5586 = vpop.permute.xlu0 %5585
  %vm5587 = vcmask 15360
  %s5588 = scalar_lea.vmem %s1, 4128
  %5589 = vst.msk [vmem:[%s5588] ss:$450 sm:$0x3] %vm5587, %v5586
  %s5590 = scalar_lea.vmem %s1, 3328
  %5591 = vst.msk [vmem:[%s5590] ss:$450 sm:$0xc] %vm5587, %v5586
  %s5592 = scalar_lea.vmem %s1, 2528
  %5593 = vst.msk [vmem:[%s5592] ss:$450 sm:$0x30] %vm5587, %v5586
  %s5594 = scalar_lea.vmem %s1, 6528
  %5595 = vst.msk [vmem:[%s5594] ss:$-350 sm:$0xc0] %vm5587, %v5586
  %s5596 = scalar_lea.vmem %s0, 104
  %s5597 = smov 3
  %v5598 = vld [vmem:[%s5596] ss:$-1 sm:%s5597]
  %s5599 = scalar_lea.vmem %s0, 3
  %v5600 = vld.sshfl [vmem:[%s5599] sm:$0xff pattern:$0x4b290777]
  %vm5601 = vcmask 1047554
  %v5602 = vsel %vm5601, %v5600, %v5598
  %5603 = vrot.lane.b32.xlu0 %v5602, 72
  %v5604 = vpop.permute.xlu0 %5603
  %vm5605 = vcmask 15360
  %s5606 = scalar_lea.vmem %s1, 4928
  %5607 = vst.msk [vmem:[%s5606] ss:$-50 sm:$0x3] %vm5605, %v5604
  %s5608 = scalar_lea.vmem %s1, 1228
  %5609 = vst.msk [vmem:[%s5608] ss:$-350 sm:$0xc] %vm5605, %v5604
  %s5610 = scalar_lea.vmem %s1, 2028
  %5611 = vst.msk [vmem:[%s5610] ss:$-350 sm:$0x30] %vm5605, %v5604
  %s5612 = scalar_lea.vmem %s1, 2828
  %5613 = vst.msk [vmem:[%s5612] ss:$-350 sm:$0xc0] %vm5605, %v5604
  %s5614 = scalar_lea.vmem %s0, 19
  %v5615 = vld.sshfl [vmem:[%s5614] sm:$0xff pattern:$0x444b2907]
  %s5616 = scalar_lea.vmem %s0, 4294967242
  %s5617 = smov 192
  %v5618 = vld [vmem:[%s5616] ss:$9 sm:%s5617]
  %vm5619 = vcmask 1047558
  %v5620 = vsel %vm5619, %v5618, %v5615
  %5621 = vrot.lane.b32.xlu0 %v5620, 72
  %v5622 = vpop.permute.xlu0 %5621
  %vm5623 = vcmask 15360
  %s5624 = scalar_lea.vmem %s1, 1328
  %5625 = vst.msk [vmem:[%s5624] ss:$-350 sm:$0x3] %vm5623, %v5622
  %s5626 = scalar_lea.vmem %s1, 2128
  %5627 = vst.msk [vmem:[%s5626] ss:$-350 sm:$0xc] %vm5623, %v5622
  %s5628 = scalar_lea.vmem %s1, 2928
  %5629 = vst.msk [vmem:[%s5628] ss:$-350 sm:$0x30] %vm5623, %v5622
  %s5630 = scalar_lea.vmem %s1, 4294964624
  %5631 = vst.msk [vmem:[%s5630] ss:$450 sm:$0xc0] %vm5623, %v5622
  %s5632 = scalar_lea.vmem %s0, 35
  %v5633 = vld.sshfl [vmem:[%s5632] sm:$0xff pattern:$0x444b2907]
  %s5634 = scalar_lea.vmem %s0, 4294967258
  %s5635 = smov 192
  %v5636 = vld [vmem:[%s5634] ss:$9 sm:%s5635]
  %vm5637 = vcmask 1047558
  %v5638 = vsel %vm5637, %v5636, %v5633
  %5639 = vrot.lane.b32.xlu0 %v5638, 72
  %v5640 = vpop.permute.xlu0 %5639
  %vm5641 = vcmask 15360
  %s5642 = scalar_lea.vmem %s1, 2128
  %5643 = vst.msk [vmem:[%s5642] ss:$-350 sm:$0x3] %vm5641, %v5640
  %s5644 = scalar_lea.vmem %s1, 2928
  %5645 = vst.msk [vmem:[%s5644] ss:$-350 sm:$0xc] %vm5641, %v5640
  %s5646 = scalar_lea.vmem %s1, 3728
  %5647 = vst.msk [vmem:[%s5646] ss:$-350 sm:$0x30] %vm5641, %v5640
  %s5648 = scalar_lea.vmem %s1, 4294965424
  %5649 = vst.msk [vmem:[%s5648] ss:$450 sm:$0xc0] %vm5641, %v5640
  %s5650 = scalar_lea.vmem %s0, 57
  %v5651 = vld.sshfl [vmem:[%s5650] sm:$0xff pattern:$0x444b2907]
  %s5652 = scalar_lea.vmem %s0, 4294967274
  %s5653 = smov 192
  %v5654 = vld [vmem:[%s5652] ss:$9 sm:%s5653]
  %vm5655 = vcmask 1047558
  %v5656 = vsel %vm5655, %v5654, %v5651
  %5657 = vrot.lane.b32.xlu0 %v5656, 72
  %v5658 = vpop.permute.xlu0 %5657
  %vm5659 = vcmask 15360
  %s5660 = scalar_lea.vmem %s1, 2928
  %5661 = vst.msk [vmem:[%s5660] ss:$-350 sm:$0x3] %vm5659, %v5658
  %s5662 = scalar_lea.vmem %s1, 3728
  %5663 = vst.msk [vmem:[%s5662] ss:$-350 sm:$0xc] %vm5659, %v5658
  %s5664 = scalar_lea.vmem %s1, 4528
  %5665 = vst.msk [vmem:[%s5664] ss:$-350 sm:$0x30] %vm5659, %v5658
  %s5666 = scalar_lea.vmem %s1, 4294966224
  %5667 = vst.msk [vmem:[%s5666] ss:$450 sm:$0xc0] %vm5659, %v5658
  %s5668 = scalar_lea.vmem %s0, 73
  %v5669 = vld.sshfl [vmem:[%s5668] sm:$0xff pattern:$0x444b2907]
  %s5670 = scalar_lea.vmem %s0, 4294967254
  %s5671 = smov 192
  %v5672 = vld [vmem:[%s5670] ss:$15 sm:%s5671]
  %vm5673 = vcmask 1047558
  %v5674 = vsel %vm5673, %v5672, %v5669
  %5675 = vrot.lane.b32.xlu0 %v5674, 72
  %v5676 = vpop.permute.xlu0 %5675
  %vm5677 = vcmask 15360
  %s5678 = scalar_lea.vmem %s1, 3728
  %5679 = vst.msk [vmem:[%s5678] ss:$-350 sm:$0x3] %vm5677, %v5676
  %s5680 = scalar_lea.vmem %s1, 4528
  %5681 = vst.msk [vmem:[%s5680] ss:$-350 sm:$0xc] %vm5677, %v5676
  %s5682 = scalar_lea.vmem %s1, 5328
  %5683 = vst.msk [vmem:[%s5682] ss:$-350 sm:$0x30] %vm5677, %v5676
  %s5684 = scalar_lea.vmem %s1, 4294967024
  %5685 = vst.msk [vmem:[%s5684] ss:$450 sm:$0xc0] %vm5677, %v5676
  %s5686 = scalar_lea.vmem %s0, 89
  %v5687 = vld.sshfl [vmem:[%s5686] sm:$0xff pattern:$0x444b2907]
  %s5688 = scalar_lea.vmem %s0, 16
  %s5689 = smov 192
  %v5690 = vld [vmem:[%s5688] ss:$9 sm:%s5689]
  %vm5691 = vcmask 1047558
  %v5692 = vsel %vm5691, %v5690, %v5687
  %5693 = vrot.lane.b32.xlu0 %v5692, 72
  %v5694 = vpop.permute.xlu0 %5693
  %vm5695 = vcmask 15360
  %s5696 = scalar_lea.vmem %s1, 4528
  %5697 = vst.msk [vmem:[%s5696] ss:$-350 sm:$0x3] %vm5695, %v5694
  %s5698 = scalar_lea.vmem %s1, 5328
  %5699 = vst.msk [vmem:[%s5698] ss:$-350 sm:$0xc] %vm5695, %v5694
  %s5700 = scalar_lea.vmem %s1, 6128
  %5701 = vst.msk [vmem:[%s5700] ss:$-350 sm:$0x30] %vm5695, %v5694
  %s5702 = scalar_lea.vmem %s1, 528
  %5703 = vst.msk [vmem:[%s5702] ss:$450 sm:$0xc0] %vm5695, %v5694
  %s5704 = scalar_lea.vmem %s0, 105
  %s5705 = smov 3
  %v5706 = vld [vmem:[%s5704] ss:$-19 sm:%s5705]
  %s5707 = scalar_lea.vmem %s0, 81
  %s5708 = smov 12
  %v5709 = vld [vmem:[%s5707] ss:$7 sm:%s5708]
  %vm5710 = vcmask 1043458
  %v5711 = vsel %vm5710, %v5709, %v5706
  %5712 = vrot.lane.b32.xlu0 %v5711, 72
  %v5713 = vpop.permute.xlu0 %5712
  %vm5714 = vcmask 15360
  %s5715 = scalar_lea.vmem %s1, 4978
  %5716 = vst.msk [vmem:[%s5715] ss:$-950 sm:$0x3] %vm5714, %v5713
  %s5717 = scalar_lea.vmem %s1, 3778
  %5718 = vst.msk [vmem:[%s5717] ss:$350 sm:$0xc] %vm5714, %v5713
  %s5719 = scalar_lea.vmem %s0, 1
  %v5720 = vld.sshfl [vmem:[%s5719] sm:$0xff pattern:$0x7e5c3a1]
  %5721 = vrot.lane.b32.xlu0 %v5720, 70
  %v5722 = vpop.permute.xlu0 %5721
  %vm5723 = vcmask 15360
  %s5724 = scalar_lea.vmem %s1, 129
  %5725 = vst.msk [vmem:[%s5724] ss:$450 sm:$0x3] %vm5723, %v5722
  %s5726 = scalar_lea.vmem %s1, 4294966625
  %5727 = vst.msk [vmem:[%s5726] ss:$450 sm:$0xc] %vm5723, %v5722
  %s5728 = scalar_lea.vmem %s1, 4294965825
  %5729 = vst.msk [vmem:[%s5728] ss:$450 sm:$0x30] %vm5723, %v5722
  %s5730 = scalar_lea.vmem %s1, 2529
  %5731 = vst.msk [vmem:[%s5730] ss:$-350 sm:$0xc0] %vm5723, %v5722
  %s5732 = scalar_lea.vmem %s0, 17
  %v5733 = vld.sshfl [vmem:[%s5732] sm:$0xff pattern:$0x7e5c3a1]
  %5734 = vrot.lane.b32.xlu0 %v5733, 70
  %v5735 = vpop.permute.xlu0 %5734
  %vm5736 = vcmask 15360
  %s5737 = scalar_lea.vmem %s1, 929
  %5738 = vst.msk [vmem:[%s5737] ss:$450 sm:$0x3] %vm5736, %v5735
  %s5739 = scalar_lea.vmem %s1, 129
  %5740 = vst.msk [vmem:[%s5739] ss:$450 sm:$0xc] %vm5736, %v5735
  %s5741 = scalar_lea.vmem %s1, 4294966625
  %5742 = vst.msk [vmem:[%s5741] ss:$450 sm:$0x30] %vm5736, %v5735
  %s5743 = scalar_lea.vmem %s1, 3329
  %5744 = vst.msk [vmem:[%s5743] ss:$-350 sm:$0xc0] %vm5736, %v5735
  %s5745 = scalar_lea.vmem %s0, 33
  %v5746 = vld.sshfl [vmem:[%s5745] sm:$0xff pattern:$0x7e5c3a1]
  %5747 = vrot.lane.b32.xlu0 %v5746, 70
  %v5748 = vpop.permute.xlu0 %5747
  %vm5749 = vcmask 15360
  %s5750 = scalar_lea.vmem %s1, 1729
  %5751 = vst.msk [vmem:[%s5750] ss:$450 sm:$0x3] %vm5749, %v5748
  %s5752 = scalar_lea.vmem %s1, 929
  %5753 = vst.msk [vmem:[%s5752] ss:$450 sm:$0xc] %vm5749, %v5748
  %s5754 = scalar_lea.vmem %s1, 129
  %5755 = vst.msk [vmem:[%s5754] ss:$450 sm:$0x30] %vm5749, %v5748
  %s5756 = scalar_lea.vmem %s1, 4129
  %5757 = vst.msk [vmem:[%s5756] ss:$-350 sm:$0xc0] %vm5749, %v5748
  %s5758 = scalar_lea.vmem %s0, 56
  %v5759 = vld.sshfl [vmem:[%s5758] sm:$0xff pattern:$0x66d4b290]
  %s5760 = scalar_lea.vmem %s0, 42
  %v5761 = vld [vmem:[%s5760] sm:$0x80]
  %vm5762 = vcmask 1047559
  %v5763 = vsel %vm5762, %v5761, %v5759
  %5764 = vrot.lane.b32.xlu0 %v5763, 70
  %v5765 = vpop.permute.xlu0 %5764
  %vm5766 = vcmask 15360
  %s5767 = scalar_lea.vmem %s1, 2529
  %5768 = vst.msk [vmem:[%s5767] ss:$450 sm:$0x3] %vm5766, %v5765
  %s5769 = scalar_lea.vmem %s1, 1729
  %5770 = vst.msk [vmem:[%s5769] ss:$450 sm:$0xc] %vm5766, %v5765
  %s5771 = scalar_lea.vmem %s1, 929
  %5772 = vst.msk [vmem:[%s5771] ss:$450 sm:$0x30] %vm5766, %v5765
  %s5773 = scalar_lea.vmem %s1, 4929
  %5774 = vst.msk [vmem:[%s5773] ss:$-350 sm:$0xc0] %vm5766, %v5765
  %s5775 = scalar_lea.vmem %s0, 71
  %v5776 = vld.sshfl [vmem:[%s5775] sm:$0xff pattern:$0x7e5c3a1]
  %5777 = vrot.lane.b32.xlu0 %v5776, 70
  %v5778 = vpop.permute.xlu0 %5777
  %vm5779 = vcmask 15360
  %s5780 = scalar_lea.vmem %s1, 3329
  %5781 = vst.msk [vmem:[%s5780] ss:$450 sm:$0x3] %vm5779, %v5778
  %s5782 = scalar_lea.vmem %s1, 2529
  %5783 = vst.msk [vmem:[%s5782] ss:$450 sm:$0xc] %vm5779, %v5778
  %s5784 = scalar_lea.vmem %s1, 1729
  %5785 = vst.msk [vmem:[%s5784] ss:$450 sm:$0x30] %vm5779, %v5778
  %s5786 = scalar_lea.vmem %s1, 5729
  %5787 = vst.msk [vmem:[%s5786] ss:$-350 sm:$0xc0] %vm5779, %v5778
  %s5788 = scalar_lea.vmem %s0, 87
  %v5789 = vld.sshfl [vmem:[%s5788] sm:$0xff pattern:$0x7e5c3a1]
  %5790 = vrot.lane.b32.xlu0 %v5789, 70
  %v5791 = vpop.permute.xlu0 %5790
  %vm5792 = vcmask 15360
  %s5793 = scalar_lea.vmem %s1, 4129
  %5794 = vst.msk [vmem:[%s5793] ss:$450 sm:$0x3] %vm5792, %v5791
  %s5795 = scalar_lea.vmem %s1, 3329
  %5796 = vst.msk [vmem:[%s5795] ss:$450 sm:$0xc] %vm5792, %v5791
  %s5797 = scalar_lea.vmem %s1, 2529
  %5798 = vst.msk [vmem:[%s5797] ss:$450 sm:$0x30] %vm5792, %v5791
  %s5799 = scalar_lea.vmem %s1, 6529
  %5800 = vst.msk [vmem:[%s5799] ss:$-350 sm:$0xc0] %vm5792, %v5791
  %s5801 = scalar_lea.vmem %s0, 104
  %s5802 = smov 3
  %v5803 = vld [vmem:[%s5801] ss:$-1 sm:%s5802]
  %s5804 = scalar_lea.vmem %s0, 3
  %v5805 = vld.sshfl [vmem:[%s5804] sm:$0xff pattern:$0x4b290777]
  %vm5806 = vcmask 1047554
  %v5807 = vsel %vm5806, %v5805, %v5803
  %5808 = vrot.lane.b32.xlu0 %v5807, 70
  %v5809 = vpop.permute.xlu0 %5808
  %vm5810 = vcmask 15360
  %s5811 = scalar_lea.vmem %s1, 4929
  %5812 = vst.msk [vmem:[%s5811] ss:$-50 sm:$0x3] %vm5810, %v5809
  %s5813 = scalar_lea.vmem %s1, 1229
  %5814 = vst.msk [vmem:[%s5813] ss:$-350 sm:$0xc] %vm5810, %v5809
  %s5815 = scalar_lea.vmem %s1, 2029
  %5816 = vst.msk [vmem:[%s5815] ss:$-350 sm:$0x30] %vm5810, %v5809
  %s5817 = scalar_lea.vmem %s1, 2829
  %5818 = vst.msk [vmem:[%s5817] ss:$-350 sm:$0xc0] %vm5810, %v5809
  %s5819 = scalar_lea.vmem %s0, 19
  %v5820 = vld.sshfl [vmem:[%s5819] sm:$0xff pattern:$0x444b2907]
  %s5821 = scalar_lea.vmem %s0, 4294967242
  %s5822 = smov 192
  %v5823 = vld [vmem:[%s5821] ss:$9 sm:%s5822]
  %vm5824 = vcmask 1047558
  %v5825 = vsel %vm5824, %v5823, %v5820
  %5826 = vrot.lane.b32.xlu0 %v5825, 70
  %v5827 = vpop.permute.xlu0 %5826
  %vm5828 = vcmask 15360
  %s5829 = scalar_lea.vmem %s1, 1329
  %5830 = vst.msk [vmem:[%s5829] ss:$-350 sm:$0x3] %vm5828, %v5827
  %s5831 = scalar_lea.vmem %s1, 2129
  %5832 = vst.msk [vmem:[%s5831] ss:$-350 sm:$0xc] %vm5828, %v5827
  %s5833 = scalar_lea.vmem %s1, 2929
  %5834 = vst.msk [vmem:[%s5833] ss:$-350 sm:$0x30] %vm5828, %v5827
  %s5835 = scalar_lea.vmem %s1, 4294964625
  %5836 = vst.msk [vmem:[%s5835] ss:$450 sm:$0xc0] %vm5828, %v5827
  %s5837 = scalar_lea.vmem %s0, 35
  %v5838 = vld.sshfl [vmem:[%s5837] sm:$0xff pattern:$0x444b2907]
  %s5839 = scalar_lea.vmem %s0, 4294967258
  %s5840 = smov 192
  %v5841 = vld [vmem:[%s5839] ss:$9 sm:%s5840]
  %vm5842 = vcmask 1047558
  %v5843 = vsel %vm5842, %v5841, %v5838
  %5844 = vrot.lane.b32.xlu0 %v5843, 70
  %v5845 = vpop.permute.xlu0 %5844
  %vm5846 = vcmask 15360
  %s5847 = scalar_lea.vmem %s1, 2129
  %5848 = vst.msk [vmem:[%s5847] ss:$-350 sm:$0x3] %vm5846, %v5845
  %s5849 = scalar_lea.vmem %s1, 2929
  %5850 = vst.msk [vmem:[%s5849] ss:$-350 sm:$0xc] %vm5846, %v5845
  %s5851 = scalar_lea.vmem %s1, 3729
  %5852 = vst.msk [vmem:[%s5851] ss:$-350 sm:$0x30] %vm5846, %v5845
  %s5853 = scalar_lea.vmem %s1, 4294965425
  %5854 = vst.msk [vmem:[%s5853] ss:$450 sm:$0xc0] %vm5846, %v5845
  %s5855 = scalar_lea.vmem %s0, 57
  %v5856 = vld.sshfl [vmem:[%s5855] sm:$0xff pattern:$0x444b2907]
  %s5857 = scalar_lea.vmem %s0, 4294967274
  %s5858 = smov 192
  %v5859 = vld [vmem:[%s5857] ss:$9 sm:%s5858]
  %vm5860 = vcmask 1047558
  %v5861 = vsel %vm5860, %v5859, %v5856
  %5862 = vrot.lane.b32.xlu0 %v5861, 70
  %v5863 = vpop.permute.xlu0 %5862
  %vm5864 = vcmask 15360
  %s5865 = scalar_lea.vmem %s1, 2929
  %5866 = vst.msk [vmem:[%s5865] ss:$-350 sm:$0x3] %vm5864, %v5863
  %s5867 = scalar_lea.vmem %s1, 3729
  %5868 = vst.msk [vmem:[%s5867] ss:$-350 sm:$0xc] %vm5864, %v5863
  %s5869 = scalar_lea.vmem %s1, 4529
  %5870 = vst.msk [vmem:[%s5869] ss:$-350 sm:$0x30] %vm5864, %v5863
  %s5871 = scalar_lea.vmem %s1, 4294966225
  %5872 = vst.msk [vmem:[%s5871] ss:$450 sm:$0xc0] %vm5864, %v5863
  %s5873 = scalar_lea.vmem %s0, 73
  %v5874 = vld.sshfl [vmem:[%s5873] sm:$0xff pattern:$0x444b2907]
  %s5875 = scalar_lea.vmem %s0, 4294967254
  %s5876 = smov 192
  %v5877 = vld [vmem:[%s5875] ss:$15 sm:%s5876]
  %vm5878 = vcmask 1047558
  %v5879 = vsel %vm5878, %v5877, %v5874
  %5880 = vrot.lane.b32.xlu0 %v5879, 70
  %v5881 = vpop.permute.xlu0 %5880
  %vm5882 = vcmask 15360
  %s5883 = scalar_lea.vmem %s1, 3729
  %5884 = vst.msk [vmem:[%s5883] ss:$-350 sm:$0x3] %vm5882, %v5881
  %s5885 = scalar_lea.vmem %s1, 4529
  %5886 = vst.msk [vmem:[%s5885] ss:$-350 sm:$0xc] %vm5882, %v5881
  %s5887 = scalar_lea.vmem %s1, 5329
  %5888 = vst.msk [vmem:[%s5887] ss:$-350 sm:$0x30] %vm5882, %v5881
  %s5889 = scalar_lea.vmem %s1, 4294967025
  %5890 = vst.msk [vmem:[%s5889] ss:$450 sm:$0xc0] %vm5882, %v5881
  %s5891 = scalar_lea.vmem %s0, 89
  %v5892 = vld.sshfl [vmem:[%s5891] sm:$0xff pattern:$0x444b2907]
  %s5893 = scalar_lea.vmem %s0, 16
  %s5894 = smov 192
  %v5895 = vld [vmem:[%s5893] ss:$9 sm:%s5894]
  %vm5896 = vcmask 1047558
  %v5897 = vsel %vm5896, %v5895, %v5892
  %5898 = vrot.lane.b32.xlu0 %v5897, 70
  %v5899 = vpop.permute.xlu0 %5898
  %vm5900 = vcmask 15360
  %s5901 = scalar_lea.vmem %s1, 4529
  %5902 = vst.msk [vmem:[%s5901] ss:$-350 sm:$0x3] %vm5900, %v5899
  %s5903 = scalar_lea.vmem %s1, 5329
  %5904 = vst.msk [vmem:[%s5903] ss:$-350 sm:$0xc] %vm5900, %v5899
  %s5905 = scalar_lea.vmem %s1, 6129
  %5906 = vst.msk [vmem:[%s5905] ss:$-350 sm:$0x30] %vm5900, %v5899
  %s5907 = scalar_lea.vmem %s1, 529
  %5908 = vst.msk [vmem:[%s5907] ss:$450 sm:$0xc0] %vm5900, %v5899
  %s5909 = scalar_lea.vmem %s0, 105
  %s5910 = smov 3
  %v5911 = vld [vmem:[%s5909] ss:$-19 sm:%s5910]
  %s5912 = scalar_lea.vmem %s0, 81
  %s5913 = smov 12
  %v5914 = vld [vmem:[%s5912] ss:$7 sm:%s5913]
  %vm5915 = vcmask 1043458
  %v5916 = vsel %vm5915, %v5914, %v5911
  %5917 = vrot.lane.b32.xlu0 %v5916, 70
  %v5918 = vpop.permute.xlu0 %5917
  %vm5919 = vcmask 15360
  %s5920 = scalar_lea.vmem %s1, 4979
  %5921 = vst.msk [vmem:[%s5920] ss:$-950 sm:$0x3] %vm5919, %v5918
  %s5922 = scalar_lea.vmem %s1, 3779
  %5923 = vst.msk [vmem:[%s5922] ss:$350 sm:$0xc] %vm5919, %v5918
  %s5924 = scalar_lea.vmem %s0, 2
  %v5925 = vld.sshfl [vmem:[%s5924] sm:$0xff pattern:$0x6d4b2907]
  %5926 = vrot.lane.b32.xlu0 %v5925, 68
  %v5927 = vpop.permute.xlu0 %5926
  %vm5928 = vcmask 15360
  %s5929 = scalar_lea.vmem %s1, 480
  %5930 = vst.msk [vmem:[%s5929] ss:$-350 sm:$0x3] %vm5928, %v5927
  %s5931 = scalar_lea.vmem %s1, 1280
  %5932 = vst.msk [vmem:[%s5931] ss:$-350 sm:$0xc] %vm5928, %v5927
  %s5933 = scalar_lea.vmem %s1, 2080
  %5934 = vst.msk [vmem:[%s5933] ss:$-350 sm:$0x30] %vm5928, %v5927
  %s5935 = scalar_lea.vmem %s1, 2880
  %5936 = vst.msk [vmem:[%s5935] ss:$-350 sm:$0xc0] %vm5928, %v5927
  %s5937 = scalar_lea.vmem %s0, 18
  %v5938 = vld.sshfl [vmem:[%s5937] sm:$0xff pattern:$0x6d4b2907]
  %5939 = vrot.lane.b32.xlu0 %v5938, 68
  %v5940 = vpop.permute.xlu0 %5939
  %vm5941 = vcmask 15360
  %s5942 = scalar_lea.vmem %s1, 1280
  %5943 = vst.msk [vmem:[%s5942] ss:$-350 sm:$0x3] %vm5941, %v5940
  %s5944 = scalar_lea.vmem %s1, 2080
  %5945 = vst.msk [vmem:[%s5944] ss:$-350 sm:$0xc] %vm5941, %v5940
  %s5946 = scalar_lea.vmem %s1, 2880
  %5947 = vst.msk [vmem:[%s5946] ss:$-350 sm:$0x30] %vm5941, %v5940
  %s5948 = scalar_lea.vmem %s1, 3680
  %5949 = vst.msk [vmem:[%s5948] ss:$-350 sm:$0xc0] %vm5941, %v5940
  %s5950 = scalar_lea.vmem %s0, 34
  %v5951 = vld.sshfl [vmem:[%s5950] sm:$0xff pattern:$0x6d4b2907]
  %5952 = vrot.lane.b32.xlu0 %v5951, 68
  %v5953 = vpop.permute.xlu0 %5952
  %vm5954 = vcmask 15360
  %s5955 = scalar_lea.vmem %s1, 2080
  %5956 = vst.msk [vmem:[%s5955] ss:$-350 sm:$0x3] %vm5954, %v5953
  %s5957 = scalar_lea.vmem %s1, 2880
  %5958 = vst.msk [vmem:[%s5957] ss:$-350 sm:$0xc] %vm5954, %v5953
  %s5959 = scalar_lea.vmem %s1, 3680
  %5960 = vst.msk [vmem:[%s5959] ss:$-350 sm:$0x30] %vm5954, %v5953
  %s5961 = scalar_lea.vmem %s1, 4480
  %5962 = vst.msk [vmem:[%s5961] ss:$-350 sm:$0xc0] %vm5954, %v5953
  %s5963 = scalar_lea.vmem %s0, 56
  %v5964 = vld.sshfl [vmem:[%s5963] sm:$0xff pattern:$0x6d4b2907]
  %5965 = vrot.lane.b32.xlu0 %v5964, 68
  %v5966 = vpop.permute.xlu0 %5965
  %vm5967 = vcmask 15360
  %s5968 = scalar_lea.vmem %s1, 2880
  %5969 = vst.msk [vmem:[%s5968] ss:$-350 sm:$0x3] %vm5967, %v5966
  %s5970 = scalar_lea.vmem %s1, 3680
  %5971 = vst.msk [vmem:[%s5970] ss:$-350 sm:$0xc] %vm5967, %v5966
  %s5972 = scalar_lea.vmem %s1, 4480
  %5973 = vst.msk [vmem:[%s5972] ss:$-350 sm:$0x30] %vm5967, %v5966
  %s5974 = scalar_lea.vmem %s1, 5280
  %5975 = vst.msk [vmem:[%s5974] ss:$-350 sm:$0xc0] %vm5967, %v5966
  %s5976 = scalar_lea.vmem %s0, 72
  %v5977 = vld.sshfl [vmem:[%s5976] sm:$0xff pattern:$0x6d4b2907]
  %5978 = vrot.lane.b32.xlu0 %v5977, 68
  %v5979 = vpop.permute.xlu0 %5978
  %vm5980 = vcmask 15360
  %s5981 = scalar_lea.vmem %s1, 3680
  %5982 = vst.msk [vmem:[%s5981] ss:$-350 sm:$0x3] %vm5980, %v5979
  %s5983 = scalar_lea.vmem %s1, 4480
  %5984 = vst.msk [vmem:[%s5983] ss:$-350 sm:$0xc] %vm5980, %v5979
  %s5985 = scalar_lea.vmem %s1, 5280
  %5986 = vst.msk [vmem:[%s5985] ss:$-350 sm:$0x30] %vm5980, %v5979
  %s5987 = scalar_lea.vmem %s1, 6080
  %5988 = vst.msk [vmem:[%s5987] ss:$-350 sm:$0xc0] %vm5980, %v5979
  %s5989 = scalar_lea.vmem %s0, 88
  %v5990 = vld.sshfl [vmem:[%s5989] sm:$0xff pattern:$0x6d4b2907]
  %5991 = vrot.lane.b32.xlu0 %v5990, 68
  %v5992 = vpop.permute.xlu0 %5991
  %vm5993 = vcmask 15360
  %s5994 = scalar_lea.vmem %s1, 4480
  %5995 = vst.msk [vmem:[%s5994] ss:$-350 sm:$0x3] %vm5993, %v5992
  %s5996 = scalar_lea.vmem %s1, 5280
  %5997 = vst.msk [vmem:[%s5996] ss:$-350 sm:$0xc] %vm5993, %v5992
  %s5998 = scalar_lea.vmem %s1, 6080
  %5999 = vst.msk [vmem:[%s5998] ss:$-350 sm:$0x30] %vm5993, %v5992
  %s6000 = scalar_lea.vmem %s1, 6880
  %6001 = vst.msk [vmem:[%s6000] ss:$-350 sm:$0xc0] %vm5993, %v5992
  %s6002 = scalar_lea.vmem %s0, 104
  %s6003 = smov 3
  %v6004 = vld [vmem:[%s6002] ss:$-103 sm:%s6003]
  %s6005 = scalar_lea.vmem %s0, 3
  %v6006 = vld.sshfl [vmem:[%s6005] sm:$0xff pattern:$0x4b290777]
  %vm6007 = vcmask 1047554
  %v6008 = vsel %vm6007, %v6006, %v6004
  %6009 = vrot.lane.b32.xlu0 %v6008, 68
  %v6010 = vpop.permute.xlu0 %6009
  %vm6011 = vcmask 15360
  %s6012 = scalar_lea.vmem %s1, 4930
  %6013 = vst.msk [vmem:[%s6012] ss:$-4850 sm:$0x3] %vm6011, %v6010
  %s6014 = scalar_lea.vmem %s1, 1230
  %6015 = vst.msk [vmem:[%s6014] ss:$-350 sm:$0xc] %vm6011, %v6010
  %s6016 = scalar_lea.vmem %s1, 2030
  %6017 = vst.msk [vmem:[%s6016] ss:$-350 sm:$0x30] %vm6011, %v6010
  %s6018 = scalar_lea.vmem %s1, 2830
  %6019 = vst.msk [vmem:[%s6018] ss:$-350 sm:$0xc0] %vm6011, %v6010
  %s6020 = scalar_lea.vmem %s0, 17
  %v6021 = vld.sshfl [vmem:[%s6020] sm:$0xff pattern:$0x66d4b290]
  %s6022 = scalar_lea.vmem %s0, 4294967289
  %v6023 = vld [vmem:[%s6022] sm:$0x80]
  %vm6024 = vcmask 1047559
  %v6025 = vsel %vm6024, %v6023, %v6021
  %6026 = vrot.lane.b32.xlu0 %v6025, 68
  %v6027 = vpop.permute.xlu0 %6026
  %vm6028 = vcmask 15360
  %s6029 = scalar_lea.vmem %s1, 880
  %6030 = vst.msk [vmem:[%s6029] ss:$450 sm:$0x3] %vm6028, %v6027
  %s6031 = scalar_lea.vmem %s1, 80
  %6032 = vst.msk [vmem:[%s6031] ss:$450 sm:$0xc] %vm6028, %v6027
  %s6033 = scalar_lea.vmem %s1, 4294966576
  %6034 = vst.msk [vmem:[%s6033] ss:$450 sm:$0x30] %vm6028, %v6027
  %s6035 = scalar_lea.vmem %s1, 8080
  %6036 = vst.msk [vmem:[%s6035] ss:$-1150 sm:$0xc0] %vm6028, %v6027
  %s6037 = scalar_lea.vmem %s0, 33
  %v6038 = vld.sshfl [vmem:[%s6037] sm:$0xff pattern:$0x66d4b290]
  %s6039 = scalar_lea.vmem %s0, 9
  %v6040 = vld [vmem:[%s6039] sm:$0x80]
  %vm6041 = vcmask 1047559
  %v6042 = vsel %vm6041, %v6040, %v6038
  %6043 = vrot.lane.b32.xlu0 %v6042, 68
  %v6044 = vpop.permute.xlu0 %6043
  %vm6045 = vcmask 15360
  %s6046 = scalar_lea.vmem %s1, 1680
  %6047 = vst.msk [vmem:[%s6046] ss:$450 sm:$0x3] %vm6045, %v6044
  %s6048 = scalar_lea.vmem %s1, 880
  %6049 = vst.msk [vmem:[%s6048] ss:$450 sm:$0xc] %vm6045, %v6044
  %s6050 = scalar_lea.vmem %s1, 80
  %6051 = vst.msk [vmem:[%s6050] ss:$450 sm:$0x30] %vm6045, %v6044
  %s6052 = scalar_lea.vmem %s1, 8880
  %6053 = vst.msk [vmem:[%s6052] ss:$-1150 sm:$0xc0] %vm6045, %v6044
  %s6054 = scalar_lea.vmem %s0, 49
  %v6055 = vld.sshfl [vmem:[%s6054] sm:$0xff pattern:$0x888888f0]
  %s6056 = scalar_lea.vmem %s0, 59
  %v6057 = vld.sshfl [vmem:[%s6056] sm:$0xff pattern:$0x22907777]
  %vm6058 = vcmask 1046531
  %v6059 = vsel %vm6058, %v6057, %v6055
  %s6060 = scalar_lea.vmem %s0, 25
  %v6061 = vld [vmem:[%s6060] sm:$0x80]
  %vm6062 = vcmask 1047559
  %v6063 = vsel %vm6062, %v6061, %v6059
  %6064 = vrot.lane.b32.xlu0 %v6063, 68
  %v6065 = vpop.permute.xlu0 %6064
  %vm6066 = vcmask 15360
  %s6067 = scalar_lea.vmem %s1, 2480
  %6068 = vst.msk [vmem:[%s6067] ss:$450 sm:$0x3] %vm6066, %v6065
  %s6069 = scalar_lea.vmem %s1, 1680
  %6070 = vst.msk [vmem:[%s6069] ss:$450 sm:$0xc] %vm6066, %v6065
  %s6071 = scalar_lea.vmem %s1, 880
  %6072 = vst.msk [vmem:[%s6071] ss:$450 sm:$0x30] %vm6066, %v6065
  %s6073 = scalar_lea.vmem %s1, 9680
  %6074 = vst.msk [vmem:[%s6073] ss:$-1150 sm:$0xc0] %vm6066, %v6065
  %s6075 = scalar_lea.vmem %s0, 71
  %v6076 = vld.sshfl [vmem:[%s6075] sm:$0xff pattern:$0x66d4b290]
  %s6077 = scalar_lea.vmem %s0, 41
  %v6078 = vld [vmem:[%s6077] sm:$0x80]
  %vm6079 = vcmask 1047559
  %v6080 = vsel %vm6079, %v6078, %v6076
  %6081 = vrot.lane.b32.xlu0 %v6080, 68
  %v6082 = vpop.permute.xlu0 %6081
  %vm6083 = vcmask 15360
  %s6084 = scalar_lea.vmem %s1, 3280
  %6085 = vst.msk [vmem:[%s6084] ss:$450 sm:$0x3] %vm6083, %v6082
  %s6086 = scalar_lea.vmem %s1, 2480
  %6087 = vst.msk [vmem:[%s6086] ss:$450 sm:$0xc] %vm6083, %v6082
  %s6088 = scalar_lea.vmem %s1, 1680
  %6089 = vst.msk [vmem:[%s6088] ss:$450 sm:$0x30] %vm6083, %v6082
  %s6090 = scalar_lea.vmem %s1, 10480
  %6091 = vst.msk [vmem:[%s6090] ss:$-1150 sm:$0xc0] %vm6083, %v6082
  %s6092 = scalar_lea.vmem %s0, 87
  %v6093 = vld.sshfl [vmem:[%s6092] sm:$0xff pattern:$0x66d4b290]
  %s6094 = scalar_lea.vmem %s0, 63
  %v6095 = vld [vmem:[%s6094] sm:$0x80]
  %vm6096 = vcmask 1047559
  %v6097 = vsel %vm6096, %v6095, %v6093
  %6098 = vrot.lane.b32.xlu0 %v6097, 68
  %v6099 = vpop.permute.xlu0 %6098
  %vm6100 = vcmask 15360
  %s6101 = scalar_lea.vmem %s1, 4080
  %6102 = vst.msk [vmem:[%s6101] ss:$450 sm:$0x3] %vm6100, %v6099
  %s6103 = scalar_lea.vmem %s1, 3280
  %6104 = vst.msk [vmem:[%s6103] ss:$450 sm:$0xc] %vm6100, %v6099
  %s6105 = scalar_lea.vmem %s1, 2480
  %6106 = vst.msk [vmem:[%s6105] ss:$450 sm:$0x30] %vm6100, %v6099
  %s6107 = scalar_lea.vmem %s1, 11280
  %6108 = vst.msk [vmem:[%s6107] ss:$-1150 sm:$0xc0] %vm6100, %v6099
  %s6109 = scalar_lea.vmem %s0, 103
  %s6110 = smov 3
  %v6111 = vld [vmem:[%s6109] ss:$2 sm:%s6110]
  %s6112 = scalar_lea.vmem %s0, 54
  %s6113 = smov 12
  %v6114 = vld [vmem:[%s6112] ss:$16 sm:%s6113]
  %vm6115 = vcmask 1043458
  %v6116 = vsel %vm6115, %v6114, %v6111
  %6117 = vrot.lane.b32.xlu0 %v6116, 68
  %v6118 = vpop.permute.xlu0 %6117
  %vm6119 = vcmask 15360
  %s6120 = scalar_lea.vmem %s1, 4880
  %6121 = vst.msk [vmem:[%s6120] ss:$100 sm:$0x3] %vm6119, %v6118
  %s6122 = scalar_lea.vmem %s1, 4028
  %6123 = vst.msk [vmem:[%s6122] sm:$0x4] %vm6119, %v6118
  %s6124 = scalar_lea.vmem %s1, 4827
  %6125 = vst.msk [vmem:[%s6124] sm:$0x8] %vm6119, %v6118
  %s6126 = scalar_lea.vmem %s0, 2
  %v6127 = vld.sshfl [vmem:[%s6126] sm:$0xff pattern:$0x6d4b2907]
  %6128 = vrot.lane.b32.xlu0 %v6127, 66
  %v6129 = vpop.permute.xlu0 %6128
  %vm6130 = vcmask 15360
  %s6131 = scalar_lea.vmem %s1, 481
  %6132 = vst.msk [vmem:[%s6131] ss:$-350 sm:$0x3] %vm6130, %v6129
  %s6133 = scalar_lea.vmem %s1, 1281
  %6134 = vst.msk [vmem:[%s6133] ss:$-350 sm:$0xc] %vm6130, %v6129
  %s6135 = scalar_lea.vmem %s1, 2081
  %6136 = vst.msk [vmem:[%s6135] ss:$-350 sm:$0x30] %vm6130, %v6129
  %s6137 = scalar_lea.vmem %s1, 2881
  %6138 = vst.msk [vmem:[%s6137] ss:$-350 sm:$0xc0] %vm6130, %v6129
  %s6139 = scalar_lea.vmem %s0, 18
  %v6140 = vld.sshfl [vmem:[%s6139] sm:$0xff pattern:$0x6d4b2907]
  %6141 = vrot.lane.b32.xlu0 %v6140, 66
  %v6142 = vpop.permute.xlu0 %6141
  %vm6143 = vcmask 15360
  %s6144 = scalar_lea.vmem %s1, 1281
  %6145 = vst.msk [vmem:[%s6144] ss:$-350 sm:$0x3] %vm6143, %v6142
  %s6146 = scalar_lea.vmem %s1, 2081
  %6147 = vst.msk [vmem:[%s6146] ss:$-350 sm:$0xc] %vm6143, %v6142
  %s6148 = scalar_lea.vmem %s1, 2881
  %6149 = vst.msk [vmem:[%s6148] ss:$-350 sm:$0x30] %vm6143, %v6142
  %s6150 = scalar_lea.vmem %s1, 3681
  %6151 = vst.msk [vmem:[%s6150] ss:$-350 sm:$0xc0] %vm6143, %v6142
  %s6152 = scalar_lea.vmem %s0, 34
  %v6153 = vld.sshfl [vmem:[%s6152] sm:$0xff pattern:$0x6d4b2907]
  %6154 = vrot.lane.b32.xlu0 %v6153, 66
  %v6155 = vpop.permute.xlu0 %6154
  %vm6156 = vcmask 15360
  %s6157 = scalar_lea.vmem %s1, 2081
  %6158 = vst.msk [vmem:[%s6157] ss:$-350 sm:$0x3] %vm6156, %v6155
  %s6159 = scalar_lea.vmem %s1, 2881
  %6160 = vst.msk [vmem:[%s6159] ss:$-350 sm:$0xc] %vm6156, %v6155
  %s6161 = scalar_lea.vmem %s1, 3681
  %6162 = vst.msk [vmem:[%s6161] ss:$-350 sm:$0x30] %vm6156, %v6155
  %s6163 = scalar_lea.vmem %s1, 4481
  %6164 = vst.msk [vmem:[%s6163] ss:$-350 sm:$0xc0] %vm6156, %v6155
  %s6165 = scalar_lea.vmem %s0, 56
  %v6166 = vld.sshfl [vmem:[%s6165] sm:$0xff pattern:$0x6d4b2907]
  %6167 = vrot.lane.b32.xlu0 %v6166, 66
  %v6168 = vpop.permute.xlu0 %6167
  %vm6169 = vcmask 15360
  %s6170 = scalar_lea.vmem %s1, 2881
  %6171 = vst.msk [vmem:[%s6170] ss:$-350 sm:$0x3] %vm6169, %v6168
  %s6172 = scalar_lea.vmem %s1, 3681
  %6173 = vst.msk [vmem:[%s6172] ss:$-350 sm:$0xc] %vm6169, %v6168
  %s6174 = scalar_lea.vmem %s1, 4481
  %6175 = vst.msk [vmem:[%s6174] ss:$-350 sm:$0x30] %vm6169, %v6168
  %s6176 = scalar_lea.vmem %s1, 5281
  %6177 = vst.msk [vmem:[%s6176] ss:$-350 sm:$0xc0] %vm6169, %v6168
  %s6178 = scalar_lea.vmem %s0, 72
  %v6179 = vld.sshfl [vmem:[%s6178] sm:$0xff pattern:$0x6d4b2907]
  %6180 = vrot.lane.b32.xlu0 %v6179, 66
  %v6181 = vpop.permute.xlu0 %6180
  %vm6182 = vcmask 15360
  %s6183 = scalar_lea.vmem %s1, 3681
  %6184 = vst.msk [vmem:[%s6183] ss:$-350 sm:$0x3] %vm6182, %v6181
  %s6185 = scalar_lea.vmem %s1, 4481
  %6186 = vst.msk [vmem:[%s6185] ss:$-350 sm:$0xc] %vm6182, %v6181
  %s6187 = scalar_lea.vmem %s1, 5281
  %6188 = vst.msk [vmem:[%s6187] ss:$-350 sm:$0x30] %vm6182, %v6181
  %s6189 = scalar_lea.vmem %s1, 6081
  %6190 = vst.msk [vmem:[%s6189] ss:$-350 sm:$0xc0] %vm6182, %v6181
  %s6191 = scalar_lea.vmem %s0, 88
  %v6192 = vld.sshfl [vmem:[%s6191] sm:$0xff pattern:$0x6d4b2907]
  %6193 = vrot.lane.b32.xlu0 %v6192, 66
  %v6194 = vpop.permute.xlu0 %6193
  %vm6195 = vcmask 15360
  %s6196 = scalar_lea.vmem %s1, 4481
  %6197 = vst.msk [vmem:[%s6196] ss:$-350 sm:$0x3] %vm6195, %v6194
  %s6198 = scalar_lea.vmem %s1, 5281
  %6199 = vst.msk [vmem:[%s6198] ss:$-350 sm:$0xc] %vm6195, %v6194
  %s6200 = scalar_lea.vmem %s1, 6081
  %6201 = vst.msk [vmem:[%s6200] ss:$-350 sm:$0x30] %vm6195, %v6194
  %s6202 = scalar_lea.vmem %s1, 6881
  %6203 = vst.msk [vmem:[%s6202] ss:$-350 sm:$0xc0] %vm6195, %v6194
  %s6204 = scalar_lea.vmem %s0, 104
  %s6205 = smov 3
  %v6206 = vld [vmem:[%s6204] ss:$-103 sm:%s6205]
  %s6207 = scalar_lea.vmem %s0, 3
  %v6208 = vld.sshfl [vmem:[%s6207] sm:$0xff pattern:$0x4b290777]
  %vm6209 = vcmask 1047554
  %v6210 = vsel %vm6209, %v6208, %v6206
  %6211 = vrot.lane.b32.xlu0 %v6210, 66
  %v6212 = vpop.permute.xlu0 %6211
  %vm6213 = vcmask 15360
  %s6214 = scalar_lea.vmem %s1, 4931
  %6215 = vst.msk [vmem:[%s6214] ss:$-4850 sm:$0x3] %vm6213, %v6212
  %s6216 = scalar_lea.vmem %s1, 1231
  %6217 = vst.msk [vmem:[%s6216] ss:$-350 sm:$0xc] %vm6213, %v6212
  %s6218 = scalar_lea.vmem %s1, 2031
  %6219 = vst.msk [vmem:[%s6218] ss:$-350 sm:$0x30] %vm6213, %v6212
  %s6220 = scalar_lea.vmem %s1, 2831
  %6221 = vst.msk [vmem:[%s6220] ss:$-350 sm:$0xc0] %vm6213, %v6212
  %s6222 = scalar_lea.vmem %s0, 17
  %v6223 = vld.sshfl [vmem:[%s6222] sm:$0xff pattern:$0x66d4b290]
  %s6224 = scalar_lea.vmem %s0, 4294967289
  %v6225 = vld [vmem:[%s6224] sm:$0x80]
  %vm6226 = vcmask 1047559
  %v6227 = vsel %vm6226, %v6225, %v6223
  %6228 = vrot.lane.b32.xlu0 %v6227, 66
  %v6229 = vpop.permute.xlu0 %6228
  %vm6230 = vcmask 15360
  %s6231 = scalar_lea.vmem %s1, 881
  %6232 = vst.msk [vmem:[%s6231] ss:$450 sm:$0x3] %vm6230, %v6229
  %s6233 = scalar_lea.vmem %s1, 81
  %6234 = vst.msk [vmem:[%s6233] ss:$450 sm:$0xc] %vm6230, %v6229
  %s6235 = scalar_lea.vmem %s1, 4294966577
  %6236 = vst.msk [vmem:[%s6235] ss:$450 sm:$0x30] %vm6230, %v6229
  %s6237 = scalar_lea.vmem %s1, 8081
  %6238 = vst.msk [vmem:[%s6237] ss:$-1150 sm:$0xc0] %vm6230, %v6229
  %s6239 = scalar_lea.vmem %s0, 33
  %v6240 = vld.sshfl [vmem:[%s6239] sm:$0xff pattern:$0x66d4b290]
  %s6241 = scalar_lea.vmem %s0, 9
  %v6242 = vld [vmem:[%s6241] sm:$0x80]
  %vm6243 = vcmask 1047559
  %v6244 = vsel %vm6243, %v6242, %v6240
  %6245 = vrot.lane.b32.xlu0 %v6244, 66
  %v6246 = vpop.permute.xlu0 %6245
  %vm6247 = vcmask 15360
  %s6248 = scalar_lea.vmem %s1, 1681
  %6249 = vst.msk [vmem:[%s6248] ss:$450 sm:$0x3] %vm6247, %v6246
  %s6250 = scalar_lea.vmem %s1, 881
  %6251 = vst.msk [vmem:[%s6250] ss:$450 sm:$0xc] %vm6247, %v6246
  %s6252 = scalar_lea.vmem %s1, 81
  %6253 = vst.msk [vmem:[%s6252] ss:$450 sm:$0x30] %vm6247, %v6246
  %s6254 = scalar_lea.vmem %s1, 8881
  %6255 = vst.msk [vmem:[%s6254] ss:$-1150 sm:$0xc0] %vm6247, %v6246
  %s6256 = scalar_lea.vmem %s0, 49
  %v6257 = vld.sshfl [vmem:[%s6256] sm:$0xff pattern:$0x888888f0]
  %s6258 = scalar_lea.vmem %s0, 59
  %v6259 = vld.sshfl [vmem:[%s6258] sm:$0xff pattern:$0x22907777]
  %vm6260 = vcmask 1046531
  %v6261 = vsel %vm6260, %v6259, %v6257
  %s6262 = scalar_lea.vmem %s0, 25
  %v6263 = vld [vmem:[%s6262] sm:$0x80]
  %vm6264 = vcmask 1047559
  %v6265 = vsel %vm6264, %v6263, %v6261
  %6266 = vrot.lane.b32.xlu0 %v6265, 66
  %v6267 = vpop.permute.xlu0 %6266
  %vm6268 = vcmask 15360
  %s6269 = scalar_lea.vmem %s1, 2481
  %6270 = vst.msk [vmem:[%s6269] ss:$450 sm:$0x3] %vm6268, %v6267
  %s6271 = scalar_lea.vmem %s1, 1681
  %6272 = vst.msk [vmem:[%s6271] ss:$450 sm:$0xc] %vm6268, %v6267
  %s6273 = scalar_lea.vmem %s1, 881
  %6274 = vst.msk [vmem:[%s6273] ss:$450 sm:$0x30] %vm6268, %v6267
  %s6275 = scalar_lea.vmem %s1, 9681
  %6276 = vst.msk [vmem:[%s6275] ss:$-1150 sm:$0xc0] %vm6268, %v6267
  %s6277 = scalar_lea.vmem %s0, 71
  %v6278 = vld.sshfl [vmem:[%s6277] sm:$0xff pattern:$0x66d4b290]
  %s6279 = scalar_lea.vmem %s0, 41
  %v6280 = vld [vmem:[%s6279] sm:$0x80]
  %vm6281 = vcmask 1047559
  %v6282 = vsel %vm6281, %v6280, %v6278
  %6283 = vrot.lane.b32.xlu0 %v6282, 66
  %v6284 = vpop.permute.xlu0 %6283
  %vm6285 = vcmask 15360
  %s6286 = scalar_lea.vmem %s1, 3281
  %6287 = vst.msk [vmem:[%s6286] ss:$450 sm:$0x3] %vm6285, %v6284
  %s6288 = scalar_lea.vmem %s1, 2481
  %6289 = vst.msk [vmem:[%s6288] ss:$450 sm:$0xc] %vm6285, %v6284
  %s6290 = scalar_lea.vmem %s1, 1681
  %6291 = vst.msk [vmem:[%s6290] ss:$450 sm:$0x30] %vm6285, %v6284
  %s6292 = scalar_lea.vmem %s1, 10481
  %6293 = vst.msk [vmem:[%s6292] ss:$-1150 sm:$0xc0] %vm6285, %v6284
  %s6294 = scalar_lea.vmem %s0, 87
  %v6295 = vld.sshfl [vmem:[%s6294] sm:$0xff pattern:$0x66d4b290]
  %s6296 = scalar_lea.vmem %s0, 63
  %v6297 = vld [vmem:[%s6296] sm:$0x80]
  %vm6298 = vcmask 1047559
  %v6299 = vsel %vm6298, %v6297, %v6295
  %6300 = vrot.lane.b32.xlu0 %v6299, 66
  %v6301 = vpop.permute.xlu0 %6300
  %vm6302 = vcmask 15360
  %s6303 = scalar_lea.vmem %s1, 4081
  %6304 = vst.msk [vmem:[%s6303] ss:$450 sm:$0x3] %vm6302, %v6301
  %s6305 = scalar_lea.vmem %s1, 3281
  %6306 = vst.msk [vmem:[%s6305] ss:$450 sm:$0xc] %vm6302, %v6301
  %s6307 = scalar_lea.vmem %s1, 2481
  %6308 = vst.msk [vmem:[%s6307] ss:$450 sm:$0x30] %vm6302, %v6301
  %s6309 = scalar_lea.vmem %s1, 11281
  %6310 = vst.msk [vmem:[%s6309] ss:$-1150 sm:$0xc0] %vm6302, %v6301
  %s6311 = scalar_lea.vmem %s0, 103
  %s6312 = smov 3
  %v6313 = vld [vmem:[%s6311] ss:$2 sm:%s6312]
  %s6314 = scalar_lea.vmem %s0, 54
  %s6315 = smov 12
  %v6316 = vld [vmem:[%s6314] ss:$16 sm:%s6315]
  %vm6317 = vcmask 1043458
  %v6318 = vsel %vm6317, %v6316, %v6313
  %6319 = vrot.lane.b32.xlu0 %v6318, 66
  %v6320 = vpop.permute.xlu0 %6319
  %vm6321 = vcmask 15360
  %s6322 = scalar_lea.vmem %s1, 4881
  %6323 = vst.msk [vmem:[%s6322] ss:$100 sm:$0x3] %vm6321, %v6320
  %s6324 = scalar_lea.vmem %s1, 4029
  %6325 = vst.msk [vmem:[%s6324] sm:$0x4] %vm6321, %v6320
  %s6326 = scalar_lea.vmem %s1, 4828
  %6327 = vst.msk [vmem:[%s6326] sm:$0x8] %vm6321, %v6320
  %v6328 = vld.sshfl [vmem:[%s0] sm:$0xff pattern:$0xf6d4b290]
  %6329 = vrot.lane.b32.xlu0 %v6328, 64
  %v6330 = vpop.permute.xlu0 %6329
  %vm6331 = vcmask 15360
  %s6332 = scalar_lea.vmem %s1, 32
  %6333 = vst.msk [vmem:[%s6332] ss:$450 sm:$0x3] %vm6331, %v6330
  %s6334 = scalar_lea.vmem %s1, 4294966528
  %6335 = vst.msk [vmem:[%s6334] ss:$450 sm:$0xc] %vm6331, %v6330
  %s6336 = scalar_lea.vmem %s1, 4294965728
  %6337 = vst.msk [vmem:[%s6336] ss:$450 sm:$0x30] %vm6331, %v6330
  %s6338 = scalar_lea.vmem %s1, 4294964928
  %6339 = vst.msk [vmem:[%s6338] ss:$450 sm:$0xc0] %vm6331, %v6330
  %s6340 = scalar_lea.vmem %s0, 16
  %v6341 = vld.sshfl [vmem:[%s6340] sm:$0xff pattern:$0xf6d4b290]
  %6342 = vrot.lane.b32.xlu0 %v6341, 64
  %v6343 = vpop.permute.xlu0 %6342
  %vm6344 = vcmask 15360
  %s6345 = scalar_lea.vmem %s1, 832
  %6346 = vst.msk [vmem:[%s6345] ss:$450 sm:$0x3] %vm6344, %v6343
  %s6347 = scalar_lea.vmem %s1, 32
  %6348 = vst.msk [vmem:[%s6347] ss:$450 sm:$0xc] %vm6344, %v6343
  %s6349 = scalar_lea.vmem %s1, 4294966528
  %6350 = vst.msk [vmem:[%s6349] ss:$450 sm:$0x30] %vm6344, %v6343
  %s6351 = scalar_lea.vmem %s1, 4294965728
  %6352 = vst.msk [vmem:[%s6351] ss:$450 sm:$0xc0] %vm6344, %v6343
  %s6353 = scalar_lea.vmem %s0, 32
  %v6354 = vld.sshfl [vmem:[%s6353] sm:$0xff pattern:$0xf6d4b290]
  %6355 = vrot.lane.b32.xlu0 %v6354, 64
  %v6356 = vpop.permute.xlu0 %6355
  %vm6357 = vcmask 15360
  %s6358 = scalar_lea.vmem %s1, 1632
  %6359 = vst.msk [vmem:[%s6358] ss:$450 sm:$0x3] %vm6357, %v6356
  %s6360 = scalar_lea.vmem %s1, 832
  %6361 = vst.msk [vmem:[%s6360] ss:$450 sm:$0xc] %vm6357, %v6356
  %s6362 = scalar_lea.vmem %s1, 32
  %6363 = vst.msk [vmem:[%s6362] ss:$450 sm:$0x30] %vm6357, %v6356
  %s6364 = scalar_lea.vmem %s1, 4294966528
  %6365 = vst.msk [vmem:[%s6364] ss:$450 sm:$0xc0] %vm6357, %v6356
  %s6366 = scalar_lea.vmem %s0, 48
  %v6367 = vld.sshfl [vmem:[%s6366] sm:$0xff pattern:$0x888888f0]
  %s6368 = scalar_lea.vmem %s0, 58
  %v6369 = vld.sshfl [vmem:[%s6368] sm:$0xff pattern:$0xb2907777]
  %vm6370 = vcmask 1047555
  %v6371 = vsel %vm6370, %v6369, %v6367
  %6372 = vrot.lane.b32.xlu0 %v6371, 64
  %v6373 = vpop.permute.xlu0 %6372
  %vm6374 = vcmask 15360
  %s6375 = scalar_lea.vmem %s1, 2432
  %6376 = vst.msk [vmem:[%s6375] ss:$450 sm:$0x3] %vm6374, %v6373
  %s6377 = scalar_lea.vmem %s1, 1632
  %6378 = vst.msk [vmem:[%s6377] ss:$450 sm:$0xc] %vm6374, %v6373
  %s6379 = scalar_lea.vmem %s1, 832
  %6380 = vst.msk [vmem:[%s6379] ss:$450 sm:$0x30] %vm6374, %v6373
  %s6381 = scalar_lea.vmem %s1, 32
  %6382 = vst.msk [vmem:[%s6381] ss:$450 sm:$0xc0] %vm6374, %v6373
  %s6383 = scalar_lea.vmem %s0, 70
  %v6384 = vld.sshfl [vmem:[%s6383] sm:$0xff pattern:$0xf6d4b290]
  %6385 = vrot.lane.b32.xlu0 %v6384, 64
  %v6386 = vpop.permute.xlu0 %6385
  %vm6387 = vcmask 15360
  %s6388 = scalar_lea.vmem %s1, 3232
  %6389 = vst.msk [vmem:[%s6388] ss:$450 sm:$0x3] %vm6387, %v6386
  %s6390 = scalar_lea.vmem %s1, 2432
  %6391 = vst.msk [vmem:[%s6390] ss:$450 sm:$0xc] %vm6387, %v6386
  %s6392 = scalar_lea.vmem %s1, 1632
  %6393 = vst.msk [vmem:[%s6392] ss:$450 sm:$0x30] %vm6387, %v6386
  %s6394 = scalar_lea.vmem %s1, 832
  %6395 = vst.msk [vmem:[%s6394] ss:$450 sm:$0xc0] %vm6387, %v6386
  %s6396 = scalar_lea.vmem %s0, 86
  %v6397 = vld.sshfl [vmem:[%s6396] sm:$0xff pattern:$0xf6d4b290]
  %6398 = vrot.lane.b32.xlu0 %v6397, 64
  %v6399 = vpop.permute.xlu0 %6398
  %vm6400 = vcmask 15360
  %s6401 = scalar_lea.vmem %s1, 4032
  %6402 = vst.msk [vmem:[%s6401] ss:$450 sm:$0x3] %vm6400, %v6399
  %s6403 = scalar_lea.vmem %s1, 3232
  %6404 = vst.msk [vmem:[%s6403] ss:$450 sm:$0xc] %vm6400, %v6399
  %s6405 = scalar_lea.vmem %s1, 2432
  %6406 = vst.msk [vmem:[%s6405] ss:$450 sm:$0x30] %vm6400, %v6399
  %s6407 = scalar_lea.vmem %s1, 1632
  %6408 = vst.msk [vmem:[%s6407] ss:$450 sm:$0xc0] %vm6400, %v6399
  %s6409 = scalar_lea.vmem %s0, 102
  %s6410 = smov 3
  %v6411 = vld [vmem:[%s6409] ss:$2 sm:%s6410]
  %s6412 = scalar_lea.vmem %s0, 1
  %v6413 = vld.sshfl [vmem:[%s6412] sm:$0xff pattern:$0x4b290777]
  %vm6414 = vcmask 1047554
  %v6415 = vsel %vm6414, %v6413, %v6411
  %6416 = vrot.lane.b32.xlu0 %v6415, 64
  %v6417 = vpop.permute.xlu0 %6416
  %vm6418 = vcmask 15360
  %s6419 = scalar_lea.vmem %s1, 4832
  %6420 = vst.msk [vmem:[%s6419] ss:$100 sm:$0x3] %vm6418, %v6417
  %s6421 = scalar_lea.vmem %s1, 1132
  %6422 = vst.msk [vmem:[%s6421] ss:$-350 sm:$0xc] %vm6418, %v6417
  %s6423 = scalar_lea.vmem %s1, 1932
  %6424 = vst.msk [vmem:[%s6423] ss:$-350 sm:$0x30] %vm6418, %v6417
  %s6425 = scalar_lea.vmem %s1, 2732
  %6426 = vst.msk [vmem:[%s6425] ss:$-350 sm:$0xc0] %vm6418, %v6417
  %s6427 = scalar_lea.vmem %s0, 14
  %v6428 = vld.sshfl [vmem:[%s6427] sm:$0xff pattern:$0x7e5c3a]
  %v6429 = vld [vmem:[%s0] sm:$0x80]
  %vm6430 = vcmask 1047559
  %v6431 = vsel %vm6430, %v6429, %v6428
  %6432 = vrot.lane.b32.xlu0 %v6431, 64
  %v6433 = vpop.permute.xlu0 %6432
  %vm6434 = vcmask 15360
  %s6435 = scalar_lea.vmem %s1, 1232
  %6436 = vst.msk [vmem:[%s6435] ss:$-350 sm:$0x3] %vm6434, %v6433
  %s6437 = scalar_lea.vmem %s1, 2032
  %6438 = vst.msk [vmem:[%s6437] ss:$-350 sm:$0xc] %vm6434, %v6433
  %s6439 = scalar_lea.vmem %s1, 2832
  %6440 = vst.msk [vmem:[%s6439] ss:$-350 sm:$0xf0] %vm6434, %v6433
  %s6441 = scalar_lea.vmem %s0, 30
  %v6442 = vld.sshfl [vmem:[%s6441] sm:$0xff pattern:$0x7e5c3a]
  %s6443 = scalar_lea.vmem %s0, 16
  %v6444 = vld [vmem:[%s6443] sm:$0x80]
  %vm6445 = vcmask 1047559
  %v6446 = vsel %vm6445, %v6444, %v6442
  %6447 = vrot.lane.b32.xlu0 %v6446, 64
  %v6448 = vpop.permute.xlu0 %6447
  %vm6449 = vcmask 15360
  %s6450 = scalar_lea.vmem %s1, 2032
  %6451 = vst.msk [vmem:[%s6450] ss:$-350 sm:$0x3] %vm6449, %v6448
  %s6452 = scalar_lea.vmem %s1, 2832
  %6453 = vst.msk [vmem:[%s6452] ss:$-350 sm:$0xc] %vm6449, %v6448
  %s6454 = scalar_lea.vmem %s1, 3632
  %6455 = vst.msk [vmem:[%s6454] ss:$-350 sm:$0xf0] %vm6449, %v6448
  %s6456 = scalar_lea.vmem %s0, 49
  %v6457 = vld.sshfl [vmem:[%s6456] sm:$0xff pattern:$0x88888f0d]
  %s6458 = scalar_lea.vmem %s0, 94
  %s6459 = smov 48
  %v6460 = vld [vmem:[%s6458] ss:$-7 sm:%s6459]
  %vm6461 = vcmask 1045508
  %v6462 = vsel %vm6461, %v6460, %v6457
  %s6463 = scalar_lea.vmem %s0, 88
  %s6464 = smov 192
  %v6465 = vld [vmem:[%s6463] ss:$-7 sm:%s6464]
  %vm6466 = vcmask 1047558
  %v6467 = vsel %vm6466, %v6465, %v6462
  %6468 = vrot.lane.b32.xlu0 %v6467, 64
  %v6469 = vpop.permute.xlu0 %6468
  %vm6470 = vcmask 15360
  %s6471 = scalar_lea.vmem %s1, 2832
  %6472 = vst.msk [vmem:[%s6471] ss:$-350 sm:$0x3] %vm6470, %v6469
  %s6473 = scalar_lea.vmem %s1, 3632
  %6474 = vst.msk [vmem:[%s6473] ss:$-350 sm:$0xc] %vm6470, %v6469
  %s6475 = scalar_lea.vmem %s1, 4432
  %6476 = vst.msk [vmem:[%s6475] ss:$-350 sm:$0xf0] %vm6470, %v6469
  %s6477 = scalar_lea.vmem %s0, 68
  %v6478 = vld.sshfl [vmem:[%s6477] sm:$0xff pattern:$0x7e5c3a]
  %s6479 = scalar_lea.vmem %s0, 54
  %v6480 = vld [vmem:[%s6479] sm:$0x80]
  %vm6481 = vcmask 1047559
  %v6482 = vsel %vm6481, %v6480, %v6478
  %6483 = vrot.lane.b32.xlu0 %v6482, 64
  %v6484 = vpop.permute.xlu0 %6483
  %vm6485 = vcmask 15360
  %s6486 = scalar_lea.vmem %s1, 3632
  %6487 = vst.msk [vmem:[%s6486] ss:$-350 sm:$0x3] %vm6485, %v6484
  %s6488 = scalar_lea.vmem %s1, 4432
  %6489 = vst.msk [vmem:[%s6488] ss:$-350 sm:$0xc] %vm6485, %v6484
  %s6490 = scalar_lea.vmem %s1, 5232
  %6491 = vst.msk [vmem:[%s6490] ss:$-350 sm:$0xf0] %vm6485, %v6484
  %s6492 = scalar_lea.vmem %s0, 84
  %v6493 = vld.sshfl [vmem:[%s6492] sm:$0xff pattern:$0x7e5c3a]
  %s6494 = scalar_lea.vmem %s0, 70
  %v6495 = vld [vmem:[%s6494] sm:$0x80]
  %vm6496 = vcmask 1047559
  %v6497 = vsel %vm6496, %v6495, %v6493
  %6498 = vrot.lane.b32.xlu0 %v6497, 64
  %v6499 = vpop.permute.xlu0 %6498
  %vm6500 = vcmask 15360
  %s6501 = scalar_lea.vmem %s1, 4432
  %6502 = vst.msk [vmem:[%s6501] ss:$-350 sm:$0x3] %vm6500, %v6499
  %s6503 = scalar_lea.vmem %s1, 5232
  %6504 = vst.msk [vmem:[%s6503] ss:$-350 sm:$0xc] %vm6500, %v6499
  %s6505 = scalar_lea.vmem %s1, 6032
  %6506 = vst.msk [vmem:[%s6505] ss:$-350 sm:$0xf0] %vm6500, %v6499
  %s6507 = scalar_lea.vmem %s0, 93
  %v6508 = vld.sshfl [vmem:[%s6507] sm:$0xff pattern:$0x7ca]
  %6509 = vrot.lane.b32.xlu0 %v6508, 64
  %v6510 = vpop.permute.xlu0 %6509
  %vm6511 = vcmask 15360
  %s6512 = scalar_lea.vmem %s1, 4882
  %6513 = vst.msk [vmem:[%s6512] ss:$100 sm:$0x3] %vm6511, %v6510
  %s6514 = scalar_lea.vmem %s1, 5432
  %6515 = vst.msk [vmem:[%s6514] ss:$-350 sm:$0xc] %vm6511, %v6510
  %v6516 = vld.sshfl [vmem:[%s0] sm:$0xff pattern:$0xf6d4b290]
  %6517 = vrot.lane.b32.xlu0 %v6516, 62
  %v6518 = vpop.permute.xlu0 %6517
  %vm6519 = vcmask 15360
  %s6520 = scalar_lea.vmem %s1, 33
  %6521 = vst.msk [vmem:[%s6520] ss:$450 sm:$0x3] %vm6519, %v6518
  %s6522 = scalar_lea.vmem %s1, 4294966529
  %6523 = vst.msk [vmem:[%s6522] ss:$450 sm:$0xc] %vm6519, %v6518
  %s6524 = scalar_lea.vmem %s1, 4294965729
  %6525 = vst.msk [vmem:[%s6524] ss:$450 sm:$0x30] %vm6519, %v6518
  %s6526 = scalar_lea.vmem %s1, 4294964929
  %6527 = vst.msk [vmem:[%s6526] ss:$450 sm:$0xc0] %vm6519, %v6518
  %s6528 = scalar_lea.vmem %s0, 16
  %v6529 = vld.sshfl [vmem:[%s6528] sm:$0xff pattern:$0xf6d4b290]
  %6530 = vrot.lane.b32.xlu0 %v6529, 62
  %v6531 = vpop.permute.xlu0 %6530
  %vm6532 = vcmask 15360
  %s6533 = scalar_lea.vmem %s1, 833
  %6534 = vst.msk [vmem:[%s6533] ss:$450 sm:$0x3] %vm6532, %v6531
  %s6535 = scalar_lea.vmem %s1, 33
  %6536 = vst.msk [vmem:[%s6535] ss:$450 sm:$0xc] %vm6532, %v6531
  %s6537 = scalar_lea.vmem %s1, 4294966529
  %6538 = vst.msk [vmem:[%s6537] ss:$450 sm:$0x30] %vm6532, %v6531
  %s6539 = scalar_lea.vmem %s1, 4294965729
  %6540 = vst.msk [vmem:[%s6539] ss:$450 sm:$0xc0] %vm6532, %v6531
  %s6541 = scalar_lea.vmem %s0, 32
  %v6542 = vld.sshfl [vmem:[%s6541] sm:$0xff pattern:$0xf6d4b290]
  %6543 = vrot.lane.b32.xlu0 %v6542, 62
  %v6544 = vpop.permute.xlu0 %6543
  %vm6545 = vcmask 15360
  %s6546 = scalar_lea.vmem %s1, 1633
  %6547 = vst.msk [vmem:[%s6546] ss:$450 sm:$0x3] %vm6545, %v6544
  %s6548 = scalar_lea.vmem %s1, 833
  %6549 = vst.msk [vmem:[%s6548] ss:$450 sm:$0xc] %vm6545, %v6544
  %s6550 = scalar_lea.vmem %s1, 33
  %6551 = vst.msk [vmem:[%s6550] ss:$450 sm:$0x30] %vm6545, %v6544
  %s6552 = scalar_lea.vmem %s1, 4294966529
  %6553 = vst.msk [vmem:[%s6552] ss:$450 sm:$0xc0] %vm6545, %v6544
  %s6554 = scalar_lea.vmem %s0, 48
  %v6555 = vld.sshfl [vmem:[%s6554] sm:$0xff pattern:$0x888888f0]
  %s6556 = scalar_lea.vmem %s0, 58
  %v6557 = vld.sshfl [vmem:[%s6556] sm:$0xff pattern:$0xb2907777]
  %vm6558 = vcmask 1047555
  %v6559 = vsel %vm6558, %v6557, %v6555
  %6560 = vrot.lane.b32.xlu0 %v6559, 62
  %v6561 = vpop.permute.xlu0 %6560
  %vm6562 = vcmask 15360
  %s6563 = scalar_lea.vmem %s1, 2433
  %6564 = vst.msk [vmem:[%s6563] ss:$450 sm:$0x3] %vm6562, %v6561
  %s6565 = scalar_lea.vmem %s1, 1633
  %6566 = vst.msk [vmem:[%s6565] ss:$450 sm:$0xc] %vm6562, %v6561
  %s6567 = scalar_lea.vmem %s1, 833
  %6568 = vst.msk [vmem:[%s6567] ss:$450 sm:$0x30] %vm6562, %v6561
  %s6569 = scalar_lea.vmem %s1, 33
  %6570 = vst.msk [vmem:[%s6569] ss:$450 sm:$0xc0] %vm6562, %v6561
  %s6571 = scalar_lea.vmem %s0, 70
  %v6572 = vld.sshfl [vmem:[%s6571] sm:$0xff pattern:$0xf6d4b290]
  %6573 = vrot.lane.b32.xlu0 %v6572, 62
  %v6574 = vpop.permute.xlu0 %6573
  %vm6575 = vcmask 15360
  %s6576 = scalar_lea.vmem %s1, 3233
  %6577 = vst.msk [vmem:[%s6576] ss:$450 sm:$0x3] %vm6575, %v6574
  %s6578 = scalar_lea.vmem %s1, 2433
  %6579 = vst.msk [vmem:[%s6578] ss:$450 sm:$0xc] %vm6575, %v6574
  %s6580 = scalar_lea.vmem %s1, 1633
  %6581 = vst.msk [vmem:[%s6580] ss:$450 sm:$0x30] %vm6575, %v6574
  %s6582 = scalar_lea.vmem %s1, 833
  %6583 = vst.msk [vmem:[%s6582] ss:$450 sm:$0xc0] %vm6575, %v6574
  %s6584 = scalar_lea.vmem %s0, 86
  %v6585 = vld.sshfl [vmem:[%s6584] sm:$0xff pattern:$0xf6d4b290]
  %6586 = vrot.lane.b32.xlu0 %v6585, 62
  %v6587 = vpop.permute.xlu0 %6586
  %vm6588 = vcmask 15360
  %s6589 = scalar_lea.vmem %s1, 4033
  %6590 = vst.msk [vmem:[%s6589] ss:$450 sm:$0x3] %vm6588, %v6587
  %s6591 = scalar_lea.vmem %s1, 3233
  %6592 = vst.msk [vmem:[%s6591] ss:$450 sm:$0xc] %vm6588, %v6587
  %s6593 = scalar_lea.vmem %s1, 2433
  %6594 = vst.msk [vmem:[%s6593] ss:$450 sm:$0x30] %vm6588, %v6587
  %s6595 = scalar_lea.vmem %s1, 1633
  %6596 = vst.msk [vmem:[%s6595] ss:$450 sm:$0xc0] %vm6588, %v6587
  %s6597 = scalar_lea.vmem %s0, 102
  %s6598 = smov 3
  %v6599 = vld [vmem:[%s6597] ss:$2 sm:%s6598]
  %s6600 = scalar_lea.vmem %s0, 1
  %v6601 = vld.sshfl [vmem:[%s6600] sm:$0xff pattern:$0x4b290777]
  %vm6602 = vcmask 1047554
  %v6603 = vsel %vm6602, %v6601, %v6599
  %6604 = vrot.lane.b32.xlu0 %v6603, 62
  %v6605 = vpop.permute.xlu0 %6604
  %vm6606 = vcmask 15360
  %s6607 = scalar_lea.vmem %s1, 4833
  %6608 = vst.msk [vmem:[%s6607] ss:$100 sm:$0x3] %vm6606, %v6605
  %s6609 = scalar_lea.vmem %s1, 1133
  %6610 = vst.msk [vmem:[%s6609] ss:$-350 sm:$0xc] %vm6606, %v6605
  %s6611 = scalar_lea.vmem %s1, 1933
  %6612 = vst.msk [vmem:[%s6611] ss:$-350 sm:$0x30] %vm6606, %v6605
  %s6613 = scalar_lea.vmem %s1, 2733
  %6614 = vst.msk [vmem:[%s6613] ss:$-350 sm:$0xc0] %vm6606, %v6605
  %s6615 = scalar_lea.vmem %s0, 14
  %v6616 = vld.sshfl [vmem:[%s6615] sm:$0xff pattern:$0x7e5c3a]
  %v6617 = vld [vmem:[%s0] sm:$0x80]
  %vm6618 = vcmask 1047559
  %v6619 = vsel %vm6618, %v6617, %v6616
  %6620 = vrot.lane.b32.xlu0 %v6619, 62
  %v6621 = vpop.permute.xlu0 %6620
  %vm6622 = vcmask 15360
  %s6623 = scalar_lea.vmem %s1, 1233
  %6624 = vst.msk [vmem:[%s6623] ss:$-350 sm:$0x3] %vm6622, %v6621
  %s6625 = scalar_lea.vmem %s1, 2033
  %6626 = vst.msk [vmem:[%s6625] ss:$-350 sm:$0xc] %vm6622, %v6621
  %s6627 = scalar_lea.vmem %s1, 2833
  %6628 = vst.msk [vmem:[%s6627] ss:$-350 sm:$0xf0] %vm6622, %v6621
  %s6629 = scalar_lea.vmem %s0, 30
  %v6630 = vld.sshfl [vmem:[%s6629] sm:$0xff pattern:$0x7e5c3a]
  %s6631 = scalar_lea.vmem %s0, 16
  %v6632 = vld [vmem:[%s6631] sm:$0x80]
  %vm6633 = vcmask 1047559
  %v6634 = vsel %vm6633, %v6632, %v6630
  %6635 = vrot.lane.b32.xlu0 %v6634, 62
  %v6636 = vpop.permute.xlu0 %6635
  %vm6637 = vcmask 15360
  %s6638 = scalar_lea.vmem %s1, 2033
  %6639 = vst.msk [vmem:[%s6638] ss:$-350 sm:$0x3] %vm6637, %v6636
  %s6640 = scalar_lea.vmem %s1, 2833
  %6641 = vst.msk [vmem:[%s6640] ss:$-350 sm:$0xc] %vm6637, %v6636
  %s6642 = scalar_lea.vmem %s1, 3633
  %6643 = vst.msk [vmem:[%s6642] ss:$-350 sm:$0xf0] %vm6637, %v6636
  %s6644 = scalar_lea.vmem %s0, 49
  %v6645 = vld.sshfl [vmem:[%s6644] sm:$0xff pattern:$0x88888f0d]
  %s6646 = scalar_lea.vmem %s0, 94
  %s6647 = smov 48
  %v6648 = vld [vmem:[%s6646] ss:$-7 sm:%s6647]
  %vm6649 = vcmask 1045508
  %v6650 = vsel %vm6649, %v6648, %v6645
  %s6651 = scalar_lea.vmem %s0, 88
  %s6652 = smov 192
  %v6653 = vld [vmem:[%s6651] ss:$-7 sm:%s6652]
  %vm6654 = vcmask 1047558
  %v6655 = vsel %vm6654, %v6653, %v6650
  %6656 = vrot.lane.b32.xlu0 %v6655, 62
  %v6657 = vpop.permute.xlu0 %6656
  %vm6658 = vcmask 15360
  %s6659 = scalar_lea.vmem %s1, 2833
  %6660 = vst.msk [vmem:[%s6659] ss:$-350 sm:$0x3] %vm6658, %v6657
  %s6661 = scalar_lea.vmem %s1, 3633
  %6662 = vst.msk [vmem:[%s6661] ss:$-350 sm:$0xc] %vm6658, %v6657
  %s6663 = scalar_lea.vmem %s1, 4433
  %6664 = vst.msk [vmem:[%s6663] ss:$-350 sm:$0xf0] %vm6658, %v6657
  %s6665 = scalar_lea.vmem %s0, 68
  %v6666 = vld.sshfl [vmem:[%s6665] sm:$0xff pattern:$0x7e5c3a]
  %s6667 = scalar_lea.vmem %s0, 54
  %v6668 = vld [vmem:[%s6667] sm:$0x80]
  %vm6669 = vcmask 1047559
  %v6670 = vsel %vm6669, %v6668, %v6666
  %6671 = vrot.lane.b32.xlu0 %v6670, 62
  %v6672 = vpop.permute.xlu0 %6671
  %vm6673 = vcmask 15360
  %s6674 = scalar_lea.vmem %s1, 3633
  %6675 = vst.msk [vmem:[%s6674] ss:$-350 sm:$0x3] %vm6673, %v6672
  %s6676 = scalar_lea.vmem %s1, 4433
  %6677 = vst.msk [vmem:[%s6676] ss:$-350 sm:$0xc] %vm6673, %v6672
  %s6678 = scalar_lea.vmem %s1, 5233
  %6679 = vst.msk [vmem:[%s6678] ss:$-350 sm:$0xf0] %vm6673, %v6672
  %s6680 = scalar_lea.vmem %s0, 84
  %v6681 = vld.sshfl [vmem:[%s6680] sm:$0xff pattern:$0x7e5c3a]
  %s6682 = scalar_lea.vmem %s0, 70
  %v6683 = vld [vmem:[%s6682] sm:$0x80]
  %vm6684 = vcmask 1047559
  %v6685 = vsel %vm6684, %v6683, %v6681
  %6686 = vrot.lane.b32.xlu0 %v6685, 62
  %v6687 = vpop.permute.xlu0 %6686
  %vm6688 = vcmask 15360
  %s6689 = scalar_lea.vmem %s1, 4433
  %6690 = vst.msk [vmem:[%s6689] ss:$-350 sm:$0x3] %vm6688, %v6687
  %s6691 = scalar_lea.vmem %s1, 5233
  %6692 = vst.msk [vmem:[%s6691] ss:$-350 sm:$0xc] %vm6688, %v6687
  %s6693 = scalar_lea.vmem %s1, 6033
  %6694 = vst.msk [vmem:[%s6693] ss:$-350 sm:$0xf0] %vm6688, %v6687
  %s6695 = scalar_lea.vmem %s0, 93
  %v6696 = vld.sshfl [vmem:[%s6695] sm:$0xff pattern:$0x7ca]
  %6697 = vrot.lane.b32.xlu0 %v6696, 62
  %v6698 = vpop.permute.xlu0 %6697
  %vm6699 = vcmask 15360
  %s6700 = scalar_lea.vmem %s1, 4883
  %6701 = vst.msk [vmem:[%s6700] ss:$100 sm:$0x3] %vm6699, %v6698
  %s6702 = scalar_lea.vmem %s1, 5433
  %6703 = vst.msk [vmem:[%s6702] ss:$-350 sm:$0xc] %vm6699, %v6698
  %v6704 = vld.sshfl [vmem:[%s0] sm:$0xff pattern:$0x6d4b2907]
  %6705 = vrot.lane.b32.xlu0 %v6704, 60
  %v6706 = vpop.permute.xlu0 %6705
  %vm6707 = vcmask 15360
  %s6708 = scalar_lea.vmem %s1, 384
  %6709 = vst.msk [vmem:[%s6708] ss:$-350 sm:$0x3] %vm6707, %v6706
  %s6710 = scalar_lea.vmem %s1, 1184
  %6711 = vst.msk [vmem:[%s6710] ss:$-350 sm:$0xc] %vm6707, %v6706
  %s6712 = scalar_lea.vmem %s1, 1984
  %6713 = vst.msk [vmem:[%s6712] ss:$-350 sm:$0x30] %vm6707, %v6706
  %s6714 = scalar_lea.vmem %s1, 2784
  %6715 = vst.msk [vmem:[%s6714] ss:$-350 sm:$0xc0] %vm6707, %v6706
  %s6716 = scalar_lea.vmem %s0, 16
  %v6717 = vld.sshfl [vmem:[%s6716] sm:$0xff pattern:$0x6d4b2907]
  %6718 = vrot.lane.b32.xlu0 %v6717, 60
  %v6719 = vpop.permute.xlu0 %6718
  %vm6720 = vcmask 15360
  %s6721 = scalar_lea.vmem %s1, 1184
  %6722 = vst.msk [vmem:[%s6721] ss:$-350 sm:$0x3] %vm6720, %v6719
  %s6723 = scalar_lea.vmem %s1, 1984
  %6724 = vst.msk [vmem:[%s6723] ss:$-350 sm:$0xc] %vm6720, %v6719
  %s6725 = scalar_lea.vmem %s1, 2784
  %6726 = vst.msk [vmem:[%s6725] ss:$-350 sm:$0x30] %vm6720, %v6719
  %s6727 = scalar_lea.vmem %s1, 3584
  %6728 = vst.msk [vmem:[%s6727] ss:$-350 sm:$0xc0] %vm6720, %v6719
  %s6729 = scalar_lea.vmem %s0, 32
  %v6730 = vld.sshfl [vmem:[%s6729] sm:$0xff pattern:$0x6d4b2907]
  %6731 = vrot.lane.b32.xlu0 %v6730, 60
  %v6732 = vpop.permute.xlu0 %6731
  %vm6733 = vcmask 15360
  %s6734 = scalar_lea.vmem %s1, 1984
  %6735 = vst.msk [vmem:[%s6734] ss:$-350 sm:$0x3] %vm6733, %v6732
  %s6736 = scalar_lea.vmem %s1, 2784
  %6737 = vst.msk [vmem:[%s6736] ss:$-350 sm:$0xc] %vm6733, %v6732
  %s6738 = scalar_lea.vmem %s1, 3584
  %6739 = vst.msk [vmem:[%s6738] ss:$-350 sm:$0x30] %vm6733, %v6732
  %s6740 = scalar_lea.vmem %s1, 4384
  %6741 = vst.msk [vmem:[%s6740] ss:$-350 sm:$0xc0] %vm6733, %v6732
  %s6742 = scalar_lea.vmem %s0, 48
  %v6743 = vld.sshfl [vmem:[%s6742] sm:$0xff pattern:$0x88888f0d]
  %s6744 = scalar_lea.vmem %s0, 58
  %v6745 = vld.sshfl [vmem:[%s6744] sm:$0xff pattern:$0x29077777]
  %vm6746 = vcmask 1047556
  %v6747 = vsel %vm6746, %v6745, %v6743
  %6748 = vrot.lane.b32.xlu0 %v6747, 60
  %v6749 = vpop.permute.xlu0 %6748
  %vm6750 = vcmask 15360
  %s6751 = scalar_lea.vmem %s1, 2784
  %6752 = vst.msk [vmem:[%s6751] ss:$-350 sm:$0x3] %vm6750, %v6749
  %s6753 = scalar_lea.vmem %s1, 3584
  %6754 = vst.msk [vmem:[%s6753] ss:$-350 sm:$0xc] %vm6750, %v6749
  %s6755 = scalar_lea.vmem %s1, 4384
  %6756 = vst.msk [vmem:[%s6755] ss:$-350 sm:$0x30] %vm6750, %v6749
  %s6757 = scalar_lea.vmem %s1, 5184
  %6758 = vst.msk [vmem:[%s6757] ss:$-350 sm:$0xc0] %vm6750, %v6749
  %s6759 = scalar_lea.vmem %s0, 70
  %v6760 = vld.sshfl [vmem:[%s6759] sm:$0xff pattern:$0x6d4b2907]
  %6761 = vrot.lane.b32.xlu0 %v6760, 60
  %v6762 = vpop.permute.xlu0 %6761
  %vm6763 = vcmask 15360
  %s6764 = scalar_lea.vmem %s1, 3584
  %6765 = vst.msk [vmem:[%s6764] ss:$-350 sm:$0x3] %vm6763, %v6762
  %s6766 = scalar_lea.vmem %s1, 4384
  %6767 = vst.msk [vmem:[%s6766] ss:$-350 sm:$0xc] %vm6763, %v6762
  %s6768 = scalar_lea.vmem %s1, 5184
  %6769 = vst.msk [vmem:[%s6768] ss:$-350 sm:$0x30] %vm6763, %v6762
  %s6770 = scalar_lea.vmem %s1, 5984
  %6771 = vst.msk [vmem:[%s6770] ss:$-350 sm:$0xc0] %vm6763, %v6762
  %s6772 = scalar_lea.vmem %s0, 86
  %v6773 = vld.sshfl [vmem:[%s6772] sm:$0xff pattern:$0x6d4b2907]
  %6774 = vrot.lane.b32.xlu0 %v6773, 60
  %v6775 = vpop.permute.xlu0 %6774
  %vm6776 = vcmask 15360
  %s6777 = scalar_lea.vmem %s1, 4384
  %6778 = vst.msk [vmem:[%s6777] ss:$-350 sm:$0x3] %vm6776, %v6775
  %s6779 = scalar_lea.vmem %s1, 5184
  %6780 = vst.msk [vmem:[%s6779] ss:$-350 sm:$0xc] %vm6776, %v6775
  %s6781 = scalar_lea.vmem %s1, 5984
  %6782 = vst.msk [vmem:[%s6781] ss:$-350 sm:$0x30] %vm6776, %v6775
  %s6783 = scalar_lea.vmem %s1, 6784
  %6784 = vst.msk [vmem:[%s6783] ss:$-350 sm:$0xc0] %vm6776, %v6775
  %s6785 = scalar_lea.vmem %s0, 102
  %s6786 = smov 3
  %v6787 = vld [vmem:[%s6785] ss:$2 sm:%s6786]
  %s6788 = scalar_lea.vmem %s0, 1
  %v6789 = vld.sshfl [vmem:[%s6788] sm:$0xff pattern:$0xb2907eee]
  %vm6790 = vcmask 1047554
  %v6791 = vsel %vm6790, %v6789, %v6787
  %6792 = vrot.lane.b32.xlu0 %v6791, 60
  %v6793 = vpop.permute.xlu0 %6792
  %vm6794 = vcmask 15360
  %s6795 = scalar_lea.vmem %s1, 4834
  %6796 = vst.msk [vmem:[%s6795] ss:$100 sm:$0x3] %vm6794, %v6793
  %s6797 = scalar_lea.vmem %s1, 1484
  %6798 = vst.msk [vmem:[%s6797] ss:$-350 sm:$0x1c] %vm6794, %v6793
  %s6799 = scalar_lea.vmem %s1, 2284
  %6800 = vst.msk [vmem:[%s6799] ss:$-350 sm:$0x60] %vm6794, %v6793
  %s6801 = scalar_lea.vmem %s1, 627
  %6802 = vst.msk [vmem:[%s6801] sm:$0x80] %vm6794, %v6793
  %s6803 = scalar_lea.vmem %s0, 17
  %v6804 = vld.sshfl [vmem:[%s6803] sm:$0xff pattern:$0xbbb2907e]
  %s6805 = scalar_lea.vmem %s0, 4294967247
  %s6806 = smov 192
  %v6807 = vld [vmem:[%s6805] ss:$9 sm:%s6806]
  %vm6808 = vcmask 1047558
  %v6809 = vsel %vm6808, %v6807, %v6804
  %6810 = vrot.lane.b32.xlu0 %v6809, 60
  %v6811 = vpop.permute.xlu0 %6810
  %vm6812 = vcmask 15360
  %s6813 = scalar_lea.vmem %s1, 1584
  %6814 = vst.msk [vmem:[%s6813] ss:$-350 sm:$0x7] %vm6812, %v6811
  %s6815 = scalar_lea.vmem %s1, 2384
  %6816 = vst.msk [vmem:[%s6815] ss:$-350 sm:$0x18] %vm6812, %v6811
  %s6817 = scalar_lea.vmem %s1, 7184
  %6818 = vst.msk [vmem:[%s6817] ss:$-1150 sm:$0x60] %vm6812, %v6811
  %s6819 = scalar_lea.vmem %s1, 727
  %6820 = vst.msk [vmem:[%s6819] sm:$0x80] %vm6812, %v6811
  %s6821 = scalar_lea.vmem %s0, 33
  %v6822 = vld.sshfl [vmem:[%s6821] sm:$0xff pattern:$0xbbb2907e]
  %s6823 = scalar_lea.vmem %s0, 4294967263
  %s6824 = smov 192
  %v6825 = vld [vmem:[%s6823] ss:$9 sm:%s6824]
  %vm6826 = vcmask 1047558
  %v6827 = vsel %vm6826, %v6825, %v6822
  %6828 = vrot.lane.b32.xlu0 %v6827, 60
  %v6829 = vpop.permute.xlu0 %6828
  %vm6830 = vcmask 15360
  %s6831 = scalar_lea.vmem %s1, 2384
  %6832 = vst.msk [vmem:[%s6831] ss:$-350 sm:$0x7] %vm6830, %v6829
  %s6833 = scalar_lea.vmem %s1, 3184
  %6834 = vst.msk [vmem:[%s6833] ss:$-350 sm:$0x18] %vm6830, %v6829
  %s6835 = scalar_lea.vmem %s1, 7984
  %6836 = vst.msk [vmem:[%s6835] ss:$-1150 sm:$0x60] %vm6830, %v6829
  %s6837 = scalar_lea.vmem %s1, 1527
  %6838 = vst.msk [vmem:[%s6837] sm:$0x80] %vm6830, %v6829
  %s6839 = scalar_lea.vmem %s0, 69
  %s6840 = smov 3
  %v6841 = vld [vmem:[%s6839] ss:$-7 sm:%s6840]
  %s6842 = scalar_lea.vmem %s0, 49
  %v6843 = vld.sshfl [vmem:[%s6842] sm:$0xff pattern:$0x8888f000]
  %vm6844 = vcmask 1044482
  %v6845 = vsel %vm6844, %v6843, %v6841
  %s6846 = scalar_lea.vmem %s0, 211
  %s6847 = smov 96
  %v6848 = vld [vmem:[%s6846] ss:$-29 sm:%s6847]
  %vm6849 = vcmask 1046533
  %v6850 = vsel %vm6849, %v6848, %v6845
  %s6851 = scalar_lea.vmem %s0, 39
  %v6852 = vld [vmem:[%s6851] sm:$0x80]
  %vm6853 = vcmask 1047559
  %v6854 = vsel %vm6853, %v6852, %v6850
  %6855 = vrot.lane.b32.xlu0 %v6854, 60
  %v6856 = vpop.permute.xlu0 %6855
  %vm6857 = vcmask 15360
  %s6858 = scalar_lea.vmem %s1, 3184
  %6859 = vst.msk [vmem:[%s6858] ss:$-350 sm:$0x7] %vm6857, %v6856
  %s6860 = scalar_lea.vmem %s1, 3984
  %6861 = vst.msk [vmem:[%s6860] ss:$-350 sm:$0x18] %vm6857, %v6856
  %s6862 = scalar_lea.vmem %s1, 8784
  %6863 = vst.msk [vmem:[%s6862] ss:$-1150 sm:$0x60] %vm6857, %v6856
  %s6864 = scalar_lea.vmem %s1, 2327
  %6865 = vst.msk [vmem:[%s6864] sm:$0x80] %vm6857, %v6856
  %s6866 = scalar_lea.vmem %s0, 71
  %v6867 = vld.sshfl [vmem:[%s6866] sm:$0xff pattern:$0xbbb2907e]
  %s6868 = scalar_lea.vmem %s0, 5
  %s6869 = smov 192
  %v6870 = vld [vmem:[%s6868] ss:$9 sm:%s6869]
  %vm6871 = vcmask 1047558
  %v6872 = vsel %vm6871, %v6870, %v6867
  %6873 = vrot.lane.b32.xlu0 %v6872, 60
  %v6874 = vpop.permute.xlu0 %6873
  %vm6875 = vcmask 15360
  %s6876 = scalar_lea.vmem %s1, 3984
  %6877 = vst.msk [vmem:[%s6876] ss:$-350 sm:$0x7] %vm6875, %v6874
  %s6878 = scalar_lea.vmem %s1, 4784
  %6879 = vst.msk [vmem:[%s6878] ss:$-350 sm:$0x18] %vm6875, %v6874
  %s6880 = scalar_lea.vmem %s1, 9584
  %6881 = vst.msk [vmem:[%s6880] ss:$-1150 sm:$0x60] %vm6875, %v6874
  %s6882 = scalar_lea.vmem %s1, 3127
  %6883 = vst.msk [vmem:[%s6882] sm:$0x80] %vm6875, %v6874
  %s6884 = scalar_lea.vmem %s0, 87
  %v6885 = vld.sshfl [vmem:[%s6884] sm:$0xff pattern:$0xbbb2907e]
  %s6886 = scalar_lea.vmem %s0, 21
  %s6887 = smov 192
  %v6888 = vld [vmem:[%s6886] ss:$9 sm:%s6887]
  %vm6889 = vcmask 1047558
  %v6890 = vsel %vm6889, %v6888, %v6885
  %6891 = vrot.lane.b32.xlu0 %v6890, 60
  %v6892 = vpop.permute.xlu0 %6891
  %vm6893 = vcmask 15360
  %s6894 = scalar_lea.vmem %s1, 4784
  %6895 = vst.msk [vmem:[%s6894] ss:$-350 sm:$0x7] %vm6893, %v6892
  %s6896 = scalar_lea.vmem %s1, 5584
  %6897 = vst.msk [vmem:[%s6896] ss:$-350 sm:$0x18] %vm6893, %v6892
  %s6898 = scalar_lea.vmem %s1, 10384
  %6899 = vst.msk [vmem:[%s6898] ss:$-1150 sm:$0x60] %vm6893, %v6892
  %s6900 = scalar_lea.vmem %s1, 3927
  %6901 = vst.msk [vmem:[%s6900] sm:$0x80] %vm6893, %v6892
  %s6902 = scalar_lea.vmem %s0, 91
  %v6903 = vld.sshfl [vmem:[%s6902] sm:$0xff pattern:$0x999990ec]
  %6904 = vrot.lane.b32.xlu0 %v6903, 60
  %v6905 = vpop.permute.xlu0 %6904
  %vm6906 = vcmask 15360
  %s6907 = scalar_lea.vmem %s1, 4884
  %6908 = vst.msk [vmem:[%s6907] ss:$100 sm:$0x3] %vm6906, %v6905
  %s6909 = scalar_lea.vmem %s1, 3384
  %6910 = vst.msk [vmem:[%s6909] ss:$450 sm:$0xc] %vm6906, %v6905
  %v6911 = vld.sshfl [vmem:[%s0] sm:$0xff pattern:$0x6d4b2907]
  %6912 = vrot.lane.b32.xlu0 %v6911, 58
  %v6913 = vpop.permute.xlu0 %6912
  %vm6914 = vcmask 15360
  %s6915 = scalar_lea.vmem %s1, 385
  %6916 = vst.msk [vmem:[%s6915] ss:$-350 sm:$0x3] %vm6914, %v6913
  %s6917 = scalar_lea.vmem %s1, 1185
  %6918 = vst.msk [vmem:[%s6917] ss:$-350 sm:$0xc] %vm6914, %v6913
  %s6919 = scalar_lea.vmem %s1, 1985
  %6920 = vst.msk [vmem:[%s6919] ss:$-350 sm:$0x30] %vm6914, %v6913
  %s6921 = scalar_lea.vmem %s1, 2785
  %6922 = vst.msk [vmem:[%s6921] ss:$-350 sm:$0xc0] %vm6914, %v6913
  %s6923 = scalar_lea.vmem %s0, 16
  %v6924 = vld.sshfl [vmem:[%s6923] sm:$0xff pattern:$0x6d4b2907]
  %6925 = vrot.lane.b32.xlu0 %v6924, 58
  %v6926 = vpop.permute.xlu0 %6925
  %vm6927 = vcmask 15360
  %s6928 = scalar_lea.vmem %s1, 1185
  %6929 = vst.msk [vmem:[%s6928] ss:$-350 sm:$0x3] %vm6927, %v6926
  %s6930 = scalar_lea.vmem %s1, 1985
  %6931 = vst.msk [vmem:[%s6930] ss:$-350 sm:$0xc] %vm6927, %v6926
  %s6932 = scalar_lea.vmem %s1, 2785
  %6933 = vst.msk [vmem:[%s6932] ss:$-350 sm:$0x30] %vm6927, %v6926
  %s6934 = scalar_lea.vmem %s1, 3585
  %6935 = vst.msk [vmem:[%s6934] ss:$-350 sm:$0xc0] %vm6927, %v6926
  %s6936 = scalar_lea.vmem %s0, 32
  %v6937 = vld.sshfl [vmem:[%s6936] sm:$0xff pattern:$0x6d4b2907]
  %6938 = vrot.lane.b32.xlu0 %v6937, 58
  %v6939 = vpop.permute.xlu0 %6938
  %vm6940 = vcmask 15360
  %s6941 = scalar_lea.vmem %s1, 1985
  %6942 = vst.msk [vmem:[%s6941] ss:$-350 sm:$0x3] %vm6940, %v6939
  %s6943 = scalar_lea.vmem %s1, 2785
  %6944 = vst.msk [vmem:[%s6943] ss:$-350 sm:$0xc] %vm6940, %v6939
  %s6945 = scalar_lea.vmem %s1, 3585
  %6946 = vst.msk [vmem:[%s6945] ss:$-350 sm:$0x30] %vm6940, %v6939
  %s6947 = scalar_lea.vmem %s1, 4385
  %6948 = vst.msk [vmem:[%s6947] ss:$-350 sm:$0xc0] %vm6940, %v6939
  %s6949 = scalar_lea.vmem %s0, 48
  %v6950 = vld.sshfl [vmem:[%s6949] sm:$0xff pattern:$0x88888f0d]
  %s6951 = scalar_lea.vmem %s0, 58
  %v6952 = vld.sshfl [vmem:[%s6951] sm:$0xff pattern:$0x29077777]
  %vm6953 = vcmask 1047556
  %v6954 = vsel %vm6953, %v6952, %v6950
  %6955 = vrot.lane.b32.xlu0 %v6954, 58
  %v6956 = vpop.permute.xlu0 %6955
  %vm6957 = vcmask 15360
  %s6958 = scalar_lea.vmem %s1, 2785
  %6959 = vst.msk [vmem:[%s6958] ss:$-350 sm:$0x3] %vm6957, %v6956
  %s6960 = scalar_lea.vmem %s1, 3585
  %6961 = vst.msk [vmem:[%s6960] ss:$-350 sm:$0xc] %vm6957, %v6956
  %s6962 = scalar_lea.vmem %s1, 4385
  %6963 = vst.msk [vmem:[%s6962] ss:$-350 sm:$0x30] %vm6957, %v6956
  %s6964 = scalar_lea.vmem %s1, 5185
  %6965 = vst.msk [vmem:[%s6964] ss:$-350 sm:$0xc0] %vm6957, %v6956
  %s6966 = scalar_lea.vmem %s0, 70
  %v6967 = vld.sshfl [vmem:[%s6966] sm:$0xff pattern:$0x6d4b2907]
  %6968 = vrot.lane.b32.xlu0 %v6967, 58
  %v6969 = vpop.permute.xlu0 %6968
  %vm6970 = vcmask 15360
  %s6971 = scalar_lea.vmem %s1, 3585
  %6972 = vst.msk [vmem:[%s6971] ss:$-350 sm:$0x3] %vm6970, %v6969
  %s6973 = scalar_lea.vmem %s1, 4385
  %6974 = vst.msk [vmem:[%s6973] ss:$-350 sm:$0xc] %vm6970, %v6969
  %s6975 = scalar_lea.vmem %s1, 5185
  %6976 = vst.msk [vmem:[%s6975] ss:$-350 sm:$0x30] %vm6970, %v6969
  %s6977 = scalar_lea.vmem %s1, 5985
  %6978 = vst.msk [vmem:[%s6977] ss:$-350 sm:$0xc0] %vm6970, %v6969
  %s6979 = scalar_lea.vmem %s0, 86
  %v6980 = vld.sshfl [vmem:[%s6979] sm:$0xff pattern:$0x6d4b2907]
  %6981 = vrot.lane.b32.xlu0 %v6980, 58
  %v6982 = vpop.permute.xlu0 %6981
  %vm6983 = vcmask 15360
  %s6984 = scalar_lea.vmem %s1, 4385
  %6985 = vst.msk [vmem:[%s6984] ss:$-350 sm:$0x3] %vm6983, %v6982
  %s6986 = scalar_lea.vmem %s1, 5185
  %6987 = vst.msk [vmem:[%s6986] ss:$-350 sm:$0xc] %vm6983, %v6982
  %s6988 = scalar_lea.vmem %s1, 5985
  %6989 = vst.msk [vmem:[%s6988] ss:$-350 sm:$0x30] %vm6983, %v6982
  %s6990 = scalar_lea.vmem %s1, 6785
  %6991 = vst.msk [vmem:[%s6990] ss:$-350 sm:$0xc0] %vm6983, %v6982
  %s6992 = scalar_lea.vmem %s0, 102
  %s6993 = smov 3
  %v6994 = vld [vmem:[%s6992] ss:$2 sm:%s6993]
  %s6995 = scalar_lea.vmem %s0, 1
  %v6996 = vld.sshfl [vmem:[%s6995] sm:$0xff pattern:$0xb2907eee]
  %vm6997 = vcmask 1047554
  %v6998 = vsel %vm6997, %v6996, %v6994
  %6999 = vrot.lane.b32.xlu0 %v6998, 58
  %v7000 = vpop.permute.xlu0 %6999
  %vm7001 = vcmask 15360
  %s7002 = scalar_lea.vmem %s1, 4835
  %7003 = vst.msk [vmem:[%s7002] ss:$100 sm:$0x3] %vm7001, %v7000
  %s7004 = scalar_lea.vmem %s1, 1485
  %7005 = vst.msk [vmem:[%s7004] ss:$-350 sm:$0x1c] %vm7001, %v7000
  %s7006 = scalar_lea.vmem %s1, 2285
  %7007 = vst.msk [vmem:[%s7006] ss:$-350 sm:$0x60] %vm7001, %v7000
  %s7008 = scalar_lea.vmem %s1, 628
  %7009 = vst.msk [vmem:[%s7008] sm:$0x80] %vm7001, %v7000
  %s7010 = scalar_lea.vmem %s0, 17
  %v7011 = vld.sshfl [vmem:[%s7010] sm:$0xff pattern:$0xbbb2907e]
  %s7012 = scalar_lea.vmem %s0, 4294967247
  %s7013 = smov 192
  %v7014 = vld [vmem:[%s7012] ss:$9 sm:%s7013]
  %vm7015 = vcmask 1047558
  %v7016 = vsel %vm7015, %v7014, %v7011
  %7017 = vrot.lane.b32.xlu0 %v7016, 58
  %v7018 = vpop.permute.xlu0 %7017
  %vm7019 = vcmask 15360
  %s7020 = scalar_lea.vmem %s1, 1585
  %7021 = vst.msk [vmem:[%s7020] ss:$-350 sm:$0x7] %vm7019, %v7018
  %s7022 = scalar_lea.vmem %s1, 2385
  %7023 = vst.msk [vmem:[%s7022] ss:$-350 sm:$0x18] %vm7019, %v7018
  %s7024 = scalar_lea.vmem %s1, 7185
  %7025 = vst.msk [vmem:[%s7024] ss:$-1150 sm:$0x60] %vm7019, %v7018
  %s7026 = scalar_lea.vmem %s1, 728
  %7027 = vst.msk [vmem:[%s7026] sm:$0x80] %vm7019, %v7018
  %s7028 = scalar_lea.vmem %s0, 33
  %v7029 = vld.sshfl [vmem:[%s7028] sm:$0xff pattern:$0xbbb2907e]
  %s7030 = scalar_lea.vmem %s0, 4294967263
  %s7031 = smov 192
  %v7032 = vld [vmem:[%s7030] ss:$9 sm:%s7031]
  %vm7033 = vcmask 1047558
  %v7034 = vsel %vm7033, %v7032, %v7029
  %7035 = vrot.lane.b32.xlu0 %v7034, 58
  %v7036 = vpop.permute.xlu0 %7035
  %vm7037 = vcmask 15360
  %s7038 = scalar_lea.vmem %s1, 2385
  %7039 = vst.msk [vmem:[%s7038] ss:$-350 sm:$0x7] %vm7037, %v7036
  %s7040 = scalar_lea.vmem %s1, 3185
  %7041 = vst.msk [vmem:[%s7040] ss:$-350 sm:$0x18] %vm7037, %v7036
  %s7042 = scalar_lea.vmem %s1, 7985
  %7043 = vst.msk [vmem:[%s7042] ss:$-1150 sm:$0x60] %vm7037, %v7036
  %s7044 = scalar_lea.vmem %s1, 1528
  %7045 = vst.msk [vmem:[%s7044] sm:$0x80] %vm7037, %v7036
  %s7046 = scalar_lea.vmem %s0, 69
  %s7047 = smov 3
  %v7048 = vld [vmem:[%s7046] ss:$-7 sm:%s7047]
  %s7049 = scalar_lea.vmem %s0, 49
  %v7050 = vld.sshfl [vmem:[%s7049] sm:$0xff pattern:$0x8888f000]
  %vm7051 = vcmask 1044482
  %v7052 = vsel %vm7051, %v7050, %v7048
  %s7053 = scalar_lea.vmem %s0, 211
  %s7054 = smov 96
  %v7055 = vld [vmem:[%s7053] ss:$-29 sm:%s7054]
  %vm7056 = vcmask 1046533
  %v7057 = vsel %vm7056, %v7055, %v7052
  %s7058 = scalar_lea.vmem %s0, 39
  %v7059 = vld [vmem:[%s7058] sm:$0x80]
  %vm7060 = vcmask 1047559
  %v7061 = vsel %vm7060, %v7059, %v7057
  %7062 = vrot.lane.b32.xlu0 %v7061, 58
  %v7063 = vpop.permute.xlu0 %7062
  %vm7064 = vcmask 15360
  %s7065 = scalar_lea.vmem %s1, 3185
  %7066 = vst.msk [vmem:[%s7065] ss:$-350 sm:$0x7] %vm7064, %v7063
  %s7067 = scalar_lea.vmem %s1, 3985
  %7068 = vst.msk [vmem:[%s7067] ss:$-350 sm:$0x18] %vm7064, %v7063
  %s7069 = scalar_lea.vmem %s1, 8785
  %7070 = vst.msk [vmem:[%s7069] ss:$-1150 sm:$0x60] %vm7064, %v7063
  %s7071 = scalar_lea.vmem %s1, 2328
  %7072 = vst.msk [vmem:[%s7071] sm:$0x80] %vm7064, %v7063
  %s7073 = scalar_lea.vmem %s0, 71
  %v7074 = vld.sshfl [vmem:[%s7073] sm:$0xff pattern:$0xbbb2907e]
  %s7075 = scalar_lea.vmem %s0, 5
  %s7076 = smov 192
  %v7077 = vld [vmem:[%s7075] ss:$9 sm:%s7076]
  %vm7078 = vcmask 1047558
  %v7079 = vsel %vm7078, %v7077, %v7074
  %7080 = vrot.lane.b32.xlu0 %v7079, 58
  %v7081 = vpop.permute.xlu0 %7080
  %vm7082 = vcmask 15360
  %s7083 = scalar_lea.vmem %s1, 3985
  %7084 = vst.msk [vmem:[%s7083] ss:$-350 sm:$0x7] %vm7082, %v7081
  %s7085 = scalar_lea.vmem %s1, 4785
  %7086 = vst.msk [vmem:[%s7085] ss:$-350 sm:$0x18] %vm7082, %v7081
  %s7087 = scalar_lea.vmem %s1, 9585
  %7088 = vst.msk [vmem:[%s7087] ss:$-1150 sm:$0x60] %vm7082, %v7081
  %s7089 = scalar_lea.vmem %s1, 3128
  %7090 = vst.msk [vmem:[%s7089] sm:$0x80] %vm7082, %v7081
  %s7091 = scalar_lea.vmem %s0, 87
  %v7092 = vld.sshfl [vmem:[%s7091] sm:$0xff pattern:$0xbbb2907e]
  %s7093 = scalar_lea.vmem %s0, 21
  %s7094 = smov 192
  %v7095 = vld [vmem:[%s7093] ss:$9 sm:%s7094]
  %vm7096 = vcmask 1047558
  %v7097 = vsel %vm7096, %v7095, %v7092
  %7098 = vrot.lane.b32.xlu0 %v7097, 58
  %v7099 = vpop.permute.xlu0 %7098
  %vm7100 = vcmask 15360
  %s7101 = scalar_lea.vmem %s1, 4785
  %7102 = vst.msk [vmem:[%s7101] ss:$-350 sm:$0x7] %vm7100, %v7099
  %s7103 = scalar_lea.vmem %s1, 5585
  %7104 = vst.msk [vmem:[%s7103] ss:$-350 sm:$0x18] %vm7100, %v7099
  %s7105 = scalar_lea.vmem %s1, 10385
  %7106 = vst.msk [vmem:[%s7105] ss:$-1150 sm:$0x60] %vm7100, %v7099
  %s7107 = scalar_lea.vmem %s1, 3928
  %7108 = vst.msk [vmem:[%s7107] sm:$0x80] %vm7100, %v7099
  %s7109 = scalar_lea.vmem %s0, 91
  %v7110 = vld.sshfl [vmem:[%s7109] sm:$0xff pattern:$0x999990ec]
  %7111 = vrot.lane.b32.xlu0 %v7110, 58
  %v7112 = vpop.permute.xlu0 %7111
  %vm7113 = vcmask 15360
  %s7114 = scalar_lea.vmem %s1, 4885
  %7115 = vst.msk [vmem:[%s7114] ss:$100 sm:$0x3] %vm7113, %v7112
  %s7116 = scalar_lea.vmem %s1, 3385
  %7117 = vst.msk [vmem:[%s7116] ss:$450 sm:$0xc] %vm7113, %v7112
  %v7118 = vld.sshfl [vmem:[%s0] sm:$0xff pattern:$0xd4b2907e]
  %7119 = vrot.lane.b32.xlu0 %v7118, 56
  %v7120 = vpop.permute.xlu0 %7119
  %vm7121 = vcmask 15360
  %s7122 = scalar_lea.vmem %s1, 736
  %7123 = vst.msk [vmem:[%s7122] ss:$-350 sm:$0x7] %vm7121, %v7120
  %s7124 = scalar_lea.vmem %s1, 1536
  %7125 = vst.msk [vmem:[%s7124] ss:$-350 sm:$0x18] %vm7121, %v7120
  %s7126 = scalar_lea.vmem %s1, 2336
  %7127 = vst.msk [vmem:[%s7126] ss:$-350 sm:$0x60] %vm7121, %v7120
  %s7128 = scalar_lea.vmem %s1, 679
  %7129 = vst.msk [vmem:[%s7128] sm:$0x80] %vm7121, %v7120
  %s7130 = scalar_lea.vmem %s0, 16
  %v7131 = vld.sshfl [vmem:[%s7130] sm:$0xff pattern:$0xd4b2907e]
  %7132 = vrot.lane.b32.xlu0 %v7131, 56
  %v7133 = vpop.permute.xlu0 %7132
  %vm7134 = vcmask 15360
  %s7135 = scalar_lea.vmem %s1, 1536
  %7136 = vst.msk [vmem:[%s7135] ss:$-350 sm:$0x7] %vm7134, %v7133
  %s7137 = scalar_lea.vmem %s1, 2336
  %7138 = vst.msk [vmem:[%s7137] ss:$-350 sm:$0x18] %vm7134, %v7133
  %s7139 = scalar_lea.vmem %s1, 3136
  %7140 = vst.msk [vmem:[%s7139] ss:$-350 sm:$0x60] %vm7134, %v7133
  %s7141 = scalar_lea.vmem %s1, 1479
  %7142 = vst.msk [vmem:[%s7141] sm:$0x80] %vm7134, %v7133
  %s7143 = scalar_lea.vmem %s0, 32
  %v7144 = vld.sshfl [vmem:[%s7143] sm:$0xff pattern:$0xd4b2907e]
  %7145 = vrot.lane.b32.xlu0 %v7144, 56
  %v7146 = vpop.permute.xlu0 %7145
  %vm7147 = vcmask 15360
  %s7148 = scalar_lea.vmem %s1, 2336
  %7149 = vst.msk [vmem:[%s7148] ss:$-350 sm:$0x7] %vm7147, %v7146
  %s7150 = scalar_lea.vmem %s1, 3136
  %7151 = vst.msk [vmem:[%s7150] ss:$-350 sm:$0x18] %vm7147, %v7146
  %s7152 = scalar_lea.vmem %s1, 3936
  %7153 = vst.msk [vmem:[%s7152] ss:$-350 sm:$0x60] %vm7147, %v7146
  %s7154 = scalar_lea.vmem %s1, 2279
  %7155 = vst.msk [vmem:[%s7154] sm:$0x80] %vm7147, %v7146
  %s7156 = scalar_lea.vmem %s0, 68
  %s7157 = smov 3
  %v7158 = vld [vmem:[%s7156] ss:$-7 sm:%s7157]
  %s7159 = scalar_lea.vmem %s0, 48
  %v7160 = vld.sshfl [vmem:[%s7159] sm:$0xff pattern:$0x8888f000]
  %vm7161 = vcmask 1044482
  %v7162 = vsel %vm7161, %v7160, %v7158
  %s7163 = scalar_lea.vmem %s0, 58
  %v7164 = vld.sshfl [vmem:[%s7163] sm:$0xff pattern:$0x90777777]
  %vm7165 = vcmask 1047557
  %v7166 = vsel %vm7165, %v7164, %v7162
  %7167 = vrot.lane.b32.xlu0 %v7166, 56
  %v7168 = vpop.permute.xlu0 %7167
  %vm7169 = vcmask 15360
  %s7170 = scalar_lea.vmem %s1, 3136
  %7171 = vst.msk [vmem:[%s7170] ss:$-350 sm:$0x7] %vm7169, %v7168
  %s7172 = scalar_lea.vmem %s1, 3936
  %7173 = vst.msk [vmem:[%s7172] ss:$-350 sm:$0x18] %vm7169, %v7168
  %s7174 = scalar_lea.vmem %s1, 4736
  %7175 = vst.msk [vmem:[%s7174] ss:$-350 sm:$0x60] %vm7169, %v7168
  %s7176 = scalar_lea.vmem %s1, 3079
  %7177 = vst.msk [vmem:[%s7176] sm:$0x80] %vm7169, %v7168
  %s7178 = scalar_lea.vmem %s0, 70
  %v7179 = vld.sshfl [vmem:[%s7178] sm:$0xff pattern:$0xd4b2907e]
  %7180 = vrot.lane.b32.xlu0 %v7179, 56
  %v7181 = vpop.permute.xlu0 %7180
  %vm7182 = vcmask 15360
  %s7183 = scalar_lea.vmem %s1, 3936
  %7184 = vst.msk [vmem:[%s7183] ss:$-350 sm:$0x7] %vm7182, %v7181
  %s7185 = scalar_lea.vmem %s1, 4736
  %7186 = vst.msk [vmem:[%s7185] ss:$-350 sm:$0x18] %vm7182, %v7181
  %s7187 = scalar_lea.vmem %s1, 5536
  %7188 = vst.msk [vmem:[%s7187] ss:$-350 sm:$0x60] %vm7182, %v7181
  %s7189 = scalar_lea.vmem %s1, 3879
  %7190 = vst.msk [vmem:[%s7189] sm:$0x80] %vm7182, %v7181
  %s7191 = scalar_lea.vmem %s0, 86
  %v7192 = vld.sshfl [vmem:[%s7191] sm:$0xff pattern:$0xd4b2907e]
  %7193 = vrot.lane.b32.xlu0 %v7192, 56
  %v7194 = vpop.permute.xlu0 %7193
  %vm7195 = vcmask 15360
  %s7196 = scalar_lea.vmem %s1, 4736
  %7197 = vst.msk [vmem:[%s7196] ss:$-350 sm:$0x7] %vm7195, %v7194
  %s7198 = scalar_lea.vmem %s1, 5536
  %7199 = vst.msk [vmem:[%s7198] ss:$-350 sm:$0x18] %vm7195, %v7194
  %s7200 = scalar_lea.vmem %s1, 6336
  %7201 = vst.msk [vmem:[%s7200] ss:$-350 sm:$0x60] %vm7195, %v7194
  %s7202 = scalar_lea.vmem %s1, 4679
  %7203 = vst.msk [vmem:[%s7202] sm:$0x80] %vm7195, %v7194
  %s7204 = scalar_lea.vmem %s0, 102
  %s7205 = smov 3
  %v7206 = vld [vmem:[%s7204] ss:$2 sm:%s7205]
  %s7207 = scalar_lea.vmem %s0, 1
  %v7208 = vld.sshfl [vmem:[%s7207] sm:$0xff pattern:$0x2907e555]
  %vm7209 = vcmask 1047554
  %v7210 = vsel %vm7209, %v7208, %v7206
  %7211 = vrot.lane.b32.xlu0 %v7210, 56
  %v7212 = vpop.permute.xlu0 %7211
  %vm7213 = vcmask 15360
  %s7214 = scalar_lea.vmem %s1, 4836
  %7215 = vst.msk [vmem:[%s7214] ss:$100 sm:$0x3] %vm7213, %v7212
  %s7216 = scalar_lea.vmem %s1, 4294966732
  %7217 = vst.msk [vmem:[%s7216] ss:$450 sm:$0xc] %vm7213, %v7212
  %s7218 = scalar_lea.vmem %s1, 1836
  %7219 = vst.msk [vmem:[%s7218] ss:$-350 sm:$0x30] %vm7213, %v7212
  %s7220 = scalar_lea.vmem %s1, 2636
  %7221 = vst.msk [vmem:[%s7220] ss:$-350 sm:$0xc0] %vm7213, %v7212
  %s7222 = scalar_lea.vmem %s0, 17
  %v7223 = vld.sshfl [vmem:[%s7222] sm:$0xff pattern:$0x222907e5]
  %s7224 = scalar_lea.vmem %s0, 54
  %s7225 = smov 192
  %v7226 = vld [vmem:[%s7224] ss:$-7 sm:%s7225]
  %vm7227 = vcmask 1047558
  %v7228 = vsel %vm7227, %v7226, %v7223
  %7229 = vrot.lane.b32.xlu0 %v7228, 56
  %v7230 = vpop.permute.xlu0 %7229
  %vm7231 = vcmask 15360
  %s7232 = scalar_lea.vmem %s1, 1136
  %7233 = vst.msk [vmem:[%s7232] ss:$450 sm:$0x3] %vm7231, %v7230
  %s7234 = scalar_lea.vmem %s1, 1936
  %7235 = vst.msk [vmem:[%s7234] ss:$-350 sm:$0xc] %vm7231, %v7230
  %s7236 = scalar_lea.vmem %s1, 2736
  %7237 = vst.msk [vmem:[%s7236] ss:$-350 sm:$0xf0] %vm7231, %v7230
  %s7238 = scalar_lea.vmem %s0, 33
  %v7239 = vld.sshfl [vmem:[%s7238] sm:$0xff pattern:$0x222907e5]
  %s7240 = scalar_lea.vmem %s0, 70
  %s7241 = smov 192
  %v7242 = vld [vmem:[%s7240] ss:$-7 sm:%s7241]
  %vm7243 = vcmask 1047558
  %v7244 = vsel %vm7243, %v7242, %v7239
  %7245 = vrot.lane.b32.xlu0 %v7244, 56
  %v7246 = vpop.permute.xlu0 %7245
  %vm7247 = vcmask 15360
  %s7248 = scalar_lea.vmem %s1, 1936
  %7249 = vst.msk [vmem:[%s7248] ss:$450 sm:$0x3] %vm7247, %v7246
  %s7250 = scalar_lea.vmem %s1, 2736
  %7251 = vst.msk [vmem:[%s7250] ss:$-350 sm:$0xc] %vm7247, %v7246
  %s7252 = scalar_lea.vmem %s1, 3536
  %7253 = vst.msk [vmem:[%s7252] ss:$-350 sm:$0xf0] %vm7247, %v7246
  %s7254 = scalar_lea.vmem %s0, 60
  %v7255 = vld.sshfl [vmem:[%s7254] sm:$0xff pattern:$0x22222290]
  %s7256 = scalar_lea.vmem %s0, 49
  %v7257 = vld.sshfl [vmem:[%s7256] sm:$0xff pattern:$0x888f0000]
  %vm7258 = vcmask 1045507
  %v7259 = vsel %vm7258, %v7257, %v7255
  %s7260 = scalar_lea.vmem %s0, 86
  %s7261 = smov 192
  %v7262 = vld [vmem:[%s7260] ss:$-7 sm:%s7261]
  %vm7263 = vcmask 1047558
  %v7264 = vsel %vm7263, %v7262, %v7259
  %7265 = vrot.lane.b32.xlu0 %v7264, 56
  %v7266 = vpop.permute.xlu0 %7265
  %vm7267 = vcmask 15360
  %s7268 = scalar_lea.vmem %s1, 2736
  %7269 = vst.msk [vmem:[%s7268] ss:$450 sm:$0x3] %vm7267, %v7266
  %s7270 = scalar_lea.vmem %s1, 3536
  %7271 = vst.msk [vmem:[%s7270] ss:$-350 sm:$0xc] %vm7267, %v7266
  %s7272 = scalar_lea.vmem %s1, 4336
  %7273 = vst.msk [vmem:[%s7272] ss:$-350 sm:$0xf0] %vm7267, %v7266
  %s7274 = scalar_lea.vmem %s0, 71
  %v7275 = vld.sshfl [vmem:[%s7274] sm:$0xff pattern:$0x222907e5]
  %s7276 = scalar_lea.vmem %s0, 108
  %s7277 = smov 192
  %v7278 = vld [vmem:[%s7276] ss:$-7 sm:%s7277]
  %vm7279 = vcmask 1047558
  %v7280 = vsel %vm7279, %v7278, %v7275
  %7281 = vrot.lane.b32.xlu0 %v7280, 56
  %v7282 = vpop.permute.xlu0 %7281
  %vm7283 = vcmask 15360
  %s7284 = scalar_lea.vmem %s1, 3536
  %7285 = vst.msk [vmem:[%s7284] ss:$450 sm:$0x3] %vm7283, %v7282
  %s7286 = scalar_lea.vmem %s1, 4336
  %7287 = vst.msk [vmem:[%s7286] ss:$-350 sm:$0xc] %vm7283, %v7282
  %s7288 = scalar_lea.vmem %s1, 5136
  %7289 = vst.msk [vmem:[%s7288] ss:$-350 sm:$0xf0] %vm7283, %v7282
  %s7290 = scalar_lea.vmem %s0, 87
  %v7291 = vld.sshfl [vmem:[%s7290] sm:$0xff pattern:$0x222907e5]
  %s7292 = scalar_lea.vmem %s0, 124
  %s7293 = smov 192
  %v7294 = vld [vmem:[%s7292] ss:$-7 sm:%s7293]
  %vm7295 = vcmask 1047558
  %v7296 = vsel %vm7295, %v7294, %v7291
  %7297 = vrot.lane.b32.xlu0 %v7296, 56
  %v7298 = vpop.permute.xlu0 %7297
  %vm7299 = vcmask 15360
  %s7300 = scalar_lea.vmem %s1, 4336
  %7301 = vst.msk [vmem:[%s7300] ss:$450 sm:$0x3] %vm7299, %v7298
  %s7302 = scalar_lea.vmem %s1, 5136
  %7303 = vst.msk [vmem:[%s7302] ss:$-350 sm:$0xc] %vm7299, %v7298
  %s7304 = scalar_lea.vmem %s1, 5936
  %7305 = vst.msk [vmem:[%s7304] ss:$-350 sm:$0xf0] %vm7299, %v7298
  %s7306 = scalar_lea.vmem %s0, 91
  %v7307 = vld.sshfl [vmem:[%s7306] sm:$0xff pattern:$0x7ec]
  %7308 = vrot.lane.b32.xlu0 %v7307, 56
  %v7309 = vpop.permute.xlu0 %7308
  %vm7310 = vcmask 15360
  %s7311 = scalar_lea.vmem %s1, 4886
  %7312 = vst.msk [vmem:[%s7311] ss:$100 sm:$0x3] %vm7310, %v7309
  %s7313 = scalar_lea.vmem %s1, 5336
  %7314 = vst.msk [vmem:[%s7313] ss:$-350 sm:$0xc] %vm7310, %v7309
  %v7315 = vld.sshfl [vmem:[%s0] sm:$0xff pattern:$0xd4b2907e]
  %7316 = vrot.lane.b32.xlu0 %v7315, 54
  %v7317 = vpop.permute.xlu0 %7316
  %vm7318 = vcmask 15360
  %s7319 = scalar_lea.vmem %s1, 737
  %7320 = vst.msk [vmem:[%s7319] ss:$-350 sm:$0x7] %vm7318, %v7317
  %s7321 = scalar_lea.vmem %s1, 1537
  %7322 = vst.msk [vmem:[%s7321] ss:$-350 sm:$0x18] %vm7318, %v7317
  %s7323 = scalar_lea.vmem %s1, 2337
  %7324 = vst.msk [vmem:[%s7323] ss:$-350 sm:$0x60] %vm7318, %v7317
  %s7325 = scalar_lea.vmem %s1, 680
  %7326 = vst.msk [vmem:[%s7325] sm:$0x80] %vm7318, %v7317
  %s7327 = scalar_lea.vmem %s0, 16
  %v7328 = vld.sshfl [vmem:[%s7327] sm:$0xff pattern:$0xd4b2907e]
  %7329 = vrot.lane.b32.xlu0 %v7328, 54
  %v7330 = vpop.permute.xlu0 %7329
  %vm7331 = vcmask 15360
  %s7332 = scalar_lea.vmem %s1, 1537
  %7333 = vst.msk [vmem:[%s7332] ss:$-350 sm:$0x7] %vm7331, %v7330
  %s7334 = scalar_lea.vmem %s1, 2337
  %7335 = vst.msk [vmem:[%s7334] ss:$-350 sm:$0x18] %vm7331, %v7330
  %s7336 = scalar_lea.vmem %s1, 3137
  %7337 = vst.msk [vmem:[%s7336] ss:$-350 sm:$0x60] %vm7331, %v7330
  %s7338 = scalar_lea.vmem %s1, 1480
  %7339 = vst.msk [vmem:[%s7338] sm:$0x80] %vm7331, %v7330
  %s7340 = scalar_lea.vmem %s0, 32
  %v7341 = vld.sshfl [vmem:[%s7340] sm:$0xff pattern:$0xd4b2907e]
  %7342 = vrot.lane.b32.xlu0 %v7341, 54
  %v7343 = vpop.permute.xlu0 %7342
  %vm7344 = vcmask 15360
  %s7345 = scalar_lea.vmem %s1, 2337
  %7346 = vst.msk [vmem:[%s7345] ss:$-350 sm:$0x7] %vm7344, %v7343
  %s7347 = scalar_lea.vmem %s1, 3137
  %7348 = vst.msk [vmem:[%s7347] ss:$-350 sm:$0x18] %vm7344, %v7343
  %s7349 = scalar_lea.vmem %s1, 3937
  %7350 = vst.msk [vmem:[%s7349] ss:$-350 sm:$0x60] %vm7344, %v7343
  %s7351 = scalar_lea.vmem %s1, 2280
  %7352 = vst.msk [vmem:[%s7351] sm:$0x80] %vm7344, %v7343
  %s7353 = scalar_lea.vmem %s0, 68
  %s7354 = smov 3
  %v7355 = vld [vmem:[%s7353] ss:$-7 sm:%s7354]
  %s7356 = scalar_lea.vmem %s0, 48
  %v7357 = vld.sshfl [vmem:[%s7356] sm:$0xff pattern:$0x8888f000]
  %vm7358 = vcmask 1044482
  %v7359 = vsel %vm7358, %v7357, %v7355
  %s7360 = scalar_lea.vmem %s0, 58
  %v7361 = vld.sshfl [vmem:[%s7360] sm:$0xff pattern:$0x90777777]
  %vm7362 = vcmask 1047557
  %v7363 = vsel %vm7362, %v7361, %v7359
  %7364 = vrot.lane.b32.xlu0 %v7363, 54
  %v7365 = vpop.permute.xlu0 %7364
  %vm7366 = vcmask 15360
  %s7367 = scalar_lea.vmem %s1, 3137
  %7368 = vst.msk [vmem:[%s7367] ss:$-350 sm:$0x7] %vm7366, %v7365
  %s7369 = scalar_lea.vmem %s1, 3937
  %7370 = vst.msk [vmem:[%s7369] ss:$-350 sm:$0x18] %vm7366, %v7365
  %s7371 = scalar_lea.vmem %s1, 4737
  %7372 = vst.msk [vmem:[%s7371] ss:$-350 sm:$0x60] %vm7366, %v7365
  %s7373 = scalar_lea.vmem %s1, 3080
  %7374 = vst.msk [vmem:[%s7373] sm:$0x80] %vm7366, %v7365
  %s7375 = scalar_lea.vmem %s0, 70
  %v7376 = vld.sshfl [vmem:[%s7375] sm:$0xff pattern:$0xd4b2907e]
  %7377 = vrot.lane.b32.xlu0 %v7376, 54
  %v7378 = vpop.permute.xlu0 %7377
  %vm7379 = vcmask 15360
  %s7380 = scalar_lea.vmem %s1, 3937
  %7381 = vst.msk [vmem:[%s7380] ss:$-350 sm:$0x7] %vm7379, %v7378
  %s7382 = scalar_lea.vmem %s1, 4737
  %7383 = vst.msk [vmem:[%s7382] ss:$-350 sm:$0x18] %vm7379, %v7378
  %s7384 = scalar_lea.vmem %s1, 5537
  %7385 = vst.msk [vmem:[%s7384] ss:$-350 sm:$0x60] %vm7379, %v7378
  %s7386 = scalar_lea.vmem %s1, 3880
  %7387 = vst.msk [vmem:[%s7386] sm:$0x80] %vm7379, %v7378
  %s7388 = scalar_lea.vmem %s0, 86
  %v7389 = vld.sshfl [vmem:[%s7388] sm:$0xff pattern:$0xd4b2907e]
  %7390 = vrot.lane.b32.xlu0 %v7389, 54
  %v7391 = vpop.permute.xlu0 %7390
  %vm7392 = vcmask 15360
  %s7393 = scalar_lea.vmem %s1, 4737
  %7394 = vst.msk [vmem:[%s7393] ss:$-350 sm:$0x7] %vm7392, %v7391
  %s7395 = scalar_lea.vmem %s1, 5537
  %7396 = vst.msk [vmem:[%s7395] ss:$-350 sm:$0x18] %vm7392, %v7391
  %s7397 = scalar_lea.vmem %s1, 6337
  %7398 = vst.msk [vmem:[%s7397] ss:$-350 sm:$0x60] %vm7392, %v7391
  %s7399 = scalar_lea.vmem %s1, 4680
  %7400 = vst.msk [vmem:[%s7399] sm:$0x80] %vm7392, %v7391
  %s7401 = scalar_lea.vmem %s0, 102
  %s7402 = smov 3
  %v7403 = vld [vmem:[%s7401] ss:$2 sm:%s7402]
  %s7404 = scalar_lea.vmem %s0, 1
  %v7405 = vld.sshfl [vmem:[%s7404] sm:$0xff pattern:$0x2907e555]
  %vm7406 = vcmask 1047554
  %v7407 = vsel %vm7406, %v7405, %v7403
  %7408 = vrot.lane.b32.xlu0 %v7407, 54
  %v7409 = vpop.permute.xlu0 %7408
  %vm7410 = vcmask 15360
  %s7411 = scalar_lea.vmem %s1, 4837
  %7412 = vst.msk [vmem:[%s7411] ss:$100 sm:$0x3] %vm7410, %v7409
  %s7413 = scalar_lea.vmem %s1, 4294966733
  %7414 = vst.msk [vmem:[%s7413] ss:$450 sm:$0xc] %vm7410, %v7409
  %s7415 = scalar_lea.vmem %s1, 1837
  %7416 = vst.msk [vmem:[%s7415] ss:$-350 sm:$0x30] %vm7410, %v7409
  %s7417 = scalar_lea.vmem %s1, 2637
  %7418 = vst.msk [vmem:[%s7417] ss:$-350 sm:$0xc0] %vm7410, %v7409
  %s7419 = scalar_lea.vmem %s0, 17
  %v7420 = vld.sshfl [vmem:[%s7419] sm:$0xff pattern:$0x222907e5]
  %s7421 = scalar_lea.vmem %s0, 54
  %s7422 = smov 192
  %v7423 = vld [vmem:[%s7421] ss:$-7 sm:%s7422]
  %vm7424 = vcmask 1047558
  %v7425 = vsel %vm7424, %v7423, %v7420
  %7426 = vrot.lane.b32.xlu0 %v7425, 54
  %v7427 = vpop.permute.xlu0 %7426
  %vm7428 = vcmask 15360
  %s7429 = scalar_lea.vmem %s1, 1137
  %7430 = vst.msk [vmem:[%s7429] ss:$450 sm:$0x3] %vm7428, %v7427
  %s7431 = scalar_lea.vmem %s1, 1937
  %7432 = vst.msk [vmem:[%s7431] ss:$-350 sm:$0xc] %vm7428, %v7427
  %s7433 = scalar_lea.vmem %s1, 2737
  %7434 = vst.msk [vmem:[%s7433] ss:$-350 sm:$0xf0] %vm7428, %v7427
  %s7435 = scalar_lea.vmem %s0, 33
  %v7436 = vld.sshfl [vmem:[%s7435] sm:$0xff pattern:$0x222907e5]
  %s7437 = scalar_lea.vmem %s0, 70
  %s7438 = smov 192
  %v7439 = vld [vmem:[%s7437] ss:$-7 sm:%s7438]
  %vm7440 = vcmask 1047558
  %v7441 = vsel %vm7440, %v7439, %v7436
  %7442 = vrot.lane.b32.xlu0 %v7441, 54
  %v7443 = vpop.permute.xlu0 %7442
  %vm7444 = vcmask 15360
  %s7445 = scalar_lea.vmem %s1, 1937
  %7446 = vst.msk [vmem:[%s7445] ss:$450 sm:$0x3] %vm7444, %v7443
  %s7447 = scalar_lea.vmem %s1, 2737
  %7448 = vst.msk [vmem:[%s7447] ss:$-350 sm:$0xc] %vm7444, %v7443
  %s7449 = scalar_lea.vmem %s1, 3537
  %7450 = vst.msk [vmem:[%s7449] ss:$-350 sm:$0xf0] %vm7444, %v7443
  %s7451 = scalar_lea.vmem %s0, 60
  %v7452 = vld.sshfl [vmem:[%s7451] sm:$0xff pattern:$0x22222290]
  %s7453 = scalar_lea.vmem %s0, 49
  %v7454 = vld.sshfl [vmem:[%s7453] sm:$0xff pattern:$0x888f0000]
  %vm7455 = vcmask 1045507
  %v7456 = vsel %vm7455, %v7454, %v7452
  %s7457 = scalar_lea.vmem %s0, 86
  %s7458 = smov 192
  %v7459 = vld [vmem:[%s7457] ss:$-7 sm:%s7458]
  %vm7460 = vcmask 1047558
  %v7461 = vsel %vm7460, %v7459, %v7456
  %7462 = vrot.lane.b32.xlu0 %v7461, 54
  %v7463 = vpop.permute.xlu0 %7462
  %vm7464 = vcmask 15360
  %s7465 = scalar_lea.vmem %s1, 2737
  %7466 = vst.msk [vmem:[%s7465] ss:$450 sm:$0x3] %vm7464, %v7463
  %s7467 = scalar_lea.vmem %s1, 3537
  %7468 = vst.msk [vmem:[%s7467] ss:$-350 sm:$0xc] %vm7464, %v7463
  %s7469 = scalar_lea.vmem %s1, 4337
  %7470 = vst.msk [vmem:[%s7469] ss:$-350 sm:$0xf0] %vm7464, %v7463
  %s7471 = scalar_lea.vmem %s0, 71
  %v7472 = vld.sshfl [vmem:[%s7471] sm:$0xff pattern:$0x222907e5]
  %s7473 = scalar_lea.vmem %s0, 108
  %s7474 = smov 192
  %v7475 = vld [vmem:[%s7473] ss:$-7 sm:%s7474]
  %vm7476 = vcmask 1047558
  %v7477 = vsel %vm7476, %v7475, %v7472
  %7478 = vrot.lane.b32.xlu0 %v7477, 54
  %v7479 = vpop.permute.xlu0 %7478
  %vm7480 = vcmask 15360
  %s7481 = scalar_lea.vmem %s1, 3537
  %7482 = vst.msk [vmem:[%s7481] ss:$450 sm:$0x3] %vm7480, %v7479
  %s7483 = scalar_lea.vmem %s1, 4337
  %7484 = vst.msk [vmem:[%s7483] ss:$-350 sm:$0xc] %vm7480, %v7479
  %s7485 = scalar_lea.vmem %s1, 5137
  %7486 = vst.msk [vmem:[%s7485] ss:$-350 sm:$0xf0] %vm7480, %v7479
  %s7487 = scalar_lea.vmem %s0, 87
  %v7488 = vld.sshfl [vmem:[%s7487] sm:$0xff pattern:$0x222907e5]
  %s7489 = scalar_lea.vmem %s0, 124
  %s7490 = smov 192
  %v7491 = vld [vmem:[%s7489] ss:$-7 sm:%s7490]
  %vm7492 = vcmask 1047558
  %v7493 = vsel %vm7492, %v7491, %v7488
  %7494 = vrot.lane.b32.xlu0 %v7493, 54
  %v7495 = vpop.permute.xlu0 %7494
  %vm7496 = vcmask 15360
  %s7497 = scalar_lea.vmem %s1, 4337
  %7498 = vst.msk [vmem:[%s7497] ss:$450 sm:$0x3] %vm7496, %v7495
  %s7499 = scalar_lea.vmem %s1, 5137
  %7500 = vst.msk [vmem:[%s7499] ss:$-350 sm:$0xc] %vm7496, %v7495
  %s7501 = scalar_lea.vmem %s1, 5937
  %7502 = vst.msk [vmem:[%s7501] ss:$-350 sm:$0xf0] %vm7496, %v7495
  %s7503 = scalar_lea.vmem %s0, 91
  %v7504 = vld.sshfl [vmem:[%s7503] sm:$0xff pattern:$0x7ec]
  %7505 = vrot.lane.b32.xlu0 %v7504, 54
  %v7506 = vpop.permute.xlu0 %7505
  %vm7507 = vcmask 15360
  %s7508 = scalar_lea.vmem %s1, 4887
  %7509 = vst.msk [vmem:[%s7508] ss:$100 sm:$0x3] %vm7507, %v7506
  %s7510 = scalar_lea.vmem %s1, 5337
  %7511 = vst.msk [vmem:[%s7510] ss:$-350 sm:$0xc] %vm7507, %v7506
  %v7512 = vld.sshfl [vmem:[%s0] sm:$0xff pattern:$0x4b2907e5]
  %7513 = vrot.lane.b32.xlu0 %v7512, 52
  %v7514 = vpop.permute.xlu0 %7513
  %vm7515 = vcmask 15360
  %s7516 = scalar_lea.vmem %s1, 288
  %7517 = vst.msk [vmem:[%s7516] ss:$450 sm:$0x3] %vm7515, %v7514
  %s7518 = scalar_lea.vmem %s1, 1088
  %7519 = vst.msk [vmem:[%s7518] ss:$-350 sm:$0xc] %vm7515, %v7514
  %s7520 = scalar_lea.vmem %s1, 1888
  %7521 = vst.msk [vmem:[%s7520] ss:$-350 sm:$0x30] %vm7515, %v7514
  %s7522 = scalar_lea.vmem %s1, 2688
  %7523 = vst.msk [vmem:[%s7522] ss:$-350 sm:$0xc0] %vm7515, %v7514
  %s7524 = scalar_lea.vmem %s0, 16
  %v7525 = vld.sshfl [vmem:[%s7524] sm:$0xff pattern:$0x4b2907e5]
  %7526 = vrot.lane.b32.xlu0 %v7525, 52
  %v7527 = vpop.permute.xlu0 %7526
  %vm7528 = vcmask 15360
  %s7529 = scalar_lea.vmem %s1, 1088
  %7530 = vst.msk [vmem:[%s7529] ss:$450 sm:$0x3] %vm7528, %v7527
  %s7531 = scalar_lea.vmem %s1, 1888
  %7532 = vst.msk [vmem:[%s7531] ss:$-350 sm:$0xc] %vm7528, %v7527
  %s7533 = scalar_lea.vmem %s1, 2688
  %7534 = vst.msk [vmem:[%s7533] ss:$-350 sm:$0x30] %vm7528, %v7527
  %s7535 = scalar_lea.vmem %s1, 3488
  %7536 = vst.msk [vmem:[%s7535] ss:$-350 sm:$0xc0] %vm7528, %v7527
  %s7537 = scalar_lea.vmem %s0, 32
  %v7538 = vld.sshfl [vmem:[%s7537] sm:$0xff pattern:$0x4b2907e5]
  %7539 = vrot.lane.b32.xlu0 %v7538, 52
  %v7540 = vpop.permute.xlu0 %7539
  %vm7541 = vcmask 15360
  %s7542 = scalar_lea.vmem %s1, 1888
  %7543 = vst.msk [vmem:[%s7542] ss:$450 sm:$0x3] %vm7541, %v7540
  %s7544 = scalar_lea.vmem %s1, 2688
  %7545 = vst.msk [vmem:[%s7544] ss:$-350 sm:$0xc] %vm7541, %v7540
  %s7546 = scalar_lea.vmem %s1, 3488
  %7547 = vst.msk [vmem:[%s7546] ss:$-350 sm:$0x30] %vm7541, %v7540
  %s7548 = scalar_lea.vmem %s1, 4288
  %7549 = vst.msk [vmem:[%s7548] ss:$-350 sm:$0xc0] %vm7541, %v7540
  %s7550 = scalar_lea.vmem %s0, 59
  %v7551 = vld.sshfl [vmem:[%s7550] sm:$0xff pattern:$0x22222290]
  %s7552 = scalar_lea.vmem %s0, 48
  %v7553 = vld.sshfl [vmem:[%s7552] sm:$0xff pattern:$0x888f0000]
  %vm7554 = vcmask 1045507
  %v7555 = vsel %vm7554, %v7553, %v7551
  %s7556 = scalar_lea.vmem %s0, 107
  %s7557 = smov 192
  %v7558 = vld [vmem:[%s7556] ss:$-7 sm:%s7557]
  %vm7559 = vcmask 1047558
  %v7560 = vsel %vm7559, %v7558, %v7555
  %7561 = vrot.lane.b32.xlu0 %v7560, 52
  %v7562 = vpop.permute.xlu0 %7561
  %vm7563 = vcmask 15360
  %s7564 = scalar_lea.vmem %s1, 2688
  %7565 = vst.msk [vmem:[%s7564] ss:$450 sm:$0x3] %vm7563, %v7562
  %s7566 = scalar_lea.vmem %s1, 3488
  %7567 = vst.msk [vmem:[%s7566] ss:$-350 sm:$0xc] %vm7563, %v7562
  %s7568 = scalar_lea.vmem %s1, 4288
  %7569 = vst.msk [vmem:[%s7568] ss:$-350 sm:$0x30] %vm7563, %v7562
  %s7570 = scalar_lea.vmem %s1, 5088
  %7571 = vst.msk [vmem:[%s7570] ss:$-350 sm:$0xc0] %vm7563, %v7562
  %s7572 = scalar_lea.vmem %s0, 70
  %v7573 = vld.sshfl [vmem:[%s7572] sm:$0xff pattern:$0x4b2907e5]
  %7574 = vrot.lane.b32.xlu0 %v7573, 52
  %v7575 = vpop.permute.xlu0 %7574
  %vm7576 = vcmask 15360
  %s7577 = scalar_lea.vmem %s1, 3488
  %7578 = vst.msk [vmem:[%s7577] ss:$450 sm:$0x3] %vm7576, %v7575
  %s7579 = scalar_lea.vmem %s1, 4288
  %7580 = vst.msk [vmem:[%s7579] ss:$-350 sm:$0xc] %vm7576, %v7575
  %s7581 = scalar_lea.vmem %s1, 5088
  %7582 = vst.msk [vmem:[%s7581] ss:$-350 sm:$0x30] %vm7576, %v7575
  %s7583 = scalar_lea.vmem %s1, 5888
  %7584 = vst.msk [vmem:[%s7583] ss:$-350 sm:$0xc0] %vm7576, %v7575
  %s7585 = scalar_lea.vmem %s0, 86
  %v7586 = vld.sshfl [vmem:[%s7585] sm:$0xff pattern:$0x4b2907e5]
  %7587 = vrot.lane.b32.xlu0 %v7586, 52
  %v7588 = vpop.permute.xlu0 %7587
  %vm7589 = vcmask 15360
  %s7590 = scalar_lea.vmem %s1, 4288
  %7591 = vst.msk [vmem:[%s7590] ss:$450 sm:$0x3] %vm7589, %v7588
  %s7592 = scalar_lea.vmem %s1, 5088
  %7593 = vst.msk [vmem:[%s7592] ss:$-350 sm:$0xc] %vm7589, %v7588
  %s7594 = scalar_lea.vmem %s1, 5888
  %7595 = vst.msk [vmem:[%s7594] ss:$-350 sm:$0x30] %vm7589, %v7588
  %s7596 = scalar_lea.vmem %s1, 6688
  %7597 = vst.msk [vmem:[%s7596] ss:$-350 sm:$0xc0] %vm7589, %v7588
  %s7598 = scalar_lea.vmem %s0, 102
  %s7599 = smov 3
  %v7600 = vld [vmem:[%s7598] ss:$2 sm:%s7599]
  %s7601 = scalar_lea.vmem %s0, 1
  %v7602 = vld.sshfl [vmem:[%s7601] sm:$0xff pattern:$0x907e5ccc]
  %vm7603 = vcmask 1047554
  %v7604 = vsel %vm7603, %v7602, %v7600
  %7605 = vrot.lane.b32.xlu0 %v7604, 52
  %v7606 = vpop.permute.xlu0 %7605
  %vm7607 = vcmask 15360
  %s7608 = scalar_lea.vmem %s1, 4838
  %7609 = vst.msk [vmem:[%s7608] ss:$100 sm:$0x3] %vm7607, %v7606
  %s7610 = scalar_lea.vmem %s1, 1388
  %7611 = vst.msk [vmem:[%s7610] ss:$-350 sm:$0xc] %vm7607, %v7606
  %s7612 = scalar_lea.vmem %s1, 2188
  %7613 = vst.msk [vmem:[%s7612] ss:$-350 sm:$0x70] %vm7607, %v7606
  %s7614 = scalar_lea.vmem %s1, 531
  %7615 = vst.msk [vmem:[%s7614] sm:$0x80] %vm7607, %v7606
  %s7616 = scalar_lea.vmem %s0, 17
  %v7617 = vld.sshfl [vmem:[%s7616] sm:$0xff pattern:$0x99907e5c]
  %s7618 = scalar_lea.vmem %s0, 4294967245
  %s7619 = smov 192
  %v7620 = vld [vmem:[%s7618] ss:$9 sm:%s7619]
  %vm7621 = vcmask 1047558
  %v7622 = vsel %vm7621, %v7620, %v7617
  %7623 = vrot.lane.b32.xlu0 %v7622, 52
  %v7624 = vpop.permute.xlu0 %7623
  %vm7625 = vcmask 15360
  %s7626 = scalar_lea.vmem %s1, 1488
  %7627 = vst.msk [vmem:[%s7626] ss:$-350 sm:$0x3] %vm7625, %v7624
  %s7628 = scalar_lea.vmem %s1, 2288
  %7629 = vst.msk [vmem:[%s7628] ss:$-350 sm:$0x1c] %vm7625, %v7624
  %s7630 = scalar_lea.vmem %s1, 7088
  %7631 = vst.msk [vmem:[%s7630] ss:$-1150 sm:$0x60] %vm7625, %v7624
  %s7632 = scalar_lea.vmem %s1, 631
  %7633 = vst.msk [vmem:[%s7632] sm:$0x80] %vm7625, %v7624
  %s7634 = scalar_lea.vmem %s0, 33
  %v7635 = vld.sshfl [vmem:[%s7634] sm:$0xff pattern:$0x99907e5c]
  %s7636 = scalar_lea.vmem %s0, 4294967261
  %s7637 = smov 192
  %v7638 = vld [vmem:[%s7636] ss:$9 sm:%s7637]
  %vm7639 = vcmask 1047558
  %v7640 = vsel %vm7639, %v7638, %v7635
  %7641 = vrot.lane.b32.xlu0 %v7640, 52
  %v7642 = vpop.permute.xlu0 %7641
  %vm7643 = vcmask 15360
  %s7644 = scalar_lea.vmem %s1, 2288
  %7645 = vst.msk [vmem:[%s7644] ss:$-350 sm:$0x3] %vm7643, %v7642
  %s7646 = scalar_lea.vmem %s1, 3088
  %7647 = vst.msk [vmem:[%s7646] ss:$-350 sm:$0x1c] %vm7643, %v7642
  %s7648 = scalar_lea.vmem %s1, 7888
  %7649 = vst.msk [vmem:[%s7648] ss:$-1150 sm:$0x60] %vm7643, %v7642
  %s7650 = scalar_lea.vmem %s1, 1431
  %7651 = vst.msk [vmem:[%s7650] sm:$0x80] %vm7643, %v7642
  %s7652 = scalar_lea.vmem %s0, 60
  %v7653 = vld.sshfl [vmem:[%s7652] sm:$0xff pattern:$0x22222907]
  %s7654 = scalar_lea.vmem %s0, 4294967285
  %s7655 = smov 48
  %v7656 = vld [vmem:[%s7654] ss:$15 sm:%s7655]
  %vm7657 = vcmask 1045508
  %v7658 = vsel %vm7657, %v7656, %v7653
  %s7659 = scalar_lea.vmem %s0, 4294967277
  %s7660 = smov 192
  %v7661 = vld [vmem:[%s7659] ss:$9 sm:%s7660]
  %vm7662 = vcmask 1047558
  %v7663 = vsel %vm7662, %v7661, %v7658
  %7664 = vrot.lane.b32.xlu0 %v7663, 52
  %v7665 = vpop.permute.xlu0 %7664
  %vm7666 = vcmask 15360
  %s7667 = scalar_lea.vmem %s1, 3088
  %7668 = vst.msk [vmem:[%s7667] ss:$-350 sm:$0x3] %vm7666, %v7665
  %s7669 = scalar_lea.vmem %s1, 3888
  %7670 = vst.msk [vmem:[%s7669] ss:$-350 sm:$0x1c] %vm7666, %v7665
  %s7671 = scalar_lea.vmem %s1, 8688
  %7672 = vst.msk [vmem:[%s7671] ss:$-1150 sm:$0x60] %vm7666, %v7665
  %s7673 = scalar_lea.vmem %s1, 2231
  %7674 = vst.msk [vmem:[%s7673] sm:$0x80] %vm7666, %v7665
  %s7675 = scalar_lea.vmem %s0, 71
  %v7676 = vld.sshfl [vmem:[%s7675] sm:$0xff pattern:$0x99907e5c]
  %s7677 = scalar_lea.vmem %s0, 3
  %s7678 = smov 192
  %v7679 = vld [vmem:[%s7677] ss:$9 sm:%s7678]
  %vm7680 = vcmask 1047558
  %v7681 = vsel %vm7680, %v7679, %v7676
  %7682 = vrot.lane.b32.xlu0 %v7681, 52
  %v7683 = vpop.permute.xlu0 %7682
  %vm7684 = vcmask 15360
  %s7685 = scalar_lea.vmem %s1, 3888
  %7686 = vst.msk [vmem:[%s7685] ss:$-350 sm:$0x3] %vm7684, %v7683
  %s7687 = scalar_lea.vmem %s1, 4688
  %7688 = vst.msk [vmem:[%s7687] ss:$-350 sm:$0x1c] %vm7684, %v7683
  %s7689 = scalar_lea.vmem %s1, 9488
  %7690 = vst.msk [vmem:[%s7689] ss:$-1150 sm:$0x60] %vm7684, %v7683
  %s7691 = scalar_lea.vmem %s1, 3031
  %7692 = vst.msk [vmem:[%s7691] sm:$0x80] %vm7684, %v7683
  %s7693 = scalar_lea.vmem %s0, 87
  %v7694 = vld.sshfl [vmem:[%s7693] sm:$0xff pattern:$0x99907e5c]
  %s7695 = scalar_lea.vmem %s0, 19
  %s7696 = smov 192
  %v7697 = vld [vmem:[%s7695] ss:$9 sm:%s7696]
  %vm7698 = vcmask 1047558
  %v7699 = vsel %vm7698, %v7697, %v7694
  %7700 = vrot.lane.b32.xlu0 %v7699, 52
  %v7701 = vpop.permute.xlu0 %7700
  %vm7702 = vcmask 15360
  %s7703 = scalar_lea.vmem %s1, 4688
  %7704 = vst.msk [vmem:[%s7703] ss:$-350 sm:$0x3] %vm7702, %v7701
  %s7705 = scalar_lea.vmem %s1, 5488
  %7706 = vst.msk [vmem:[%s7705] ss:$-350 sm:$0x1c] %vm7702, %v7701
  %s7707 = scalar_lea.vmem %s1, 10288
  %7708 = vst.msk [vmem:[%s7707] ss:$-1150 sm:$0x60] %vm7702, %v7701
  %s7709 = scalar_lea.vmem %s1, 3831
  %7710 = vst.msk [vmem:[%s7709] sm:$0x80] %vm7702, %v7701
  %s7711 = scalar_lea.vmem %s0, 89
  %v7712 = vld.sshfl [vmem:[%s7711] sm:$0xff pattern:$0x9999990e]
  %s7713 = scalar_lea.vmem %s0, 102
  %v7714 = vld [vmem:[%s7713] sm:$0x8]
  %vm7715 = vcmask 1043459
  %v7716 = vsel %vm7715, %v7714, %v7712
  %7717 = vrot.lane.b32.xlu0 %v7716, 52
  %v7718 = vpop.permute.xlu0 %7717
  %vm7719 = vcmask 15360
  %s7720 = scalar_lea.vmem %s1, 4888
  %7721 = vst.msk [vmem:[%s7720] ss:$-700 sm:$0x3] %vm7719, %v7718
  %s7722 = scalar_lea.vmem %s1, 3938
  %7723 = vst.msk [vmem:[%s7722] ss:$350 sm:$0xc] %vm7719, %v7718
  %v7724 = vld.sshfl [vmem:[%s0] sm:$0xff pattern:$0x4b2907e5]
  %7725 = vrot.lane.b32.xlu0 %v7724, 50
  %v7726 = vpop.permute.xlu0 %7725
  %vm7727 = vcmask 15360
  %s7728 = scalar_lea.vmem %s1, 289
  %7729 = vst.msk [vmem:[%s7728] ss:$450 sm:$0x3] %vm7727, %v7726
  %s7730 = scalar_lea.vmem %s1, 1089
  %7731 = vst.msk [vmem:[%s7730] ss:$-350 sm:$0xc] %vm7727, %v7726
  %s7732 = scalar_lea.vmem %s1, 1889
  %7733 = vst.msk [vmem:[%s7732] ss:$-350 sm:$0x30] %vm7727, %v7726
  %s7734 = scalar_lea.vmem %s1, 2689
  %7735 = vst.msk [vmem:[%s7734] ss:$-350 sm:$0xc0] %vm7727, %v7726
  %s7736 = scalar_lea.vmem %s0, 16
  %v7737 = vld.sshfl [vmem:[%s7736] sm:$0xff pattern:$0x4b2907e5]
  %7738 = vrot.lane.b32.xlu0 %v7737, 50
  %v7739 = vpop.permute.xlu0 %7738
  %vm7740 = vcmask 15360
  %s7741 = scalar_lea.vmem %s1, 1089
  %7742 = vst.msk [vmem:[%s7741] ss:$450 sm:$0x3] %vm7740, %v7739
  %s7743 = scalar_lea.vmem %s1, 1889
  %7744 = vst.msk [vmem:[%s7743] ss:$-350 sm:$0xc] %vm7740, %v7739
  %s7745 = scalar_lea.vmem %s1, 2689
  %7746 = vst.msk [vmem:[%s7745] ss:$-350 sm:$0x30] %vm7740, %v7739
  %s7747 = scalar_lea.vmem %s1, 3489
  %7748 = vst.msk [vmem:[%s7747] ss:$-350 sm:$0xc0] %vm7740, %v7739
  %s7749 = scalar_lea.vmem %s0, 32
  %v7750 = vld.sshfl [vmem:[%s7749] sm:$0xff pattern:$0x4b2907e5]
  %7751 = vrot.lane.b32.xlu0 %v7750, 50
  %v7752 = vpop.permute.xlu0 %7751
  %vm7753 = vcmask 15360
  %s7754 = scalar_lea.vmem %s1, 1889
  %7755 = vst.msk [vmem:[%s7754] ss:$450 sm:$0x3] %vm7753, %v7752
  %s7756 = scalar_lea.vmem %s1, 2689
  %7757 = vst.msk [vmem:[%s7756] ss:$-350 sm:$0xc] %vm7753, %v7752
  %s7758 = scalar_lea.vmem %s1, 3489
  %7759 = vst.msk [vmem:[%s7758] ss:$-350 sm:$0x30] %vm7753, %v7752
  %s7760 = scalar_lea.vmem %s1, 4289
  %7761 = vst.msk [vmem:[%s7760] ss:$-350 sm:$0xc0] %vm7753, %v7752
  %s7762 = scalar_lea.vmem %s0, 59
  %v7763 = vld.sshfl [vmem:[%s7762] sm:$0xff pattern:$0x22222290]
  %s7764 = scalar_lea.vmem %s0, 48
  %v7765 = vld.sshfl [vmem:[%s7764] sm:$0xff pattern:$0x888f0000]
  %vm7766 = vcmask 1045507
  %v7767 = vsel %vm7766, %v7765, %v7763
  %s7768 = scalar_lea.vmem %s0, 107
  %s7769 = smov 192
  %v7770 = vld [vmem:[%s7768] ss:$-7 sm:%s7769]
  %vm7771 = vcmask 1047558
  %v7772 = vsel %vm7771, %v7770, %v7767
  %7773 = vrot.lane.b32.xlu0 %v7772, 50
  %v7774 = vpop.permute.xlu0 %7773
  %vm7775 = vcmask 15360
  %s7776 = scalar_lea.vmem %s1, 2689
  %7777 = vst.msk [vmem:[%s7776] ss:$450 sm:$0x3] %vm7775, %v7774
  %s7778 = scalar_lea.vmem %s1, 3489
  %7779 = vst.msk [vmem:[%s7778] ss:$-350 sm:$0xc] %vm7775, %v7774
  %s7780 = scalar_lea.vmem %s1, 4289
  %7781 = vst.msk [vmem:[%s7780] ss:$-350 sm:$0x30] %vm7775, %v7774
  %s7782 = scalar_lea.vmem %s1, 5089
  %7783 = vst.msk [vmem:[%s7782] ss:$-350 sm:$0xc0] %vm7775, %v7774
  %s7784 = scalar_lea.vmem %s0, 70
  %v7785 = vld.sshfl [vmem:[%s7784] sm:$0xff pattern:$0x4b2907e5]
  %7786 = vrot.lane.b32.xlu0 %v7785, 50
  %v7787 = vpop.permute.xlu0 %7786
  %vm7788 = vcmask 15360
  %s7789 = scalar_lea.vmem %s1, 3489
  %7790 = vst.msk [vmem:[%s7789] ss:$450 sm:$0x3] %vm7788, %v7787
  %s7791 = scalar_lea.vmem %s1, 4289
  %7792 = vst.msk [vmem:[%s7791] ss:$-350 sm:$0xc] %vm7788, %v7787
  %s7793 = scalar_lea.vmem %s1, 5089
  %7794 = vst.msk [vmem:[%s7793] ss:$-350 sm:$0x30] %vm7788, %v7787
  %s7795 = scalar_lea.vmem %s1, 5889
  %7796 = vst.msk [vmem:[%s7795] ss:$-350 sm:$0xc0] %vm7788, %v7787
  %s7797 = scalar_lea.vmem %s0, 86
  %v7798 = vld.sshfl [vmem:[%s7797] sm:$0xff pattern:$0x4b2907e5]
  %7799 = vrot.lane.b32.xlu0 %v7798, 50
  %v7800 = vpop.permute.xlu0 %7799
  %vm7801 = vcmask 15360
  %s7802 = scalar_lea.vmem %s1, 4289
  %7803 = vst.msk [vmem:[%s7802] ss:$450 sm:$0x3] %vm7801, %v7800
  %s7804 = scalar_lea.vmem %s1, 5089
  %7805 = vst.msk [vmem:[%s7804] ss:$-350 sm:$0xc] %vm7801, %v7800
  %s7806 = scalar_lea.vmem %s1, 5889
  %7807 = vst.msk [vmem:[%s7806] ss:$-350 sm:$0x30] %vm7801, %v7800
  %s7808 = scalar_lea.vmem %s1, 6689
  %7809 = vst.msk [vmem:[%s7808] ss:$-350 sm:$0xc0] %vm7801, %v7800
  %s7810 = scalar_lea.vmem %s0, 102
  %s7811 = smov 3
  %v7812 = vld [vmem:[%s7810] ss:$2 sm:%s7811]
  %s7813 = scalar_lea.vmem %s0, 1
  %v7814 = vld.sshfl [vmem:[%s7813] sm:$0xff pattern:$0x907e5ccc]
  %vm7815 = vcmask 1047554
  %v7816 = vsel %vm7815, %v7814, %v7812
  %7817 = vrot.lane.b32.xlu0 %v7816, 50
  %v7818 = vpop.permute.xlu0 %7817
  %vm7819 = vcmask 15360
  %s7820 = scalar_lea.vmem %s1, 4839
  %7821 = vst.msk [vmem:[%s7820] ss:$100 sm:$0x3] %vm7819, %v7818
  %s7822 = scalar_lea.vmem %s1, 1389
  %7823 = vst.msk [vmem:[%s7822] ss:$-350 sm:$0xc] %vm7819, %v7818
  %s7824 = scalar_lea.vmem %s1, 2189
  %7825 = vst.msk [vmem:[%s7824] ss:$-350 sm:$0x70] %vm7819, %v7818
  %s7826 = scalar_lea.vmem %s1, 532
  %7827 = vst.msk [vmem:[%s7826] sm:$0x80] %vm7819, %v7818
  %s7828 = scalar_lea.vmem %s0, 17
  %v7829 = vld.sshfl [vmem:[%s7828] sm:$0xff pattern:$0x99907e5c]
  %s7830 = scalar_lea.vmem %s0, 4294967245
  %s7831 = smov 192
  %v7832 = vld [vmem:[%s7830] ss:$9 sm:%s7831]
  %vm7833 = vcmask 1047558
  %v7834 = vsel %vm7833, %v7832, %v7829
  %7835 = vrot.lane.b32.xlu0 %v7834, 50
  %v7836 = vpop.permute.xlu0 %7835
  %vm7837 = vcmask 15360
  %s7838 = scalar_lea.vmem %s1, 1489
  %7839 = vst.msk [vmem:[%s7838] ss:$-350 sm:$0x3] %vm7837, %v7836
  %s7840 = scalar_lea.vmem %s1, 2289
  %7841 = vst.msk [vmem:[%s7840] ss:$-350 sm:$0x1c] %vm7837, %v7836
  %s7842 = scalar_lea.vmem %s1, 7089
  %7843 = vst.msk [vmem:[%s7842] ss:$-1150 sm:$0x60] %vm7837, %v7836
  %s7844 = scalar_lea.vmem %s1, 632
  %7845 = vst.msk [vmem:[%s7844] sm:$0x80] %vm7837, %v7836
  %s7846 = scalar_lea.vmem %s0, 33
  %v7847 = vld.sshfl [vmem:[%s7846] sm:$0xff pattern:$0x99907e5c]
  %s7848 = scalar_lea.vmem %s0, 4294967261
  %s7849 = smov 192
  %v7850 = vld [vmem:[%s7848] ss:$9 sm:%s7849]
  %vm7851 = vcmask 1047558
  %v7852 = vsel %vm7851, %v7850, %v7847
  %7853 = vrot.lane.b32.xlu0 %v7852, 50
  %v7854 = vpop.permute.xlu0 %7853
  %vm7855 = vcmask 15360
  %s7856 = scalar_lea.vmem %s1, 2289
  %7857 = vst.msk [vmem:[%s7856] ss:$-350 sm:$0x3] %vm7855, %v7854
  %s7858 = scalar_lea.vmem %s1, 3089
  %7859 = vst.msk [vmem:[%s7858] ss:$-350 sm:$0x1c] %vm7855, %v7854
  %s7860 = scalar_lea.vmem %s1, 7889
  %7861 = vst.msk [vmem:[%s7860] ss:$-1150 sm:$0x60] %vm7855, %v7854
  %s7862 = scalar_lea.vmem %s1, 1432
  %7863 = vst.msk [vmem:[%s7862] sm:$0x80] %vm7855, %v7854
  %s7864 = scalar_lea.vmem %s0, 60
  %v7865 = vld.sshfl [vmem:[%s7864] sm:$0xff pattern:$0x22222907]
  %s7866 = scalar_lea.vmem %s0, 4294967285
  %s7867 = smov 48
  %v7868 = vld [vmem:[%s7866] ss:$15 sm:%s7867]
  %vm7869 = vcmask 1045508
  %v7870 = vsel %vm7869, %v7868, %v7865
  %s7871 = scalar_lea.vmem %s0, 4294967277
  %s7872 = smov 192
  %v7873 = vld [vmem:[%s7871] ss:$9 sm:%s7872]
  %vm7874 = vcmask 1047558
  %v7875 = vsel %vm7874, %v7873, %v7870
  %7876 = vrot.lane.b32.xlu0 %v7875, 50
  %v7877 = vpop.permute.xlu0 %7876
  %vm7878 = vcmask 15360
  %s7879 = scalar_lea.vmem %s1, 3089
  %7880 = vst.msk [vmem:[%s7879] ss:$-350 sm:$0x3] %vm7878, %v7877
  %s7881 = scalar_lea.vmem %s1, 3889
  %7882 = vst.msk [vmem:[%s7881] ss:$-350 sm:$0x1c] %vm7878, %v7877
  %s7883 = scalar_lea.vmem %s1, 8689
  %7884 = vst.msk [vmem:[%s7883] ss:$-1150 sm:$0x60] %vm7878, %v7877
  %s7885 = scalar_lea.vmem %s1, 2232
  %7886 = vst.msk [vmem:[%s7885] sm:$0x80] %vm7878, %v7877
  %s7887 = scalar_lea.vmem %s0, 71
  %v7888 = vld.sshfl [vmem:[%s7887] sm:$0xff pattern:$0x99907e5c]
  %s7889 = scalar_lea.vmem %s0, 3
  %s7890 = smov 192
  %v7891 = vld [vmem:[%s7889] ss:$9 sm:%s7890]
  %vm7892 = vcmask 1047558
  %v7893 = vsel %vm7892, %v7891, %v7888
  %7894 = vrot.lane.b32.xlu0 %v7893, 50
  %v7895 = vpop.permute.xlu0 %7894
  %vm7896 = vcmask 15360
  %s7897 = scalar_lea.vmem %s1, 3889
  %7898 = vst.msk [vmem:[%s7897] ss:$-350 sm:$0x3] %vm7896, %v7895
  %s7899 = scalar_lea.vmem %s1, 4689
  %7900 = vst.msk [vmem:[%s7899] ss:$-350 sm:$0x1c] %vm7896, %v7895
  %s7901 = scalar_lea.vmem %s1, 9489
  %7902 = vst.msk [vmem:[%s7901] ss:$-1150 sm:$0x60] %vm7896, %v7895
  %s7903 = scalar_lea.vmem %s1, 3032
  %7904 = vst.msk [vmem:[%s7903] sm:$0x80] %vm7896, %v7895
  %s7905 = scalar_lea.vmem %s0, 87
  %v7906 = vld.sshfl [vmem:[%s7905] sm:$0xff pattern:$0x99907e5c]
  %s7907 = scalar_lea.vmem %s0, 19
  %s7908 = smov 192
  %v7909 = vld [vmem:[%s7907] ss:$9 sm:%s7908]
  %vm7910 = vcmask 1047558
  %v7911 = vsel %vm7910, %v7909, %v7906
  %7912 = vrot.lane.b32.xlu0 %v7911, 50
  %v7913 = vpop.permute.xlu0 %7912
  %vm7914 = vcmask 15360
  %s7915 = scalar_lea.vmem %s1, 4689
  %7916 = vst.msk [vmem:[%s7915] ss:$-350 sm:$0x3] %vm7914, %v7913
  %s7917 = scalar_lea.vmem %s1, 5489
  %7918 = vst.msk [vmem:[%s7917] ss:$-350 sm:$0x1c] %vm7914, %v7913
  %s7919 = scalar_lea.vmem %s1, 10289
  %7920 = vst.msk [vmem:[%s7919] ss:$-1150 sm:$0x60] %vm7914, %v7913
  %s7921 = scalar_lea.vmem %s1, 3832
  %7922 = vst.msk [vmem:[%s7921] sm:$0x80] %vm7914, %v7913
  %s7923 = scalar_lea.vmem %s0, 89
  %v7924 = vld.sshfl [vmem:[%s7923] sm:$0xff pattern:$0x9999990e]
  %s7925 = scalar_lea.vmem %s0, 102
  %v7926 = vld [vmem:[%s7925] sm:$0x8]
  %vm7927 = vcmask 1043459
  %v7928 = vsel %vm7927, %v7926, %v7924
  %7929 = vrot.lane.b32.xlu0 %v7928, 50
  %v7930 = vpop.permute.xlu0 %7929
  %vm7931 = vcmask 15360
  %s7932 = scalar_lea.vmem %s1, 4889
  %7933 = vst.msk [vmem:[%s7932] ss:$-700 sm:$0x3] %vm7931, %v7930
  %s7934 = scalar_lea.vmem %s1, 3939
  %7935 = vst.msk [vmem:[%s7934] ss:$350 sm:$0xc] %vm7931, %v7930
  %v7936 = vld.sshfl [vmem:[%s0] sm:$0xff pattern:$0xb2907e5c]
  %7937 = vrot.lane.b32.xlu0 %v7936, 48
  %v7938 = vpop.permute.xlu0 %7937
  %vm7939 = vcmask 15360
  %s7940 = scalar_lea.vmem %s1, 640
  %7941 = vst.msk [vmem:[%s7940] ss:$-350 sm:$0x3] %vm7939, %v7938
  %s7942 = scalar_lea.vmem %s1, 1440
  %7943 = vst.msk [vmem:[%s7942] ss:$-350 sm:$0x1c] %vm7939, %v7938
  %s7944 = scalar_lea.vmem %s1, 2240
  %7945 = vst.msk [vmem:[%s7944] ss:$-350 sm:$0x60] %vm7939, %v7938
  %s7946 = scalar_lea.vmem %s1, 583
  %7947 = vst.msk [vmem:[%s7946] sm:$0x80] %vm7939, %v7938
  %s7948 = scalar_lea.vmem %s0, 16
  %v7949 = vld.sshfl [vmem:[%s7948] sm:$0xff pattern:$0xb2907e5c]
  %7950 = vrot.lane.b32.xlu0 %v7949, 48
  %v7951 = vpop.permute.xlu0 %7950
  %vm7952 = vcmask 15360
  %s7953 = scalar_lea.vmem %s1, 1440
  %7954 = vst.msk [vmem:[%s7953] ss:$-350 sm:$0x3] %vm7952, %v7951
  %s7955 = scalar_lea.vmem %s1, 2240
  %7956 = vst.msk [vmem:[%s7955] ss:$-350 sm:$0x1c] %vm7952, %v7951
  %s7957 = scalar_lea.vmem %s1, 3040
  %7958 = vst.msk [vmem:[%s7957] ss:$-350 sm:$0x60] %vm7952, %v7951
  %s7959 = scalar_lea.vmem %s1, 1383
  %7960 = vst.msk [vmem:[%s7959] sm:$0x80] %vm7952, %v7951
  %s7961 = scalar_lea.vmem %s0, 32
  %v7962 = vld.sshfl [vmem:[%s7961] sm:$0xff pattern:$0xb2907e5c]
  %7963 = vrot.lane.b32.xlu0 %v7962, 48
  %v7964 = vpop.permute.xlu0 %7963
  %vm7965 = vcmask 15360
  %s7966 = scalar_lea.vmem %s1, 2240
  %7967 = vst.msk [vmem:[%s7966] ss:$-350 sm:$0x3] %vm7965, %v7964
  %s7968 = scalar_lea.vmem %s1, 3040
  %7969 = vst.msk [vmem:[%s7968] ss:$-350 sm:$0x1c] %vm7965, %v7964
  %s7970 = scalar_lea.vmem %s1, 3840
  %7971 = vst.msk [vmem:[%s7970] ss:$-350 sm:$0x60] %vm7965, %v7964
  %s7972 = scalar_lea.vmem %s1, 2183
  %7973 = vst.msk [vmem:[%s7972] sm:$0x80] %vm7965, %v7964
  %s7974 = scalar_lea.vmem %s0, 59
  %v7975 = vld.sshfl [vmem:[%s7974] sm:$0xff pattern:$0x22222907]
  %s7976 = scalar_lea.vmem %s0, 48
  %v7977 = vld.sshfl [vmem:[%s7976] sm:$0xff pattern:$0x88f00000]
  %vm7978 = vcmask 1046532
  %v7979 = vsel %vm7978, %v7977, %v7975
  %s7980 = scalar_lea.vmem %s0, 58
  %v7981 = vld [vmem:[%s7980] sm:$0x80]
  %vm7982 = vcmask 1047559
  %v7983 = vsel %vm7982, %v7981, %v7979
  %7984 = vrot.lane.b32.xlu0 %v7983, 48
  %v7985 = vpop.permute.xlu0 %7984
  %vm7986 = vcmask 15360
  %s7987 = scalar_lea.vmem %s1, 3040
  %7988 = vst.msk [vmem:[%s7987] ss:$-350 sm:$0x3] %vm7986, %v7985
  %s7989 = scalar_lea.vmem %s1, 3840
  %7990 = vst.msk [vmem:[%s7989] ss:$-350 sm:$0x1c] %vm7986, %v7985
  %s7991 = scalar_lea.vmem %s1, 4640
  %7992 = vst.msk [vmem:[%s7991] ss:$-350 sm:$0x60] %vm7986, %v7985
  %s7993 = scalar_lea.vmem %s1, 2983
  %7994 = vst.msk [vmem:[%s7993] sm:$0x80] %vm7986, %v7985
  %s7995 = scalar_lea.vmem %s0, 70
  %v7996 = vld.sshfl [vmem:[%s7995] sm:$0xff pattern:$0xb2907e5c]
  %7997 = vrot.lane.b32.xlu0 %v7996, 48
  %v7998 = vpop.permute.xlu0 %7997
  %vm7999 = vcmask 15360
  %s8000 = scalar_lea.vmem %s1, 3840
  %8001 = vst.msk [vmem:[%s8000] ss:$-350 sm:$0x3] %vm7999, %v7998
  %s8002 = scalar_lea.vmem %s1, 4640
  %8003 = vst.msk [vmem:[%s8002] ss:$-350 sm:$0x1c] %vm7999, %v7998
  %s8004 = scalar_lea.vmem %s1, 5440
  %8005 = vst.msk [vmem:[%s8004] ss:$-350 sm:$0x60] %vm7999, %v7998
  %s8006 = scalar_lea.vmem %s1, 3783
  %8007 = vst.msk [vmem:[%s8006] sm:$0x80] %vm7999, %v7998
  %s8008 = scalar_lea.vmem %s0, 86
  %v8009 = vld.sshfl [vmem:[%s8008] sm:$0xff pattern:$0xb2907e5c]
  %8010 = vrot.lane.b32.xlu0 %v8009, 48
  %v8011 = vpop.permute.xlu0 %8010
  %vm8012 = vcmask 15360
  %s8013 = scalar_lea.vmem %s1, 4640
  %8014 = vst.msk [vmem:[%s8013] ss:$-350 sm:$0x3] %vm8012, %v8011
  %s8015 = scalar_lea.vmem %s1, 5440
  %8016 = vst.msk [vmem:[%s8015] ss:$-350 sm:$0x1c] %vm8012, %v8011
  %s8017 = scalar_lea.vmem %s1, 6240
  %8018 = vst.msk [vmem:[%s8017] ss:$-350 sm:$0x60] %vm8012, %v8011
  %s8019 = scalar_lea.vmem %s1, 4583
  %8020 = vst.msk [vmem:[%s8019] sm:$0x80] %vm8012, %v8011
  %s8021 = scalar_lea.vmem %s0, 102
  %s8022 = smov 3
  %v8023 = vld [vmem:[%s8021] ss:$2 sm:%s8022]
  %s8024 = scalar_lea.vmem %s0, 1
  %v8025 = vld.sshfl [vmem:[%s8024] sm:$0xff pattern:$0x7e5c333]
  %vm8026 = vcmask 1047554
  %v8027 = vsel %vm8026, %v8025, %v8023
  %8028 = vrot.lane.b32.xlu0 %v8027, 48
  %v8029 = vpop.permute.xlu0 %8028
  %vm8030 = vcmask 15360
  %s8031 = scalar_lea.vmem %s1, 4840
  %8032 = vst.msk [vmem:[%s8031] ss:$100 sm:$0x3] %vm8030, %v8029
  %s8033 = scalar_lea.vmem %s1, 4294966636
  %8034 = vst.msk [vmem:[%s8033] ss:$450 sm:$0xc] %vm8030, %v8029
  %s8035 = scalar_lea.vmem %s1, 4294965836
  %8036 = vst.msk [vmem:[%s8035] ss:$450 sm:$0x30] %vm8030, %v8029
  %s8037 = scalar_lea.vmem %s1, 2540
  %8038 = vst.msk [vmem:[%s8037] ss:$-350 sm:$0xc0] %vm8030, %v8029
  %s8039 = scalar_lea.vmem %s0, 17
  %v8040 = vld.sshfl [vmem:[%s8039] sm:$0xff pattern:$0x7e5c3]
  %s8041 = scalar_lea.vmem %s0, 52
  %s8042 = smov 192
  %v8043 = vld [vmem:[%s8041] ss:$-7 sm:%s8042]
  %vm8044 = vcmask 1047558
  %v8045 = vsel %vm8044, %v8043, %v8040
  %8046 = vrot.lane.b32.xlu0 %v8045, 48
  %v8047 = vpop.permute.xlu0 %8046
  %vm8048 = vcmask 15360
  %s8049 = scalar_lea.vmem %s1, 1040
  %8050 = vst.msk [vmem:[%s8049] ss:$450 sm:$0x3] %vm8048, %v8047
  %s8051 = scalar_lea.vmem %s1, 240
  %8052 = vst.msk [vmem:[%s8051] ss:$450 sm:$0xc] %vm8048, %v8047
  %s8053 = scalar_lea.vmem %s1, 2640
  %8054 = vst.msk [vmem:[%s8053] ss:$-350 sm:$0xf0] %vm8048, %v8047
  %s8055 = scalar_lea.vmem %s0, 33
  %v8056 = vld.sshfl [vmem:[%s8055] sm:$0xff pattern:$0x7e5c3]
  %s8057 = scalar_lea.vmem %s0, 68
  %s8058 = smov 192
  %v8059 = vld [vmem:[%s8057] ss:$-7 sm:%s8058]
  %vm8060 = vcmask 1047558
  %v8061 = vsel %vm8060, %v8059, %v8056
  %8062 = vrot.lane.b32.xlu0 %v8061, 48
  %v8063 = vpop.permute.xlu0 %8062
  %vm8064 = vcmask 15360
  %s8065 = scalar_lea.vmem %s1, 1840
  %8066 = vst.msk [vmem:[%s8065] ss:$450 sm:$0x3] %vm8064, %v8063
  %s8067 = scalar_lea.vmem %s1, 1040
  %8068 = vst.msk [vmem:[%s8067] ss:$450 sm:$0xc] %vm8064, %v8063
  %s8069 = scalar_lea.vmem %s1, 3440
  %8070 = vst.msk [vmem:[%s8069] ss:$-350 sm:$0xf0] %vm8064, %v8063
  %s8071 = scalar_lea.vmem %s0, 58
  %v8072 = vld.sshfl [vmem:[%s8071] sm:$0xff pattern:$0x4444b290]
  %s8073 = scalar_lea.vmem %s0, 84
  %v8074 = vld [vmem:[%s8073] ss:$-7 sm:$0xe0]
  %vm8075 = vcmask 1047557
  %v8076 = vsel %vm8075, %v8074, %v8072
  %8077 = vrot.lane.b32.xlu0 %v8076, 48
  %v8078 = vpop.permute.xlu0 %8077
  %vm8079 = vcmask 15360
  %s8080 = scalar_lea.vmem %s1, 2640
  %8081 = vst.msk [vmem:[%s8080] ss:$450 sm:$0x3] %vm8079, %v8078
  %s8082 = scalar_lea.vmem %s1, 1840
  %8083 = vst.msk [vmem:[%s8082] ss:$450 sm:$0xc] %vm8079, %v8078
  %s8084 = scalar_lea.vmem %s1, 4240
  %8085 = vst.msk [vmem:[%s8084] ss:$-350 sm:$0xf0] %vm8079, %v8078
  %s8086 = scalar_lea.vmem %s0, 71
  %v8087 = vld.sshfl [vmem:[%s8086] sm:$0xff pattern:$0x7e5c3]
  %s8088 = scalar_lea.vmem %s0, 106
  %s8089 = smov 192
  %v8090 = vld [vmem:[%s8088] ss:$-7 sm:%s8089]
  %vm8091 = vcmask 1047558
  %v8092 = vsel %vm8091, %v8090, %v8087
  %8093 = vrot.lane.b32.xlu0 %v8092, 48
  %v8094 = vpop.permute.xlu0 %8093
  %vm8095 = vcmask 15360
  %s8096 = scalar_lea.vmem %s1, 3440
  %8097 = vst.msk [vmem:[%s8096] ss:$450 sm:$0x3] %vm8095, %v8094
  %s8098 = scalar_lea.vmem %s1, 2640
  %8099 = vst.msk [vmem:[%s8098] ss:$450 sm:$0xc] %vm8095, %v8094
  %s8100 = scalar_lea.vmem %s1, 5040
  %8101 = vst.msk [vmem:[%s8100] ss:$-350 sm:$0xf0] %vm8095, %v8094
  %s8102 = scalar_lea.vmem %s0, 87
  %v8103 = vld.sshfl [vmem:[%s8102] sm:$0xff pattern:$0x7e5c3]
  %s8104 = scalar_lea.vmem %s0, 122
  %s8105 = smov 192
  %v8106 = vld [vmem:[%s8104] ss:$-7 sm:%s8105]
  %vm8107 = vcmask 1047558
  %v8108 = vsel %vm8107, %v8106, %v8103
  %8109 = vrot.lane.b32.xlu0 %v8108, 48
  %v8110 = vpop.permute.xlu0 %8109
  %vm8111 = vcmask 15360
  %s8112 = scalar_lea.vmem %s1, 4240
  %8113 = vst.msk [vmem:[%s8112] ss:$450 sm:$0x3] %vm8111, %v8110
  %s8114 = scalar_lea.vmem %s1, 3440
  %8115 = vst.msk [vmem:[%s8114] ss:$450 sm:$0xc] %vm8111, %v8110
  %s8116 = scalar_lea.vmem %s1, 5840
  %8117 = vst.msk [vmem:[%s8116] ss:$-350 sm:$0xf0] %vm8111, %v8110
  %s8118 = scalar_lea.vmem %s0, 103
  %v8119 = vld [vmem:[%s8118] ss:$-7 sm:$0x7]
  %s8120 = scalar_lea.vmem %s0, 102
  %v8121 = vld [vmem:[%s8120] sm:$0x8]
  %vm8122 = vcmask 1043459
  %v8123 = vsel %vm8122, %v8121, %v8119
  %8124 = vrot.lane.b32.xlu0 %v8123, 48
  %v8125 = vpop.permute.xlu0 %8124
  %vm8126 = vcmask 15360
  %s8127 = scalar_lea.vmem %s1, 4890
  %8128 = vst.msk [vmem:[%s8127] ss:$-350 sm:$0x7] %vm8126, %v8125
  %s8129 = scalar_lea.vmem %s1, 4987
  %8130 = vst.msk [vmem:[%s8129] sm:$0x8] %vm8126, %v8125
  %v8131 = vld.sshfl [vmem:[%s0] sm:$0xff pattern:$0xb2907e5c]
  %8132 = vrot.lane.b32.xlu0 %v8131, 46
  %v8133 = vpop.permute.xlu0 %8132
  %vm8134 = vcmask 15360
  %s8135 = scalar_lea.vmem %s1, 641
  %8136 = vst.msk [vmem:[%s8135] ss:$-350 sm:$0x3] %vm8134, %v8133
  %s8137 = scalar_lea.vmem %s1, 1441
  %8138 = vst.msk [vmem:[%s8137] ss:$-350 sm:$0x1c] %vm8134, %v8133
  %s8139 = scalar_lea.vmem %s1, 2241
  %8140 = vst.msk [vmem:[%s8139] ss:$-350 sm:$0x60] %vm8134, %v8133
  %s8141 = scalar_lea.vmem %s1, 584
  %8142 = vst.msk [vmem:[%s8141] sm:$0x80] %vm8134, %v8133
  %s8143 = scalar_lea.vmem %s0, 16
  %v8144 = vld.sshfl [vmem:[%s8143] sm:$0xff pattern:$0xb2907e5c]
  %8145 = vrot.lane.b32.xlu0 %v8144, 46
  %v8146 = vpop.permute.xlu0 %8145
  %vm8147 = vcmask 15360
  %s8148 = scalar_lea.vmem %s1, 1441
  %8149 = vst.msk [vmem:[%s8148] ss:$-350 sm:$0x3] %vm8147, %v8146
  %s8150 = scalar_lea.vmem %s1, 2241
  %8151 = vst.msk [vmem:[%s8150] ss:$-350 sm:$0x1c] %vm8147, %v8146
  %s8152 = scalar_lea.vmem %s1, 3041
  %8153 = vst.msk [vmem:[%s8152] ss:$-350 sm:$0x60] %vm8147, %v8146
  %s8154 = scalar_lea.vmem %s1, 1384
  %8155 = vst.msk [vmem:[%s8154] sm:$0x80] %vm8147, %v8146
  %s8156 = scalar_lea.vmem %s0, 32
  %v8157 = vld.sshfl [vmem:[%s8156] sm:$0xff pattern:$0xb2907e5c]
  %8158 = vrot.lane.b32.xlu0 %v8157, 46
  %v8159 = vpop.permute.xlu0 %8158
  %vm8160 = vcmask 15360
  %s8161 = scalar_lea.vmem %s1, 2241
  %8162 = vst.msk [vmem:[%s8161] ss:$-350 sm:$0x3] %vm8160, %v8159
  %s8163 = scalar_lea.vmem %s1, 3041
  %8164 = vst.msk [vmem:[%s8163] ss:$-350 sm:$0x1c] %vm8160, %v8159
  %s8165 = scalar_lea.vmem %s1, 3841
  %8166 = vst.msk [vmem:[%s8165] ss:$-350 sm:$0x60] %vm8160, %v8159
  %s8167 = scalar_lea.vmem %s1, 2184
  %8168 = vst.msk [vmem:[%s8167] sm:$0x80] %vm8160, %v8159
  %s8169 = scalar_lea.vmem %s0, 59
  %v8170 = vld.sshfl [vmem:[%s8169] sm:$0xff pattern:$0x22222907]
  %s8171 = scalar_lea.vmem %s0, 48
  %v8172 = vld.sshfl [vmem:[%s8171] sm:$0xff pattern:$0x88f00000]
  %vm8173 = vcmask 1046532
  %v8174 = vsel %vm8173, %v8172, %v8170
  %s8175 = scalar_lea.vmem %s0, 58
  %v8176 = vld [vmem:[%s8175] sm:$0x80]
  %vm8177 = vcmask 1047559
  %v8178 = vsel %vm8177, %v8176, %v8174
  %8179 = vrot.lane.b32.xlu0 %v8178, 46
  %v8180 = vpop.permute.xlu0 %8179
  %vm8181 = vcmask 15360
  %s8182 = scalar_lea.vmem %s1, 3041
  %8183 = vst.msk [vmem:[%s8182] ss:$-350 sm:$0x3] %vm8181, %v8180
  %s8184 = scalar_lea.vmem %s1, 3841
  %8185 = vst.msk [vmem:[%s8184] ss:$-350 sm:$0x1c] %vm8181, %v8180
  %s8186 = scalar_lea.vmem %s1, 4641
  %8187 = vst.msk [vmem:[%s8186] ss:$-350 sm:$0x60] %vm8181, %v8180
  %s8188 = scalar_lea.vmem %s1, 2984
  %8189 = vst.msk [vmem:[%s8188] sm:$0x80] %vm8181, %v8180
  %s8190 = scalar_lea.vmem %s0, 70
  %v8191 = vld.sshfl [vmem:[%s8190] sm:$0xff pattern:$0xb2907e5c]
  %8192 = vrot.lane.b32.xlu0 %v8191, 46
  %v8193 = vpop.permute.xlu0 %8192
  %vm8194 = vcmask 15360
  %s8195 = scalar_lea.vmem %s1, 3841
  %8196 = vst.msk [vmem:[%s8195] ss:$-350 sm:$0x3] %vm8194, %v8193
  %s8197 = scalar_lea.vmem %s1, 4641
  %8198 = vst.msk [vmem:[%s8197] ss:$-350 sm:$0x1c] %vm8194, %v8193
  %s8199 = scalar_lea.vmem %s1, 5441
  %8200 = vst.msk [vmem:[%s8199] ss:$-350 sm:$0x60] %vm8194, %v8193
  %s8201 = scalar_lea.vmem %s1, 3784
  %8202 = vst.msk [vmem:[%s8201] sm:$0x80] %vm8194, %v8193
  %s8203 = scalar_lea.vmem %s0, 86
  %v8204 = vld.sshfl [vmem:[%s8203] sm:$0xff pattern:$0xb2907e5c]
  %8205 = vrot.lane.b32.xlu0 %v8204, 46
  %v8206 = vpop.permute.xlu0 %8205
  %vm8207 = vcmask 15360
  %s8208 = scalar_lea.vmem %s1, 4641
  %8209 = vst.msk [vmem:[%s8208] ss:$-350 sm:$0x3] %vm8207, %v8206
  %s8210 = scalar_lea.vmem %s1, 5441
  %8211 = vst.msk [vmem:[%s8210] ss:$-350 sm:$0x1c] %vm8207, %v8206
  %s8212 = scalar_lea.vmem %s1, 6241
  %8213 = vst.msk [vmem:[%s8212] ss:$-350 sm:$0x60] %vm8207, %v8206
  %s8214 = scalar_lea.vmem %s1, 4584
  %8215 = vst.msk [vmem:[%s8214] sm:$0x80] %vm8207, %v8206
  %s8216 = scalar_lea.vmem %s0, 102
  %s8217 = smov 3
  %v8218 = vld [vmem:[%s8216] ss:$2 sm:%s8217]
  %s8219 = scalar_lea.vmem %s0, 1
  %v8220 = vld.sshfl [vmem:[%s8219] sm:$0xff pattern:$0x7e5c333]
  %vm8221 = vcmask 1047554
  %v8222 = vsel %vm8221, %v8220, %v8218
  %8223 = vrot.lane.b32.xlu0 %v8222, 46
  %v8224 = vpop.permute.xlu0 %8223
  %vm8225 = vcmask 15360
  %s8226 = scalar_lea.vmem %s1, 4841
  %8227 = vst.msk [vmem:[%s8226] ss:$100 sm:$0x3] %vm8225, %v8224
  %s8228 = scalar_lea.vmem %s1, 4294966637
  %8229 = vst.msk [vmem:[%s8228] ss:$450 sm:$0xc] %vm8225, %v8224
  %s8230 = scalar_lea.vmem %s1, 4294965837
  %8231 = vst.msk [vmem:[%s8230] ss:$450 sm:$0x30] %vm8225, %v8224
  %s8232 = scalar_lea.vmem %s1, 2541
  %8233 = vst.msk [vmem:[%s8232] ss:$-350 sm:$0xc0] %vm8225, %v8224
  %s8234 = scalar_lea.vmem %s0, 17
  %v8235 = vld.sshfl [vmem:[%s8234] sm:$0xff pattern:$0x7e5c3]
  %s8236 = scalar_lea.vmem %s0, 52
  %s8237 = smov 192
  %v8238 = vld [vmem:[%s8236] ss:$-7 sm:%s8237]
  %vm8239 = vcmask 1047558
  %v8240 = vsel %vm8239, %v8238, %v8235
  %8241 = vrot.lane.b32.xlu0 %v8240, 46
  %v8242 = vpop.permute.xlu0 %8241
  %vm8243 = vcmask 15360
  %s8244 = scalar_lea.vmem %s1, 1041
  %8245 = vst.msk [vmem:[%s8244] ss:$450 sm:$0x3] %vm8243, %v8242
  %s8246 = scalar_lea.vmem %s1, 241
  %8247 = vst.msk [vmem:[%s8246] ss:$450 sm:$0xc] %vm8243, %v8242
  %s8248 = scalar_lea.vmem %s1, 2641
  %8249 = vst.msk [vmem:[%s8248] ss:$-350 sm:$0xf0] %vm8243, %v8242
  %s8250 = scalar_lea.vmem %s0, 33
  %v8251 = vld.sshfl [vmem:[%s8250] sm:$0xff pattern:$0x7e5c3]
  %s8252 = scalar_lea.vmem %s0, 68
  %s8253 = smov 192
  %v8254 = vld [vmem:[%s8252] ss:$-7 sm:%s8253]
  %vm8255 = vcmask 1047558
  %v8256 = vsel %vm8255, %v8254, %v8251
  %8257 = vrot.lane.b32.xlu0 %v8256, 46
  %v8258 = vpop.permute.xlu0 %8257
  %vm8259 = vcmask 15360
  %s8260 = scalar_lea.vmem %s1, 1841
  %8261 = vst.msk [vmem:[%s8260] ss:$450 sm:$0x3] %vm8259, %v8258
  %s8262 = scalar_lea.vmem %s1, 1041
  %8263 = vst.msk [vmem:[%s8262] ss:$450 sm:$0xc] %vm8259, %v8258
  %s8264 = scalar_lea.vmem %s1, 3441
  %8265 = vst.msk [vmem:[%s8264] ss:$-350 sm:$0xf0] %vm8259, %v8258
  %s8266 = scalar_lea.vmem %s0, 58
  %v8267 = vld.sshfl [vmem:[%s8266] sm:$0xff pattern:$0x4444b290]
  %s8268 = scalar_lea.vmem %s0, 84
  %v8269 = vld [vmem:[%s8268] ss:$-7 sm:$0xe0]
  %vm8270 = vcmask 1047557
  %v8271 = vsel %vm8270, %v8269, %v8267
  %8272 = vrot.lane.b32.xlu0 %v8271, 46
  %v8273 = vpop.permute.xlu0 %8272
  %vm8274 = vcmask 15360
  %s8275 = scalar_lea.vmem %s1, 2641
  %8276 = vst.msk [vmem:[%s8275] ss:$450 sm:$0x3] %vm8274, %v8273
  %s8277 = scalar_lea.vmem %s1, 1841
  %8278 = vst.msk [vmem:[%s8277] ss:$450 sm:$0xc] %vm8274, %v8273
  %s8279 = scalar_lea.vmem %s1, 4241
  %8280 = vst.msk [vmem:[%s8279] ss:$-350 sm:$0xf0] %vm8274, %v8273
  %s8281 = scalar_lea.vmem %s0, 71
  %v8282 = vld.sshfl [vmem:[%s8281] sm:$0xff pattern:$0x7e5c3]
  %s8283 = scalar_lea.vmem %s0, 106
  %s8284 = smov 192
  %v8285 = vld [vmem:[%s8283] ss:$-7 sm:%s8284]
  %vm8286 = vcmask 1047558
  %v8287 = vsel %vm8286, %v8285, %v8282
  %8288 = vrot.lane.b32.xlu0 %v8287, 46
  %v8289 = vpop.permute.xlu0 %8288
  %vm8290 = vcmask 15360
  %s8291 = scalar_lea.vmem %s1, 3441
  %8292 = vst.msk [vmem:[%s8291] ss:$450 sm:$0x3] %vm8290, %v8289
  %s8293 = scalar_lea.vmem %s1, 2641
  %8294 = vst.msk [vmem:[%s8293] ss:$450 sm:$0xc] %vm8290, %v8289
  %s8295 = scalar_lea.vmem %s1, 5041
  %8296 = vst.msk [vmem:[%s8295] ss:$-350 sm:$0xf0] %vm8290, %v8289
  %s8297 = scalar_lea.vmem %s0, 87
  %v8298 = vld.sshfl [vmem:[%s8297] sm:$0xff pattern:$0x7e5c3]
  %s8299 = scalar_lea.vmem %s0, 122
  %s8300 = smov 192
  %v8301 = vld [vmem:[%s8299] ss:$-7 sm:%s8300]
  %vm8302 = vcmask 1047558
  %v8303 = vsel %vm8302, %v8301, %v8298
  %8304 = vrot.lane.b32.xlu0 %v8303, 46
  %v8305 = vpop.permute.xlu0 %8304
  %vm8306 = vcmask 15360
  %s8307 = scalar_lea.vmem %s1, 4241
  %8308 = vst.msk [vmem:[%s8307] ss:$450 sm:$0x3] %vm8306, %v8305
  %s8309 = scalar_lea.vmem %s1, 3441
  %8310 = vst.msk [vmem:[%s8309] ss:$450 sm:$0xc] %vm8306, %v8305
  %s8311 = scalar_lea.vmem %s1, 5841
  %8312 = vst.msk [vmem:[%s8311] ss:$-350 sm:$0xf0] %vm8306, %v8305
  %s8313 = scalar_lea.vmem %s0, 103
  %v8314 = vld [vmem:[%s8313] ss:$-7 sm:$0x7]
  %s8315 = scalar_lea.vmem %s0, 102
  %v8316 = vld [vmem:[%s8315] sm:$0x8]
  %vm8317 = vcmask 1043459
  %v8318 = vsel %vm8317, %v8316, %v8314
  %8319 = vrot.lane.b32.xlu0 %v8318, 46
  %v8320 = vpop.permute.xlu0 %8319
  %vm8321 = vcmask 15360
  %s8322 = scalar_lea.vmem %s1, 4891
  %8323 = vst.msk [vmem:[%s8322] ss:$-350 sm:$0x7] %vm8321, %v8320
  %s8324 = scalar_lea.vmem %s1, 4988
  %8325 = vst.msk [vmem:[%s8324] sm:$0x8] %vm8321, %v8320
  %v8326 = vld.sshfl [vmem:[%s0] sm:$0xff pattern:$0x2907e5c3]
  %8327 = vrot.lane.b32.xlu0 %v8326, 44
  %v8328 = vpop.permute.xlu0 %8327
  %vm8329 = vcmask 15360
  %s8330 = scalar_lea.vmem %s1, 192
  %8331 = vst.msk [vmem:[%s8330] ss:$450 sm:$0x3] %vm8329, %v8328
  %s8332 = scalar_lea.vmem %s1, 4294966688
  %8333 = vst.msk [vmem:[%s8332] ss:$450 sm:$0xc] %vm8329, %v8328
  %s8334 = scalar_lea.vmem %s1, 1792
  %8335 = vst.msk [vmem:[%s8334] ss:$-350 sm:$0x30] %vm8329, %v8328
  %s8336 = scalar_lea.vmem %s1, 2592
  %8337 = vst.msk [vmem:[%s8336] ss:$-350 sm:$0xc0] %vm8329, %v8328
  %s8338 = scalar_lea.vmem %s0, 16
  %v8339 = vld.sshfl [vmem:[%s8338] sm:$0xff pattern:$0x2907e5c3]
  %8340 = vrot.lane.b32.xlu0 %v8339, 44
  %v8341 = vpop.permute.xlu0 %8340
  %vm8342 = vcmask 15360
  %s8343 = scalar_lea.vmem %s1, 992
  %8344 = vst.msk [vmem:[%s8343] ss:$450 sm:$0x3] %vm8342, %v8341
  %s8345 = scalar_lea.vmem %s1, 192
  %8346 = vst.msk [vmem:[%s8345] ss:$450 sm:$0xc] %vm8342, %v8341
  %s8347 = scalar_lea.vmem %s1, 2592
  %8348 = vst.msk [vmem:[%s8347] ss:$-350 sm:$0x30] %vm8342, %v8341
  %s8349 = scalar_lea.vmem %s1, 3392
  %8350 = vst.msk [vmem:[%s8349] ss:$-350 sm:$0xc0] %vm8342, %v8341
  %s8351 = scalar_lea.vmem %s0, 32
  %v8352 = vld.sshfl [vmem:[%s8351] sm:$0xff pattern:$0x2907e5c3]
  %8353 = vrot.lane.b32.xlu0 %v8352, 44
  %v8354 = vpop.permute.xlu0 %8353
  %vm8355 = vcmask 15360
  %s8356 = scalar_lea.vmem %s1, 1792
  %8357 = vst.msk [vmem:[%s8356] ss:$450 sm:$0x3] %vm8355, %v8354
  %s8358 = scalar_lea.vmem %s1, 992
  %8359 = vst.msk [vmem:[%s8358] ss:$450 sm:$0xc] %vm8355, %v8354
  %s8360 = scalar_lea.vmem %s1, 3392
  %8361 = vst.msk [vmem:[%s8360] ss:$-350 sm:$0x30] %vm8355, %v8354
  %s8362 = scalar_lea.vmem %s1, 4192
  %8363 = vst.msk [vmem:[%s8362] ss:$-350 sm:$0xc0] %vm8355, %v8354
  %s8364 = scalar_lea.vmem %s0, 57
  %v8365 = vld.sshfl [vmem:[%s8364] sm:$0xff pattern:$0x4444b290]
  %s8366 = scalar_lea.vmem %s0, 48
  %v8367 = vld.sshfl [vmem:[%s8366] sm:$0xff pattern:$0x8f000000]
  %vm8368 = vcmask 1047557
  %v8369 = vsel %vm8368, %v8367, %v8365
  %8370 = vrot.lane.b32.xlu0 %v8369, 44
  %v8371 = vpop.permute.xlu0 %8370
  %vm8372 = vcmask 15360
  %s8373 = scalar_lea.vmem %s1, 2592
  %8374 = vst.msk [vmem:[%s8373] ss:$450 sm:$0x3] %vm8372, %v8371
  %s8375 = scalar_lea.vmem %s1, 1792
  %8376 = vst.msk [vmem:[%s8375] ss:$450 sm:$0xc] %vm8372, %v8371
  %s8377 = scalar_lea.vmem %s1, 4192
  %8378 = vst.msk [vmem:[%s8377] ss:$-350 sm:$0x30] %vm8372, %v8371
  %s8379 = scalar_lea.vmem %s1, 4992
  %8380 = vst.msk [vmem:[%s8379] ss:$-350 sm:$0xc0] %vm8372, %v8371
  %s8381 = scalar_lea.vmem %s0, 70
  %v8382 = vld.sshfl [vmem:[%s8381] sm:$0xff pattern:$0x2907e5c3]
  %8383 = vrot.lane.b32.xlu0 %v8382, 44
  %v8384 = vpop.permute.xlu0 %8383
  %vm8385 = vcmask 15360
  %s8386 = scalar_lea.vmem %s1, 3392
  %8387 = vst.msk [vmem:[%s8386] ss:$450 sm:$0x3] %vm8385, %v8384
  %s8388 = scalar_lea.vmem %s1, 2592
  %8389 = vst.msk [vmem:[%s8388] ss:$450 sm:$0xc] %vm8385, %v8384
  %s8390 = scalar_lea.vmem %s1, 4992
  %8391 = vst.msk [vmem:[%s8390] ss:$-350 sm:$0x30] %vm8385, %v8384
  %s8392 = scalar_lea.vmem %s1, 5792
  %8393 = vst.msk [vmem:[%s8392] ss:$-350 sm:$0xc0] %vm8385, %v8384
  %s8394 = scalar_lea.vmem %s0, 86
  %v8395 = vld.sshfl [vmem:[%s8394] sm:$0xff pattern:$0x2907e5c3]
  %8396 = vrot.lane.b32.xlu0 %v8395, 44
  %v8397 = vpop.permute.xlu0 %8396
  %vm8398 = vcmask 15360
  %s8399 = scalar_lea.vmem %s1, 4192
  %8400 = vst.msk [vmem:[%s8399] ss:$450 sm:$0x3] %vm8398, %v8397
  %s8401 = scalar_lea.vmem %s1, 3392
  %8402 = vst.msk [vmem:[%s8401] ss:$450 sm:$0xc] %vm8398, %v8397
  %s8403 = scalar_lea.vmem %s1, 5792
  %8404 = vst.msk [vmem:[%s8403] ss:$-350 sm:$0x30] %vm8398, %v8397
  %s8405 = scalar_lea.vmem %s1, 6592
  %8406 = vst.msk [vmem:[%s8405] ss:$-350 sm:$0xc0] %vm8398, %v8397
  %s8407 = scalar_lea.vmem %s0, 102
  %v8408 = vld.sshfl [vmem:[%s8407] sm:$0xff pattern:$0x22222203]
  %s8409 = scalar_lea.vmem %s0, 4
  %v8410 = vld.sshfl [vmem:[%s8409] sm:$0xff pattern:$0xb2907777]
  %vm8411 = vcmask 1047555
  %v8412 = vsel %vm8411, %v8410, %v8408
  %8413 = vrot.lane.b32.xlu0 %v8412, 44
  %v8414 = vpop.permute.xlu0 %8413
  %vm8415 = vcmask 15360
  %s8416 = scalar_lea.vmem %s1, 4992
  %8417 = vst.msk [vmem:[%s8416] ss:$-150 sm:$0x3] %vm8415, %v8414
  %s8418 = scalar_lea.vmem %s1, 13642
  %8419 = vst.msk [vmem:[%s8418] ss:$-4350 sm:$0xc] %vm8415, %v8414
  %s8420 = scalar_lea.vmem %s1, 4294965738
  %8421 = vst.msk [vmem:[%s8420] ss:$450 sm:$0x30] %vm8415, %v8414
  %s8422 = scalar_lea.vmem %s1, 4294964938
  %8423 = vst.msk [vmem:[%s8422] ss:$450 sm:$0xc0] %vm8415, %v8414
  %s8424 = scalar_lea.vmem %s0, 20
  %v8425 = vld.sshfl [vmem:[%s8424] sm:$0xff pattern:$0xbbbb2907]
  %s8426 = scalar_lea.vmem %s0, 1
  %v8427 = vld.sshfl [vmem:[%s8426] sm:$0xff pattern:$0x90777777]
  %vm8428 = vcmask 1047557
  %v8429 = vsel %vm8428, %v8427, %v8425
  %8430 = vrot.lane.b32.xlu0 %v8429, 44
  %v8431 = vpop.permute.xlu0 %8430
  %vm8432 = vcmask 15360
  %s8433 = scalar_lea.vmem %s1, 1392
  %8434 = vst.msk [vmem:[%s8433] ss:$-350 sm:$0x3] %vm8432, %v8431
  %s8435 = scalar_lea.vmem %s1, 2192
  %8436 = vst.msk [vmem:[%s8435] ss:$-350 sm:$0xc] %vm8432, %v8431
  %s8437 = scalar_lea.vmem %s1, 6192
  %8438 = vst.msk [vmem:[%s8437] ss:$-1150 sm:$0x30] %vm8432, %v8431
  %s8439 = scalar_lea.vmem %s1, 4294964688
  %8440 = vst.msk [vmem:[%s8439] ss:$450 sm:$0xc0] %vm8432, %v8431
  %s8441 = scalar_lea.vmem %s0, 36
  %v8442 = vld.sshfl [vmem:[%s8441] sm:$0xff pattern:$0xbbbb2907]
  %s8443 = scalar_lea.vmem %s0, 17
  %v8444 = vld.sshfl [vmem:[%s8443] sm:$0xff pattern:$0x90777777]
  %vm8445 = vcmask 1047557
  %v8446 = vsel %vm8445, %v8444, %v8442
  %8447 = vrot.lane.b32.xlu0 %v8446, 44
  %v8448 = vpop.permute.xlu0 %8447
  %vm8449 = vcmask 15360
  %s8450 = scalar_lea.vmem %s1, 2192
  %8451 = vst.msk [vmem:[%s8450] ss:$-350 sm:$0x3] %vm8449, %v8448
  %s8452 = scalar_lea.vmem %s1, 2992
  %8453 = vst.msk [vmem:[%s8452] ss:$-350 sm:$0xc] %vm8449, %v8448
  %s8454 = scalar_lea.vmem %s1, 6992
  %8455 = vst.msk [vmem:[%s8454] ss:$-1150 sm:$0x30] %vm8449, %v8448
  %s8456 = scalar_lea.vmem %s1, 4294965488
  %8457 = vst.msk [vmem:[%s8456] ss:$450 sm:$0xc0] %vm8449, %v8448
  %s8458 = scalar_lea.vmem %s0, 58
  %v8459 = vld.sshfl [vmem:[%s8458] sm:$0xff pattern:$0xbbbb2907]
  %s8460 = scalar_lea.vmem %s0, 33
  %v8461 = vld.sshfl [vmem:[%s8460] sm:$0xff pattern:$0x90777777]
  %vm8462 = vcmask 1047557
  %v8463 = vsel %vm8462, %v8461, %v8459
  %8464 = vrot.lane.b32.xlu0 %v8463, 44
  %v8465 = vpop.permute.xlu0 %8464
  %vm8466 = vcmask 15360
  %s8467 = scalar_lea.vmem %s1, 2992
  %8468 = vst.msk [vmem:[%s8467] ss:$-350 sm:$0x3] %vm8466, %v8465
  %s8469 = scalar_lea.vmem %s1, 3792
  %8470 = vst.msk [vmem:[%s8469] ss:$-350 sm:$0xc] %vm8466, %v8465
  %s8471 = scalar_lea.vmem %s1, 7792
  %8472 = vst.msk [vmem:[%s8471] ss:$-1150 sm:$0x30] %vm8466, %v8465
  %s8473 = scalar_lea.vmem %s1, 4294966288
  %8474 = vst.msk [vmem:[%s8473] ss:$450 sm:$0xc0] %vm8466, %v8465
  %s8475 = scalar_lea.vmem %s0, 74
  %v8476 = vld.sshfl [vmem:[%s8475] sm:$0xff pattern:$0xbbbb2907]
  %s8477 = scalar_lea.vmem %s0, 49
  %v8478 = vld.sshfl [vmem:[%s8477] sm:$0xff pattern:$0xf0dddddd]
  %vm8479 = vcmask 1047557
  %v8480 = vsel %vm8479, %v8478, %v8476
  %8481 = vrot.lane.b32.xlu0 %v8480, 44
  %v8482 = vpop.permute.xlu0 %8481
  %vm8483 = vcmask 15360
  %s8484 = scalar_lea.vmem %s1, 3792
  %8485 = vst.msk [vmem:[%s8484] ss:$-350 sm:$0x3] %vm8483, %v8482
  %s8486 = scalar_lea.vmem %s1, 4592
  %8487 = vst.msk [vmem:[%s8486] ss:$-350 sm:$0xc] %vm8483, %v8482
  %s8488 = scalar_lea.vmem %s1, 8592
  %8489 = vst.msk [vmem:[%s8488] ss:$-1150 sm:$0x30] %vm8483, %v8482
  %s8490 = scalar_lea.vmem %s1, 4294967088
  %8491 = vst.msk [vmem:[%s8490] ss:$450 sm:$0xc0] %vm8483, %v8482
  %s8492 = scalar_lea.vmem %s0, 90
  %v8493 = vld.sshfl [vmem:[%s8492] sm:$0xff pattern:$0xbbbb2907]
  %s8494 = scalar_lea.vmem %s0, 71
  %v8495 = vld.sshfl [vmem:[%s8494] sm:$0xff pattern:$0x90777777]
  %vm8496 = vcmask 1047557
  %v8497 = vsel %vm8496, %v8495, %v8493
  %8498 = vrot.lane.b32.xlu0 %v8497, 44
  %v8499 = vpop.permute.xlu0 %8498
  %vm8500 = vcmask 15360
  %s8501 = scalar_lea.vmem %s1, 4592
  %8502 = vst.msk [vmem:[%s8501] ss:$-350 sm:$0x3] %vm8500, %v8499
  %s8503 = scalar_lea.vmem %s1, 5392
  %8504 = vst.msk [vmem:[%s8503] ss:$-350 sm:$0xc] %vm8500, %v8499
  %s8505 = scalar_lea.vmem %s1, 9392
  %8506 = vst.msk [vmem:[%s8505] ss:$-1150 sm:$0x30] %vm8500, %v8499
  %s8507 = scalar_lea.vmem %s1, 592
  %8508 = vst.msk [vmem:[%s8507] ss:$450 sm:$0xc0] %vm8500, %v8499
  %s8509 = scalar_lea.vmem %s0, 87
  %v8510 = vld.sshfl [vmem:[%s8509] sm:$0xff pattern:$0x99999907]
  %s8511 = scalar_lea.vmem %s0, 100
  %v8512 = vld [vmem:[%s8511] sm:$0x8]
  %vm8513 = vcmask 1043459
  %v8514 = vsel %vm8513, %v8512, %v8510
  %8515 = vrot.lane.b32.xlu0 %v8514, 44
  %v8516 = vpop.permute.xlu0 %8515
  %vm8517 = vcmask 15360
  %s8518 = scalar_lea.vmem %s1, 4442
  %8519 = vst.msk [vmem:[%s8518] ss:$-350 sm:$0x3] %vm8517, %v8516
  %s8520 = scalar_lea.vmem %s1, 3842
  %8521 = vst.msk [vmem:[%s8520] ss:$350 sm:$0xc] %vm8517, %v8516
  %v8522 = vld.sshfl [vmem:[%s0] sm:$0xff pattern:$0x2907e5c3]
  %8523 = vrot.lane.b32.xlu0 %v8522, 42
  %v8524 = vpop.permute.xlu0 %8523
  %vm8525 = vcmask 15360
  %s8526 = scalar_lea.vmem %s1, 193
  %8527 = vst.msk [vmem:[%s8526] ss:$450 sm:$0x3] %vm8525, %v8524
  %s8528 = scalar_lea.vmem %s1, 4294966689
  %8529 = vst.msk [vmem:[%s8528] ss:$450 sm:$0xc] %vm8525, %v8524
  %s8530 = scalar_lea.vmem %s1, 1793
  %8531 = vst.msk [vmem:[%s8530] ss:$-350 sm:$0x30] %vm8525, %v8524
  %s8532 = scalar_lea.vmem %s1, 2593
  %8533 = vst.msk [vmem:[%s8532] ss:$-350 sm:$0xc0] %vm8525, %v8524
  %s8534 = scalar_lea.vmem %s0, 16
  %v8535 = vld.sshfl [vmem:[%s8534] sm:$0xff pattern:$0x2907e5c3]
  %8536 = vrot.lane.b32.xlu0 %v8535, 42
  %v8537 = vpop.permute.xlu0 %8536
  %vm8538 = vcmask 15360
  %s8539 = scalar_lea.vmem %s1, 993
  %8540 = vst.msk [vmem:[%s8539] ss:$450 sm:$0x3] %vm8538, %v8537
  %s8541 = scalar_lea.vmem %s1, 193
  %8542 = vst.msk [vmem:[%s8541] ss:$450 sm:$0xc] %vm8538, %v8537
  %s8543 = scalar_lea.vmem %s1, 2593
  %8544 = vst.msk [vmem:[%s8543] ss:$-350 sm:$0x30] %vm8538, %v8537
  %s8545 = scalar_lea.vmem %s1, 3393
  %8546 = vst.msk [vmem:[%s8545] ss:$-350 sm:$0xc0] %vm8538, %v8537
  %s8547 = scalar_lea.vmem %s0, 32
  %v8548 = vld.sshfl [vmem:[%s8547] sm:$0xff pattern:$0x2907e5c3]
  %8549 = vrot.lane.b32.xlu0 %v8548, 42
  %v8550 = vpop.permute.xlu0 %8549
  %vm8551 = vcmask 15360
  %s8552 = scalar_lea.vmem %s1, 1793
  %8553 = vst.msk [vmem:[%s8552] ss:$450 sm:$0x3] %vm8551, %v8550
  %s8554 = scalar_lea.vmem %s1, 993
  %8555 = vst.msk [vmem:[%s8554] ss:$450 sm:$0xc] %vm8551, %v8550
  %s8556 = scalar_lea.vmem %s1, 3393
  %8557 = vst.msk [vmem:[%s8556] ss:$-350 sm:$0x30] %vm8551, %v8550
  %s8558 = scalar_lea.vmem %s1, 4193
  %8559 = vst.msk [vmem:[%s8558] ss:$-350 sm:$0xc0] %vm8551, %v8550
  %s8560 = scalar_lea.vmem %s0, 57
  %v8561 = vld.sshfl [vmem:[%s8560] sm:$0xff pattern:$0x4444b290]
  %s8562 = scalar_lea.vmem %s0, 48
  %v8563 = vld.sshfl [vmem:[%s8562] sm:$0xff pattern:$0x8f000000]
  %vm8564 = vcmask 1047557
  %v8565 = vsel %vm8564, %v8563, %v8561
  %8566 = vrot.lane.b32.xlu0 %v8565, 42
  %v8567 = vpop.permute.xlu0 %8566
  %vm8568 = vcmask 15360
  %s8569 = scalar_lea.vmem %s1, 2593
  %8570 = vst.msk [vmem:[%s8569] ss:$450 sm:$0x3] %vm8568, %v8567
  %s8571 = scalar_lea.vmem %s1, 1793
  %8572 = vst.msk [vmem:[%s8571] ss:$450 sm:$0xc] %vm8568, %v8567
  %s8573 = scalar_lea.vmem %s1, 4193
  %8574 = vst.msk [vmem:[%s8573] ss:$-350 sm:$0x30] %vm8568, %v8567
  %s8575 = scalar_lea.vmem %s1, 4993
  %8576 = vst.msk [vmem:[%s8575] ss:$-350 sm:$0xc0] %vm8568, %v8567
  %s8577 = scalar_lea.vmem %s0, 70
  %v8578 = vld.sshfl [vmem:[%s8577] sm:$0xff pattern:$0x2907e5c3]
  %8579 = vrot.lane.b32.xlu0 %v8578, 42
  %v8580 = vpop.permute.xlu0 %8579
  %vm8581 = vcmask 15360
  %s8582 = scalar_lea.vmem %s1, 3393
  %8583 = vst.msk [vmem:[%s8582] ss:$450 sm:$0x3] %vm8581, %v8580
  %s8584 = scalar_lea.vmem %s1, 2593
  %8585 = vst.msk [vmem:[%s8584] ss:$450 sm:$0xc] %vm8581, %v8580
  %s8586 = scalar_lea.vmem %s1, 4993
  %8587 = vst.msk [vmem:[%s8586] ss:$-350 sm:$0x30] %vm8581, %v8580
  %s8588 = scalar_lea.vmem %s1, 5793
  %8589 = vst.msk [vmem:[%s8588] ss:$-350 sm:$0xc0] %vm8581, %v8580
  %s8590 = scalar_lea.vmem %s0, 86
  %v8591 = vld.sshfl [vmem:[%s8590] sm:$0xff pattern:$0x2907e5c3]
  %8592 = vrot.lane.b32.xlu0 %v8591, 42
  %v8593 = vpop.permute.xlu0 %8592
  %vm8594 = vcmask 15360
  %s8595 = scalar_lea.vmem %s1, 4193
  %8596 = vst.msk [vmem:[%s8595] ss:$450 sm:$0x3] %vm8594, %v8593
  %s8597 = scalar_lea.vmem %s1, 3393
  %8598 = vst.msk [vmem:[%s8597] ss:$450 sm:$0xc] %vm8594, %v8593
  %s8599 = scalar_lea.vmem %s1, 5793
  %8600 = vst.msk [vmem:[%s8599] ss:$-350 sm:$0x30] %vm8594, %v8593
  %s8601 = scalar_lea.vmem %s1, 6593
  %8602 = vst.msk [vmem:[%s8601] ss:$-350 sm:$0xc0] %vm8594, %v8593
  %s8603 = scalar_lea.vmem %s0, 102
  %v8604 = vld.sshfl [vmem:[%s8603] sm:$0xff pattern:$0x22222203]
  %s8605 = scalar_lea.vmem %s0, 4
  %v8606 = vld.sshfl [vmem:[%s8605] sm:$0xff pattern:$0xb2907777]
  %vm8607 = vcmask 1047555
  %v8608 = vsel %vm8607, %v8606, %v8604
  %8609 = vrot.lane.b32.xlu0 %v8608, 42
  %v8610 = vpop.permute.xlu0 %8609
  %vm8611 = vcmask 15360
  %s8612 = scalar_lea.vmem %s1, 4993
  %8613 = vst.msk [vmem:[%s8612] ss:$-150 sm:$0x3] %vm8611, %v8610
  %s8614 = scalar_lea.vmem %s1, 13643
  %8615 = vst.msk [vmem:[%s8614] ss:$-4350 sm:$0xc] %vm8611, %v8610
  %s8616 = scalar_lea.vmem %s1, 4294965739
  %8617 = vst.msk [vmem:[%s8616] ss:$450 sm:$0x30] %vm8611, %v8610
  %s8618 = scalar_lea.vmem %s1, 4294964939
  %8619 = vst.msk [vmem:[%s8618] ss:$450 sm:$0xc0] %vm8611, %v8610
  %s8620 = scalar_lea.vmem %s0, 20
  %v8621 = vld.sshfl [vmem:[%s8620] sm:$0xff pattern:$0xbbbb2907]
  %s8622 = scalar_lea.vmem %s0, 1
  %v8623 = vld.sshfl [vmem:[%s8622] sm:$0xff pattern:$0x90777777]
  %vm8624 = vcmask 1047557
  %v8625 = vsel %vm8624, %v8623, %v8621
  %8626 = vrot.lane.b32.xlu0 %v8625, 42
  %v8627 = vpop.permute.xlu0 %8626
  %vm8628 = vcmask 15360
  %s8629 = scalar_lea.vmem %s1, 1393
  %8630 = vst.msk [vmem:[%s8629] ss:$-350 sm:$0x3] %vm8628, %v8627
  %s8631 = scalar_lea.vmem %s1, 2193
  %8632 = vst.msk [vmem:[%s8631] ss:$-350 sm:$0xc] %vm8628, %v8627
  %s8633 = scalar_lea.vmem %s1, 6193
  %8634 = vst.msk [vmem:[%s8633] ss:$-1150 sm:$0x30] %vm8628, %v8627
  %s8635 = scalar_lea.vmem %s1, 4294964689
  %8636 = vst.msk [vmem:[%s8635] ss:$450 sm:$0xc0] %vm8628, %v8627
  %s8637 = scalar_lea.vmem %s0, 36
  %v8638 = vld.sshfl [vmem:[%s8637] sm:$0xff pattern:$0xbbbb2907]
  %s8639 = scalar_lea.vmem %s0, 17
  %v8640 = vld.sshfl [vmem:[%s8639] sm:$0xff pattern:$0x90777777]
  %vm8641 = vcmask 1047557
  %v8642 = vsel %vm8641, %v8640, %v8638
  %8643 = vrot.lane.b32.xlu0 %v8642, 42
  %v8644 = vpop.permute.xlu0 %8643
  %vm8645 = vcmask 15360
  %s8646 = scalar_lea.vmem %s1, 2193
  %8647 = vst.msk [vmem:[%s8646] ss:$-350 sm:$0x3] %vm8645, %v8644
  %s8648 = scalar_lea.vmem %s1, 2993
  %8649 = vst.msk [vmem:[%s8648] ss:$-350 sm:$0xc] %vm8645, %v8644
  %s8650 = scalar_lea.vmem %s1, 6993
  %8651 = vst.msk [vmem:[%s8650] ss:$-1150 sm:$0x30] %vm8645, %v8644
  %s8652 = scalar_lea.vmem %s1, 4294965489
  %8653 = vst.msk [vmem:[%s8652] ss:$450 sm:$0xc0] %vm8645, %v8644
  %s8654 = scalar_lea.vmem %s0, 58
  %v8655 = vld.sshfl [vmem:[%s8654] sm:$0xff pattern:$0xbbbb2907]
  %s8656 = scalar_lea.vmem %s0, 33
  %v8657 = vld.sshfl [vmem:[%s8656] sm:$0xff pattern:$0x90777777]
  %vm8658 = vcmask 1047557
  %v8659 = vsel %vm8658, %v8657, %v8655
  %8660 = vrot.lane.b32.xlu0 %v8659, 42
  %v8661 = vpop.permute.xlu0 %8660
  %vm8662 = vcmask 15360
  %s8663 = scalar_lea.vmem %s1, 2993
  %8664 = vst.msk [vmem:[%s8663] ss:$-350 sm:$0x3] %vm8662, %v8661
  %s8665 = scalar_lea.vmem %s1, 3793
  %8666 = vst.msk [vmem:[%s8665] ss:$-350 sm:$0xc] %vm8662, %v8661
  %s8667 = scalar_lea.vmem %s1, 7793
  %8668 = vst.msk [vmem:[%s8667] ss:$-1150 sm:$0x30] %vm8662, %v8661
  %s8669 = scalar_lea.vmem %s1, 4294966289
  %8670 = vst.msk [vmem:[%s8669] ss:$450 sm:$0xc0] %vm8662, %v8661
  %s8671 = scalar_lea.vmem %s0, 74
  %v8672 = vld.sshfl [vmem:[%s8671] sm:$0xff pattern:$0xbbbb2907]
  %s8673 = scalar_lea.vmem %s0, 49
  %v8674 = vld.sshfl [vmem:[%s8673] sm:$0xff pattern:$0xf0dddddd]
  %vm8675 = vcmask 1047557
  %v8676 = vsel %vm8675, %v8674, %v8672
  %8677 = vrot.lane.b32.xlu0 %v8676, 42
  %v8678 = vpop.permute.xlu0 %8677
  %vm8679 = vcmask 15360
  %s8680 = scalar_lea.vmem %s1, 3793
  %8681 = vst.msk [vmem:[%s8680] ss:$-350 sm:$0x3] %vm8679, %v8678
  %s8682 = scalar_lea.vmem %s1, 4593
  %8683 = vst.msk [vmem:[%s8682] ss:$-350 sm:$0xc] %vm8679, %v8678
  %s8684 = scalar_lea.vmem %s1, 8593
  %8685 = vst.msk [vmem:[%s8684] ss:$-1150 sm:$0x30] %vm8679, %v8678
  %s8686 = scalar_lea.vmem %s1, 4294967089
  %8687 = vst.msk [vmem:[%s8686] ss:$450 sm:$0xc0] %vm8679, %v8678
  %s8688 = scalar_lea.vmem %s0, 90
  %v8689 = vld.sshfl [vmem:[%s8688] sm:$0xff pattern:$0xbbbb2907]
  %s8690 = scalar_lea.vmem %s0, 71
  %v8691 = vld.sshfl [vmem:[%s8690] sm:$0xff pattern:$0x90777777]
  %vm8692 = vcmask 1047557
  %v8693 = vsel %vm8692, %v8691, %v8689
  %8694 = vrot.lane.b32.xlu0 %v8693, 42
  %v8695 = vpop.permute.xlu0 %8694
  %vm8696 = vcmask 15360
  %s8697 = scalar_lea.vmem %s1, 4593
  %8698 = vst.msk [vmem:[%s8697] ss:$-350 sm:$0x3] %vm8696, %v8695
  %s8699 = scalar_lea.vmem %s1, 5393
  %8700 = vst.msk [vmem:[%s8699] ss:$-350 sm:$0xc] %vm8696, %v8695
  %s8701 = scalar_lea.vmem %s1, 9393
  %8702 = vst.msk [vmem:[%s8701] ss:$-1150 sm:$0x30] %vm8696, %v8695
  %s8703 = scalar_lea.vmem %s1, 593
  %8704 = vst.msk [vmem:[%s8703] ss:$450 sm:$0xc0] %vm8696, %v8695
  %s8705 = scalar_lea.vmem %s0, 87
  %v8706 = vld.sshfl [vmem:[%s8705] sm:$0xff pattern:$0x99999907]
  %s8707 = scalar_lea.vmem %s0, 100
  %v8708 = vld [vmem:[%s8707] sm:$0x8]
  %vm8709 = vcmask 1043459
  %v8710 = vsel %vm8709, %v8708, %v8706
  %8711 = vrot.lane.b32.xlu0 %v8710, 42
  %v8712 = vpop.permute.xlu0 %8711
  %vm8713 = vcmask 15360
  %s8714 = scalar_lea.vmem %s1, 4443
  %8715 = vst.msk [vmem:[%s8714] ss:$-350 sm:$0x3] %vm8713, %v8712
  %s8716 = scalar_lea.vmem %s1, 3843
  %8717 = vst.msk [vmem:[%s8716] ss:$350 sm:$0xc] %vm8713, %v8712
  %v8718 = vld.sshfl [vmem:[%s0] sm:$0xff pattern:$0x907e5c3a]
  %8719 = vrot.lane.b32.xlu0 %v8718, 40
  %v8720 = vpop.permute.xlu0 %8719
  %vm8721 = vcmask 15360
  %s8722 = scalar_lea.vmem %s1, 544
  %8723 = vst.msk [vmem:[%s8722] ss:$-350 sm:$0x3] %vm8721, %v8720
  %s8724 = scalar_lea.vmem %s1, 1344
  %8725 = vst.msk [vmem:[%s8724] ss:$-350 sm:$0xc] %vm8721, %v8720
  %s8726 = scalar_lea.vmem %s1, 2144
  %8727 = vst.msk [vmem:[%s8726] ss:$-350 sm:$0x70] %vm8721, %v8720
  %s8728 = scalar_lea.vmem %s1, 487
  %8729 = vst.msk [vmem:[%s8728] sm:$0x80] %vm8721, %v8720
  %s8730 = scalar_lea.vmem %s0, 16
  %v8731 = vld.sshfl [vmem:[%s8730] sm:$0xff pattern:$0x907e5c3a]
  %8732 = vrot.lane.b32.xlu0 %v8731, 40
  %v8733 = vpop.permute.xlu0 %8732
  %vm8734 = vcmask 15360
  %s8735 = scalar_lea.vmem %s1, 1344
  %8736 = vst.msk [vmem:[%s8735] ss:$-350 sm:$0x3] %vm8734, %v8733
  %s8737 = scalar_lea.vmem %s1, 2144
  %8738 = vst.msk [vmem:[%s8737] ss:$-350 sm:$0xc] %vm8734, %v8733
  %s8739 = scalar_lea.vmem %s1, 2944
  %8740 = vst.msk [vmem:[%s8739] ss:$-350 sm:$0x70] %vm8734, %v8733
  %s8741 = scalar_lea.vmem %s1, 1287
  %8742 = vst.msk [vmem:[%s8741] sm:$0x80] %vm8734, %v8733
  %s8743 = scalar_lea.vmem %s0, 32
  %v8744 = vld.sshfl [vmem:[%s8743] sm:$0xff pattern:$0x907e5c3a]
  %8745 = vrot.lane.b32.xlu0 %v8744, 40
  %v8746 = vpop.permute.xlu0 %8745
  %vm8747 = vcmask 15360
  %s8748 = scalar_lea.vmem %s1, 2144
  %8749 = vst.msk [vmem:[%s8748] ss:$-350 sm:$0x3] %vm8747, %v8746
  %s8750 = scalar_lea.vmem %s1, 2944
  %8751 = vst.msk [vmem:[%s8750] ss:$-350 sm:$0xc] %vm8747, %v8746
  %s8752 = scalar_lea.vmem %s1, 3744
  %8753 = vst.msk [vmem:[%s8752] ss:$-350 sm:$0x70] %vm8747, %v8746
  %s8754 = scalar_lea.vmem %s1, 2087
  %8755 = vst.msk [vmem:[%s8754] sm:$0x80] %vm8747, %v8746
  %s8756 = scalar_lea.vmem %s0, 57
  %v8757 = vld.sshfl [vmem:[%s8756] sm:$0xff pattern:$0x444b2907]
  %s8758 = scalar_lea.vmem %s0, 4294967254
  %s8759 = smov 192
  %v8760 = vld [vmem:[%s8758] ss:$15 sm:%s8759]
  %vm8761 = vcmask 1047558
  %v8762 = vsel %vm8761, %v8760, %v8757
  %8763 = vrot.lane.b32.xlu0 %v8762, 40
  %v8764 = vpop.permute.xlu0 %8763
  %vm8765 = vcmask 15360
  %s8766 = scalar_lea.vmem %s1, 2944
  %8767 = vst.msk [vmem:[%s8766] ss:$-350 sm:$0x3] %vm8765, %v8764
  %s8768 = scalar_lea.vmem %s1, 3744
  %8769 = vst.msk [vmem:[%s8768] ss:$-350 sm:$0xc] %vm8765, %v8764
  %s8770 = scalar_lea.vmem %s1, 4544
  %8771 = vst.msk [vmem:[%s8770] ss:$-350 sm:$0x70] %vm8765, %v8764
  %s8772 = scalar_lea.vmem %s1, 2887
  %8773 = vst.msk [vmem:[%s8772] sm:$0x80] %vm8765, %v8764
  %s8774 = scalar_lea.vmem %s0, 70
  %v8775 = vld.sshfl [vmem:[%s8774] sm:$0xff pattern:$0x907e5c3a]
  %8776 = vrot.lane.b32.xlu0 %v8775, 40
  %v8777 = vpop.permute.xlu0 %8776
  %vm8778 = vcmask 15360
  %s8779 = scalar_lea.vmem %s1, 3744
  %8780 = vst.msk [vmem:[%s8779] ss:$-350 sm:$0x3] %vm8778, %v8777
  %s8781 = scalar_lea.vmem %s1, 4544
  %8782 = vst.msk [vmem:[%s8781] ss:$-350 sm:$0xc] %vm8778, %v8777
  %s8783 = scalar_lea.vmem %s1, 5344
  %8784 = vst.msk [vmem:[%s8783] ss:$-350 sm:$0x70] %vm8778, %v8777
  %s8785 = scalar_lea.vmem %s1, 3687
  %8786 = vst.msk [vmem:[%s8785] sm:$0x80] %vm8778, %v8777
  %s8787 = scalar_lea.vmem %s0, 86
  %v8788 = vld.sshfl [vmem:[%s8787] sm:$0xff pattern:$0x907e5c3a]
  %8789 = vrot.lane.b32.xlu0 %v8788, 40
  %v8790 = vpop.permute.xlu0 %8789
  %vm8791 = vcmask 15360
  %s8792 = scalar_lea.vmem %s1, 4544
  %8793 = vst.msk [vmem:[%s8792] ss:$-350 sm:$0x3] %vm8791, %v8790
  %s8794 = scalar_lea.vmem %s1, 5344
  %8795 = vst.msk [vmem:[%s8794] ss:$-350 sm:$0xc] %vm8791, %v8790
  %s8796 = scalar_lea.vmem %s1, 6144
  %8797 = vst.msk [vmem:[%s8796] ss:$-350 sm:$0x70] %vm8791, %v8790
  %s8798 = scalar_lea.vmem %s1, 4487
  %8799 = vst.msk [vmem:[%s8798] sm:$0x80] %vm8791, %v8790
  %s8800 = scalar_lea.vmem %s0, 105
  %s8801 = smov 3
  %v8802 = vld [vmem:[%s8800] ss:$-3 sm:%s8801]
  %s8803 = scalar_lea.vmem %s0, 2
  %v8804 = vld.sshfl [vmem:[%s8803] sm:$0xff pattern:$0xd4b29000]
  %vm8805 = vcmask 1047554
  %v8806 = vsel %vm8805, %v8804, %v8802
  %8807 = vrot.lane.b32.xlu0 %v8806, 40
  %v8808 = vpop.permute.xlu0 %8807
  %vm8809 = vcmask 15360
  %s8810 = scalar_lea.vmem %s1, 4994
  %8811 = vst.msk [vmem:[%s8810] ss:$-150 sm:$0x3] %vm8809, %v8808
  %s8812 = scalar_lea.vmem %s1, 4294966540
  %8813 = vst.msk [vmem:[%s8812] ss:$450 sm:$0xc] %vm8809, %v8808
  %s8814 = scalar_lea.vmem %s1, 4294965740
  %8815 = vst.msk [vmem:[%s8814] ss:$450 sm:$0x30] %vm8809, %v8808
  %s8816 = scalar_lea.vmem %s1, 4294964940
  %8817 = vst.msk [vmem:[%s8816] ss:$450 sm:$0xc0] %vm8809, %v8808
  %s8818 = scalar_lea.vmem %s0, 18
  %v8819 = vld.sshfl [vmem:[%s8818] sm:$0xff pattern:$0xddd4b290]
  %s8820 = scalar_lea.vmem %s0, 50
  %s8821 = smov 192
  %v8822 = vld [vmem:[%s8820] ss:$-7 sm:%s8821]
  %vm8823 = vcmask 1047558
  %v8824 = vsel %vm8823, %v8822, %v8819
  %8825 = vrot.lane.b32.xlu0 %v8824, 40
  %v8826 = vpop.permute.xlu0 %8825
  %vm8827 = vcmask 15360
  %s8828 = scalar_lea.vmem %s1, 944
  %8829 = vst.msk [vmem:[%s8828] ss:$450 sm:$0x3] %vm8827, %v8826
  %s8830 = scalar_lea.vmem %s1, 144
  %8831 = vst.msk [vmem:[%s8830] ss:$450 sm:$0xc] %vm8827, %v8826
  %s8832 = scalar_lea.vmem %s1, 4294966640
  %8833 = vst.msk [vmem:[%s8832] ss:$450 sm:$0x30] %vm8827, %v8826
  %s8834 = scalar_lea.vmem %s1, 2544
  %8835 = vst.msk [vmem:[%s8834] ss:$-350 sm:$0xc0] %vm8827, %v8826
  %s8836 = scalar_lea.vmem %s0, 34
  %v8837 = vld.sshfl [vmem:[%s8836] sm:$0xff pattern:$0xddd4b290]
  %s8838 = scalar_lea.vmem %s0, 66
  %s8839 = smov 192
  %v8840 = vld [vmem:[%s8838] ss:$-7 sm:%s8839]
  %vm8841 = vcmask 1047558
  %v8842 = vsel %vm8841, %v8840, %v8837
  %8843 = vrot.lane.b32.xlu0 %v8842, 40
  %v8844 = vpop.permute.xlu0 %8843
  %vm8845 = vcmask 15360
  %s8846 = scalar_lea.vmem %s1, 1744
  %8847 = vst.msk [vmem:[%s8846] ss:$450 sm:$0x3] %vm8845, %v8844
  %s8848 = scalar_lea.vmem %s1, 944
  %8849 = vst.msk [vmem:[%s8848] ss:$450 sm:$0xc] %vm8845, %v8844
  %s8850 = scalar_lea.vmem %s1, 144
  %8851 = vst.msk [vmem:[%s8850] ss:$450 sm:$0x30] %vm8845, %v8844
  %s8852 = scalar_lea.vmem %s1, 3344
  %8853 = vst.msk [vmem:[%s8852] ss:$-350 sm:$0xc0] %vm8845, %v8844
  %s8854 = scalar_lea.vmem %s0, 56
  %v8855 = vld.sshfl [vmem:[%s8854] sm:$0xff pattern:$0xddd4b290]
  %s8856 = scalar_lea.vmem %s0, 82
  %s8857 = smov 192
  %v8858 = vld [vmem:[%s8856] ss:$-7 sm:%s8857]
  %vm8859 = vcmask 1047558
  %v8860 = vsel %vm8859, %v8858, %v8855
  %8861 = vrot.lane.b32.xlu0 %v8860, 40
  %v8862 = vpop.permute.xlu0 %8861
  %vm8863 = vcmask 15360
  %s8864 = scalar_lea.vmem %s1, 2544
  %8865 = vst.msk [vmem:[%s8864] ss:$450 sm:$0x3] %vm8863, %v8862
  %s8866 = scalar_lea.vmem %s1, 1744
  %8867 = vst.msk [vmem:[%s8866] ss:$450 sm:$0xc] %vm8863, %v8862
  %s8868 = scalar_lea.vmem %s1, 944
  %8869 = vst.msk [vmem:[%s8868] ss:$450 sm:$0x30] %vm8863, %v8862
  %s8870 = scalar_lea.vmem %s1, 4144
  %8871 = vst.msk [vmem:[%s8870] ss:$-350 sm:$0xc0] %vm8863, %v8862
  %s8872 = scalar_lea.vmem %s0, 72
  %v8873 = vld.sshfl [vmem:[%s8872] sm:$0xff pattern:$0xddd4b290]
  %s8874 = scalar_lea.vmem %s0, 140
  %s8875 = smov 192
  %v8876 = vld [vmem:[%s8874] ss:$-13 sm:%s8875]
  %vm8877 = vcmask 1047558
  %v8878 = vsel %vm8877, %v8876, %v8873
  %8879 = vrot.lane.b32.xlu0 %v8878, 40
  %v8880 = vpop.permute.xlu0 %8879
  %vm8881 = vcmask 15360
  %s8882 = scalar_lea.vmem %s1, 3344
  %8883 = vst.msk [vmem:[%s8882] ss:$450 sm:$0x3] %vm8881, %v8880
  %s8884 = scalar_lea.vmem %s1, 2544
  %8885 = vst.msk [vmem:[%s8884] ss:$450 sm:$0xc] %vm8881, %v8880
  %s8886 = scalar_lea.vmem %s1, 1744
  %8887 = vst.msk [vmem:[%s8886] ss:$450 sm:$0x30] %vm8881, %v8880
  %s8888 = scalar_lea.vmem %s1, 4944
  %8889 = vst.msk [vmem:[%s8888] ss:$-350 sm:$0xc0] %vm8881, %v8880
  %s8890 = scalar_lea.vmem %s0, 88
  %v8891 = vld.sshfl [vmem:[%s8890] sm:$0xff pattern:$0xddd4b290]
  %s8892 = scalar_lea.vmem %s0, 120
  %s8893 = smov 192
  %v8894 = vld [vmem:[%s8892] ss:$-7 sm:%s8893]
  %vm8895 = vcmask 1047558
  %v8896 = vsel %vm8895, %v8894, %v8891
  %8897 = vrot.lane.b32.xlu0 %v8896, 40
  %v8898 = vpop.permute.xlu0 %8897
  %vm8899 = vcmask 15360
  %s8900 = scalar_lea.vmem %s1, 4144
  %8901 = vst.msk [vmem:[%s8900] ss:$450 sm:$0x3] %vm8899, %v8898
  %s8902 = scalar_lea.vmem %s1, 3344
  %8903 = vst.msk [vmem:[%s8902] ss:$450 sm:$0xc] %vm8899, %v8898
  %s8904 = scalar_lea.vmem %s1, 2544
  %8905 = vst.msk [vmem:[%s8904] ss:$450 sm:$0x30] %vm8899, %v8898
  %s8906 = scalar_lea.vmem %s1, 5744
  %8907 = vst.msk [vmem:[%s8906] ss:$-350 sm:$0xc0] %vm8899, %v8898
  %s8908 = scalar_lea.vmem %s0, 104
  %s8909 = smov 3
  %v8910 = vld [vmem:[%s8908] ss:$-10 sm:%s8909]
  %s8911 = scalar_lea.vmem %s0, 55
  %s8912 = smov 12
  %v8913 = vld [vmem:[%s8911] ss:$16 sm:%s8912]
  %vm8914 = vcmask 1043458
  %v8915 = vsel %vm8914, %v8913, %v8910
  %8916 = vrot.lane.b32.xlu0 %v8915, 40
  %v8917 = vpop.permute.xlu0 %8916
  %vm8918 = vcmask 15360
  %s8919 = scalar_lea.vmem %s1, 4944
  %8920 = vst.msk [vmem:[%s8919] ss:$-500 sm:$0x3] %vm8918, %v8917
  %s8921 = scalar_lea.vmem %s1, 4092
  %8922 = vst.msk [vmem:[%s8921] sm:$0x4] %vm8918, %v8917
  %s8923 = scalar_lea.vmem %s1, 4891
  %8924 = vst.msk [vmem:[%s8923] sm:$0x8] %vm8918, %v8917
  %v8925 = vld.sshfl [vmem:[%s0] sm:$0xff pattern:$0x907e5c3a]
  %8926 = vrot.lane.b32.xlu0 %v8925, 38
  %v8927 = vpop.permute.xlu0 %8926
  %vm8928 = vcmask 15360
  %s8929 = scalar_lea.vmem %s1, 545
  %8930 = vst.msk [vmem:[%s8929] ss:$-350 sm:$0x3] %vm8928, %v8927
  %s8931 = scalar_lea.vmem %s1, 1345
  %8932 = vst.msk [vmem:[%s8931] ss:$-350 sm:$0xc] %vm8928, %v8927
  %s8933 = scalar_lea.vmem %s1, 2145
  %8934 = vst.msk [vmem:[%s8933] ss:$-350 sm:$0x70] %vm8928, %v8927
  %s8935 = scalar_lea.vmem %s1, 488
  %8936 = vst.msk [vmem:[%s8935] sm:$0x80] %vm8928, %v8927
  %s8937 = scalar_lea.vmem %s0, 16
  %v8938 = vld.sshfl [vmem:[%s8937] sm:$0xff pattern:$0x907e5c3a]
  %8939 = vrot.lane.b32.xlu0 %v8938, 38
  %v8940 = vpop.permute.xlu0 %8939
  %vm8941 = vcmask 15360
  %s8942 = scalar_lea.vmem %s1, 1345
  %8943 = vst.msk [vmem:[%s8942] ss:$-350 sm:$0x3] %vm8941, %v8940
  %s8944 = scalar_lea.vmem %s1, 2145
  %8945 = vst.msk [vmem:[%s8944] ss:$-350 sm:$0xc] %vm8941, %v8940
  %s8946 = scalar_lea.vmem %s1, 2945
  %8947 = vst.msk [vmem:[%s8946] ss:$-350 sm:$0x70] %vm8941, %v8940
  %s8948 = scalar_lea.vmem %s1, 1288
  %8949 = vst.msk [vmem:[%s8948] sm:$0x80] %vm8941, %v8940
  %s8950 = scalar_lea.vmem %s0, 32
  %v8951 = vld.sshfl [vmem:[%s8950] sm:$0xff pattern:$0x907e5c3a]
  %8952 = vrot.lane.b32.xlu0 %v8951, 38
  %v8953 = vpop.permute.xlu0 %8952
  %vm8954 = vcmask 15360
  %s8955 = scalar_lea.vmem %s1, 2145
  %8956 = vst.msk [vmem:[%s8955] ss:$-350 sm:$0x3] %vm8954, %v8953
  %s8957 = scalar_lea.vmem %s1, 2945
  %8958 = vst.msk [vmem:[%s8957] ss:$-350 sm:$0xc] %vm8954, %v8953
  %s8959 = scalar_lea.vmem %s1, 3745
  %8960 = vst.msk [vmem:[%s8959] ss:$-350 sm:$0x70] %vm8954, %v8953
  %s8961 = scalar_lea.vmem %s1, 2088
  %8962 = vst.msk [vmem:[%s8961] sm:$0x80] %vm8954, %v8953
  %s8963 = scalar_lea.vmem %s0, 57
  %v8964 = vld.sshfl [vmem:[%s8963] sm:$0xff pattern:$0x444b2907]
  %s8965 = scalar_lea.vmem %s0, 4294967254
  %s8966 = smov 192
  %v8967 = vld [vmem:[%s8965] ss:$15 sm:%s8966]
  %vm8968 = vcmask 1047558
  %v8969 = vsel %vm8968, %v8967, %v8964
  %8970 = vrot.lane.b32.xlu0 %v8969, 38
  %v8971 = vpop.permute.xlu0 %8970
  %vm8972 = vcmask 15360
  %s8973 = scalar_lea.vmem %s1, 2945
  %8974 = vst.msk [vmem:[%s8973] ss:$-350 sm:$0x3] %vm8972, %v8971
  %s8975 = scalar_lea.vmem %s1, 3745
  %8976 = vst.msk [vmem:[%s8975] ss:$-350 sm:$0xc] %vm8972, %v8971
  %s8977 = scalar_lea.vmem %s1, 4545
  %8978 = vst.msk [vmem:[%s8977] ss:$-350 sm:$0x70] %vm8972, %v8971
  %s8979 = scalar_lea.vmem %s1, 2888
  %8980 = vst.msk [vmem:[%s8979] sm:$0x80] %vm8972, %v8971
  %s8981 = scalar_lea.vmem %s0, 70
  %v8982 = vld.sshfl [vmem:[%s8981] sm:$0xff pattern:$0x907e5c3a]
  %8983 = vrot.lane.b32.xlu0 %v8982, 38
  %v8984 = vpop.permute.xlu0 %8983
  %vm8985 = vcmask 15360
  %s8986 = scalar_lea.vmem %s1, 3745
  %8987 = vst.msk [vmem:[%s8986] ss:$-350 sm:$0x3] %vm8985, %v8984
  %s8988 = scalar_lea.vmem %s1, 4545
  %8989 = vst.msk [vmem:[%s8988] ss:$-350 sm:$0xc] %vm8985, %v8984
  %s8990 = scalar_lea.vmem %s1, 5345
  %8991 = vst.msk [vmem:[%s8990] ss:$-350 sm:$0x70] %vm8985, %v8984
  %s8992 = scalar_lea.vmem %s1, 3688
  %8993 = vst.msk [vmem:[%s8992] sm:$0x80] %vm8985, %v8984
  %s8994 = scalar_lea.vmem %s0, 86
  %v8995 = vld.sshfl [vmem:[%s8994] sm:$0xff pattern:$0x907e5c3a]
  %8996 = vrot.lane.b32.xlu0 %v8995, 38
  %v8997 = vpop.permute.xlu0 %8996
  %vm8998 = vcmask 15360
  %s8999 = scalar_lea.vmem %s1, 4545
  %9000 = vst.msk [vmem:[%s8999] ss:$-350 sm:$0x3] %vm8998, %v8997
  %s9001 = scalar_lea.vmem %s1, 5345
  %9002 = vst.msk [vmem:[%s9001] ss:$-350 sm:$0xc] %vm8998, %v8997
  %s9003 = scalar_lea.vmem %s1, 6145
  %9004 = vst.msk [vmem:[%s9003] ss:$-350 sm:$0x70] %vm8998, %v8997
  %s9005 = scalar_lea.vmem %s1, 4488
  %9006 = vst.msk [vmem:[%s9005] sm:$0x80] %vm8998, %v8997
  %s9007 = scalar_lea.vmem %s0, 105
  %s9008 = smov 3
  %v9009 = vld [vmem:[%s9007] ss:$-3 sm:%s9008]
  %s9010 = scalar_lea.vmem %s0, 2
  %v9011 = vld.sshfl [vmem:[%s9010] sm:$0xff pattern:$0xd4b29000]
  %vm9012 = vcmask 1047554
  %v9013 = vsel %vm9012, %v9011, %v9009
  %9014 = vrot.lane.b32.xlu0 %v9013, 38
  %v9015 = vpop.permute.xlu0 %9014
  %vm9016 = vcmask 15360
  %s9017 = scalar_lea.vmem %s1, 4995
  %9018 = vst.msk [vmem:[%s9017] ss:$-150 sm:$0x3] %vm9016, %v9015
  %s9019 = scalar_lea.vmem %s1, 4294966541
  %9020 = vst.msk [vmem:[%s9019] ss:$450 sm:$0xc] %vm9016, %v9015
  %s9021 = scalar_lea.vmem %s1, 4294965741
  %9022 = vst.msk [vmem:[%s9021] ss:$450 sm:$0x30] %vm9016, %v9015
  %s9023 = scalar_lea.vmem %s1, 4294964941
  %9024 = vst.msk [vmem:[%s9023] ss:$450 sm:$0xc0] %vm9016, %v9015
  %s9025 = scalar_lea.vmem %s0, 18
  %v9026 = vld.sshfl [vmem:[%s9025] sm:$0xff pattern:$0xddd4b290]
  %s9027 = scalar_lea.vmem %s0, 50
  %s9028 = smov 192
  %v9029 = vld [vmem:[%s9027] ss:$-7 sm:%s9028]
  %vm9030 = vcmask 1047558
  %v9031 = vsel %vm9030, %v9029, %v9026
  %9032 = vrot.lane.b32.xlu0 %v9031, 38
  %v9033 = vpop.permute.xlu0 %9032
  %vm9034 = vcmask 15360
  %s9035 = scalar_lea.vmem %s1, 945
  %9036 = vst.msk [vmem:[%s9035] ss:$450 sm:$0x3] %vm9034, %v9033
  %s9037 = scalar_lea.vmem %s1, 145
  %9038 = vst.msk [vmem:[%s9037] ss:$450 sm:$0xc] %vm9034, %v9033
  %s9039 = scalar_lea.vmem %s1, 4294966641
  %9040 = vst.msk [vmem:[%s9039] ss:$450 sm:$0x30] %vm9034, %v9033
  %s9041 = scalar_lea.vmem %s1, 2545
  %9042 = vst.msk [vmem:[%s9041] ss:$-350 sm:$0xc0] %vm9034, %v9033
  %s9043 = scalar_lea.vmem %s0, 34
  %v9044 = vld.sshfl [vmem:[%s9043] sm:$0xff pattern:$0xddd4b290]
  %s9045 = scalar_lea.vmem %s0, 66
  %s9046 = smov 192
  %v9047 = vld [vmem:[%s9045] ss:$-7 sm:%s9046]
  %vm9048 = vcmask 1047558
  %v9049 = vsel %vm9048, %v9047, %v9044
  %9050 = vrot.lane.b32.xlu0 %v9049, 38
  %v9051 = vpop.permute.xlu0 %9050
  %vm9052 = vcmask 15360
  %s9053 = scalar_lea.vmem %s1, 1745
  %9054 = vst.msk [vmem:[%s9053] ss:$450 sm:$0x3] %vm9052, %v9051
  %s9055 = scalar_lea.vmem %s1, 945
  %9056 = vst.msk [vmem:[%s9055] ss:$450 sm:$0xc] %vm9052, %v9051
  %s9057 = scalar_lea.vmem %s1, 145
  %9058 = vst.msk [vmem:[%s9057] ss:$450 sm:$0x30] %vm9052, %v9051
  %s9059 = scalar_lea.vmem %s1, 3345
  %9060 = vst.msk [vmem:[%s9059] ss:$-350 sm:$0xc0] %vm9052, %v9051
  %s9061 = scalar_lea.vmem %s0, 56
  %v9062 = vld.sshfl [vmem:[%s9061] sm:$0xff pattern:$0xddd4b290]
  %s9063 = scalar_lea.vmem %s0, 82
  %s9064 = smov 192
  %v9065 = vld [vmem:[%s9063] ss:$-7 sm:%s9064]
  %vm9066 = vcmask 1047558
  %v9067 = vsel %vm9066, %v9065, %v9062
  %9068 = vrot.lane.b32.xlu0 %v9067, 38
  %v9069 = vpop.permute.xlu0 %9068
  %vm9070 = vcmask 15360
  %s9071 = scalar_lea.vmem %s1, 2545
  %9072 = vst.msk [vmem:[%s9071] ss:$450 sm:$0x3] %vm9070, %v9069
  %s9073 = scalar_lea.vmem %s1, 1745
  %9074 = vst.msk [vmem:[%s9073] ss:$450 sm:$0xc] %vm9070, %v9069
  %s9075 = scalar_lea.vmem %s1, 945
  %9076 = vst.msk [vmem:[%s9075] ss:$450 sm:$0x30] %vm9070, %v9069
  %s9077 = scalar_lea.vmem %s1, 4145
  %9078 = vst.msk [vmem:[%s9077] ss:$-350 sm:$0xc0] %vm9070, %v9069
  %s9079 = scalar_lea.vmem %s0, 72
  %v9080 = vld.sshfl [vmem:[%s9079] sm:$0xff pattern:$0xddd4b290]
  %s9081 = scalar_lea.vmem %s0, 140
  %s9082 = smov 192
  %v9083 = vld [vmem:[%s9081] ss:$-13 sm:%s9082]
  %vm9084 = vcmask 1047558
  %v9085 = vsel %vm9084, %v9083, %v9080
  %9086 = vrot.lane.b32.xlu0 %v9085, 38
  %v9087 = vpop.permute.xlu0 %9086
  %vm9088 = vcmask 15360
  %s9089 = scalar_lea.vmem %s1, 3345
  %9090 = vst.msk [vmem:[%s9089] ss:$450 sm:$0x3] %vm9088, %v9087
  %s9091 = scalar_lea.vmem %s1, 2545
  %9092 = vst.msk [vmem:[%s9091] ss:$450 sm:$0xc] %vm9088, %v9087
  %s9093 = scalar_lea.vmem %s1, 1745
  %9094 = vst.msk [vmem:[%s9093] ss:$450 sm:$0x30] %vm9088, %v9087
  %s9095 = scalar_lea.vmem %s1, 4945
  %9096 = vst.msk [vmem:[%s9095] ss:$-350 sm:$0xc0] %vm9088, %v9087
  %s9097 = scalar_lea.vmem %s0, 88
  %v9098 = vld.sshfl [vmem:[%s9097] sm:$0xff pattern:$0xddd4b290]
  %s9099 = scalar_lea.vmem %s0, 120
  %s9100 = smov 192
  %v9101 = vld [vmem:[%s9099] ss:$-7 sm:%s9100]
  %vm9102 = vcmask 1047558
  %v9103 = vsel %vm9102, %v9101, %v9098
  %9104 = vrot.lane.b32.xlu0 %v9103, 38
  %v9105 = vpop.permute.xlu0 %9104
  %vm9106 = vcmask 15360
  %s9107 = scalar_lea.vmem %s1, 4145
  %9108 = vst.msk [vmem:[%s9107] ss:$450 sm:$0x3] %vm9106, %v9105
  %s9109 = scalar_lea.vmem %s1, 3345
  %9110 = vst.msk [vmem:[%s9109] ss:$450 sm:$0xc] %vm9106, %v9105
  %s9111 = scalar_lea.vmem %s1, 2545
  %9112 = vst.msk [vmem:[%s9111] ss:$450 sm:$0x30] %vm9106, %v9105
  %s9113 = scalar_lea.vmem %s1, 5745
  %9114 = vst.msk [vmem:[%s9113] ss:$-350 sm:$0xc0] %vm9106, %v9105
  %s9115 = scalar_lea.vmem %s0, 104
  %s9116 = smov 3
  %v9117 = vld [vmem:[%s9115] ss:$-10 sm:%s9116]
  %s9118 = scalar_lea.vmem %s0, 55
  %s9119 = smov 12
  %v9120 = vld [vmem:[%s9118] ss:$16 sm:%s9119]
  %vm9121 = vcmask 1043458
  %v9122 = vsel %vm9121, %v9120, %v9117
  %9123 = vrot.lane.b32.xlu0 %v9122, 38
  %v9124 = vpop.permute.xlu0 %9123
  %vm9125 = vcmask 15360
  %s9126 = scalar_lea.vmem %s1, 4945
  %9127 = vst.msk [vmem:[%s9126] ss:$-500 sm:$0x3] %vm9125, %v9124
  %s9128 = scalar_lea.vmem %s1, 4093
  %9129 = vst.msk [vmem:[%s9128] sm:$0x4] %vm9125, %v9124
  %s9130 = scalar_lea.vmem %s1, 4892
  %9131 = vst.msk [vmem:[%s9130] sm:$0x8] %vm9125, %v9124
  %v9132 = vld.sshfl [vmem:[%s0] sm:$0xff pattern:$0x7e5c3a1]
  %9133 = vrot.lane.b32.xlu0 %v9132, 36
  %v9134 = vpop.permute.xlu0 %9133
  %vm9135 = vcmask 15360
  %s9136 = scalar_lea.vmem %s1, 96
  %9137 = vst.msk [vmem:[%s9136] ss:$450 sm:$0x3] %vm9135, %v9134
  %s9138 = scalar_lea.vmem %s1, 4294966592
  %9139 = vst.msk [vmem:[%s9138] ss:$450 sm:$0xc] %vm9135, %v9134
  %s9140 = scalar_lea.vmem %s1, 4294965792
  %9141 = vst.msk [vmem:[%s9140] ss:$450 sm:$0x30] %vm9135, %v9134
  %s9142 = scalar_lea.vmem %s1, 2496
  %9143 = vst.msk [vmem:[%s9142] ss:$-350 sm:$0xc0] %vm9135, %v9134
  %s9144 = scalar_lea.vmem %s0, 16
  %v9145 = vld.sshfl [vmem:[%s9144] sm:$0xff pattern:$0x7e5c3a1]
  %9146 = vrot.lane.b32.xlu0 %v9145, 36
  %v9147 = vpop.permute.xlu0 %9146
  %vm9148 = vcmask 15360
  %s9149 = scalar_lea.vmem %s1, 896
  %9150 = vst.msk [vmem:[%s9149] ss:$450 sm:$0x3] %vm9148, %v9147
  %s9151 = scalar_lea.vmem %s1, 96
  %9152 = vst.msk [vmem:[%s9151] ss:$450 sm:$0xc] %vm9148, %v9147
  %s9153 = scalar_lea.vmem %s1, 4294966592
  %9154 = vst.msk [vmem:[%s9153] ss:$450 sm:$0x30] %vm9148, %v9147
  %s9155 = scalar_lea.vmem %s1, 3296
  %9156 = vst.msk [vmem:[%s9155] ss:$-350 sm:$0xc0] %vm9148, %v9147
  %s9157 = scalar_lea.vmem %s0, 32
  %v9158 = vld.sshfl [vmem:[%s9157] sm:$0xff pattern:$0x7e5c3a1]
  %9159 = vrot.lane.b32.xlu0 %v9158, 36
  %v9160 = vpop.permute.xlu0 %9159
  %vm9161 = vcmask 15360
  %s9162 = scalar_lea.vmem %s1, 1696
  %9163 = vst.msk [vmem:[%s9162] ss:$450 sm:$0x3] %vm9161, %v9160
  %s9164 = scalar_lea.vmem %s1, 896
  %9165 = vst.msk [vmem:[%s9164] ss:$450 sm:$0xc] %vm9161, %v9160
  %s9166 = scalar_lea.vmem %s1, 96
  %9167 = vst.msk [vmem:[%s9166] ss:$450 sm:$0x30] %vm9161, %v9160
  %s9168 = scalar_lea.vmem %s1, 4096
  %9169 = vst.msk [vmem:[%s9168] ss:$-350 sm:$0xc0] %vm9161, %v9160
  %s9170 = scalar_lea.vmem %s0, 49
  %v9171 = vld.sshfl [vmem:[%s9170] sm:$0xff pattern:$0x888888f0]
  %s9172 = scalar_lea.vmem %s0, 59
  %v9173 = vld.sshfl [vmem:[%s9172] sm:$0xff pattern:$0x22907777]
  %vm9174 = vcmask 1046531
  %v9175 = vsel %vm9174, %v9173, %v9171
  %s9176 = scalar_lea.vmem %s0, 41
  %v9177 = vld [vmem:[%s9176] sm:$0x80]
  %vm9178 = vcmask 1047559
  %v9179 = vsel %vm9178, %v9177, %v9175
  %9180 = vrot.lane.b32.xlu0 %v9179, 36
  %v9181 = vpop.permute.xlu0 %9180
  %vm9182 = vcmask 15360
  %s9183 = scalar_lea.vmem %s1, 2496
  %9184 = vst.msk [vmem:[%s9183] ss:$450 sm:$0x3] %vm9182, %v9181
  %s9185 = scalar_lea.vmem %s1, 1696
  %9186 = vst.msk [vmem:[%s9185] ss:$450 sm:$0xc] %vm9182, %v9181
  %s9187 = scalar_lea.vmem %s1, 896
  %9188 = vst.msk [vmem:[%s9187] ss:$450 sm:$0x30] %vm9182, %v9181
  %s9189 = scalar_lea.vmem %s1, 4896
  %9190 = vst.msk [vmem:[%s9189] ss:$-350 sm:$0xc0] %vm9182, %v9181
  %s9191 = scalar_lea.vmem %s0, 70
  %v9192 = vld.sshfl [vmem:[%s9191] sm:$0xff pattern:$0x7e5c3a1]
  %9193 = vrot.lane.b32.xlu0 %v9192, 36
  %v9194 = vpop.permute.xlu0 %9193
  %vm9195 = vcmask 15360
  %s9196 = scalar_lea.vmem %s1, 3296
  %9197 = vst.msk [vmem:[%s9196] ss:$450 sm:$0x3] %vm9195, %v9194
  %s9198 = scalar_lea.vmem %s1, 2496
  %9199 = vst.msk [vmem:[%s9198] ss:$450 sm:$0xc] %vm9195, %v9194
  %s9200 = scalar_lea.vmem %s1, 1696
  %9201 = vst.msk [vmem:[%s9200] ss:$450 sm:$0x30] %vm9195, %v9194
  %s9202 = scalar_lea.vmem %s1, 5696
  %9203 = vst.msk [vmem:[%s9202] ss:$-350 sm:$0xc0] %vm9195, %v9194
  %s9204 = scalar_lea.vmem %s0, 86
  %v9205 = vld.sshfl [vmem:[%s9204] sm:$0xff pattern:$0x7e5c3a1]
  %9206 = vrot.lane.b32.xlu0 %v9205, 36
  %v9207 = vpop.permute.xlu0 %9206
  %vm9208 = vcmask 15360
  %s9209 = scalar_lea.vmem %s1, 4096
  %9210 = vst.msk [vmem:[%s9209] ss:$450 sm:$0x3] %vm9208, %v9207
  %s9211 = scalar_lea.vmem %s1, 3296
  %9212 = vst.msk [vmem:[%s9211] ss:$450 sm:$0xc] %vm9208, %v9207
  %s9213 = scalar_lea.vmem %s1, 2496
  %9214 = vst.msk [vmem:[%s9213] ss:$450 sm:$0x30] %vm9208, %v9207
  %s9215 = scalar_lea.vmem %s1, 6496
  %9216 = vst.msk [vmem:[%s9215] ss:$-350 sm:$0xc0] %vm9208, %v9207
  %s9217 = scalar_lea.vmem %s0, 102
  %v9218 = vld.sshfl [vmem:[%s9217] sm:$0xff pattern:$0x31]
  %s9219 = scalar_lea.vmem %s0, 2
  %v9220 = vld.sshfl [vmem:[%s9219] sm:$0xff pattern:$0xb2907777]
  %vm9221 = vcmask 1047555
  %v9222 = vsel %vm9221, %v9220, %v9218
  %9223 = vrot.lane.b32.xlu0 %v9222, 36
  %v9224 = vpop.permute.xlu0 %9223
  %vm9225 = vcmask 15360
  %s9226 = scalar_lea.vmem %s1, 4896
  %9227 = vst.msk [vmem:[%s9226] ss:$100 sm:$0x3] %vm9225, %v9224
  %s9228 = scalar_lea.vmem %s1, 13546
  %9229 = vst.msk [vmem:[%s9228] ss:$-4350 sm:$0xc] %vm9225, %v9224
  %s9230 = scalar_lea.vmem %s1, 4294965642
  %9231 = vst.msk [vmem:[%s9230] ss:$450 sm:$0x30] %vm9225, %v9224
  %s9232 = scalar_lea.vmem %s1, 4294964842
  %9233 = vst.msk [vmem:[%s9232] ss:$450 sm:$0xc0] %vm9225, %v9224
  %s9234 = scalar_lea.vmem %s0, 18
  %v9235 = vld.sshfl [vmem:[%s9234] sm:$0xff pattern:$0xbbbb2907]
  %s9236 = scalar_lea.vmem %s0, 6
  %v9237 = vld.sshfl [vmem:[%s9236] sm:$0xff pattern:$0x29000000]
  %vm9238 = vcmask 1047557
  %v9239 = vsel %vm9238, %v9237, %v9235
  %9240 = vrot.lane.b32.xlu0 %v9239, 36
  %v9241 = vpop.permute.xlu0 %9240
  %vm9242 = vcmask 15360
  %s9243 = scalar_lea.vmem %s1, 1296
  %9244 = vst.msk [vmem:[%s9243] ss:$-350 sm:$0x3] %vm9242, %v9241
  %s9245 = scalar_lea.vmem %s1, 2096
  %9246 = vst.msk [vmem:[%s9245] ss:$-350 sm:$0xc] %vm9242, %v9241
  %s9247 = scalar_lea.vmem %s1, 6096
  %9248 = vst.msk [vmem:[%s9247] ss:$-1150 sm:$0x30] %vm9242, %v9241
  %s9249 = scalar_lea.vmem %s1, 2896
  %9250 = vst.msk [vmem:[%s9249] ss:$-350 sm:$0xc0] %vm9242, %v9241
  %s9251 = scalar_lea.vmem %s0, 34
  %v9252 = vld.sshfl [vmem:[%s9251] sm:$0xff pattern:$0xbbbb2907]
  %s9253 = scalar_lea.vmem %s0, 22
  %v9254 = vld.sshfl [vmem:[%s9253] sm:$0xff pattern:$0x29000000]
  %vm9255 = vcmask 1047557
  %v9256 = vsel %vm9255, %v9254, %v9252
  %9257 = vrot.lane.b32.xlu0 %v9256, 36
  %v9258 = vpop.permute.xlu0 %9257
  %vm9259 = vcmask 15360
  %s9260 = scalar_lea.vmem %s1, 2096
  %9261 = vst.msk [vmem:[%s9260] ss:$-350 sm:$0x3] %vm9259, %v9258
  %s9262 = scalar_lea.vmem %s1, 2896
  %9263 = vst.msk [vmem:[%s9262] ss:$-350 sm:$0xc] %vm9259, %v9258
  %s9264 = scalar_lea.vmem %s1, 6896
  %9265 = vst.msk [vmem:[%s9264] ss:$-1150 sm:$0x30] %vm9259, %v9258
  %s9266 = scalar_lea.vmem %s1, 3696
  %9267 = vst.msk [vmem:[%s9266] ss:$-350 sm:$0xc0] %vm9259, %v9258
  %s9268 = scalar_lea.vmem %s0, 56
  %v9269 = vld.sshfl [vmem:[%s9268] sm:$0xff pattern:$0xbbbb2907]
  %s9270 = scalar_lea.vmem %s0, 38
  %v9271 = vld.sshfl [vmem:[%s9270] sm:$0xff pattern:$0x29000000]
  %vm9272 = vcmask 1047557
  %v9273 = vsel %vm9272, %v9271, %v9269
  %9274 = vrot.lane.b32.xlu0 %v9273, 36
  %v9275 = vpop.permute.xlu0 %9274
  %vm9276 = vcmask 15360
  %s9277 = scalar_lea.vmem %s1, 2896
  %9278 = vst.msk [vmem:[%s9277] ss:$-350 sm:$0x3] %vm9276, %v9275
  %s9279 = scalar_lea.vmem %s1, 3696
  %9280 = vst.msk [vmem:[%s9279] ss:$-350 sm:$0xc] %vm9276, %v9275
  %s9281 = scalar_lea.vmem %s1, 7696
  %9282 = vst.msk [vmem:[%s9281] ss:$-1150 sm:$0x30] %vm9276, %v9275
  %s9283 = scalar_lea.vmem %s1, 4496
  %9284 = vst.msk [vmem:[%s9283] ss:$-350 sm:$0xc0] %vm9276, %v9275
  %s9285 = scalar_lea.vmem %s0, 72
  %v9286 = vld.sshfl [vmem:[%s9285] sm:$0xff pattern:$0xbbbb2907]
  %s9287 = scalar_lea.vmem %s0, 60
  %v9288 = vld.sshfl [vmem:[%s9287] sm:$0xff pattern:$0x29000000]
  %vm9289 = vcmask 1047557
  %v9290 = vsel %vm9289, %v9288, %v9286
  %9291 = vrot.lane.b32.xlu0 %v9290, 36
  %v9292 = vpop.permute.xlu0 %9291
  %vm9293 = vcmask 15360
  %s9294 = scalar_lea.vmem %s1, 3696
  %9295 = vst.msk [vmem:[%s9294] ss:$-350 sm:$0x3] %vm9293, %v9292
  %s9296 = scalar_lea.vmem %s1, 4496
  %9297 = vst.msk [vmem:[%s9296] ss:$-350 sm:$0xc] %vm9293, %v9292
  %s9298 = scalar_lea.vmem %s1, 8496
  %9299 = vst.msk [vmem:[%s9298] ss:$-1150 sm:$0x30] %vm9293, %v9292
  %s9300 = scalar_lea.vmem %s1, 5296
  %9301 = vst.msk [vmem:[%s9300] ss:$-350 sm:$0xc0] %vm9293, %v9292
  %s9302 = scalar_lea.vmem %s0, 88
  %v9303 = vld.sshfl [vmem:[%s9302] sm:$0xff pattern:$0xbbbb2907]
  %s9304 = scalar_lea.vmem %s0, 76
  %v9305 = vld.sshfl [vmem:[%s9304] sm:$0xff pattern:$0x29000000]
  %vm9306 = vcmask 1047557
  %v9307 = vsel %vm9306, %v9305, %v9303
  %9308 = vrot.lane.b32.xlu0 %v9307, 36
  %v9309 = vpop.permute.xlu0 %9308
  %vm9310 = vcmask 15360
  %s9311 = scalar_lea.vmem %s1, 4496
  %9312 = vst.msk [vmem:[%s9311] ss:$-350 sm:$0x3] %vm9310, %v9309
  %s9313 = scalar_lea.vmem %s1, 5296
  %9314 = vst.msk [vmem:[%s9313] ss:$-350 sm:$0xc] %vm9310, %v9309
  %s9315 = scalar_lea.vmem %s1, 9296
  %9316 = vst.msk [vmem:[%s9315] ss:$-1150 sm:$0x30] %vm9310, %v9309
  %s9317 = scalar_lea.vmem %s1, 6096
  %9318 = vst.msk [vmem:[%s9317] ss:$-350 sm:$0xc0] %vm9310, %v9309
  %s9319 = scalar_lea.vmem %s0, 92
  %v9320 = vld.sshfl [vmem:[%s9319] sm:$0xff pattern:$0x2222290c]
  %9321 = vrot.lane.b32.xlu0 %v9320, 36
  %v9322 = vpop.permute.xlu0 %9321
  %vm9323 = vcmask 15360
  %s9324 = scalar_lea.vmem %s1, 4946
  %9325 = vst.msk [vmem:[%s9324] ss:$-600 sm:$0x3] %vm9323, %v9322
  %s9326 = scalar_lea.vmem %s1, 5496
  %9327 = vst.msk [vmem:[%s9326] ss:$-350 sm:$0xc] %vm9323, %v9322
  %v9328 = vld.sshfl [vmem:[%s0] sm:$0xff pattern:$0x7e5c3a1]
  %9329 = vrot.lane.b32.xlu0 %v9328, 34
  %v9330 = vpop.permute.xlu0 %9329
  %vm9331 = vcmask 15360
  %s9332 = scalar_lea.vmem %s1, 97
  %9333 = vst.msk [vmem:[%s9332] ss:$450 sm:$0x3] %vm9331, %v9330
  %s9334 = scalar_lea.vmem %s1, 4294966593
  %9335 = vst.msk [vmem:[%s9334] ss:$450 sm:$0xc] %vm9331, %v9330
  %s9336 = scalar_lea.vmem %s1, 4294965793
  %9337 = vst.msk [vmem:[%s9336] ss:$450 sm:$0x30] %vm9331, %v9330
  %s9338 = scalar_lea.vmem %s1, 2497
  %9339 = vst.msk [vmem:[%s9338] ss:$-350 sm:$0xc0] %vm9331, %v9330
  %s9340 = scalar_lea.vmem %s0, 16
  %v9341 = vld.sshfl [vmem:[%s9340] sm:$0xff pattern:$0x7e5c3a1]
  %9342 = vrot.lane.b32.xlu0 %v9341, 34
  %v9343 = vpop.permute.xlu0 %9342
  %vm9344 = vcmask 15360
  %s9345 = scalar_lea.vmem %s1, 897
  %9346 = vst.msk [vmem:[%s9345] ss:$450 sm:$0x3] %vm9344, %v9343
  %s9347 = scalar_lea.vmem %s1, 97
  %9348 = vst.msk [vmem:[%s9347] ss:$450 sm:$0xc] %vm9344, %v9343
  %s9349 = scalar_lea.vmem %s1, 4294966593
  %9350 = vst.msk [vmem:[%s9349] ss:$450 sm:$0x30] %vm9344, %v9343
  %s9351 = scalar_lea.vmem %s1, 3297
  %9352 = vst.msk [vmem:[%s9351] ss:$-350 sm:$0xc0] %vm9344, %v9343
  %s9353 = scalar_lea.vmem %s0, 32
  %v9354 = vld.sshfl [vmem:[%s9353] sm:$0xff pattern:$0x7e5c3a1]
  %9355 = vrot.lane.b32.xlu0 %v9354, 34
  %v9356 = vpop.permute.xlu0 %9355
  %vm9357 = vcmask 15360
  %s9358 = scalar_lea.vmem %s1, 1697
  %9359 = vst.msk [vmem:[%s9358] ss:$450 sm:$0x3] %vm9357, %v9356
  %s9360 = scalar_lea.vmem %s1, 897
  %9361 = vst.msk [vmem:[%s9360] ss:$450 sm:$0xc] %vm9357, %v9356
  %s9362 = scalar_lea.vmem %s1, 97
  %9363 = vst.msk [vmem:[%s9362] ss:$450 sm:$0x30] %vm9357, %v9356
  %s9364 = scalar_lea.vmem %s1, 4097
  %9365 = vst.msk [vmem:[%s9364] ss:$-350 sm:$0xc0] %vm9357, %v9356
  %s9366 = scalar_lea.vmem %s0, 49
  %v9367 = vld.sshfl [vmem:[%s9366] sm:$0xff pattern:$0x888888f0]
  %s9368 = scalar_lea.vmem %s0, 59
  %v9369 = vld.sshfl [vmem:[%s9368] sm:$0xff pattern:$0x22907777]
  %vm9370 = vcmask 1046531
  %v9371 = vsel %vm9370, %v9369, %v9367
  %s9372 = scalar_lea.vmem %s0, 41
  %v9373 = vld [vmem:[%s9372] sm:$0x80]
  %vm9374 = vcmask 1047559
  %v9375 = vsel %vm9374, %v9373, %v9371
  %9376 = vrot.lane.b32.xlu0 %v9375, 34
  %v9377 = vpop.permute.xlu0 %9376
  %vm9378 = vcmask 15360
  %s9379 = scalar_lea.vmem %s1, 2497
  %9380 = vst.msk [vmem:[%s9379] ss:$450 sm:$0x3] %vm9378, %v9377
  %s9381 = scalar_lea.vmem %s1, 1697
  %9382 = vst.msk [vmem:[%s9381] ss:$450 sm:$0xc] %vm9378, %v9377
  %s9383 = scalar_lea.vmem %s1, 897
  %9384 = vst.msk [vmem:[%s9383] ss:$450 sm:$0x30] %vm9378, %v9377
  %s9385 = scalar_lea.vmem %s1, 4897
  %9386 = vst.msk [vmem:[%s9385] ss:$-350 sm:$0xc0] %vm9378, %v9377
  %s9387 = scalar_lea.vmem %s0, 70
  %v9388 = vld.sshfl [vmem:[%s9387] sm:$0xff pattern:$0x7e5c3a1]
  %9389 = vrot.lane.b32.xlu0 %v9388, 34
  %v9390 = vpop.permute.xlu0 %9389
  %vm9391 = vcmask 15360
  %s9392 = scalar_lea.vmem %s1, 3297
  %9393 = vst.msk [vmem:[%s9392] ss:$450 sm:$0x3] %vm9391, %v9390
  %s9394 = scalar_lea.vmem %s1, 2497
  %9395 = vst.msk [vmem:[%s9394] ss:$450 sm:$0xc] %vm9391, %v9390
  %s9396 = scalar_lea.vmem %s1, 1697
  %9397 = vst.msk [vmem:[%s9396] ss:$450 sm:$0x30] %vm9391, %v9390
  %s9398 = scalar_lea.vmem %s1, 5697
  %9399 = vst.msk [vmem:[%s9398] ss:$-350 sm:$0xc0] %vm9391, %v9390
  %s9400 = scalar_lea.vmem %s0, 86
  %v9401 = vld.sshfl [vmem:[%s9400] sm:$0xff pattern:$0x7e5c3a1]
  %9402 = vrot.lane.b32.xlu0 %v9401, 34
  %v9403 = vpop.permute.xlu0 %9402
  %vm9404 = vcmask 15360
  %s9405 = scalar_lea.vmem %s1, 4097
  %9406 = vst.msk [vmem:[%s9405] ss:$450 sm:$0x3] %vm9404, %v9403
  %s9407 = scalar_lea.vmem %s1, 3297
  %9408 = vst.msk [vmem:[%s9407] ss:$450 sm:$0xc] %vm9404, %v9403
  %s9409 = scalar_lea.vmem %s1, 2497
  %9410 = vst.msk [vmem:[%s9409] ss:$450 sm:$0x30] %vm9404, %v9403
  %s9411 = scalar_lea.vmem %s1, 6497
  %9412 = vst.msk [vmem:[%s9411] ss:$-350 sm:$0xc0] %vm9404, %v9403
  %s9413 = scalar_lea.vmem %s0, 102
  %v9414 = vld.sshfl [vmem:[%s9413] sm:$0xff pattern:$0x31]
  %s9415 = scalar_lea.vmem %s0, 2
  %v9416 = vld.sshfl [vmem:[%s9415] sm:$0xff pattern:$0xb2907777]
  %vm9417 = vcmask 1047555
  %v9418 = vsel %vm9417, %v9416, %v9414
  %9419 = vrot.lane.b32.xlu0 %v9418, 34
  %v9420 = vpop.permute.xlu0 %9419
  %vm9421 = vcmask 15360
  %s9422 = scalar_lea.vmem %s1, 4897
  %9423 = vst.msk [vmem:[%s9422] ss:$100 sm:$0x3] %vm9421, %v9420
  %s9424 = scalar_lea.vmem %s1, 13547
  %9425 = vst.msk [vmem:[%s9424] ss:$-4350 sm:$0xc] %vm9421, %v9420
  %s9426 = scalar_lea.vmem %s1, 4294965643
  %9427 = vst.msk [vmem:[%s9426] ss:$450 sm:$0x30] %vm9421, %v9420
  %s9428 = scalar_lea.vmem %s1, 4294964843
  %9429 = vst.msk [vmem:[%s9428] ss:$450 sm:$0xc0] %vm9421, %v9420
  %s9430 = scalar_lea.vmem %s0, 18
  %v9431 = vld.sshfl [vmem:[%s9430] sm:$0xff pattern:$0xbbbb2907]
  %s9432 = scalar_lea.vmem %s0, 6
  %v9433 = vld.sshfl [vmem:[%s9432] sm:$0xff pattern:$0x29000000]
  %vm9434 = vcmask 1047557
  %v9435 = vsel %vm9434, %v9433, %v9431
  %9436 = vrot.lane.b32.xlu0 %v9435, 34
  %v9437 = vpop.permute.xlu0 %9436
  %vm9438 = vcmask 15360
  %s9439 = scalar_lea.vmem %s1, 1297
  %9440 = vst.msk [vmem:[%s9439] ss:$-350 sm:$0x3] %vm9438, %v9437
  %s9441 = scalar_lea.vmem %s1, 2097
  %9442 = vst.msk [vmem:[%s9441] ss:$-350 sm:$0xc] %vm9438, %v9437
  %s9443 = scalar_lea.vmem %s1, 6097
  %9444 = vst.msk [vmem:[%s9443] ss:$-1150 sm:$0x30] %vm9438, %v9437
  %s9445 = scalar_lea.vmem %s1, 2897
  %9446 = vst.msk [vmem:[%s9445] ss:$-350 sm:$0xc0] %vm9438, %v9437
  %s9447 = scalar_lea.vmem %s0, 34
  %v9448 = vld.sshfl [vmem:[%s9447] sm:$0xff pattern:$0xbbbb2907]
  %s9449 = scalar_lea.vmem %s0, 22
  %v9450 = vld.sshfl [vmem:[%s9449] sm:$0xff pattern:$0x29000000]
  %vm9451 = vcmask 1047557
  %v9452 = vsel %vm9451, %v9450, %v9448
  %9453 = vrot.lane.b32.xlu0 %v9452, 34
  %v9454 = vpop.permute.xlu0 %9453
  %vm9455 = vcmask 15360
  %s9456 = scalar_lea.vmem %s1, 2097
  %9457 = vst.msk [vmem:[%s9456] ss:$-350 sm:$0x3] %vm9455, %v9454
  %s9458 = scalar_lea.vmem %s1, 2897
  %9459 = vst.msk [vmem:[%s9458] ss:$-350 sm:$0xc] %vm9455, %v9454
  %s9460 = scalar_lea.vmem %s1, 6897
  %9461 = vst.msk [vmem:[%s9460] ss:$-1150 sm:$0x30] %vm9455, %v9454
  %s9462 = scalar_lea.vmem %s1, 3697
  %9463 = vst.msk [vmem:[%s9462] ss:$-350 sm:$0xc0] %vm9455, %v9454
  %s9464 = scalar_lea.vmem %s0, 56
  %v9465 = vld.sshfl [vmem:[%s9464] sm:$0xff pattern:$0xbbbb2907]
  %s9466 = scalar_lea.vmem %s0, 38
  %v9467 = vld.sshfl [vmem:[%s9466] sm:$0xff pattern:$0x29000000]
  %vm9468 = vcmask 1047557
  %v9469 = vsel %vm9468, %v9467, %v9465
  %9470 = vrot.lane.b32.xlu0 %v9469, 34
  %v9471 = vpop.permute.xlu0 %9470
  %vm9472 = vcmask 15360
  %s9473 = scalar_lea.vmem %s1, 2897
  %9474 = vst.msk [vmem:[%s9473] ss:$-350 sm:$0x3] %vm9472, %v9471
  %s9475 = scalar_lea.vmem %s1, 3697
  %9476 = vst.msk [vmem:[%s9475] ss:$-350 sm:$0xc] %vm9472, %v9471
  %s9477 = scalar_lea.vmem %s1, 7697
  %9478 = vst.msk [vmem:[%s9477] ss:$-1150 sm:$0x30] %vm9472, %v9471
  %s9479 = scalar_lea.vmem %s1, 4497
  %9480 = vst.msk [vmem:[%s9479] ss:$-350 sm:$0xc0] %vm9472, %v9471
  %s9481 = scalar_lea.vmem %s0, 72
  %v9482 = vld.sshfl [vmem:[%s9481] sm:$0xff pattern:$0xbbbb2907]
  %s9483 = scalar_lea.vmem %s0, 60
  %v9484 = vld.sshfl [vmem:[%s9483] sm:$0xff pattern:$0x29000000]
  %vm9485 = vcmask 1047557
  %v9486 = vsel %vm9485, %v9484, %v9482
  %9487 = vrot.lane.b32.xlu0 %v9486, 34
  %v9488 = vpop.permute.xlu0 %9487
  %vm9489 = vcmask 15360
  %s9490 = scalar_lea.vmem %s1, 3697
  %9491 = vst.msk [vmem:[%s9490] ss:$-350 sm:$0x3] %vm9489, %v9488
  %s9492 = scalar_lea.vmem %s1, 4497
  %9493 = vst.msk [vmem:[%s9492] ss:$-350 sm:$0xc] %vm9489, %v9488
  %s9494 = scalar_lea.vmem %s1, 8497
  %9495 = vst.msk [vmem:[%s9494] ss:$-1150 sm:$0x30] %vm9489, %v9488
  %s9496 = scalar_lea.vmem %s1, 5297
  %9497 = vst.msk [vmem:[%s9496] ss:$-350 sm:$0xc0] %vm9489, %v9488
  %s9498 = scalar_lea.vmem %s0, 88
  %v9499 = vld.sshfl [vmem:[%s9498] sm:$0xff pattern:$0xbbbb2907]
  %s9500 = scalar_lea.vmem %s0, 76
  %v9501 = vld.sshfl [vmem:[%s9500] sm:$0xff pattern:$0x29000000]
  %vm9502 = vcmask 1047557
  %v9503 = vsel %vm9502, %v9501, %v9499
  %9504 = vrot.lane.b32.xlu0 %v9503, 34
  %v9505 = vpop.permute.xlu0 %9504
  %vm9506 = vcmask 15360
  %s9507 = scalar_lea.vmem %s1, 4497
  %9508 = vst.msk [vmem:[%s9507] ss:$-350 sm:$0x3] %vm9506, %v9505
  %s9509 = scalar_lea.vmem %s1, 5297
  %9510 = vst.msk [vmem:[%s9509] ss:$-350 sm:$0xc] %vm9506, %v9505
  %s9511 = scalar_lea.vmem %s1, 9297
  %9512 = vst.msk [vmem:[%s9511] ss:$-1150 sm:$0x30] %vm9506, %v9505
  %s9513 = scalar_lea.vmem %s1, 6097
  %9514 = vst.msk [vmem:[%s9513] ss:$-350 sm:$0xc0] %vm9506, %v9505
  %s9515 = scalar_lea.vmem %s0, 92
  %v9516 = vld.sshfl [vmem:[%s9515] sm:$0xff pattern:$0x2222290c]
  %9517 = vrot.lane.b32.xlu0 %v9516, 34
  %v9518 = vpop.permute.xlu0 %9517
  %vm9519 = vcmask 15360
  %s9520 = scalar_lea.vmem %s1, 4947
  %9521 = vst.msk [vmem:[%s9520] ss:$-600 sm:$0x3] %vm9519, %v9518
  %s9522 = scalar_lea.vmem %s1, 5497
  %9523 = vst.msk [vmem:[%s9522] ss:$-350 sm:$0xc] %vm9519, %v9518
  %s9524 = scalar_lea.vmem %s0, 1
  %v9525 = vld.sshfl [vmem:[%s9524] sm:$0xff pattern:$0x6d4b2907]
  %9526 = vrot.lane.b32.xlu0 %v9525, 32
  %v9527 = vpop.permute.xlu0 %9526
  %vm9528 = vcmask 15360
  %s9529 = scalar_lea.vmem %s1, 448
  %9530 = vst.msk [vmem:[%s9529] ss:$-350 sm:$0x3] %vm9528, %v9527
  %s9531 = scalar_lea.vmem %s1, 1248
  %9532 = vst.msk [vmem:[%s9531] ss:$-350 sm:$0xc] %vm9528, %v9527
  %s9533 = scalar_lea.vmem %s1, 2048
  %9534 = vst.msk [vmem:[%s9533] ss:$-350 sm:$0x30] %vm9528, %v9527
  %s9535 = scalar_lea.vmem %s1, 2848
  %9536 = vst.msk [vmem:[%s9535] ss:$-350 sm:$0xc0] %vm9528, %v9527
  %s9537 = scalar_lea.vmem %s0, 17
  %v9538 = vld.sshfl [vmem:[%s9537] sm:$0xff pattern:$0x6d4b2907]
  %9539 = vrot.lane.b32.xlu0 %v9538, 32
  %v9540 = vpop.permute.xlu0 %9539
  %vm9541 = vcmask 15360
  %s9542 = scalar_lea.vmem %s1, 1248
  %9543 = vst.msk [vmem:[%s9542] ss:$-350 sm:$0x3] %vm9541, %v9540
  %s9544 = scalar_lea.vmem %s1, 2048
  %9545 = vst.msk [vmem:[%s9544] ss:$-350 sm:$0xc] %vm9541, %v9540
  %s9546 = scalar_lea.vmem %s1, 2848
  %9547 = vst.msk [vmem:[%s9546] ss:$-350 sm:$0x30] %vm9541, %v9540
  %s9548 = scalar_lea.vmem %s1, 3648
  %9549 = vst.msk [vmem:[%s9548] ss:$-350 sm:$0xc0] %vm9541, %v9540
  %s9550 = scalar_lea.vmem %s0, 33
  %v9551 = vld.sshfl [vmem:[%s9550] sm:$0xff pattern:$0x6d4b2907]
  %9552 = vrot.lane.b32.xlu0 %v9551, 32
  %v9553 = vpop.permute.xlu0 %9552
  %vm9554 = vcmask 15360
  %s9555 = scalar_lea.vmem %s1, 2048
  %9556 = vst.msk [vmem:[%s9555] ss:$-350 sm:$0x3] %vm9554, %v9553
  %s9557 = scalar_lea.vmem %s1, 2848
  %9558 = vst.msk [vmem:[%s9557] ss:$-350 sm:$0xc] %vm9554, %v9553
  %s9559 = scalar_lea.vmem %s1, 3648
  %9560 = vst.msk [vmem:[%s9559] ss:$-350 sm:$0x30] %vm9554, %v9553
  %s9561 = scalar_lea.vmem %s1, 4448
  %9562 = vst.msk [vmem:[%s9561] ss:$-350 sm:$0xc0] %vm9554, %v9553
  %s9563 = scalar_lea.vmem %s0, 49
  %v9564 = vld.sshfl [vmem:[%s9563] sm:$0xff pattern:$0x88888f0d]
  %s9565 = scalar_lea.vmem %s0, 59
  %v9566 = vld.sshfl [vmem:[%s9565] sm:$0xff pattern:$0x29077777]
  %vm9567 = vcmask 1047556
  %v9568 = vsel %vm9567, %v9566, %v9564
  %9569 = vrot.lane.b32.xlu0 %v9568, 32
  %v9570 = vpop.permute.xlu0 %9569
  %vm9571 = vcmask 15360
  %s9572 = scalar_lea.vmem %s1, 2848
  %9573 = vst.msk [vmem:[%s9572] ss:$-350 sm:$0x3] %vm9571, %v9570
  %s9574 = scalar_lea.vmem %s1, 3648
  %9575 = vst.msk [vmem:[%s9574] ss:$-350 sm:$0xc] %vm9571, %v9570
  %s9576 = scalar_lea.vmem %s1, 4448
  %9577 = vst.msk [vmem:[%s9576] ss:$-350 sm:$0x30] %vm9571, %v9570
  %s9578 = scalar_lea.vmem %s1, 5248
  %9579 = vst.msk [vmem:[%s9578] ss:$-350 sm:$0xc0] %vm9571, %v9570
  %s9580 = scalar_lea.vmem %s0, 71
  %v9581 = vld.sshfl [vmem:[%s9580] sm:$0xff pattern:$0x6d4b2907]
  %9582 = vrot.lane.b32.xlu0 %v9581, 32
  %v9583 = vpop.permute.xlu0 %9582
  %vm9584 = vcmask 15360
  %s9585 = scalar_lea.vmem %s1, 3648
  %9586 = vst.msk [vmem:[%s9585] ss:$-350 sm:$0x3] %vm9584, %v9583
  %s9587 = scalar_lea.vmem %s1, 4448
  %9588 = vst.msk [vmem:[%s9587] ss:$-350 sm:$0xc] %vm9584, %v9583
  %s9589 = scalar_lea.vmem %s1, 5248
  %9590 = vst.msk [vmem:[%s9589] ss:$-350 sm:$0x30] %vm9584, %v9583
  %s9591 = scalar_lea.vmem %s1, 6048
  %9592 = vst.msk [vmem:[%s9591] ss:$-350 sm:$0xc0] %vm9584, %v9583
  %s9593 = scalar_lea.vmem %s0, 87
  %v9594 = vld.sshfl [vmem:[%s9593] sm:$0xff pattern:$0x6d4b2907]
  %9595 = vrot.lane.b32.xlu0 %v9594, 32
  %v9596 = vpop.permute.xlu0 %9595
  %vm9597 = vcmask 15360
  %s9598 = scalar_lea.vmem %s1, 4448
  %9599 = vst.msk [vmem:[%s9598] ss:$-350 sm:$0x3] %vm9597, %v9596
  %s9600 = scalar_lea.vmem %s1, 5248
  %9601 = vst.msk [vmem:[%s9600] ss:$-350 sm:$0xc] %vm9597, %v9596
  %s9602 = scalar_lea.vmem %s1, 6048
  %9603 = vst.msk [vmem:[%s9602] ss:$-350 sm:$0x30] %vm9597, %v9596
  %s9604 = scalar_lea.vmem %s1, 6848
  %9605 = vst.msk [vmem:[%s9604] ss:$-350 sm:$0xc0] %vm9597, %v9596
  %s9606 = scalar_lea.vmem %s0, 103
  %s9607 = smov 3
  %v9608 = vld [vmem:[%s9606] ss:$2 sm:%s9607]
  %v9609 = vld.sshfl [vmem:[%s0] sm:$0xff pattern:$0xd4b29000]
  %vm9610 = vcmask 1047554
  %v9611 = vsel %vm9610, %v9609, %v9608
  %9612 = vrot.lane.b32.xlu0 %v9611, 32
  %v9613 = vpop.permute.xlu0 %9612
  %vm9614 = vcmask 15360
  %s9615 = scalar_lea.vmem %s1, 4898
  %9616 = vst.msk [vmem:[%s9615] ss:$100 sm:$0x3] %vm9614, %v9613
  %s9617 = scalar_lea.vmem %s1, 4294966444
  %9618 = vst.msk [vmem:[%s9617] ss:$450 sm:$0xc] %vm9614, %v9613
  %s9619 = scalar_lea.vmem %s1, 4294965644
  %9620 = vst.msk [vmem:[%s9619] ss:$450 sm:$0x30] %vm9614, %v9613
  %s9621 = scalar_lea.vmem %s1, 4294964844
  %9622 = vst.msk [vmem:[%s9621] ss:$450 sm:$0xc0] %vm9614, %v9613
  %s9623 = scalar_lea.vmem %s0, 16
  %v9624 = vld.sshfl [vmem:[%s9623] sm:$0xff pattern:$0xddd4b290]
  %s9625 = scalar_lea.vmem %s0, 4294967248
  %s9626 = smov 192
  %v9627 = vld [vmem:[%s9625] ss:$9 sm:%s9626]
  %vm9628 = vcmask 1047558
  %v9629 = vsel %vm9628, %v9627, %v9624
  %9630 = vrot.lane.b32.xlu0 %v9629, 32
  %v9631 = vpop.permute.xlu0 %9630
  %vm9632 = vcmask 15360
  %s9633 = scalar_lea.vmem %s1, 848
  %9634 = vst.msk [vmem:[%s9633] ss:$450 sm:$0x3] %vm9632, %v9631
  %s9635 = scalar_lea.vmem %s1, 48
  %9636 = vst.msk [vmem:[%s9635] ss:$450 sm:$0xc] %vm9632, %v9631
  %s9637 = scalar_lea.vmem %s1, 4294966544
  %9638 = vst.msk [vmem:[%s9637] ss:$450 sm:$0x30] %vm9632, %v9631
  %s9639 = scalar_lea.vmem %s1, 4294964944
  %9640 = vst.msk [vmem:[%s9639] ss:$450 sm:$0xc0] %vm9632, %v9631
  %s9641 = scalar_lea.vmem %s0, 32
  %v9642 = vld.sshfl [vmem:[%s9641] sm:$0xff pattern:$0xddd4b290]
  %s9643 = scalar_lea.vmem %s0, 4294967264
  %s9644 = smov 192
  %v9645 = vld [vmem:[%s9643] ss:$9 sm:%s9644]
  %vm9646 = vcmask 1047558
  %v9647 = vsel %vm9646, %v9645, %v9642
  %9648 = vrot.lane.b32.xlu0 %v9647, 32
  %v9649 = vpop.permute.xlu0 %9648
  %vm9650 = vcmask 15360
  %s9651 = scalar_lea.vmem %s1, 1648
  %9652 = vst.msk [vmem:[%s9651] ss:$450 sm:$0x3] %vm9650, %v9649
  %s9653 = scalar_lea.vmem %s1, 848
  %9654 = vst.msk [vmem:[%s9653] ss:$450 sm:$0xc] %vm9650, %v9649
  %s9655 = scalar_lea.vmem %s1, 48
  %9656 = vst.msk [vmem:[%s9655] ss:$450 sm:$0x30] %vm9650, %v9649
  %s9657 = scalar_lea.vmem %s1, 4294965744
  %9658 = vst.msk [vmem:[%s9657] ss:$450 sm:$0xc0] %vm9650, %v9649
  %s9659 = scalar_lea.vmem %s0, 48
  %v9660 = vld.sshfl [vmem:[%s9659] sm:$0xff pattern:$0x888888f0]
  %s9661 = scalar_lea.vmem %s0, 58
  %v9662 = vld.sshfl [vmem:[%s9661] sm:$0xff pattern:$0x99907777]
  %vm9663 = vcmask 1045507
  %v9664 = vsel %vm9663, %v9662, %v9660
  %s9665 = scalar_lea.vmem %s0, 4294967280
  %s9666 = smov 192
  %v9667 = vld [vmem:[%s9665] ss:$9 sm:%s9666]
  %vm9668 = vcmask 1047558
  %v9669 = vsel %vm9668, %v9667, %v9664
  %9670 = vrot.lane.b32.xlu0 %v9669, 32
  %v9671 = vpop.permute.xlu0 %9670
  %vm9672 = vcmask 15360
  %s9673 = scalar_lea.vmem %s1, 2448
  %9674 = vst.msk [vmem:[%s9673] ss:$450 sm:$0x3] %vm9672, %v9671
  %s9675 = scalar_lea.vmem %s1, 1648
  %9676 = vst.msk [vmem:[%s9675] ss:$450 sm:$0xc] %vm9672, %v9671
  %s9677 = scalar_lea.vmem %s1, 848
  %9678 = vst.msk [vmem:[%s9677] ss:$450 sm:$0x30] %vm9672, %v9671
  %s9679 = scalar_lea.vmem %s1, 4294966544
  %9680 = vst.msk [vmem:[%s9679] ss:$450 sm:$0xc0] %vm9672, %v9671
  %s9681 = scalar_lea.vmem %s0, 70
  %v9682 = vld.sshfl [vmem:[%s9681] sm:$0xff pattern:$0xddd4b290]
  %s9683 = scalar_lea.vmem %s0, 6
  %s9684 = smov 192
  %v9685 = vld [vmem:[%s9683] ss:$9 sm:%s9684]
  %vm9686 = vcmask 1047558
  %v9687 = vsel %vm9686, %v9685, %v9682
  %9688 = vrot.lane.b32.xlu0 %v9687, 32
  %v9689 = vpop.permute.xlu0 %9688
  %vm9690 = vcmask 15360
  %s9691 = scalar_lea.vmem %s1, 3248
  %9692 = vst.msk [vmem:[%s9691] ss:$450 sm:$0x3] %vm9690, %v9689
  %s9693 = scalar_lea.vmem %s1, 2448
  %9694 = vst.msk [vmem:[%s9693] ss:$450 sm:$0xc] %vm9690, %v9689
  %s9695 = scalar_lea.vmem %s1, 1648
  %9696 = vst.msk [vmem:[%s9695] ss:$450 sm:$0x30] %vm9690, %v9689
  %s9697 = scalar_lea.vmem %s1, 48
  %9698 = vst.msk [vmem:[%s9697] ss:$450 sm:$0xc0] %vm9690, %v9689
  %s9699 = scalar_lea.vmem %s0, 86
  %v9700 = vld.sshfl [vmem:[%s9699] sm:$0xff pattern:$0xddd4b290]
  %s9701 = scalar_lea.vmem %s0, 22
  %s9702 = smov 192
  %v9703 = vld [vmem:[%s9701] ss:$9 sm:%s9702]
  %vm9704 = vcmask 1047558
  %v9705 = vsel %vm9704, %v9703, %v9700
  %9706 = vrot.lane.b32.xlu0 %v9705, 32
  %v9707 = vpop.permute.xlu0 %9706
  %vm9708 = vcmask 15360
  %s9709 = scalar_lea.vmem %s1, 4048
  %9710 = vst.msk [vmem:[%s9709] ss:$450 sm:$0x3] %vm9708, %v9707
  %s9711 = scalar_lea.vmem %s1, 3248
  %9712 = vst.msk [vmem:[%s9711] ss:$450 sm:$0xc] %vm9708, %v9707
  %s9713 = scalar_lea.vmem %s1, 2448
  %9714 = vst.msk [vmem:[%s9713] ss:$450 sm:$0x30] %vm9708, %v9707
  %s9715 = scalar_lea.vmem %s1, 848
  %9716 = vst.msk [vmem:[%s9715] ss:$450 sm:$0xc0] %vm9708, %v9707
  %s9717 = scalar_lea.vmem %s0, 92
  %v9718 = vld.sshfl [vmem:[%s9717] sm:$0xff pattern:$0x999990ca]
  %9719 = vrot.lane.b32.xlu0 %v9718, 32
  %v9720 = vpop.permute.xlu0 %9719
  %vm9721 = vcmask 15360
  %s9722 = scalar_lea.vmem %s1, 4848
  %9723 = vst.msk [vmem:[%s9722] ss:$100 sm:$0x3] %vm9721, %v9720
  %s9724 = scalar_lea.vmem %s1, 3448
  %9725 = vst.msk [vmem:[%s9724] ss:$450 sm:$0xc] %vm9721, %v9720
  %s9726 = scalar_lea.vmem %s0, 1
  %v9727 = vld.sshfl [vmem:[%s9726] sm:$0xff pattern:$0x6d4b2907]
  %9728 = vrot.lane.b32.xlu0 %v9727, 30
  %v9729 = vpop.permute.xlu0 %9728
  %vm9730 = vcmask 15360
  %s9731 = scalar_lea.vmem %s1, 449
  %9732 = vst.msk [vmem:[%s9731] ss:$-350 sm:$0x3] %vm9730, %v9729
  %s9733 = scalar_lea.vmem %s1, 1249
  %9734 = vst.msk [vmem:[%s9733] ss:$-350 sm:$0xc] %vm9730, %v9729
  %s9735 = scalar_lea.vmem %s1, 2049
  %9736 = vst.msk [vmem:[%s9735] ss:$-350 sm:$0x30] %vm9730, %v9729
  %s9737 = scalar_lea.vmem %s1, 2849
  %9738 = vst.msk [vmem:[%s9737] ss:$-350 sm:$0xc0] %vm9730, %v9729
  %s9739 = scalar_lea.vmem %s0, 17
  %v9740 = vld.sshfl [vmem:[%s9739] sm:$0xff pattern:$0x6d4b2907]
  %9741 = vrot.lane.b32.xlu0 %v9740, 30
  %v9742 = vpop.permute.xlu0 %9741
  %vm9743 = vcmask 15360
  %s9744 = scalar_lea.vmem %s1, 1249
  %9745 = vst.msk [vmem:[%s9744] ss:$-350 sm:$0x3] %vm9743, %v9742
  %s9746 = scalar_lea.vmem %s1, 2049
  %9747 = vst.msk [vmem:[%s9746] ss:$-350 sm:$0xc] %vm9743, %v9742
  %s9748 = scalar_lea.vmem %s1, 2849
  %9749 = vst.msk [vmem:[%s9748] ss:$-350 sm:$0x30] %vm9743, %v9742
  %s9750 = scalar_lea.vmem %s1, 3649
  %9751 = vst.msk [vmem:[%s9750] ss:$-350 sm:$0xc0] %vm9743, %v9742
  %s9752 = scalar_lea.vmem %s0, 33
  %v9753 = vld.sshfl [vmem:[%s9752] sm:$0xff pattern:$0x6d4b2907]
  %9754 = vrot.lane.b32.xlu0 %v9753, 30
  %v9755 = vpop.permute.xlu0 %9754
  %vm9756 = vcmask 15360
  %s9757 = scalar_lea.vmem %s1, 2049
  %9758 = vst.msk [vmem:[%s9757] ss:$-350 sm:$0x3] %vm9756, %v9755
  %s9759 = scalar_lea.vmem %s1, 2849
  %9760 = vst.msk [vmem:[%s9759] ss:$-350 sm:$0xc] %vm9756, %v9755
  %s9761 = scalar_lea.vmem %s1, 3649
  %9762 = vst.msk [vmem:[%s9761] ss:$-350 sm:$0x30] %vm9756, %v9755
  %s9763 = scalar_lea.vmem %s1, 4449
  %9764 = vst.msk [vmem:[%s9763] ss:$-350 sm:$0xc0] %vm9756, %v9755
  %s9765 = scalar_lea.vmem %s0, 49
  %v9766 = vld.sshfl [vmem:[%s9765] sm:$0xff pattern:$0x88888f0d]
  %s9767 = scalar_lea.vmem %s0, 59
  %v9768 = vld.sshfl [vmem:[%s9767] sm:$0xff pattern:$0x29077777]
  %vm9769 = vcmask 1047556
  %v9770 = vsel %vm9769, %v9768, %v9766
  %9771 = vrot.lane.b32.xlu0 %v9770, 30
  %v9772 = vpop.permute.xlu0 %9771
  %vm9773 = vcmask 15360
  %s9774 = scalar_lea.vmem %s1, 2849
  %9775 = vst.msk [vmem:[%s9774] ss:$-350 sm:$0x3] %vm9773, %v9772
  %s9776 = scalar_lea.vmem %s1, 3649
  %9777 = vst.msk [vmem:[%s9776] ss:$-350 sm:$0xc] %vm9773, %v9772
  %s9778 = scalar_lea.vmem %s1, 4449
  %9779 = vst.msk [vmem:[%s9778] ss:$-350 sm:$0x30] %vm9773, %v9772
  %s9780 = scalar_lea.vmem %s1, 5249
  %9781 = vst.msk [vmem:[%s9780] ss:$-350 sm:$0xc0] %vm9773, %v9772
  %s9782 = scalar_lea.vmem %s0, 71
  %v9783 = vld.sshfl [vmem:[%s9782] sm:$0xff pattern:$0x6d4b2907]
  %9784 = vrot.lane.b32.xlu0 %v9783, 30
  %v9785 = vpop.permute.xlu0 %9784
  %vm9786 = vcmask 15360
  %s9787 = scalar_lea.vmem %s1, 3649
  %9788 = vst.msk [vmem:[%s9787] ss:$-350 sm:$0x3] %vm9786, %v9785
  %s9789 = scalar_lea.vmem %s1, 4449
  %9790 = vst.msk [vmem:[%s9789] ss:$-350 sm:$0xc] %vm9786, %v9785
  %s9791 = scalar_lea.vmem %s1, 5249
  %9792 = vst.msk [vmem:[%s9791] ss:$-350 sm:$0x30] %vm9786, %v9785
  %s9793 = scalar_lea.vmem %s1, 6049
  %9794 = vst.msk [vmem:[%s9793] ss:$-350 sm:$0xc0] %vm9786, %v9785
  %s9795 = scalar_lea.vmem %s0, 87
  %v9796 = vld.sshfl [vmem:[%s9795] sm:$0xff pattern:$0x6d4b2907]
  %9797 = vrot.lane.b32.xlu0 %v9796, 30
  %v9798 = vpop.permute.xlu0 %9797
  %vm9799 = vcmask 15360
  %s9800 = scalar_lea.vmem %s1, 4449
  %9801 = vst.msk [vmem:[%s9800] ss:$-350 sm:$0x3] %vm9799, %v9798
  %s9802 = scalar_lea.vmem %s1, 5249
  %9803 = vst.msk [vmem:[%s9802] ss:$-350 sm:$0xc] %vm9799, %v9798
  %s9804 = scalar_lea.vmem %s1, 6049
  %9805 = vst.msk [vmem:[%s9804] ss:$-350 sm:$0x30] %vm9799, %v9798
  %s9806 = scalar_lea.vmem %s1, 6849
  %9807 = vst.msk [vmem:[%s9806] ss:$-350 sm:$0xc0] %vm9799, %v9798
  %s9808 = scalar_lea.vmem %s0, 103
  %s9809 = smov 3
  %v9810 = vld [vmem:[%s9808] ss:$2 sm:%s9809]
  %v9811 = vld.sshfl [vmem:[%s0] sm:$0xff pattern:$0xd4b29000]
  %vm9812 = vcmask 1047554
  %v9813 = vsel %vm9812, %v9811, %v9810
  %9814 = vrot.lane.b32.xlu0 %v9813, 30
  %v9815 = vpop.permute.xlu0 %9814
  %vm9816 = vcmask 15360
  %s9817 = scalar_lea.vmem %s1, 4899
  %9818 = vst.msk [vmem:[%s9817] ss:$100 sm:$0x3] %vm9816, %v9815
  %s9819 = scalar_lea.vmem %s1, 4294966445
  %9820 = vst.msk [vmem:[%s9819] ss:$450 sm:$0xc] %vm9816, %v9815
  %s9821 = scalar_lea.vmem %s1, 4294965645
  %9822 = vst.msk [vmem:[%s9821] ss:$450 sm:$0x30] %vm9816, %v9815
  %s9823 = scalar_lea.vmem %s1, 4294964845
  %9824 = vst.msk [vmem:[%s9823] ss:$450 sm:$0xc0] %vm9816, %v9815
  %s9825 = scalar_lea.vmem %s0, 16
  %v9826 = vld.sshfl [vmem:[%s9825] sm:$0xff pattern:$0xddd4b290]
  %s9827 = scalar_lea.vmem %s0, 4294967248
  %s9828 = smov 192
  %v9829 = vld [vmem:[%s9827] ss:$9 sm:%s9828]
  %vm9830 = vcmask 1047558
  %v9831 = vsel %vm9830, %v9829, %v9826
  %9832 = vrot.lane.b32.xlu0 %v9831, 30
  %v9833 = vpop.permute.xlu0 %9832
  %vm9834 = vcmask 15360
  %s9835 = scalar_lea.vmem %s1, 849
  %9836 = vst.msk [vmem:[%s9835] ss:$450 sm:$0x3] %vm9834, %v9833
  %s9837 = scalar_lea.vmem %s1, 49
  %9838 = vst.msk [vmem:[%s9837] ss:$450 sm:$0xc] %vm9834, %v9833
  %s9839 = scalar_lea.vmem %s1, 4294966545
  %9840 = vst.msk [vmem:[%s9839] ss:$450 sm:$0x30] %vm9834, %v9833
  %s9841 = scalar_lea.vmem %s1, 4294964945
  %9842 = vst.msk [vmem:[%s9841] ss:$450 sm:$0xc0] %vm9834, %v9833
  %s9843 = scalar_lea.vmem %s0, 32
  %v9844 = vld.sshfl [vmem:[%s9843] sm:$0xff pattern:$0xddd4b290]
  %s9845 = scalar_lea.vmem %s0, 4294967264
  %s9846 = smov 192
  %v9847 = vld [vmem:[%s9845] ss:$9 sm:%s9846]
  %vm9848 = vcmask 1047558
  %v9849 = vsel %vm9848, %v9847, %v9844
  %9850 = vrot.lane.b32.xlu0 %v9849, 30
  %v9851 = vpop.permute.xlu0 %9850
  %vm9852 = vcmask 15360
  %s9853 = scalar_lea.vmem %s1, 1649
  %9854 = vst.msk [vmem:[%s9853] ss:$450 sm:$0x3] %vm9852, %v9851
  %s9855 = scalar_lea.vmem %s1, 849
  %9856 = vst.msk [vmem:[%s9855] ss:$450 sm:$0xc] %vm9852, %v9851
  %s9857 = scalar_lea.vmem %s1, 49
  %9858 = vst.msk [vmem:[%s9857] ss:$450 sm:$0x30] %vm9852, %v9851
  %s9859 = scalar_lea.vmem %s1, 4294965745
  %9860 = vst.msk [vmem:[%s9859] ss:$450 sm:$0xc0] %vm9852, %v9851
  %s9861 = scalar_lea.vmem %s0, 48
  %v9862 = vld.sshfl [vmem:[%s9861] sm:$0xff pattern:$0x888888f0]
  %s9863 = scalar_lea.vmem %s0, 58
  %v9864 = vld.sshfl [vmem:[%s9863] sm:$0xff pattern:$0x99907777]
  %vm9865 = vcmask 1045507
  %v9866 = vsel %vm9865, %v9864, %v9862
  %s9867 = scalar_lea.vmem %s0, 4294967280
  %s9868 = smov 192
  %v9869 = vld [vmem:[%s9867] ss:$9 sm:%s9868]
  %vm9870 = vcmask 1047558
  %v9871 = vsel %vm9870, %v9869, %v9866
  %9872 = vrot.lane.b32.xlu0 %v9871, 30
  %v9873 = vpop.permute.xlu0 %9872
  %vm9874 = vcmask 15360
  %s9875 = scalar_lea.vmem %s1, 2449
  %9876 = vst.msk [vmem:[%s9875] ss:$450 sm:$0x3] %vm9874, %v9873
  %s9877 = scalar_lea.vmem %s1, 1649
  %9878 = vst.msk [vmem:[%s9877] ss:$450 sm:$0xc] %vm9874, %v9873
  %s9879 = scalar_lea.vmem %s1, 849
  %9880 = vst.msk [vmem:[%s9879] ss:$450 sm:$0x30] %vm9874, %v9873
  %s9881 = scalar_lea.vmem %s1, 4294966545
  %9882 = vst.msk [vmem:[%s9881] ss:$450 sm:$0xc0] %vm9874, %v9873
  %s9883 = scalar_lea.vmem %s0, 70
  %v9884 = vld.sshfl [vmem:[%s9883] sm:$0xff pattern:$0xddd4b290]
  %s9885 = scalar_lea.vmem %s0, 6
  %s9886 = smov 192
  %v9887 = vld [vmem:[%s9885] ss:$9 sm:%s9886]
  %vm9888 = vcmask 1047558
  %v9889 = vsel %vm9888, %v9887, %v9884
  %9890 = vrot.lane.b32.xlu0 %v9889, 30
  %v9891 = vpop.permute.xlu0 %9890
  %vm9892 = vcmask 15360
  %s9893 = scalar_lea.vmem %s1, 3249
  %9894 = vst.msk [vmem:[%s9893] ss:$450 sm:$0x3] %vm9892, %v9891
  %s9895 = scalar_lea.vmem %s1, 2449
  %9896 = vst.msk [vmem:[%s9895] ss:$450 sm:$0xc] %vm9892, %v9891
  %s9897 = scalar_lea.vmem %s1, 1649
  %9898 = vst.msk [vmem:[%s9897] ss:$450 sm:$0x30] %vm9892, %v9891
  %s9899 = scalar_lea.vmem %s1, 49
  %9900 = vst.msk [vmem:[%s9899] ss:$450 sm:$0xc0] %vm9892, %v9891
  %s9901 = scalar_lea.vmem %s0, 86
  %v9902 = vld.sshfl [vmem:[%s9901] sm:$0xff pattern:$0xddd4b290]
  %s9903 = scalar_lea.vmem %s0, 22
  %s9904 = smov 192
  %v9905 = vld [vmem:[%s9903] ss:$9 sm:%s9904]
  %vm9906 = vcmask 1047558
  %v9907 = vsel %vm9906, %v9905, %v9902
  %9908 = vrot.lane.b32.xlu0 %v9907, 30
  %v9909 = vpop.permute.xlu0 %9908
  %vm9910 = vcmask 15360
  %s9911 = scalar_lea.vmem %s1, 4049
  %9912 = vst.msk [vmem:[%s9911] ss:$450 sm:$0x3] %vm9910, %v9909
  %s9913 = scalar_lea.vmem %s1, 3249
  %9914 = vst.msk [vmem:[%s9913] ss:$450 sm:$0xc] %vm9910, %v9909
  %s9915 = scalar_lea.vmem %s1, 2449
  %9916 = vst.msk [vmem:[%s9915] ss:$450 sm:$0x30] %vm9910, %v9909
  %s9917 = scalar_lea.vmem %s1, 849
  %9918 = vst.msk [vmem:[%s9917] ss:$450 sm:$0xc0] %vm9910, %v9909
  %s9919 = scalar_lea.vmem %s0, 92
  %v9920 = vld.sshfl [vmem:[%s9919] sm:$0xff pattern:$0x999990ca]
  %9921 = vrot.lane.b32.xlu0 %v9920, 30
  %v9922 = vpop.permute.xlu0 %9921
  %vm9923 = vcmask 15360
  %s9924 = scalar_lea.vmem %s1, 4849
  %9925 = vst.msk [vmem:[%s9924] ss:$100 sm:$0x3] %vm9923, %v9922
  %s9926 = scalar_lea.vmem %s1, 3449
  %9927 = vst.msk [vmem:[%s9926] ss:$450 sm:$0xc] %vm9923, %v9922

// kernel: self_attention_t_forward.1
$region0: #{self_attention_t_forward.1}
  #allocation0 [shape = 'u32[]', space=smem, size = 0x4, offset = 0x4, fixed_abs, tag = 'smem constant byte address 0x4 - core index']
  #allocation1 [shape = 'u32[144,128]{1,0:T(1,128)}', space=vmem, size = 0x12000, scoped, tag = 'internal scratch']
  %s0 = inlined_call_operand.vmem [shape: f32[2,64,64], index: 0, kind: input, shape index: {}]
  %s1 = inlined_call_operand.vmem [shape: f32[2,1,64], index: 1, kind: input, shape index: {}]
  %s2 = inlined_call_operand.vmem [shape: f32[64,64], index: 2, kind: input, shape index: {}]
  %s3 = inlined_call_operand.vmem [shape: f32[64,128], index: 3, kind: input, shape index: {}]
  %s4 = inlined_call_operand.vmem [shape: f32[2,64,128], index: 4, kind: output, shape index: {}]
  %s5 = sld [smem:[#allocation0]]
  $region49: #{self_attention_t_forward.1} parent=0
    _
  %s7 = ssub.s32 1, %s5
  %s8 = scalar_select 0, %s7, %s5
  loop: start=0, step=1, limit=4
  $region2: #{self_attention_t_forward.1} parent=0 // loop_pre_header
    _
  $region3: #{self_attention_t_forward.1} parent=0 // loop_header
    %s10 = sphi 0, %s14
    %p11 = scmp.ge.s32.totalorder %s10, 4
    %s20 = sphi 0, %s22
    %s23 = sphi 0, %s20
    %s24 = sphi 0, %s23
    %s40 = sphi 0, %s24
    %s46 = sphi 0, %s48
    %s49 = sphi 0, %s46
    %s50 = sphi 0, %s49
    %s66 = sphi 0, %s50
    %s70 = sphi 0, %s70
    %s72 = sphi 0, %s70
    %s73 = sphi 0, %s72
    %s87 = sphi 0, %s73
    %s91 = sphi 0, %s91
    %s93 = sphi 0, %s91
    %s94 = sphi 0, %s93
    %s108 = sphi 0, %s94
    %s114 = sphi 0, %s116
    %s117 = sphi 0, %s114
    %s118 = sphi 0, %s117
    %s134 = sphi 0, %s118
  $region4: #{self_attention_t_forward.1} parent=0 // loop_header_branch
    %13 = sbr.rel (%p11) target = $region8
  $region5: #{self_attention_t_forward.1} parent=0 // loop_body
    %s15 = ssub.s32 %s10, 1
    %s16 = ssub.s32 %s10, 2
    %s17 = sadd.s32 %s10, 1
    %s18 = ssub.s32 %s10, %s17
    %p19 = scmp.eq.s32.totalorder %s18, 0
    %s21 = sadd.s32 %s20, 1
    %s22 = scalar_select %p19, %s20, %s21
    %p25 = pneg %p19
    %p26 = scmp.eq.s32.totalorder %s10, 1
    %p27 = por %p25, %p26
    %p28 = scmp.ne.s32.totalorder %s20, %s23
    %p29 = scmp.eq.s32.totalorder %s10, 0
    %p30 = por %p28, %p29
    %p31 = scmp.ne.s32.totalorder %s20, %s23
    %p32 = scmp.eq.s32.totalorder %s15, 1
    %p33 = por %p31, %p32
    %p34 = scmp.ne.s32.totalorder %s23, %s24
    %p35 = scmp.eq.s32.totalorder %s15, 0
    %p36 = por %p34, %p35
    %p37 = scmp.ne.s32.totalorder %s23, %s24
    %p38 = scmp.eq.s32.totalorder %s16, 1
    %p39 = por %p37, %p38
    %p41 = scmp.ne.s32.totalorder %s24, %s40
    %p42 = scmp.eq.s32.totalorder %s16, 0
    %p43 = por %p41, %p42
    %s44 = ssub.s32 %s10, %s17
    %p45 = scmp.eq.s32.totalorder %s44, 0
    %s47 = sadd.s32 %s46, 1
    %s48 = scalar_select %p45, %s46, %s47
    %p51 = pneg %p45
    %p52 = scmp.eq.s32.totalorder %s10, 1
    %p53 = por %p51, %p52
    %p54 = scmp.ne.s32.totalorder %s46, %s49
    %p55 = scmp.eq.s32.totalorder %s10, 0
    %p56 = por %p54, %p55
    %p57 = scmp.ne.s32.totalorder %s46, %s49
    %p58 = scmp.eq.s32.totalorder %s15, 1
    %p59 = por %p57, %p58
    %p60 = scmp.ne.s32.totalorder %s49, %s50
    %p61 = scmp.eq.s32.totalorder %s15, 0
    %p62 = por %p60, %p61
    %p63 = scmp.ne.s32.totalorder %s49, %s50
    %p64 = scmp.eq.s32.totalorder %s16, 1
    %p65 = por %p63, %p64
    %p67 = scmp.ne.s32.totalorder %s50, %s66
    %p68 = scmp.eq.s32.totalorder %s16, 0
    %p69 = por %p67, %p68
    %s71 = sadd.s32 %s70, 1
    %p74 = scmp.eq.s32.totalorder %s10, 1
    %p75 = scmp.ne.s32.totalorder %s70, %s72
    %p76 = scmp.eq.s32.totalorder %s10, 0
    %p77 = por %p75, %p76
    %p78 = scmp.ne.s32.totalorder %s70, %s72
    %p79 = scmp.eq.s32.totalorder %s15, 1
    %p80 = por %p78, %p79
    %p81 = scmp.ne.s32.totalorder %s72, %s73
    %p82 = scmp.eq.s32.totalorder %s15, 0
    %p83 = por %p81, %p82
    %p84 = scmp.ne.s32.totalorder %s72, %s73
    %p85 = scmp.eq.s32.totalorder %s16, 1
    %p86 = por %p84, %p85
    %p88 = scmp.ne.s32.totalorder %s73, %s87
    %p89 = scmp.eq.s32.totalorder %s16, 0
    %p90 = por %p88, %p89
    %s92 = sadd.s32 %s91, 1
    %p95 = scmp.eq.s32.totalorder %s10, 1
    %p96 = scmp.ne.s32.totalorder %s91, %s93
    %p97 = scmp.eq.s32.totalorder %s10, 0
    %p98 = por %p96, %p97
    %p99 = scmp.ne.s32.totalorder %s91, %s93
    %p100 = scmp.eq.s32.totalorder %s15, 1
    %p101 = por %p99, %p100
    %p102 = scmp.ne.s32.totalorder %s93, %s94
    %p103 = scmp.eq.s32.totalorder %s15, 0
    %p104 = por %p102, %p103
    %p105 = scmp.ne.s32.totalorder %s93, %s94
    %p106 = scmp.eq.s32.totalorder %s16, 1
    %p107 = por %p105, %p106
    %p109 = scmp.ne.s32.totalorder %s94, %s108
    %p110 = scmp.eq.s32.totalorder %s16, 0
    %p111 = por %p109, %p110
    %s112 = ssub.s32 %s10, %s17
    %p113 = scmp.eq.s32.totalorder %s112, 0
    %s115 = sadd.s32 %s114, 1
    %s116 = scalar_select %p113, %s114, %s115
    %p119 = pneg %p113
    %p120 = scmp.eq.s32.totalorder %s10, 1
    %p121 = por %p119, %p120
    %p122 = scmp.ne.s32.totalorder %s114, %s117
    %p123 = scmp.eq.s32.totalorder %s10, 0
    %p124 = por %p122, %p123
    %p125 = scmp.ne.s32.totalorder %s114, %s117
    %p126 = scmp.eq.s32.totalorder %s15, 1
    %p127 = por %p125, %p126
    %p128 = scmp.ne.s32.totalorder %s117, %s118
    %p129 = scmp.eq.s32.totalorder %s15, 0
    %p130 = por %p128, %p129
    %p131 = scmp.ne.s32.totalorder %s117, %s118
    %p132 = scmp.eq.s32.totalorder %s16, 1
    %p133 = por %p131, %p132
    %p135 = scmp.ne.s32.totalorder %s118, %s134
    %p136 = scmp.eq.s32.totalorder %s16, 0
    %p137 = por %p135, %p136
    %p138 = scmp.le.s32.totalorder 1, %s10
    %p139 = scmp.lt.s32.totalorder %s10, 3
    %p140 = pnand %p138, %p139
    %p141 = pneg %p140
    // Predicated region
    $region9: #{self_attention_t_forward.1} parent=5 // pred_check
      _
    $region10: #{self_attention_t_forward.1} parent=5 // pred_check_branch
      %143 = sbr.rel (%p140) target = $region12
    $region11: #{self_attention_t_forward.1} parent=5 // pred_region
      %s144 = ssub.s32 %s10, 1
      // Predicated region
      $region13: #{self_attention_t_forward.1} parent=11 // pred_check
        %p145 = pneg %p83
      $region14: #{self_attention_t_forward.1} parent=11 // pred_check_branch
        %147 = sbr.rel (%p145) target = $region16
      $region15: #{self_attention_t_forward.1} parent=11 // pred_region
        _
      $region16: #{self_attention_t_forward.1} parent=11 // pred_fallthru
        _
      // Predicated region
      $region17: #{self_attention_t_forward.1} parent=11 // pred_check
        %p148 = pneg %p104
      $region18: #{self_attention_t_forward.1} parent=11 // pred_check_branch
        %150 = sbr.rel (%p148) target = $region20
      $region19: #{self_attention_t_forward.1} parent=11 // pred_region
        _
      $region20: #{self_attention_t_forward.1} parent=11 // pred_fallthru
        _
    $region12: #{self_attention_t_forward.1} parent=5 // pred_fallthru
      _
    %p151 = scmp.lt.s32.totalorder %s10, 2
    // Predicated region
    $region21: #{self_attention_t_forward.1} parent=5 // pred_check
      %p152 = pneg %p151
    $region22: #{self_attention_t_forward.1} parent=5 // pred_check_branch
      %154 = sbr.rel (%p152) target = $region24
    $region23: #{self_attention_t_forward.1} parent=5 // pred_region
      // Predicated region
      $region25: #{self_attention_t_forward.1} parent=23 // pred_check
        %p155 = pneg %p30
      $region26: #{self_attention_t_forward.1} parent=23 // pred_check_branch
        %157 = sbr.rel (%p155) target = $region28
      $region27: #{self_attention_t_forward.1} parent=23 // pred_region
        %p158 = scmp.lt.s32.totalorder %s10, 1
        %s159 = scalar_select %p158, %s10, 1
        %s160 = smul.addr %s159, 8
        %s161 = smul.addr %s160, 8
        %s162 = scalar_lea.vmem %s0, %s161
      $region28: #{self_attention_t_forward.1} parent=23 // pred_fallthru
        _
      // Predicated region
      $region29: #{self_attention_t_forward.1} parent=23 // pred_check
        %p163 = pneg %p56
      $region30: #{self_attention_t_forward.1} parent=23 // pred_check_branch
        %165 = sbr.rel (%p163) target = $region32
      $region31: #{self_attention_t_forward.1} parent=23 // pred_region
        %p166 = scmp.lt.s32.totalorder %s10, 1
        %s167 = scalar_select %p166, %s10, 1
        %s168 = scalar_lea.vmem %s1, %s167
      $region32: #{self_attention_t_forward.1} parent=23 // pred_fallthru
        _
    $region24: #{self_attention_t_forward.1} parent=5 // pred_fallthru
      _
    %p169 = scmp.le.s32.totalorder 1, %s10
    %p170 = scmp.lt.s32.totalorder %s10, 3
    %p171 = pnand %p169, %p170
    %p172 = pneg %p171
    // Predicated region
    $region33: #{self_attention_t_forward.1} parent=5 // pred_check
      _
    $region34: #{self_attention_t_forward.1} parent=5 // pred_check_branch
      %174 = sbr.rel (%p171) target = $region36
    $region35: #{self_attention_t_forward.1} parent=5 // pred_region
      %s175 = ssub.s32 %s10, 1
      %p176 = scmp.lt.s32.totalorder %s15, 1
      %s177 = scalar_select %p176, %s15, 1
      %s178 = smul.addr %s177, 8
      %s179 = smul.addr %s178, 8
      %s180 = scalar_lea.vmem %s0, %s179
      %p181 = pneg %p36
      %p182 = pneg %p33
      %p183 = scmp.lt.s32.totalorder %s15, 1
      %s184 = scalar_select %p183, %s15, 1
      %s185 = scalar_lea.vmem %s1, %s184
      %p186 = pneg %p62
      %p187 = pneg %p59
      %p188 = pneg %p83
      %p189 = pneg %p80
      %p190 = pneg %p104
      %p191 = pneg %p101
      %p192 = pneg %p130
      %p193 = pneg %p127
      %p194 = scmp.lt.s32.totalorder %s15, 1
      %s195 = scalar_select %p194, %s15, 1
      %s196 = smul.addr %s195, 8
      %s197 = smul.addr %s196, 8
      %s198 = scalar_lea.vmem %s4, %s197
      %p199 = scmp.lt.s32.totalorder %s15, 1
      %s200 = scalar_select %p199, %s15, 1
      %s201 = smul.addr %s200, 8
      %s202 = smul.addr %s201, 8
      %s203 = scalar_lea.vmem %s0, %s202
      %p204 = scmp.lt.s32.totalorder %s15, 1
      %s205 = scalar_select %p204, %s15, 1
      %s206 = scalar_lea.vmem %s1, %s205
      %p207 = scmp.lt.s32.totalorder %s15, 1
      %s208 = scalar_select %p207, %s15, 1
      %s209 = smul.addr %s208, 8
      %s210 = smul.addr %s209, 8
      %s211 = scalar_lea.vmem %s4, %s210
      %v212 = vld [vmem:[%s203] sm:$0xff]
      %v213 = vld [vmem:[%s203 + $0x8] sm:$0xff]
      %v214 = vld [vmem:[%s203 + $0x10] sm:$0xff]
      %v215 = vld [vmem:[%s203 + $0x18] sm:$0xff]
      %v216 = vld [vmem:[%s203 + $0x20] sm:$0xff]
      %v217 = vld [vmem:[%s203 + $0x28] sm:$0xff]
      %v218 = vld [vmem:[%s203 + $0x30] sm:$0xff]
      %v219 = vld [vmem:[%s203 + $0x38] sm:$0xff]
      %v220 = vld [vmem:[%s2] sm:$0xff]
      %v221 = vld [vmem:[%s2 + $0x8] sm:$0xff]
      %v222 = vld [vmem:[%s2 + $0x10] sm:$0xff]
      %v223 = vld [vmem:[%s2 + $0x18] sm:$0xff]
      %v224 = vld [vmem:[%s2 + $0x20] sm:$0xff]
      %v225 = vld [vmem:[%s2 + $0x28] sm:$0xff]
      %v226 = vld [vmem:[%s2 + $0x30] sm:$0xff]
      %v227 = vld [vmem:[%s2 + $0x38] sm:$0xff]
      %v228 = vld [vmem:[%s206] sm:$0x1]
      %v230 = vlaneseq
      %v231 = vshrl.u32 %v230, 7
      %v232 = vsub.s32 0, %v231
      %v233 = vrot.slane %v228, %v232
      %vm235 = vcmask 523264
      %v237 = vsel %vm235, %v212, 0
      %v240 = vsel %vm235, %v213, 0
      %v243 = vsel %vm235, %v214, 0
      %v246 = vsel %vm235, %v215, 0
      %v249 = vsel %vm235, %v216, 0
      %v252 = vsel %vm235, %v217, 0
      %v255 = vsel %vm235, %v218, 0
      %v258 = vsel %vm235, %v219, 0
      %260 = vmatprep.subr.mxu0 0.0
      %261 = vmatpush1.msra.mxu0 %v220
      %262 = vmatprep.subr.mxu0 0.0
      %263 = vmatpush1.msra.mxu0 %v221
      %264 = vmatprep.subr.mxu0 0.0
      %265 = vmatpush1.msra.mxu0 %v222
      %266 = vmatprep.subr.mxu0 0.0
      %267 = vmatpush1.msra.mxu0 %v223
      %268 = vmatprep.subr.mxu0 0.0
      %269 = vmatpush1.msra.mxu0 %v224
      %270 = vmatprep.subr.mxu0 0.0
      %271 = vmatpush1.msra.mxu0 %v225
      %272 = vmatprep.subr.mxu0 0.0
      %273 = vmatpush1.msra.mxu0 %v226
      %274 = vmatprep.subr.mxu0 0.0
      %275 = vmatpush1.msra.mxu0 %v227
      %276 = vmatprep.subr.mxu0 0.0
      %277 = vmatpush1.msra.mxu0 0.0
      %278 = vmatprep.subr.mxu0 0.0
      %279 = vmatpush1.msra.mxu0 0.0
      %280 = vmatprep.subr.mxu0 0.0
      %281 = vmatpush1.msra.mxu0 0.0
      %282 = vmatprep.subr.mxu0 0.0
      %283 = vmatpush1.msra.mxu0 0.0
      %284 = vmatprep.subr.mxu0 0.0
      %285 = vmatpush1.msra.mxu0 0.0
      %286 = vmatprep.subr.mxu0 0.0
      %287 = vmatpush1.msra.mxu0 0.0
      %288 = vmatprep.subr.mxu0 0.0
      %289 = vmatpush1.msra.mxu0 0.0
      %290 = vmatprep.subr.mxu0 0.0
      %291 = vmatpush1.msra.mxu0 0.0
      %292 = vmatprep.subr.mxu0 0.0
      %293 = vmatpush1.msra.mxu0 0.0
      %294 = vmatprep.subr.mxu0 0.0
      %295 = vmatpush1.msra.mxu0 0.0
      %296 = vmatprep.subr.mxu0 0.0
      %297 = vmatpush1.msra.mxu0 0.0
      %298 = vmatprep.subr.mxu0 0.0
      %299 = vmatpush1.msra.mxu0 0.0
      %300 = vmatprep.subr.mxu0 0.0
      %301 = vmatpush1.msra.mxu0 0.0
      %302 = vmatprep.subr.mxu0 0.0
      %303 = vmatpush1.msra.mxu0 0.0
      %304 = vmatprep.subr.mxu0 0.0
      %305 = vmatpush1.msra.mxu0 0.0
      %306 = vmatprep.subr.mxu0 0.0
      %307 = vmatpush1.msra.mxu0 0.0
      %308 = vmatprep.subr.mxu0 0.0
      %309 = vmatpush1.msra.mxu0 0.0
      %310 = vmatprep.subr.mxu0 0.0
      %311 = vmatpush1.msra.mxu0 0.0
      %312 = vmatprep.subr.mxu0 0.0
      %313 = vmatpush1.msra.mxu0 0.0
      %314 = vmatprep.subr.mxu0 0.0
      %315 = vmatpush1.msra.mxu0 0.0
      %316 = vmatprep.subr.mxu0 0.0
      %317 = vmatpush1.msra.mxu0 0.0
      %318 = vmatprep.subr.mxu0 0.0
      %319 = vmatpush1.msra.mxu0 0.0
      %320 = vmatprep.subr.mxu0 0.0
      %321 = vmatpush1.msra.mxu0 0.0
      %322 = vmatprep.subr.mxu0 0.0
      %323 = vmatpush1.msra.mxu0 0.0
      %324 = vmatprep.mubr.f32.mxu0 0.0
      %325 = vmatmul.mubr.f32.gmra.mrb[0].mxu0 %v237
      %v326 = vpop.f32.mrb[0].mxu0
      %v327 = vadd.f32 %v233, %v326
      %v328 = vpop.f32.mrb[0].mxu0
      %329 = vmatprep.mubr.f32.mxu0 0.0
      %330 = vmatmul.mubr.f32.gmra.mrb[0].mxu0 %v240
      %v331 = vpop.f32.mrb[0].mxu0
      %v332 = vadd.f32 %v233, %v331
      %v333 = vpop.f32.mrb[0].mxu0
      %334 = vmatprep.mubr.f32.mxu0 0.0
      %335 = vmatmul.mubr.f32.gmra.mrb[0].mxu0 %v243
      %v336 = vpop.f32.mrb[0].mxu0
      %v337 = vadd.f32 %v233, %v336
      %v338 = vpop.f32.mrb[0].mxu0
      %339 = vmatprep.mubr.f32.mxu0 0.0
      %340 = vmatmul.mubr.f32.gmra.mrb[0].mxu0 %v246
      %v341 = vpop.f32.mrb[0].mxu0
      %v342 = vadd.f32 %v233, %v341
      %v343 = vpop.f32.mrb[0].mxu0
      %344 = vmatprep.mubr.f32.mxu0 0.0
      %345 = vmatmul.mubr.f32.gmra.mrb[0].mxu0 %v249
      %v346 = vpop.f32.mrb[0].mxu0
      %v347 = vadd.f32 %v233, %v346
      %v348 = vpop.f32.mrb[0].mxu0
      %349 = vmatprep.mubr.f32.mxu0 0.0
      %350 = vmatmul.mubr.f32.gmra.mrb[0].mxu0 %v252
      %v351 = vpop.f32.mrb[0].mxu0
      %v352 = vadd.f32 %v233, %v351
      %v353 = vpop.f32.mrb[0].mxu0
      %354 = vmatprep.mubr.f32.mxu0 0.0
      %355 = vmatmul.mubr.f32.gmra.mrb[0].mxu0 %v255
      %v356 = vpop.f32.mrb[0].mxu0
      %v357 = vadd.f32 %v233, %v356
      %v358 = vpop.f32.mrb[0].mxu0
      %359 = vmatprep.mubr.f32.mxu0 0.0
      %360 = vmatmul.mubr.f32.gmra.mrb[0].mxu0 %v258
      %v361 = vpop.f32.mrb[0].mxu0
      %v362 = vadd.f32 %v233, %v361
      %v363 = vpop.f32.mrb[0].mxu0
      %364 = vdwg.mxu0
      %373 = vrot.lane.b32.xlu0 %v327, 96
      %v374 = vpop.permute.xlu0 %373
      %375 = vrot.lane.b32.xlu0 %v332, 96
      %v376 = vpop.permute.xlu0 %375
      %377 = vrot.lane.b32.xlu0 %v337, 96
      %v378 = vpop.permute.xlu0 %377
      %379 = vrot.lane.b32.xlu0 %v342, 96
      %v380 = vpop.permute.xlu0 %379
      %381 = vrot.lane.b32.xlu0 %v347, 96
      %v382 = vpop.permute.xlu0 %381
      %383 = vrot.lane.b32.xlu0 %v352, 96
      %v384 = vpop.permute.xlu0 %383
      %385 = vrot.lane.b32.xlu0 %v357, 96
      %v386 = vpop.permute.xlu0 %385
      %387 = vrot.lane.b32.xlu0 %v362, 96
      %v388 = vpop.permute.xlu0 %387
      %vm389 = vcmask 261120
      %v390 = vsel %vm389, %v327, 0
      %v392 = vsel %vm389, %v332, 0
      %v394 = vsel %vm389, %v337, 0
      %v396 = vsel %vm389, %v342, 0
      %v398 = vsel %vm389, %v347, 0
      %v400 = vsel %vm389, %v352, 0
      %v402 = vsel %vm389, %v357, 0
      %v404 = vsel %vm389, %v362, 0
      %v406 = vsel %vm389, %v374, 0
      %v408 = vsel %vm389, %v376, 0
      %v410 = vsel %vm389, %v378, 0
      %v412 = vsel %vm389, %v380, 0
      %v414 = vsel %vm389, %v382, 0
      %v416 = vsel %vm389, %v384, 0
      %v418 = vsel %vm389, %v386, 0
      %v420 = vsel %vm389, %v388, 0
      %422 = vmatprep.subr.mxu0 0.0
      %423 = vmatpush1.xpose.msra.mxu0 %v406
      %424 = vmatprep.subr.mxu0 0.0
      %425 = vmatpush1.xpose.msra.mxu0 %v408
      %426 = vmatprep.subr.mxu0 0.0
      %427 = vmatpush1.xpose.msra.mxu0 %v410
      %428 = vmatprep.subr.mxu0 0.0
      %429 = vmatpush1.xpose.msra.mxu0 %v412
      %430 = vmatprep.subr.mxu0 0.0
      %431 = vmatpush1.xpose.msra.mxu0 %v414
      %432 = vmatprep.subr.mxu0 0.0
      %433 = vmatpush1.xpose.msra.mxu0 %v416
      %434 = vmatprep.subr.mxu0 0.0
      %435 = vmatpush1.xpose.msra.mxu0 %v418
      %436 = vmatprep.subr.mxu0 0.0
      %437 = vmatpush1.xpose.msra.mxu0 %v420
      %438 = vmatprep.subr.mxu0 0.0
      %439 = vmatpush1.xpose.msra.mxu0 0.0
      %440 = vmatprep.subr.mxu0 0.0
      %441 = vmatpush1.xpose.msra.mxu0 0.0
      %442 = vmatprep.subr.mxu0 0.0
      %443 = vmatpush1.xpose.msra.mxu0 0.0
      %444 = vmatprep.subr.mxu0 0.0
      %445 = vmatpush1.xpose.msra.mxu0 0.0
      %446 = vmatprep.subr.mxu0 0.0
      %447 = vmatpush1.xpose.msra.mxu0 0.0
      %448 = vmatprep.subr.mxu0 0.0
      %449 = vmatpush1.xpose.msra.mxu0 0.0
      %450 = vmatprep.subr.mxu0 0.0
      %451 = vmatpush1.xpose.msra.mxu0 0.0
      %452 = vmatprep.subr.mxu0 0.0
      %453 = vmatpush1.xpose.msra.mxu0 0.0
      %454 = vmatprep.subr.mxu0 0.0
      %455 = vmatpush1.xpose.msra.mxu0 0.0
      %456 = vmatprep.subr.mxu0 0.0
      %457 = vmatpush1.xpose.msra.mxu0 0.0
      %458 = vmatprep.subr.mxu0 0.0
      %459 = vmatpush1.xpose.msra.mxu0 0.0
      %460 = vmatprep.subr.mxu0 0.0
      %461 = vmatpush1.xpose.msra.mxu0 0.0
      %462 = vmatprep.subr.mxu0 0.0
      %463 = vmatpush1.xpose.msra.mxu0 0.0
      %464 = vmatprep.subr.mxu0 0.0
      %465 = vmatpush1.xpose.msra.mxu0 0.0
      %466 = vmatprep.subr.mxu0 0.0
      %467 = vmatpush1.xpose.msra.mxu0 0.0
      %468 = vmatprep.subr.mxu0 0.0
      %469 = vmatpush1.xpose.msra.mxu0 0.0
      %470 = vmatprep.subr.mxu0 0.0
      %471 = vmatpush1.xpose.msra.mxu0 0.0
      %472 = vmatprep.subr.mxu0 0.0
      %473 = vmatpush1.xpose.msra.mxu0 0.0
      %474 = vmatprep.subr.mxu0 0.0
      %475 = vmatpush1.xpose.msra.mxu0 0.0
      %476 = vmatprep.subr.mxu0 0.0
      %477 = vmatpush1.xpose.msra.mxu0 0.0
      %478 = vmatprep.subr.mxu0 0.0
      %479 = vmatpush1.xpose.msra.mxu0 0.0
      %480 = vmatprep.subr.mxu0 0.0
      %481 = vmatpush1.xpose.msra.mxu0 0.0
      %482 = vmatprep.subr.mxu0 0.0
      %483 = vmatpush1.xpose.msra.mxu0 0.0
      %484 = vmatprep.subr.mxu0 0.0
      %485 = vmatpush1.xpose.msra.mxu0 0.0
      %486 = vmatprep.mubr.f32.mxu0 0.0
      %487 = vmatmul.mubr.f32.gmra.mrb[0].mxu0 %v390
      %v488 = vpop.f32.mrb[0].mxu0
      %v489 = vadd.f32 0.0, %v488
      %v490 = vpop.f32.mrb[0].mxu0
      %491 = vmatprep.mubr.f32.mxu0 0.0
      %492 = vmatmul.mubr.f32.gmra.mrb[0].mxu0 %v392
      %v493 = vpop.f32.mrb[0].mxu0
      %v494 = vadd.f32 0.0, %v493
      %v495 = vpop.f32.mrb[0].mxu0
      %496 = vmatprep.mubr.f32.mxu0 0.0
      %497 = vmatmul.mubr.f32.gmra.mrb[0].mxu0 %v394
      %v498 = vpop.f32.mrb[0].mxu0
      %v499 = vadd.f32 0.0, %v498
      %v500 = vpop.f32.mrb[0].mxu0
      %501 = vmatprep.mubr.f32.mxu0 0.0
      %502 = vmatmul.mubr.f32.gmra.mrb[0].mxu0 %v396
      %v503 = vpop.f32.mrb[0].mxu0
      %v504 = vadd.f32 0.0, %v503
      %v505 = vpop.f32.mrb[0].mxu0
      %506 = vmatprep.mubr.f32.mxu0 0.0
      %507 = vmatmul.mubr.f32.gmra.mrb[0].mxu0 %v398
      %v508 = vpop.f32.mrb[0].mxu0
      %v509 = vadd.f32 0.0, %v508
      %v510 = vpop.f32.mrb[0].mxu0
      %511 = vmatprep.mubr.f32.mxu0 0.0
      %512 = vmatmul.mubr.f32.gmra.mrb[0].mxu0 %v400
      %v513 = vpop.f32.mrb[0].mxu0
      %v514 = vadd.f32 0.0, %v513
      %v515 = vpop.f32.mrb[0].mxu0
      %516 = vmatprep.mubr.f32.mxu0 0.0
      %517 = vmatmul.mubr.f32.gmra.mrb[0].mxu0 %v402
      %v518 = vpop.f32.mrb[0].mxu0
      %v519 = vadd.f32 0.0, %v518
      %v520 = vpop.f32.mrb[0].mxu0
      %521 = vmatprep.mubr.f32.mxu0 0.0
      %522 = vmatmul.mubr.f32.gmra.mrb[0].mxu0 %v404
      %v523 = vpop.f32.mrb[0].mxu0
      %v524 = vadd.f32 0.0, %v523
      %v525 = vpop.f32.mrb[0].mxu0
      %526 = vdwg.mxu0
      %v527 = vlaneseq
      %v528 = vand.u32 %v527, 127
      %vm529 = vcmp.lt.s32.totalorder %v528, 50
      %v530 = vsel %vm529, %v489, -1e+30
      %v531 = vsel %vm529, %v494, -1e+30
      %v532 = vsel %vm529, %v499, -1e+30
      %v533 = vsel %vm529, %v504, -1e+30
      %v534 = vsel %vm529, %v509, -1e+30
      %v535 = vsel %vm529, %v514, -1e+30
      %v536 = vsel %vm529, %v519, -1e+30
      %v537 = vsel %vm529, %v524, -1e+30
      %v538 = vsel %vm235, %v530, -inf
      %539 = vmax.xlane.f32.xlu0 %v538
      %v540 = vpop.xlane.xlu0 %539
      %v541 = vsel %vm235, %v531, -inf
      %542 = vmax.xlane.f32.xlu0 %v541
      %v543 = vpop.xlane.xlu0 %542
      %v544 = vsel %vm235, %v532, -inf
      %545 = vmax.xlane.f32.xlu0 %v544
      %v546 = vpop.xlane.xlu0 %545
      %v547 = vsel %vm235, %v533, -inf
      %548 = vmax.xlane.f32.xlu0 %v547
      %v549 = vpop.xlane.xlu0 %548
      %v550 = vsel %vm235, %v534, -inf
      %551 = vmax.xlane.f32.xlu0 %v550
      %v552 = vpop.xlane.xlu0 %551
      %v553 = vsel %vm235, %v535, -inf
      %554 = vmax.xlane.f32.xlu0 %v553
      %v555 = vpop.xlane.xlu0 %554
      %v556 = vsel %vm235, %v536, -inf
      %557 = vmax.xlane.f32.xlu0 %v556
      %v558 = vpop.xlane.xlu0 %557
      %v559 = vsel %vm235, %v537, -inf
      %560 = vmax.xlane.f32.xlu0 %v559
      %v561 = vpop.xlane.xlu0 %560
      %v562 = vsub.f32 %v530, %v540
      %v563 = vsub.f32 %v531, %v543
      %v564 = vsub.f32 %v532, %v546
      %v565 = vsub.f32 %v533, %v549
      %v566 = vsub.f32 %v534, %v552
      %v567 = vsub.f32 %v535, %v555
      %v568 = vsub.f32 %v536, %v558
      %v569 = vsub.f32 %v537, %v561
      %v570 = vmul.f32 %v562, 1.442695
      %v571 = vpow.pop %v570
      %v572 = vmul.f32 %v563, 1.442695
      %v573 = vpow.pop %v572
      %v574 = vmul.f32 %v564, 1.442695
      %v575 = vpow.pop %v574
      %v576 = vmul.f32 %v565, 1.442695
      %v577 = vpow.pop %v576
      %v578 = vmul.f32 %v566, 1.442695
      %v579 = vpow.pop %v578
      %v580 = vmul.f32 %v567, 1.442695
      %v581 = vpow.pop %v580
      %v582 = vmul.f32 %v568, 1.442695
      %v583 = vpow.pop %v582
      %v584 = vmul.f32 %v569, 1.442695
      %v585 = vpow.pop %v584
      %v586 = vsel %vm235, %v571, 0.0
      %587 = vadd.xlane.f32.xlu0 %v586
      %v588 = vpop.xlane.xlu0 %587
      %v589 = vsel %vm235, %v573, 0.0
      %590 = vadd.xlane.f32.xlu0 %v589
      %v591 = vpop.xlane.xlu0 %590
      %v592 = vsel %vm235, %v575, 0.0
      %593 = vadd.xlane.f32.xlu0 %v592
      %v594 = vpop.xlane.xlu0 %593
      %v595 = vsel %vm235, %v577, 0.0
      %596 = vadd.xlane.f32.xlu0 %v595
      %v597 = vpop.xlane.xlu0 %596
      %v598 = vsel %vm235, %v579, 0.0
      %599 = vadd.xlane.f32.xlu0 %v598
      %v600 = vpop.xlane.xlu0 %599
      %v601 = vsel %vm235, %v581, 0.0
      %602 = vadd.xlane.f32.xlu0 %v601
      %v603 = vpop.xlane.xlu0 %602
      %v604 = vsel %vm235, %v583, 0.0
      %605 = vadd.xlane.f32.xlu0 %v604
      %v606 = vpop.xlane.xlu0 %605
      %v607 = vsel %vm235, %v585, 0.0
      %608 = vadd.xlane.f32.xlu0 %v607
      %v609 = vpop.xlane.xlu0 %608
      %v610 = vrcp.pop %v588
      %v611 = vmul.f32 %v571, %v610
      %v612 = vrcp.pop %v591
      %v613 = vmul.f32 %v573, %v612
      %v614 = vrcp.pop %v594
      %v615 = vmul.f32 %v575, %v614
      %v616 = vrcp.pop %v597
      %v617 = vmul.f32 %v577, %v616
      %v618 = vrcp.pop %v600
      %v619 = vmul.f32 %v579, %v618
      %v620 = vrcp.pop %v603
      %v621 = vmul.f32 %v581, %v620
      %v622 = vrcp.pop %v606
      %v623 = vmul.f32 %v583, %v622
      %v624 = vrcp.pop %v609
      %v625 = vmul.f32 %v585, %v624
      %v626 = vld [vmem:[%s3] sm:$0xff]
      %v627 = vld [vmem:[%s3 + $0x8] sm:$0xff]
      %v628 = vld [vmem:[%s3 + $0x10] sm:$0xff]
      %v629 = vld [vmem:[%s3 + $0x18] sm:$0xff]
      %v630 = vld [vmem:[%s3 + $0x20] sm:$0xff]
      %v631 = vld [vmem:[%s3 + $0x28] sm:$0xff]
      %v632 = vld [vmem:[%s3 + $0x30] sm:$0xff]
      %v633 = vld [vmem:[%s3 + $0x38] sm:$0xff]
      %v635 = vsel %vm235, %v611, 0
      %v638 = vsel %vm235, %v613, 0
      %v641 = vsel %vm235, %v615, 0
      %v644 = vsel %vm235, %v617, 0
      %v647 = vsel %vm235, %v619, 0
      %v650 = vsel %vm235, %v621, 0
      %v653 = vsel %vm235, %v623, 0
      %v656 = vsel %vm235, %v625, 0
      %658 = vmatprep.subr.mxu0 0.0
      %659 = vmatpush1.msra.mxu0 %v626
      %660 = vmatprep.subr.mxu0 0.0
      %661 = vmatpush1.msra.mxu0 %v627
      %662 = vmatprep.subr.mxu0 0.0
      %663 = vmatpush1.msra.mxu0 %v628
      %664 = vmatprep.subr.mxu0 0.0
      %665 = vmatpush1.msra.mxu0 %v629
      %666 = vmatprep.subr.mxu0 0.0
      %667 = vmatpush1.msra.mxu0 %v630
      %668 = vmatprep.subr.mxu0 0.0
      %669 = vmatpush1.msra.mxu0 %v631
      %670 = vmatprep.subr.mxu0 0.0
      %671 = vmatpush1.msra.mxu0 %v632
      %672 = vmatprep.subr.mxu0 0.0
      %673 = vmatpush1.msra.mxu0 %v633
      %674 = vmatprep.subr.mxu0 0.0
      %675 = vmatpush1.msra.mxu0 0.0
      %676 = vmatprep.subr.mxu0 0.0
      %677 = vmatpush1.msra.mxu0 0.0
      %678 = vmatprep.subr.mxu0 0.0
      %679 = vmatpush1.msra.mxu0 0.0
      %680 = vmatprep.subr.mxu0 0.0
      %681 = vmatpush1.msra.mxu0 0.0
      %682 = vmatprep.subr.mxu0 0.0
      %683 = vmatpush1.msra.mxu0 0.0
      %684 = vmatprep.subr.mxu0 0.0
      %685 = vmatpush1.msra.mxu0 0.0
      %686 = vmatprep.subr.mxu0 0.0
      %687 = vmatpush1.msra.mxu0 0.0
      %688 = vmatprep.subr.mxu0 0.0
      %689 = vmatpush1.msra.mxu0 0.0
      %690 = vmatprep.subr.mxu0 0.0
      %691 = vmatpush1.msra.mxu0 0.0
      %692 = vmatprep.subr.mxu0 0.0
      %693 = vmatpush1.msra.mxu0 0.0
      %694 = vmatprep.subr.mxu0 0.0
      %695 = vmatpush1.msra.mxu0 0.0
      %696 = vmatprep.subr.mxu0 0.0
      %697 = vmatpush1.msra.mxu0 0.0
      %698 = vmatprep.subr.mxu0 0.0
      %699 = vmatpush1.msra.mxu0 0.0
      %700 = vmatprep.subr.mxu0 0.0
      %701 = vmatpush1.msra.mxu0 0.0
      %702 = vmatprep.subr.mxu0 0.0
      %703 = vmatpush1.msra.mxu0 0.0
      %704 = vmatprep.subr.mxu0 0.0
      %705 = vmatpush1.msra.mxu0 0.0
      %706 = vmatprep.subr.mxu0 0.0
      %707 = vmatpush1.msra.mxu0 0.0
      %708 = vmatprep.subr.mxu0 0.0
      %709 = vmatpush1.msra.mxu0 0.0
      %710 = vmatprep.subr.mxu0 0.0
      %711 = vmatpush1.msra.mxu0 0.0
      %712 = vmatprep.subr.mxu0 0.0
      %713 = vmatpush1.msra.mxu0 0.0
      %714 = vmatprep.subr.mxu0 0.0
      %715 = vmatpush1.msra.mxu0 0.0
      %716 = vmatprep.subr.mxu0 0.0
      %717 = vmatpush1.msra.mxu0 0.0
      %718 = vmatprep.subr.mxu0 0.0
      %719 = vmatpush1.msra.mxu0 0.0
      %720 = vmatprep.subr.mxu0 0.0
      %721 = vmatpush1.msra.mxu0 0.0
      %722 = vmatprep.mubr.f32.mxu0 0.0
      %723 = vmatmul.mubr.f32.gmra.mrb[0].mxu0 %v635
      %v724 = vpop.f32.mrb[0].mxu0
      %v725 = vadd.f32 0.0, %v724
      %v726 = vpop.f32.mrb[0].mxu0
      %727 = vmatprep.mubr.f32.mxu0 0.0
      %728 = vmatmul.mubr.f32.gmra.mrb[0].mxu0 %v638
      %v729 = vpop.f32.mrb[0].mxu0
      %v730 = vadd.f32 0.0, %v729
      %v731 = vpop.f32.mrb[0].mxu0
      %732 = vmatprep.mubr.f32.mxu0 0.0
      %733 = vmatmul.mubr.f32.gmra.mrb[0].mxu0 %v641
      %v734 = vpop.f32.mrb[0].mxu0
      %v735 = vadd.f32 0.0, %v734
      %v736 = vpop.f32.mrb[0].mxu0
      %737 = vmatprep.mubr.f32.mxu0 0.0
      %738 = vmatmul.mubr.f32.gmra.mrb[0].mxu0 %v644
      %v739 = vpop.f32.mrb[0].mxu0
      %v740 = vadd.f32 0.0, %v739
      %v741 = vpop.f32.mrb[0].mxu0
      %742 = vmatprep.mubr.f32.mxu0 0.0
      %743 = vmatmul.mubr.f32.gmra.mrb[0].mxu0 %v647
      %v744 = vpop.f32.mrb[0].mxu0
      %v745 = vadd.f32 0.0, %v744
      %v746 = vpop.f32.mrb[0].mxu0
      %747 = vmatprep.mubr.f32.mxu0 0.0
      %748 = vmatmul.mubr.f32.gmra.mrb[0].mxu0 %v650
      %v749 = vpop.f32.mrb[0].mxu0
      %v750 = vadd.f32 0.0, %v749
      %v751 = vpop.f32.mrb[0].mxu0
      %752 = vmatprep.mubr.f32.mxu0 0.0
      %753 = vmatmul.mubr.f32.gmra.mrb[0].mxu0 %v653
      %v754 = vpop.f32.mrb[0].mxu0
      %v755 = vadd.f32 0.0, %v754
      %v756 = vpop.f32.mrb[0].mxu0
      %757 = vmatprep.mubr.f32.mxu0 0.0
      %758 = vmatmul.mubr.f32.gmra.mrb[0].mxu0 %v656
      %v759 = vpop.f32.mrb[0].mxu0
      %v760 = vadd.f32 0.0, %v759
      %v761 = vpop.f32.mrb[0].mxu0
      %762 = vdwg.mxu0
      %763 = vst [vmem:[%s211] sm:$0xff] %v725
      %764 = vst [vmem:[%s211 + $0x8] sm:$0xff] %v730
      %765 = vst [vmem:[%s211 + $0x10] sm:$0xff] %v735
      %766 = vst [vmem:[%s211 + $0x18] sm:$0xff] %v740
      %767 = vst [vmem:[%s211 + $0x20] sm:$0xff] %v745
      %768 = vst [vmem:[%s211 + $0x28] sm:$0xff] %v750
      %769 = vst [vmem:[%s211 + $0x30] sm:$0xff] %v755
      %770 = vst [vmem:[%s211 + $0x38] sm:$0xff] %v760
      %p771 = scmp.lt.s32.totalorder %s15, 1
      %s772 = scalar_select %p771, %s15, 1
      %s773 = smul.addr %s772, 8
      %s774 = smul.addr %s773, 8
      %s775 = scalar_lea.vmem %s4, %s774
      // Predicated region
      $region37: #{self_attention_t_forward.1} parent=35 // pred_check
        %p776 = pneg %p127
      $region38: #{self_attention_t_forward.1} parent=35 // pred_check_branch
        %778 = sbr.rel (%p776) target = $region40
      $region39: #{self_attention_t_forward.1} parent=35 // pred_region
        _
      $region40: #{self_attention_t_forward.1} parent=35 // pred_fallthru
        _
    $region36: #{self_attention_t_forward.1} parent=5 // pred_fallthru
      _
    %p779 = scmp.le.s32.totalorder 2, %s10
    // Predicated region
    $region41: #{self_attention_t_forward.1} parent=5 // pred_check
      %p780 = pneg %p779
    $region42: #{self_attention_t_forward.1} parent=5 // pred_check_branch
      %782 = sbr.rel (%p780) target = $region44
    $region43: #{self_attention_t_forward.1} parent=5 // pred_region
      %s783 = ssub.s32 %s10, 2
      // Predicated region
      $region45: #{self_attention_t_forward.1} parent=43 // pred_check
        %p784 = pneg %p133
      $region46: #{self_attention_t_forward.1} parent=43 // pred_check_branch
        %786 = sbr.rel (%p784) target = $region48
      $region47: #{self_attention_t_forward.1} parent=43 // pred_region
        %p787 = scmp.lt.s32.totalorder %s16, 1
        %s788 = scalar_select %p787, %s16, 1
        %s789 = smul.addr %s788, 8
        %s790 = smul.addr %s789, 8
        %s791 = scalar_lea.vmem %s4, %s790
      $region48: #{self_attention_t_forward.1} parent=43 // pred_fallthru
        _
    $region44: #{self_attention_t_forward.1} parent=5 // pred_fallthru
      _
  $region6: #{self_attention_t_forward.1} parent=0 // loop_footer
    %s14 = sadd.s32 1, %s10
  $region7: #{self_attention_t_forward.1} parent=0 // loop_footer_branch
    %9 = sbr.rel target = $region3
  $region8: #{self_attention_t_forward.1} parent=0 // loop_exit
    _

</llo_original>
